<compile_context>
chip_gen: v6e
topology: v6e:2x2x1
jax: 0.10.0
libtpu: 0.0.40
codegen_flags: <defaults>
</compile_context>

<pallas_src>
import functools

import jax
import jax.numpy as jnp
from jax.experimental import pallas as pl
from jax.experimental.pallas import tpu as pltpu

EPS = 1e-3  # ultralytics Conv uses BatchNorm2d(eps=0.001)


def _round_up(v, m):
    return (v + m - 1) // m * m


def _vmem_limit_bytes():
    """Per-generation VMEM limit (~3/4 of physical) instead of a fixed 48 MiB."""
    try:
        cap = getattr(pltpu.get_tpu_info(), "vmem_capacity_bytes", None)
        if cap:
            return int(cap) * 3 // 4
    except Exception:
        pass
    return 48 * 1024 * 1024


# ----------------------------------------------------------------------------
# 3x3 same-padding conv on the padded bf16 VMEM buffer, kw folded into MXU K.
# pbuf layout: data at rows [1, H+1) cols [0, W); rows 0/H+1 and cols [W, Wp8)
# are zero. The circular roll wrap lands on those zero pad columns, which
# reproduces zero 'same' padding exactly (requires Wp8 >= W + 1).
# ----------------------------------------------------------------------------
def _conv3x3_kfold(pbuf, w_ref, H, Wp8, c):
    rows = H * Wp8
    acc = None
    for kh in range(3):
        # One tile-aligned read of the kh row band (Wp8 % 16 == 0 keeps the
        # bf16 reshape free). Rolls are done in f32 (sublane rotation of packed
        # bf16 by an odd shift is not guaranteed to lower); they run on the XLU
        # and overlap the MXU.
        band = pbuf[kh:kh + H, :, :].reshape(rows, c).astype(jnp.float32)
        op = jnp.concatenate(
            [pltpu.roll(band, 1, 0),            # kw = 0 : needs band[r - 1]
             band,                              # kw = 1
             pltpu.roll(band, rows - 1, 0)],    # kw = 2 : needs band[r + 1]
            axis=-1).astype(jnp.bfloat16)       # (rows, 3c) MXU operand
        y = jnp.dot(op, w_ref[kh], preferred_element_type=jnp.float32)
        acc = y if acc is None else acc + y     # accumulate in registers
    return acc                                  # (rows, c) f32


# ----------------------------------------------------------------------------
# Fused C2 kernel (one grid step = one batch item).
# ----------------------------------------------------------------------------
def _c2_kernel(*refs, n_blocks, H, W, c, Wp8, shortcut):
    x_ref, wcv1_ref, bcv1_ref = refs[0], refs[1], refs[2]
    blk = refs[3:3 + 4 * n_blocks]
    wcv2_ref = refs[3 + 4 * n_blocks]
    bcv2_ref = refs[4 + 4 * n_blocks]
    o_ref = refs[5 + 4 * n_blocks]
    pbuf, bbuf, tbuf = refs[6 + 4 * n_blocks:]

    HW = H * W

    # Re-establish the zero-pad invariant: halo rows 0 / H+1 and the right-pad
    # columns only (NOT a full pbuf memset). Interior stores below always cover
    # [1:H+1, 0:W) fully and never touch the pad columns.
    zrow = jnp.zeros((1, Wp8, c), jnp.bfloat16)
    pbuf[0:1, :, :] = zrow
    pbuf[H + 1:H + 2, :, :] = zrow
    pbuf[1:H + 1, W:Wp8, :] = jnp.zeros((H, Wp8 - W, c), jnp.bfloat16)

    # --- cv1: 1x1 conv (+ folded BN bias) + SiLU, ONE dot against the full
    #     (Cin, 2c) weight. a -> padded working buffer, b -> bbuf (bf16). ---
    y = jnp.dot(x_ref[0], wcv1_ref[...], preferred_element_type=jnp.float32)
    y = y + bcv1_ref[...]
    y = y * jax.nn.sigmoid(y)                               # SiLU, f32 (HW, 2c)
    bbuf[...] = y[:, c:].astype(jnp.bfloat16)
    pbuf[1:H + 1, 0:W, :] = y[:, :c].reshape(H, W, c).astype(jnp.bfloat16)

    # --- bottleneck chain: (3x3 conv + BN + SiLU) x2, optional residual.
    #     The intermediate h / t never leaves VMEM. ---
    for i in range(n_blocks):
        w1_ref, b1_ref, w2_ref, b2_ref = blk[4 * i:4 * i + 4]
        if shortcut:
            tbuf[...] = pbuf[1:H + 1, 0:W, :]               # residual source

        y1 = _conv3x3_kfold(pbuf, w1_ref, H, Wp8, c) + b1_ref[...]
        h = y1 * jax.nn.sigmoid(y1)                         # (rows, c) f32
        pbuf[1:H + 1, 0:W, :] = (
            h.reshape(H, Wp8, c)[:, :W, :].astype(jnp.bfloat16))

        y2 = _conv3x3_kfold(pbuf, w2_ref, H, Wp8, c) + b2_ref[...]
        o = (y2 * jax.nn.sigmoid(y2)).reshape(H, Wp8, c)[:, :W, :]
        if shortcut:
            o = o + tbuf[...].astype(jnp.float32)
        pbuf[1:H + 1, 0:W, :] = o.astype(jnp.bfloat16)

    # --- cv2: 1x1 conv on cat(m(a), b) as ONE dot (K = 2c) + bias + SiLU. ---
    t = pbuf[1:H + 1, 0:W, :].reshape(HW, c)                # bf16
    tb = jnp.concatenate([t, bbuf[...]], axis=-1)           # (HW, 2c) bf16
    z = jnp.dot(tb, wcv2_ref[...], preferred_element_type=jnp.float32)
    z = z + bcv2_ref[...]
    o_ref[0] = z * jax.nn.sigmoid(z)                        # (HW, c2out) f32


# ----------------------------------------------------------------------------
# C2 forward (NCHW in / NCHW out, matching the PyTorch module)
# ----------------------------------------------------------------------------
def c2_forward(x_nchw, params, shortcut=True):
    c = params["c"]
    n_blocks = len(params["m"])
    N, cin, H, W = x_nchw.shape
    c2out = params["cv2"]["w"].shape[1]
    HW = H * W
    Wp8 = _round_up(W + 1, 16)  # >= W+1 zero cols; x16 keeps bf16 reshapes aligned
    Hp = H + 2

    # NCHW -> NHWC, cast to bf16 at the boundary (halves the activation DMA),
    # flatten spatial so the kernel sees a ready (HW, Cin) matmul operand.
    x = jnp.transpose(x_nchw, (0, 2, 3, 1)).astype(jnp.bfloat16).reshape(N, HW, cin)

    inputs = [x, params["cv1"]["w"], params["cv1"]["b"]]
    in_specs = [
        pl.BlockSpec((1, HW, cin), lambda n: (n, 0, 0)),
        pl.BlockSpec((cin, 2 * c), lambda n: (0, 0)),
        pl.BlockSpec((1, 2 * c), lambda n: (0, 0)),
    ]
    for bp in params["m"]:
        # Fold the kw axis into the matmul K dim once, outside the kernel.
        inputs += [bp["cv1"]["w"].reshape(3, 3 * c, c), bp["cv1"]["b"],
                   bp["cv2"]["w"].reshape(3, 3 * c, c), bp["cv2"]["b"]]
        in_specs += [
            pl.BlockSpec((3, 3 * c, c), lambda n: (0, 0, 0)),
            pl.BlockSpec((1, c), lambda n: (0, 0)),
            pl.BlockSpec((3, 3 * c, c), lambda n: (0, 0, 0)),
            pl.BlockSpec((1, c), lambda n: (0, 0)),
        ]
    inputs += [params["cv2"]["w"], params["cv2"]["b"]]
    in_specs += [
        pl.BlockSpec((2 * c, c2out), lambda n: (0, 0)),
        pl.BlockSpec((1, c2out), lambda n: (0, 0)),
    ]

    kernel = functools.partial(_c2_kernel, n_blocks=n_blocks, H=H, W=W, c=c,
                               Wp8=Wp8, shortcut=shortcut)
    out = pl.pallas_call(
        kernel,
        out_shape=jax.ShapeDtypeStruct((N, HW, c2out), jnp.float32),
        grid_spec=pltpu.PrefetchScalarGridSpec(
            num_scalar_prefetch=0,
            grid=(N,),
            in_specs=in_specs,
            out_specs=pl.BlockSpec((1, HW, c2out), lambda n: (n, 0, 0)),
            scratch_shapes=[
                pltpu.VMEM((Hp, Wp8, c), jnp.bfloat16),   # padded a / h / t buffer
                pltpu.VMEM((HW, c), jnp.bfloat16),        # b chunk (feeds cv2)
                pltpu.VMEM((H, W, c), jnp.bfloat16),      # residual source
            ],
        ),
        compiler_params=pltpu.CompilerParams(
            # TODO(synk): on v7x add an H-band grid axis (2-row halo) with
            # CORE_PARALLEL for dual-TensorCore sharding at N=1 / large images.
            dimension_semantics=("parallel",),
            vmem_limit_bytes=_vmem_limit_bytes(),
        ),
    )(*inputs)

    out = out.reshape(N, H, W, c2out)
    return jnp.transpose(out, (0, 3, 1, 2))                 # -> NCHW


# ----------------------------------------------------------------------------
# Parameter initialization (deterministic, synthetic). Eval-mode BN is folded
# into the conv weight (scale) and a per-channel bias:
#   scale = gamma / sqrt(var + eps);  bias = beta - mean * scale
#   w_folded = w * scale  (stored bf16 for the MXU);  bias stays f32.
# ----------------------------------------------------------------------------
def _conv_bn_params(key, cin, cout, k):
    kw_, kg, kb, km, kv = jax.random.split(key, 5)
    shape = (cin, cout) if k == 1 else (k, k, cin, cout)
    w = 0.1 * jax.random.normal(kw_, shape, jnp.float32)
    gamma = jax.random.uniform(kg, (cout,), jnp.float32, 0.5, 1.5)
    beta = 0.1 * jax.random.normal(kb, (cout,), jnp.float32)
    mean = 0.1 * jax.random.normal(km, (cout,), jnp.float32)
    var = jax.random.uniform(kv, (cout,), jnp.float32, 0.5, 1.5)
    scale = gamma / jnp.sqrt(var + EPS)
    bias = beta - mean * scale
    return {"w": (w * scale).astype(jnp.bfloat16), "b": bias.reshape(1, cout)}


def init_c2_params(key, c1, c2, n=1, e=0.5):
    c = int(c2 * e)
    keys = jax.random.split(key, 2 + 2 * n)
    params = {
        "c": c,
        "cv1": _conv_bn_params(keys[0], c1, 2 * c, 1),
        "cv2": _conv_bn_params(keys[1], 2 * c, c2, 1),
        "m": [],
    }
    for i in range(n):
        params["m"].append({
            "cv1": _conv_bn_params(keys[2 + 2 * i], c, c, 3),
            "cv2": _conv_bn_params(keys[3 + 2 * i], c, c, 3),
        })
    return params


# ----------------------------------------------------------------------------
# Pure-JAX reference (lax conv) used as an in-script sanity check.
# ----------------------------------------------------------------------------
def _ref_conv_bn_silu(x, w, b):
    y = jax.lax.conv_general_dilated(
        x, w, window_strides=(1, 1), padding="SAME",
        dimension_numbers=("NHWC", "HWIO", "NHWC"),
        precision=jax.lax.Precision.HIGHEST) + b.reshape(1, 1, 1, -1)
    return y * jax.nn.sigmoid(y)


def c2_reference(x_nchw, params, shortcut=True):
    c = params["c"]
    x = jnp.transpose(x_nchw, (0, 2, 3, 1)).astype(jnp.float32)
    w1 = params["cv1"]["w"].astype(jnp.float32)[None, None]
    y = _ref_conv_bn_silu(x, w1, params["cv1"]["b"])
    a, b = y[..., :c], y[..., c:]
    t = a
    for bp in params["m"]:
        h = _ref_conv_bn_silu(t, bp["cv1"]["w"].astype(jnp.float32), bp["cv1"]["b"])
        h2 = _ref_conv_bn_silu(h, bp["cv2"]["w"].astype(jnp.float32), bp["cv2"]["b"])
        t = t + h2 if shortcut else h2
    cat = jnp.concatenate([t, b], axis=-1)
    w2 = params["cv2"]["w"].astype(jnp.float32)[None, None]
    out = _ref_conv_bn_silu(cat, w2, params["cv2"]["b"])
    return jnp.transpose(out, (0, 3, 1, 2))


if __name__ == "__main__":
    key = jax.random.PRNGKey(0)
    kx, kp = jax.random.split(key)

    # small config: c1 = c2 = 8, n = 1, e = 0.5  =>  hidden c = 4
    N, C1, H, W = 2, 8, 16, 16
    C2_OUT, NBLK = 8, 1

    x = jax.random.normal(kx, (N, C1, H, W), jnp.float32)  # NCHW, like PyTorch
    params = init_c2_params(kp, C1, C2_OUT, n=NBLK, e=0.5)

    out = c2_forward(x, params)
    jax.block_until_ready(out)
    assert out.shape == (N, C2_OUT, H, W), out.shape

    # sanity check vs a pure-JAX reference (loose tolerance: bf16 operands and
    # bf16 inter-stage storage)
    ref = c2_reference(x, params)
    err = float(jnp.max(jnp.abs(out - ref)))
    assert err < 0.1, f"mismatch vs reference: max abs err = {err}"

    print("KERNEL_OK")
</pallas_src>

<mosaic_0001>
module attributes {stable_mosaic.version = 11 : i64} {
  func.func @_c2_kernel(%arg0: i32, %arg1: memref<1x256x8xbf16, #tpu.memory_space<vmem>>, %arg2: memref<8x8xbf16, #tpu.memory_space<vmem>>, %arg3: memref<1x8xf32, #tpu.memory_space<vmem>>, %arg4: memref<3x12x4xbf16, #tpu.memory_space<vmem>>, %arg5: memref<1x4xf32, #tpu.memory_space<vmem>>, %arg6: memref<3x12x4xbf16, #tpu.memory_space<vmem>>, %arg7: memref<1x4xf32, #tpu.memory_space<vmem>>, %arg8: memref<8x8xbf16, #tpu.memory_space<vmem>>, %arg9: memref<1x8xf32, #tpu.memory_space<vmem>>, %arg10: memref<1x256x8xf32, #tpu.memory_space<vmem>>, %arg11: memref<18x32x4xbf16, #tpu.memory_space<vmem>>, %arg12: memref<256x4xbf16, #tpu.memory_space<vmem>>, %arg13: memref<16x16x4xbf16, #tpu.memory_space<vmem>>) attributes {dimension_semantics = [#tpu.dimension_semantics<parallel>], iteration_bounds = array<i64: 2>, scalar_prefetch = 0 : i64, scratch_operands = 3 : i64, tpu.core_type = #tpu.core_type<tc>, window_params = [{transform_indices = @transform_0, window_bounds = array<i64: 1, 256, 8>}, {pipeline_mode = #tpu.pipeline_mode<synchronous>, transform_indices = @transform_1, window_bounds = array<i64: 8, 8>}, {pipeline_mode = #tpu.pipeline_mode<synchronous>, transform_indices = @transform_2, window_bounds = array<i64: 1, 8>}, {pipeline_mode = #tpu.pipeline_mode<synchronous>, transform_indices = @transform_3, window_bounds = array<i64: 3, 12, 4>}, {pipeline_mode = #tpu.pipeline_mode<synchronous>, transform_indices = @transform_4, window_bounds = array<i64: 1, 4>}, {pipeline_mode = #tpu.pipeline_mode<synchronous>, transform_indices = @transform_5, window_bounds = array<i64: 3, 12, 4>}, {pipeline_mode = #tpu.pipeline_mode<synchronous>, transform_indices = @transform_6, window_bounds = array<i64: 1, 4>}, {pipeline_mode = #tpu.pipeline_mode<synchronous>, transform_indices = @transform_7, window_bounds = array<i64: 8, 8>}, {pipeline_mode = #tpu.pipeline_mode<synchronous>, transform_indices = @transform_8, window_bounds = array<i64: 1, 8>}, {transform_indices = @transform_9, window_bounds = array<i64: 1, 256, 8>}]} {
    %cst = arith.constant 0.000000e+00 : bf16
    %0 = vector.broadcast %cst : bf16 to vector<1x32x4xbf16>
    %c0 = arith.constant 0 : index
    %c0_0 = arith.constant 0 : index
    %c0_1 = arith.constant 0 : index
    %1 = vector.load %arg11[%c0, %c0_0, %c0_1] : memref<18x32x4xbf16, #tpu.memory_space<vmem>>, vector<1x32x4xbf16>
    tpu.vector_store %arg11[%c0, %c0_0, %c0_1], %0 {strides = array<i32>} : memref<18x32x4xbf16, #tpu.memory_space<vmem>>, vector<1x32x4xbf16>,
    %c17 = arith.constant 17 : index
    %c0_2 = arith.constant 0 : index
    %c0_3 = arith.constant 0 : index
    %2 = vector.load %arg11[%c17, %c0_2, %c0_3] : memref<18x32x4xbf16, #tpu.memory_space<vmem>>, vector<1x32x4xbf16>
    tpu.vector_store %arg11[%c17, %c0_2, %c0_3], %0 {strides = array<i32>} : memref<18x32x4xbf16, #tpu.memory_space<vmem>>, vector<1x32x4xbf16>,
    %cst_4 = arith.constant 0.000000e+00 : bf16
    %3 = vector.broadcast %cst_4 : bf16 to vector<16x16x4xbf16>
    %c1 = arith.constant 1 : index
    %c16 = arith.constant 16 : index
    %c0_5 = arith.constant 0 : index
    %4 = vector.load %arg11[%c1, %c16, %c0_5] : memref<18x32x4xbf16, #tpu.memory_space<vmem>>, vector<16x16x4xbf16>
    tpu.vector_store %arg11[%c1, %c16, %c0_5], %3 {strides = array<i32>} : memref<18x32x4xbf16, #tpu.memory_space<vmem>>, vector<16x16x4xbf16>,
    %c0_6 = arith.constant 0 : index
    %c0_7 = arith.constant 0 : index
    %c0_8 = arith.constant 0 : index
    %5 = vector.load %arg1[%c0_6, %c0_7, %c0_8] : memref<1x256x8xbf16, #tpu.memory_space<vmem>>, vector<1x256x8xbf16>
    %6 = vector.shape_cast %5 : vector<1x256x8xbf16> to vector<256x8xbf16>
    %c0_9 = arith.constant 0 : index
    %c0_10 = arith.constant 0 : index
    %7 = vector.load %arg2[%c0_9, %c0_10] : memref<8x8xbf16, #tpu.memory_space<vmem>>, vector<8x8xbf16>
    %cst_11 = arith.constant dense<0.000000e+00> : vector<256x8xf32>
    %8 = tpu.matmul %6, %7, %cst_11 {dimension_numbers = #tpu.dot_dimension_numbers<[1], [0], [0], [1], [0, 0, 1, 1], [], []>} : vector<256x8xbf16>, vector<8x8xbf16>, vector<256x8xf32> -> vector<256x8xf32>
    %c0_12 = arith.constant 0 : index
    %c0_13 = arith.constant 0 : index
    %9 = vector.load %arg3[%c0_12, %c0_13] : memref<1x8xf32, #tpu.memory_space<vmem>>, vector<1x8xf32>
    %10 = vector.broadcast %9 : vector<1x8xf32> to vector<256x8xf32>
    %11 = arith.addf %8, %10 : vector<256x8xf32>
    %12 = arith.negf %11 : vector<256x8xf32>
    %13 = math.exp %12 : vector<256x8xf32>
    %cst_14 = arith.constant 1.000000e+00 : f32
    %14 = vector.broadcast %cst_14 : f32 to vector<256x8xf32>
    %15 = arith.addf %14, %13 : vector<256x8xf32>
    %16 = arith.divf %14, %15 : vector<256x8xf32>
    %17 = arith.mulf %11, %16 : vector<256x8xf32>
    %18 = vector.extract_strided_slice %17 {offsets = [0, 4], sizes = [256, 4], strides = [1, 1]} : vector<256x8xf32> to vector<256x4xf32>
    %19 = arith.truncf %18 : vector<256x4xf32> to vector<256x4xbf16>
    %c0_15 = arith.constant 0 : index
    %c0_16 = arith.constant 0 : index
    %20 = vector.load %arg12[%c0_15, %c0_16] : memref<256x4xbf16, #tpu.memory_space<vmem>>, vector<256x4xbf16>
    tpu.vector_store %arg12[%c0_15, %c0_16], %19 {strides = array<i32>} : memref<256x4xbf16, #tpu.memory_space<vmem>>, vector<256x4xbf16>,
    %21 = vector.extract_strided_slice %17 {offsets = [0, 0], sizes = [256, 4], strides = [1, 1]} : vector<256x8xf32> to vector<256x4xf32>
    %22 = vector.shape_cast %21 : vector<256x4xf32> to vector<16x16x4xf32>
    %23 = arith.truncf %22 : vector<16x16x4xf32> to vector<16x16x4xbf16>
    %c1_17 = arith.constant 1 : index
    %c0_18 = arith.constant 0 : index
    %c0_19 = arith.constant 0 : index
    %24 = vector.load %arg11[%c1_17, %c0_18, %c0_19] : memref<18x32x4xbf16, #tpu.memory_space<vmem>>, vector<16x16x4xbf16>
    tpu.vector_store %arg11[%c1_17, %c0_18, %c0_19], %23 {strides = array<i32>} : memref<18x32x4xbf16, #tpu.memory_space<vmem>>, vector<16x16x4xbf16>,
    %c1_20 = arith.constant 1 : index
    %c0_21 = arith.constant 0 : index
    %c0_22 = arith.constant 0 : index
    %25 = vector.load %arg11[%c1_20, %c0_21, %c0_22] : memref<18x32x4xbf16, #tpu.memory_space<vmem>>, vector<16x16x4xbf16>
    %c0_23 = arith.constant 0 : index
    %c0_24 = arith.constant 0 : index
    %c0_25 = arith.constant 0 : index
    %26 = vector.load %arg13[%c0_23, %c0_24, %c0_25] : memref<16x16x4xbf16, #tpu.memory_space<vmem>>, vector<16x16x4xbf16>
    tpu.vector_store %arg13[%c0_23, %c0_24, %c0_25], %25 {strides = array<i32>} : memref<16x16x4xbf16, #tpu.memory_space<vmem>>, vector<16x16x4xbf16>,
    %c0_26 = arith.constant 0 : index
    %c0_27 = arith.constant 0 : index
    %c0_28 = arith.constant 0 : index
    %27 = vector.load %arg11[%c0_26, %c0_27, %c0_28] : memref<18x32x4xbf16, #tpu.memory_space<vmem>>, vector<16x32x4xbf16>
    %28 = vector.shape_cast %27 : vector<16x32x4xbf16> to vector<512x4xbf16>
    %29 = arith.extf %28 : vector<512x4xbf16> to vector<512x4xf32>
    %c1_i32 = arith.constant 1 : i32
    %30 = tpu.dynamic_rotate %29 by %c1_i32 dim 0 : vector<512x4xf32>, i32 -> vector<512x4xf32>
    %c511_i32 = arith.constant 511 : i32
    %31 = tpu.dynamic_rotate %29 by %c511_i32 dim 0 : vector<512x4xf32>, i32 -> vector<512x4xf32>
    %32 = tpu.concatenate %30, %29, %31 in 1 : vector<512x4xf32>, vector<512x4xf32>, vector<512x4xf32> -> vector<512x12xf32>
    %33 = arith.truncf %32 : vector<512x12xf32> to vector<512x12xbf16>
    %c0_29 = arith.constant 0 : index
    %c0_30 = arith.constant 0 : index
    %c0_31 = arith.constant 0 : index
    %34 = vector.load %arg4[%c0_29, %c0_30, %c0_31] : memref<3x12x4xbf16, #tpu.memory_space<vmem>>, vector<1x12x4xbf16>
    %35 = vector.shape_cast %34 : vector<1x12x4xbf16> to vector<12x4xbf16>
    %cst_32 = arith.constant dense<0.000000e+00> : vector<512x4xf32>
    %36 = tpu.matmul %33, %35, %cst_32 {dimension_numbers = #tpu.dot_dimension_numbers<[1], [0], [0], [1], [0, 0, 1, 1], [], []>} : vector<512x12xbf16>, vector<12x4xbf16>, vector<512x4xf32> -> vector<512x4xf32>
    %c1_33 = arith.constant 1 : index
    %c0_34 = arith.constant 0 : index
    %c0_35 = arith.constant 0 : index
    %37 = vector.load %arg11[%c1_33, %c0_34, %c0_35] : memref<18x32x4xbf16, #tpu.memory_space<vmem>>, vector<16x32x4xbf16>
    %38 = vector.shape_cast %37 : vector<16x32x4xbf16> to vector<512x4xbf16>
    %39 = arith.extf %38 : vector<512x4xbf16> to vector<512x4xf32>
    %c1_i32_36 = arith.constant 1 : i32
    %40 = tpu.dynamic_rotate %39 by %c1_i32_36 dim 0 : vector<512x4xf32>, i32 -> vector<512x4xf32>
    %c511_i32_37 = arith.constant 511 : i32
    %41 = tpu.dynamic_rotate %39 by %c511_i32_37 dim 0 : vector<512x4xf32>, i32 -> vector<512x4xf32>
    %42 = tpu.concatenate %40, %39, %41 in 1 : vector<512x4xf32>, vector<512x4xf32>, vector<512x4xf32> -> vector<512x12xf32>
    %43 = arith.truncf %42 : vector<512x12xf32> to vector<512x12xbf16>
    %c1_38 = arith.constant 1 : index
    %c0_39 = arith.constant 0 : index
    %c0_40 = arith.constant 0 : index
    %44 = vector.load %arg4[%c1_38, %c0_39, %c0_40] : memref<3x12x4xbf16, #tpu.memory_space<vmem>>, vector<1x12x4xbf16>
    %45 = vector.shape_cast %44 : vector<1x12x4xbf16> to vector<12x4xbf16>
    %cst_41 = arith.constant dense<0.000000e+00> : vector<512x4xf32>
    %46 = tpu.matmul %43, %45, %cst_41 {dimension_numbers = #tpu.dot_dimension_numbers<[1], [0], [0], [1], [0, 0, 1, 1], [], []>} : vector<512x12xbf16>, vector<12x4xbf16>, vector<512x4xf32> -> vector<512x4xf32>
    %47 = arith.addf %36, %46 : vector<512x4xf32>
    %c2 = arith.constant 2 : index
    %c0_42 = arith.constant 0 : index
    %c0_43 = arith.constant 0 : index
    %48 = vector.load %arg11[%c2, %c0_42, %c0_43] : memref<18x32x4xbf16, #tpu.memory_space<vmem>>, vector<16x32x4xbf16>
    %49 = vector.shape_cast %48 : vector<16x32x4xbf16> to vector<512x4xbf16>
    %50 = arith.extf %49 : vector<512x4xbf16> to vector<512x4xf32>
    %c1_i32_44 = arith.constant 1 : i32
    %51 = tpu.dynamic_rotate %50 by %c1_i32_44 dim 0 : vector<512x4xf32>, i32 -> vector<512x4xf32>
    %c511_i32_45 = arith.constant 511 : i32
    %52 = tpu.dynamic_rotate %50 by %c511_i32_45 dim 0 : vector<512x4xf32>, i32 -> vector<512x4xf32>
    %53 = tpu.concatenate %51, %50, %52 in 1 : vector<512x4xf32>, vector<512x4xf32>, vector<512x4xf32> -> vector<512x12xf32>
    %54 = arith.truncf %53 : vector<512x12xf32> to vector<512x12xbf16>
    %c2_46 = arith.constant 2 : index
    %c0_47 = arith.constant 0 : index
    %c0_48 = arith.constant 0 : index
    %55 = vector.load %arg4[%c2_46, %c0_47, %c0_48] : memref<3x12x4xbf16, #tpu.memory_space<vmem>>, vector<1x12x4xbf16>
    %56 = vector.shape_cast %55 : vector<1x12x4xbf16> to vector<12x4xbf16>
    %cst_49 = arith.constant dense<0.000000e+00> : vector<512x4xf32>
    %57 = tpu.matmul %54, %56, %cst_49 {dimension_numbers = #tpu.dot_dimension_numbers<[1], [0], [0], [1], [0, 0, 1, 1], [], []>} : vector<512x12xbf16>, vector<12x4xbf16>, vector<512x4xf32> -> vector<512x4xf32>
    %58 = arith.addf %47, %57 : vector<512x4xf32>
    %c0_50 = arith.constant 0 : index
    %c0_51 = arith.constant 0 : index
    %59 = vector.load %arg5[%c0_50, %c0_51] : memref<1x4xf32, #tpu.memory_space<vmem>>, vector<1x4xf32>
    %60 = vector.broadcast %59 : vector<1x4xf32> to vector<512x4xf32>
    %61 = arith.addf %58, %60 : vector<512x4xf32>
    %62 = arith.negf %61 : vector<512x4xf32>
    %63 = math.exp %62 : vector<512x4xf32>
    %cst_52 = arith.constant 1.000000e+00 : f32
    %64 = vector.broadcast %cst_52 : f32 to vector<512x4xf32>
    %65 = arith.addf %64, %63 : vector<512x4xf32>
    %66 = arith.divf %64, %65 : vector<512x4xf32>
    %67 = arith.mulf %61, %66 : vector<512x4xf32>
    %68 = vector.shape_cast %67 : vector<512x4xf32> to vector<16x32x4xf32>
    %69 = vector.extract_strided_slice %68 {offsets = [0, 0, 0], sizes = [16, 16, 4], strides = [1, 1, 1]} : vector<16x32x4xf32> to vector<16x16x4xf32>
    %70 = arith.truncf %69 : vector<16x16x4xf32> to vector<16x16x4xbf16>
    %c1_53 = arith.constant 1 : index
    %c0_54 = arith.constant 0 : index
    %c0_55 = arith.constant 0 : index
    %71 = vector.load %arg11[%c1_53, %c0_54, %c0_55] : memref<18x32x4xbf16, #tpu.memory_space<vmem>>, vector<16x16x4xbf16>
    tpu.vector_store %arg11[%c1_53, %c0_54, %c0_55], %70 {strides = array<i32>} : memref<18x32x4xbf16, #tpu.memory_space<vmem>>, vector<16x16x4xbf16>,
    %c0_56 = arith.constant 0 : index
    %c0_57 = arith.constant 0 : index
    %c0_58 = arith.constant 0 : index
    %72 = vector.load %arg11[%c0_56, %c0_57, %c0_58] : memref<18x32x4xbf16, #tpu.memory_space<vmem>>, vector<16x32x4xbf16>
    %73 = vector.shape_cast %72 : vector<16x32x4xbf16> to vector<512x4xbf16>
    %74 = arith.extf %73 : vector<512x4xbf16> to vector<512x4xf32>
    %c1_i32_59 = arith.constant 1 : i32
    %75 = tpu.dynamic_rotate %74 by %c1_i32_59 dim 0 : vector<512x4xf32>, i32 -> vector<512x4xf32>
    %c511_i32_60 = arith.constant 511 : i32
    %76 = tpu.dynamic_rotate %74 by %c511_i32_60 dim 0 : vector<512x4xf32>, i32 -> vector<512x4xf32>
    %77 = tpu.concatenate %75, %74, %76 in 1 : vector<512x4xf32>, vector<512x4xf32>, vector<512x4xf32> -> vector<512x12xf32>
    %78 = arith.truncf %77 : vector<512x12xf32> to vector<512x12xbf16>
    %c0_61 = arith.constant 0 : index
    %c0_62 = arith.constant 0 : index
    %c0_63 = arith.constant 0 : index
    %79 = vector.load %arg6[%c0_61, %c0_62, %c0_63] : memref<3x12x4xbf16, #tpu.memory_space<vmem>>, vector<1x12x4xbf16>
    %80 = vector.shape_cast %79 : vector<1x12x4xbf16> to vector<12x4xbf16>
    %cst_64 = arith.constant dense<0.000000e+00> : vector<512x4xf32>
    %81 = tpu.matmul %78, %80, %cst_64 {dimension_numbers = #tpu.dot_dimension_numbers<[1], [0], [0], [1], [0, 0, 1, 1], [], []>} : vector<512x12xbf16>, vector<12x4xbf16>, vector<512x4xf32> -> vector<512x4xf32>
    %c1_65 = arith.constant 1 : index
    %c0_66 = arith.constant 0 : index
    %c0_67 = arith.constant 0 : index
    %82 = vector.load %arg11[%c1_65, %c0_66, %c0_67] : memref<18x32x4xbf16, #tpu.memory_space<vmem>>, vector<16x32x4xbf16>
    %83 = vector.shape_cast %82 : vector<16x32x4xbf16> to vector<512x4xbf16>
    %84 = arith.extf %83 : vector<512x4xbf16> to vector<512x4xf32>
    %c1_i32_68 = arith.constant 1 : i32
    %85 = tpu.dynamic_rotate %84 by %c1_i32_68 dim 0 : vector<512x4xf32>, i32 -> vector<512x4xf32>
    %c511_i32_69 = arith.constant 511 : i32
    %86 = tpu.dynamic_rotate %84 by %c511_i32_69 dim 0 : vector<512x4xf32>, i32 -> vector<512x4xf32>
    %87 = tpu.concatenate %85, %84, %86 in 1 : vector<512x4xf32>, vector<512x4xf32>, vector<512x4xf32> -> vector<512x12xf32>
    %88 = arith.truncf %87 : vector<512x12xf32> to vector<512x12xbf16>
    %c1_70 = arith.constant 1 : index
    %c0_71 = arith.constant 0 : index
    %c0_72 = arith.constant 0 : index
    %89 = vector.load %arg6[%c1_70, %c0_71, %c0_72] : memref<3x12x4xbf16, #tpu.memory_space<vmem>>, vector<1x12x4xbf16>
    %90 = vector.shape_cast %89 : vector<1x12x4xbf16> to vector<12x4xbf16>
    %cst_73 = arith.constant dense<0.000000e+00> : vector<512x4xf32>
    %91 = tpu.matmul %88, %90, %cst_73 {dimension_numbers = #tpu.dot_dimension_numbers<[1], [0], [0], [1], [0, 0, 1, 1], [], []>} : vector<512x12xbf16>, vector<12x4xbf16>, vector<512x4xf32> -> vector<512x4xf32>
    %92 = arith.addf %81, %91 : vector<512x4xf32>
    %c2_74 = arith.constant 2 : index
    %c0_75 = arith.constant 0 : index
    %c0_76 = arith.constant 0 : index
    %93 = vector.load %arg11[%c2_74, %c0_75, %c0_76] : memref<18x32x4xbf16, #tpu.memory_space<vmem>>, vector<16x32x4xbf16>
    %94 = vector.shape_cast %93 : vector<16x32x4xbf16> to vector<512x4xbf16>
    %95 = arith.extf %94 : vector<512x4xbf16> to vector<512x4xf32>
    %c1_i32_77 = arith.constant 1 : i32
    %96 = tpu.dynamic_rotate %95 by %c1_i32_77 dim 0 : vector<512x4xf32>, i32 -> vector<512x4xf32>
    %c511_i32_78 = arith.constant 511 : i32
    %97 = tpu.dynamic_rotate %95 by %c511_i32_78 dim 0 : vector<512x4xf32>, i32 -> vector<512x4xf32>
    %98 = tpu.concatenate %96, %95, %97 in 1 : vector<512x4xf32>, vector<512x4xf32>, vector<512x4xf32> -> vector<512x12xf32>
    %99 = arith.truncf %98 : vector<512x12xf32> to vector<512x12xbf16>
    %c2_79 = arith.constant 2 : index
    %c0_80 = arith.constant 0 : index
    %c0_81 = arith.constant 0 : index
    %100 = vector.load %arg6[%c2_79, %c0_80, %c0_81] : memref<3x12x4xbf16, #tpu.memory_space<vmem>>, vector<1x12x4xbf16>
    %101 = vector.shape_cast %100 : vector<1x12x4xbf16> to vector<12x4xbf16>
    %cst_82 = arith.constant dense<0.000000e+00> : vector<512x4xf32>
    %102 = tpu.matmul %99, %101, %cst_82 {dimension_numbers = #tpu.dot_dimension_numbers<[1], [0], [0], [1], [0, 0, 1, 1], [], []>} : vector<512x12xbf16>, vector<12x4xbf16>, vector<512x4xf32> -> vector<512x4xf32>
    %103 = arith.addf %92, %102 : vector<512x4xf32>
    %c0_83 = arith.constant 0 : index
    %c0_84 = arith.constant 0 : index
    %104 = vector.load %arg7[%c0_83, %c0_84] : memref<1x4xf32, #tpu.memory_space<vmem>>, vector<1x4xf32>
    %105 = vector.broadcast %104 : vector<1x4xf32> to vector<512x4xf32>
    %106 = arith.addf %103, %105 : vector<512x4xf32>
    %107 = arith.negf %106 : vector<512x4xf32>
    %108 = math.exp %107 : vector<512x4xf32>
    %cst_85 = arith.constant 1.000000e+00 : f32
    %109 = vector.broadcast %cst_85 : f32 to vector<512x4xf32>
    %110 = arith.addf %109, %108 : vector<512x4xf32>
    %111 = arith.divf %109, %110 : vector<512x4xf32>
    %112 = arith.mulf %106, %111 : vector<512x4xf32>
    %113 = vector.shape_cast %112 : vector<512x4xf32> to vector<16x32x4xf32>
    %114 = vector.extract_strided_slice %113 {offsets = [0, 0, 0], sizes = [16, 16, 4], strides = [1, 1, 1]} : vector<16x32x4xf32> to vector<16x16x4xf32>
    %c0_86 = arith.constant 0 : index
    %c0_87 = arith.constant 0 : index
    %c0_88 = arith.constant 0 : index
    %115 = vector.load %arg13[%c0_86, %c0_87, %c0_88] : memref<16x16x4xbf16, #tpu.memory_space<vmem>>, vector<16x16x4xbf16>
    %116 = arith.extf %115 : vector<16x16x4xbf16> to vector<16x16x4xf32>
    %117 = arith.addf %114, %116 : vector<16x16x4xf32>
    %118 = arith.truncf %117 : vector<16x16x4xf32> to vector<16x16x4xbf16>
    %c1_89 = arith.constant 1 : index
    %c0_90 = arith.constant 0 : index
    %c0_91 = arith.constant 0 : index
    %119 = vector.load %arg11[%c1_89, %c0_90, %c0_91] : memref<18x32x4xbf16, #tpu.memory_space<vmem>>, vector<16x16x4xbf16>
    tpu.vector_store %arg11[%c1_89, %c0_90, %c0_91], %118 {strides = array<i32>} : memref<18x32x4xbf16, #tpu.memory_space<vmem>>, vector<16x16x4xbf16>,
    %c1_92 = arith.constant 1 : index
    %c0_93 = arith.constant 0 : index
    %c0_94 = arith.constant 0 : index
    %120 = vector.load %arg11[%c1_92, %c0_93, %c0_94] : memref<18x32x4xbf16, #tpu.memory_space<vmem>>, vector<16x16x4xbf16>
    %121 = vector.shape_cast %120 : vector<16x16x4xbf16> to vector<256x4xbf16>
    %c0_95 = arith.constant 0 : index
    %c0_96 = arith.constant 0 : index
    %122 = vector.load %arg12[%c0_95, %c0_96] : memref<256x4xbf16, #tpu.memory_space<vmem>>, vector<256x4xbf16>
    %123 = tpu.concatenate %121, %122 in 1 : vector<256x4xbf16>, vector<256x4xbf16> -> vector<256x8xbf16>
    %c0_97 = arith.constant 0 : index
    %c0_98 = arith.constant 0 : index
    %124 = vector.load %arg8[%c0_97, %c0_98] : memref<8x8xbf16, #tpu.memory_space<vmem>>, vector<8x8xbf16>
    %cst_99 = arith.constant dense<0.000000e+00> : vector<256x8xf32>
    %125 = tpu.matmul %123, %124, %cst_99 {dimension_numbers = #tpu.dot_dimension_numbers<[1], [0], [0], [1], [0, 0, 1, 1], [], []>} : vector<256x8xbf16>, vector<8x8xbf16>, vector<256x8xf32> -> vector<256x8xf32>
    %c0_100 = arith.constant 0 : index
    %c0_101 = arith.constant 0 : index
    %126 = vector.load %arg9[%c0_100, %c0_101] : memref<1x8xf32, #tpu.memory_space<vmem>>, vector<1x8xf32>
    %127 = vector.broadcast %126 : vector<1x8xf32> to vector<256x8xf32>
    %128 = arith.addf %125, %127 : vector<256x8xf32>
    %129 = arith.negf %128 : vector<256x8xf32>
    %130 = math.exp %129 : vector<256x8xf32>
    %cst_102 = arith.constant 1.000000e+00 : f32
    %131 = vector.broadcast %cst_102 : f32 to vector<256x8xf32>
    %132 = arith.addf %131, %130 : vector<256x8xf32>
    %133 = arith.divf %131, %132 : vector<256x8xf32>
    %134 = arith.mulf %128, %133 : vector<256x8xf32>
    %c0_103 = arith.constant 0 : index
    %c0_104 = arith.constant 0 : index
    %c0_105 = arith.constant 0 : index
    %135 = vector.load %arg10[%c0_103, %c0_104, %c0_105] : memref<1x256x8xf32, #tpu.memory_space<vmem>>, vector<1x256x8xf32>
    %136 = vector.shape_cast %135 : vector<1x256x8xf32> to vector<256x8xf32>
    %137 = vector.shape_cast %134 : vector<256x8xf32> to vector<1x256x8xf32>
    tpu.vector_store %arg10[%c0_103, %c0_104, %c0_105], %137 {strides = array<i32>} : memref<1x256x8xf32, #tpu.memory_space<vmem>>, vector<1x256x8xf32>,
    return
  }
  func.func @transform_0(%arg0: i32) -> (i32, i32, i32) {
    %c0_i32 = arith.constant 0 : i32
    %c0_i32_0 = arith.constant 0 : i32
    %c0_i32_1 = arith.constant 0 : i32
    return %arg0, %c0_i32, %c0_i32_0 : i32, i32, i32
  }
  func.func @transform_1(%arg0: i32) -> (i32, i32) {
    %c0_i32 = arith.constant 0 : i32
    %c0_i32_0 = arith.constant 0 : i32
    %c0_i32_1 = arith.constant 0 : i32
    return %c0_i32, %c0_i32_0 : i32, i32
  }
  func.func @transform_2(%arg0: i32) -> (i32, i32) {
    %c0_i32 = arith.constant 0 : i32
    %c0_i32_0 = arith.constant 0 : i32
    %c0_i32_1 = arith.constant 0 : i32
    return %c0_i32, %c0_i32_0 : i32, i32
  }
  func.func @transform_3(%arg0: i32) -> (i32, i32, i32) {
    %c0_i32 = arith.constant 0 : i32
    %c0_i32_0 = arith.constant 0 : i32
    %c0_i32_1 = arith.constant 0 : i32
    %c0_i32_2 = arith.constant 0 : i32
    return %c0_i32, %c0_i32_0, %c0_i32_1 : i32, i32, i32
  }
  func.func @transform_4(%arg0: i32) -> (i32, i32) {
    %c0_i32 = arith.constant 0 : i32
    %c0_i32_0 = arith.constant 0 : i32
    %c0_i32_1 = arith.constant 0 : i32
    return %c0_i32, %c0_i32_0 : i32, i32
  }
  func.func @transform_5(%arg0: i32) -> (i32, i32, i32) {
    %c0_i32 = arith.constant 0 : i32
    %c0_i32_0 = arith.constant 0 : i32
    %c0_i32_1 = arith.constant 0 : i32
    %c0_i32_2 = arith.constant 0 : i32
    return %c0_i32, %c0_i32_0, %c0_i32_1 : i32, i32, i32
  }
  func.func @transform_6(%arg0: i32) -> (i32, i32) {
    %c0_i32 = arith.constant 0 : i32
    %c0_i32_0 = arith.constant 0 : i32
    %c0_i32_1 = arith.constant 0 : i32
    return %c0_i32, %c0_i32_0 : i32, i32
  }
  func.func @transform_7(%arg0: i32) -> (i32, i32) {
    %c0_i32 = arith.constant 0 : i32
    %c0_i32_0 = arith.constant 0 : i32
    %c0_i32_1 = arith.constant 0 : i32
    return %c0_i32, %c0_i32_0 : i32, i32
  }
  func.func @transform_8(%arg0: i32) -> (i32, i32) {
    %c0_i32 = arith.constant 0 : i32
    %c0_i32_0 = arith.constant 0 : i32
    %c0_i32_1 = arith.constant 0 : i32
    return %c0_i32, %c0_i32_0 : i32, i32
  }
  func.func @transform_9(%arg0: i32) -> (i32, i32, i32) {
    %c0_i32 = arith.constant 0 : i32
    %c0_i32_0 = arith.constant 0 : i32
    %c0_i32_1 = arith.constant 0 : i32
    return %arg0, %c0_i32, %c0_i32_0 : i32, i32, i32
  }
}

</mosaic_0001>

<llo_original>
// kernel: tpu_custom_call.1
$region0: #{tpu_custom_call.1}
  #allocation0 [shape = 'u32[]', space=smem, size = 0x4, offset = 0x4, fixed_abs, tag = 'smem constant byte address 0x4 - core index']
  #allocation1 [shape = 'u32[144,128]{1,0:T(1,128)}', space=vmem, size = 0x12000, scoped, tag = 'internal scratch']
  #allocation2 [shape = 'bf16[18,32,4]{2,1,0:T(8,128)(2,1)}', space=vmem, size = 0x24000, scoped, tag = 'scratch operand']
  #allocation3 [shape = 'bf16[256,4]{1,0:T(8,128)(2,1)}', space=vmem, size = 0x10000, scoped, tag = 'scratch operand']
  #allocation4 [shape = 'bf16[16,16,4]{2,1,0:T(8,128)(2,1)}', space=vmem, size = 0x10000, scoped, tag = 'scratch operand']
  %s0 = inlined_call_operand.vmem [shape: bf16[2,256,8], index: 0, kind: input, shape index: {}]
  %s1 = inlined_call_operand.vmem [shape: bf16[8,8], index: 1, kind: input, shape index: {}]
  %s2 = inlined_call_operand.vmem [shape: f32[1,8], index: 2, kind: input, shape index: {}]
  %s3 = inlined_call_operand.vmem [shape: bf16[3,12,4], index: 3, kind: input, shape index: {}]
  %s4 = inlined_call_operand.vmem [shape: f32[1,4], index: 4, kind: input, shape index: {}]
  %s5 = inlined_call_operand.vmem [shape: bf16[3,12,4], index: 5, kind: input, shape index: {}]
  %s6 = inlined_call_operand.vmem [shape: f32[1,4], index: 6, kind: input, shape index: {}]
  %s7 = inlined_call_operand.vmem [shape: bf16[8,8], index: 7, kind: input, shape index: {}]
  %s8 = inlined_call_operand.vmem [shape: f32[1,8], index: 8, kind: input, shape index: {}]
  %s9 = inlined_call_operand.vmem [shape: f32[2,256,8], index: 9, kind: output, shape index: {}]
  %s10 = sld [smem:[#allocation0]]
  $region69: #{tpu_custom_call.1} parent=0
    _
  %s12 = ssub.s32 1, %s10
  %s13 = scalar_select 0, %s12, %s10
  loop: start=0, step=1, limit=4
  $region2: #{tpu_custom_call.1} parent=0 // loop_pre_header
    _
  $region3: #{tpu_custom_call.1} parent=0 // loop_header
    %s15 = sphi 0, %s19
    %p16 = scmp.ge.s32.totalorder %s15, 4
    %s25 = sphi 0, %s27
    %s28 = sphi 0, %s25
    %s29 = sphi 0, %s28
    %s45 = sphi 0, %s29
    %s49 = sphi 0, %s49
    %s51 = sphi 0, %s49
    %s52 = sphi 0, %s51
    %s66 = sphi 0, %s52
    %s70 = sphi 0, %s70
    %s72 = sphi 0, %s70
    %s73 = sphi 0, %s72
    %s87 = sphi 0, %s73
    %s91 = sphi 0, %s91
    %s93 = sphi 0, %s91
    %s94 = sphi 0, %s93
    %s108 = sphi 0, %s94
    %s112 = sphi 0, %s112
    %s114 = sphi 0, %s112
    %s115 = sphi 0, %s114
    %s129 = sphi 0, %s115
    %s133 = sphi 0, %s133
    %s135 = sphi 0, %s133
    %s136 = sphi 0, %s135
    %s150 = sphi 0, %s136
    %s154 = sphi 0, %s154
    %s156 = sphi 0, %s154
    %s157 = sphi 0, %s156
    %s171 = sphi 0, %s157
    %s175 = sphi 0, %s175
    %s177 = sphi 0, %s175
    %s178 = sphi 0, %s177
    %s192 = sphi 0, %s178
    %s196 = sphi 0, %s196
    %s198 = sphi 0, %s196
    %s199 = sphi 0, %s198
    %s213 = sphi 0, %s199
    %s219 = sphi 0, %s221
    %s222 = sphi 0, %s219
    %s223 = sphi 0, %s222
    %s239 = sphi 0, %s223
  $region4: #{tpu_custom_call.1} parent=0 // loop_header_branch
    %18 = sbr.rel (%p16) target = $region8
  $region5: #{tpu_custom_call.1} parent=0 // loop_body
    %s20 = ssub.s32 %s15, 1
    %s21 = ssub.s32 %s15, 2
    %s22 = sadd.s32 %s15, 1
    %s23 = ssub.s32 %s15, %s22
    %p24 = scmp.eq.s32.totalorder %s23, 0
    %s26 = sadd.s32 %s25, 1
    %s27 = scalar_select %p24, %s25, %s26
    %p30 = pneg %p24
    %p31 = scmp.eq.s32.totalorder %s15, 1
    %p32 = por %p30, %p31
    %p33 = scmp.ne.s32.totalorder %s25, %s28
    %p34 = scmp.eq.s32.totalorder %s15, 0
    %p35 = por %p33, %p34
    %p36 = scmp.ne.s32.totalorder %s25, %s28
    %p37 = scmp.eq.s32.totalorder %s20, 1
    %p38 = por %p36, %p37
    %p39 = scmp.ne.s32.totalorder %s28, %s29
    %p40 = scmp.eq.s32.totalorder %s20, 0
    %p41 = por %p39, %p40
    %p42 = scmp.ne.s32.totalorder %s28, %s29
    %p43 = scmp.eq.s32.totalorder %s21, 1
    %p44 = por %p42, %p43
    %p46 = scmp.ne.s32.totalorder %s29, %s45
    %p47 = scmp.eq.s32.totalorder %s21, 0
    %p48 = por %p46, %p47
    %s50 = sadd.s32 %s49, 1
    %p53 = scmp.eq.s32.totalorder %s15, 1
    %p54 = scmp.ne.s32.totalorder %s49, %s51
    %p55 = scmp.eq.s32.totalorder %s15, 0
    %p56 = por %p54, %p55
    %p57 = scmp.ne.s32.totalorder %s49, %s51
    %p58 = scmp.eq.s32.totalorder %s20, 1
    %p59 = por %p57, %p58
    %p60 = scmp.ne.s32.totalorder %s51, %s52
    %p61 = scmp.eq.s32.totalorder %s20, 0
    %p62 = por %p60, %p61
    %p63 = scmp.ne.s32.totalorder %s51, %s52
    %p64 = scmp.eq.s32.totalorder %s21, 1
    %p65 = por %p63, %p64
    %p67 = scmp.ne.s32.totalorder %s52, %s66
    %p68 = scmp.eq.s32.totalorder %s21, 0
    %p69 = por %p67, %p68
    %s71 = sadd.s32 %s70, 1
    %p74 = scmp.eq.s32.totalorder %s15, 1
    %p75 = scmp.ne.s32.totalorder %s70, %s72
    %p76 = scmp.eq.s32.totalorder %s15, 0
    %p77 = por %p75, %p76
    %p78 = scmp.ne.s32.totalorder %s70, %s72
    %p79 = scmp.eq.s32.totalorder %s20, 1
    %p80 = por %p78, %p79
    %p81 = scmp.ne.s32.totalorder %s72, %s73
    %p82 = scmp.eq.s32.totalorder %s20, 0
    %p83 = por %p81, %p82
    %p84 = scmp.ne.s32.totalorder %s72, %s73
    %p85 = scmp.eq.s32.totalorder %s21, 1
    %p86 = por %p84, %p85
    %p88 = scmp.ne.s32.totalorder %s73, %s87
    %p89 = scmp.eq.s32.totalorder %s21, 0
    %p90 = por %p88, %p89
    %s92 = sadd.s32 %s91, 1
    %p95 = scmp.eq.s32.totalorder %s15, 1
    %p96 = scmp.ne.s32.totalorder %s91, %s93
    %p97 = scmp.eq.s32.totalorder %s15, 0
    %p98 = por %p96, %p97
    %p99 = scmp.ne.s32.totalorder %s91, %s93
    %p100 = scmp.eq.s32.totalorder %s20, 1
    %p101 = por %p99, %p100
    %p102 = scmp.ne.s32.totalorder %s93, %s94
    %p103 = scmp.eq.s32.totalorder %s20, 0
    %p104 = por %p102, %p103
    %p105 = scmp.ne.s32.totalorder %s93, %s94
    %p106 = scmp.eq.s32.totalorder %s21, 1
    %p107 = por %p105, %p106
    %p109 = scmp.ne.s32.totalorder %s94, %s108
    %p110 = scmp.eq.s32.totalorder %s21, 0
    %p111 = por %p109, %p110
    %s113 = sadd.s32 %s112, 1
    %p116 = scmp.eq.s32.totalorder %s15, 1
    %p117 = scmp.ne.s32.totalorder %s112, %s114
    %p118 = scmp.eq.s32.totalorder %s15, 0
    %p119 = por %p117, %p118
    %p120 = scmp.ne.s32.totalorder %s112, %s114
    %p121 = scmp.eq.s32.totalorder %s20, 1
    %p122 = por %p120, %p121
    %p123 = scmp.ne.s32.totalorder %s114, %s115
    %p124 = scmp.eq.s32.totalorder %s20, 0
    %p125 = por %p123, %p124
    %p126 = scmp.ne.s32.totalorder %s114, %s115
    %p127 = scmp.eq.s32.totalorder %s21, 1
    %p128 = por %p126, %p127
    %p130 = scmp.ne.s32.totalorder %s115, %s129
    %p131 = scmp.eq.s32.totalorder %s21, 0
    %p132 = por %p130, %p131
    %s134 = sadd.s32 %s133, 1
    %p137 = scmp.eq.s32.totalorder %s15, 1
    %p138 = scmp.ne.s32.totalorder %s133, %s135
    %p139 = scmp.eq.s32.totalorder %s15, 0
    %p140 = por %p138, %p139
    %p141 = scmp.ne.s32.totalorder %s133, %s135
    %p142 = scmp.eq.s32.totalorder %s20, 1
    %p143 = por %p141, %p142
    %p144 = scmp.ne.s32.totalorder %s135, %s136
    %p145 = scmp.eq.s32.totalorder %s20, 0
    %p146 = por %p144, %p145
    %p147 = scmp.ne.s32.totalorder %s135, %s136
    %p148 = scmp.eq.s32.totalorder %s21, 1
    %p149 = por %p147, %p148
    %p151 = scmp.ne.s32.totalorder %s136, %s150
    %p152 = scmp.eq.s32.totalorder %s21, 0
    %p153 = por %p151, %p152
    %s155 = sadd.s32 %s154, 1
    %p158 = scmp.eq.s32.totalorder %s15, 1
    %p159 = scmp.ne.s32.totalorder %s154, %s156
    %p160 = scmp.eq.s32.totalorder %s15, 0
    %p161 = por %p159, %p160
    %p162 = scmp.ne.s32.totalorder %s154, %s156
    %p163 = scmp.eq.s32.totalorder %s20, 1
    %p164 = por %p162, %p163
    %p165 = scmp.ne.s32.totalorder %s156, %s157
    %p166 = scmp.eq.s32.totalorder %s20, 0
    %p167 = por %p165, %p166
    %p168 = scmp.ne.s32.totalorder %s156, %s157
    %p169 = scmp.eq.s32.totalorder %s21, 1
    %p170 = por %p168, %p169
    %p172 = scmp.ne.s32.totalorder %s157, %s171
    %p173 = scmp.eq.s32.totalorder %s21, 0
    %p174 = por %p172, %p173
    %s176 = sadd.s32 %s175, 1
    %p179 = scmp.eq.s32.totalorder %s15, 1
    %p180 = scmp.ne.s32.totalorder %s175, %s177
    %p181 = scmp.eq.s32.totalorder %s15, 0
    %p182 = por %p180, %p181
    %p183 = scmp.ne.s32.totalorder %s175, %s177
    %p184 = scmp.eq.s32.totalorder %s20, 1
    %p185 = por %p183, %p184
    %p186 = scmp.ne.s32.totalorder %s177, %s178
    %p187 = scmp.eq.s32.totalorder %s20, 0
    %p188 = por %p186, %p187
    %p189 = scmp.ne.s32.totalorder %s177, %s178
    %p190 = scmp.eq.s32.totalorder %s21, 1
    %p191 = por %p189, %p190
    %p193 = scmp.ne.s32.totalorder %s178, %s192
    %p194 = scmp.eq.s32.totalorder %s21, 0
    %p195 = por %p193, %p194
    %s197 = sadd.s32 %s196, 1
    %p200 = scmp.eq.s32.totalorder %s15, 1
    %p201 = scmp.ne.s32.totalorder %s196, %s198
    %p202 = scmp.eq.s32.totalorder %s15, 0
    %p203 = por %p201, %p202
    %p204 = scmp.ne.s32.totalorder %s196, %s198
    %p205 = scmp.eq.s32.totalorder %s20, 1
    %p206 = por %p204, %p205
    %p207 = scmp.ne.s32.totalorder %s198, %s199
    %p208 = scmp.eq.s32.totalorder %s20, 0
    %p209 = por %p207, %p208
    %p210 = scmp.ne.s32.totalorder %s198, %s199
    %p211 = scmp.eq.s32.totalorder %s21, 1
    %p212 = por %p210, %p211
    %p214 = scmp.ne.s32.totalorder %s199, %s213
    %p215 = scmp.eq.s32.totalorder %s21, 0
    %p216 = por %p214, %p215
    %s217 = ssub.s32 %s15, %s22
    %p218 = scmp.eq.s32.totalorder %s217, 0
    %s220 = sadd.s32 %s219, 1
    %s221 = scalar_select %p218, %s219, %s220
    %p224 = pneg %p218
    %p225 = scmp.eq.s32.totalorder %s15, 1
    %p226 = por %p224, %p225
    %p227 = scmp.ne.s32.totalorder %s219, %s222
    %p228 = scmp.eq.s32.totalorder %s15, 0
    %p229 = por %p227, %p228
    %p230 = scmp.ne.s32.totalorder %s219, %s222
    %p231 = scmp.eq.s32.totalorder %s20, 1
    %p232 = por %p230, %p231
    %p233 = scmp.ne.s32.totalorder %s222, %s223
    %p234 = scmp.eq.s32.totalorder %s20, 0
    %p235 = por %p233, %p234
    %p236 = scmp.ne.s32.totalorder %s222, %s223
    %p237 = scmp.eq.s32.totalorder %s21, 1
    %p238 = por %p236, %p237
    %p240 = scmp.ne.s32.totalorder %s223, %s239
    %p241 = scmp.eq.s32.totalorder %s21, 0
    %p242 = por %p240, %p241
    %p243 = scmp.le.s32.totalorder 1, %s15
    %p244 = scmp.lt.s32.totalorder %s15, 3
    %p245 = pnand %p243, %p244
    %p246 = pneg %p245
    // Predicated region
    $region9: #{tpu_custom_call.1} parent=5 // pred_check
      _
    $region10: #{tpu_custom_call.1} parent=5 // pred_check_branch
      %248 = sbr.rel (%p245) target = $region12
    $region11: #{tpu_custom_call.1} parent=5 // pred_region
      %s249 = ssub.s32 %s15, 1
      // Predicated region
      $region13: #{tpu_custom_call.1} parent=11 // pred_check
        %p250 = pneg %p62
      $region14: #{tpu_custom_call.1} parent=11 // pred_check_branch
        %252 = sbr.rel (%p250) target = $region16
      $region15: #{tpu_custom_call.1} parent=11 // pred_region
        _
      $region16: #{tpu_custom_call.1} parent=11 // pred_fallthru
        _
      // Predicated region
      $region17: #{tpu_custom_call.1} parent=11 // pred_check
        %p253 = pneg %p83
      $region18: #{tpu_custom_call.1} parent=11 // pred_check_branch
        %255 = sbr.rel (%p253) target = $region20
      $region19: #{tpu_custom_call.1} parent=11 // pred_region
        _
      $region20: #{tpu_custom_call.1} parent=11 // pred_fallthru
        _
      // Predicated region
      $region21: #{tpu_custom_call.1} parent=11 // pred_check
        %p256 = pneg %p104
      $region22: #{tpu_custom_call.1} parent=11 // pred_check_branch
        %258 = sbr.rel (%p256) target = $region24
      $region23: #{tpu_custom_call.1} parent=11 // pred_region
        _
      $region24: #{tpu_custom_call.1} parent=11 // pred_fallthru
        _
      // Predicated region
      $region25: #{tpu_custom_call.1} parent=11 // pred_check
        %p259 = pneg %p125
      $region26: #{tpu_custom_call.1} parent=11 // pred_check_branch
        %261 = sbr.rel (%p259) target = $region28
      $region27: #{tpu_custom_call.1} parent=11 // pred_region
        _
      $region28: #{tpu_custom_call.1} parent=11 // pred_fallthru
        _
      // Predicated region
      $region29: #{tpu_custom_call.1} parent=11 // pred_check
        %p262 = pneg %p146
      $region30: #{tpu_custom_call.1} parent=11 // pred_check_branch
        %264 = sbr.rel (%p262) target = $region32
      $region31: #{tpu_custom_call.1} parent=11 // pred_region
        _
      $region32: #{tpu_custom_call.1} parent=11 // pred_fallthru
        _
      // Predicated region
      $region33: #{tpu_custom_call.1} parent=11 // pred_check
        %p265 = pneg %p167
      $region34: #{tpu_custom_call.1} parent=11 // pred_check_branch
        %267 = sbr.rel (%p265) target = $region36
      $region35: #{tpu_custom_call.1} parent=11 // pred_region
        _
      $region36: #{tpu_custom_call.1} parent=11 // pred_fallthru
        _
      // Predicated region
      $region37: #{tpu_custom_call.1} parent=11 // pred_check
        %p268 = pneg %p188
      $region38: #{tpu_custom_call.1} parent=11 // pred_check_branch
        %270 = sbr.rel (%p268) target = $region40
      $region39: #{tpu_custom_call.1} parent=11 // pred_region
        _
      $region40: #{tpu_custom_call.1} parent=11 // pred_fallthru
        _
      // Predicated region
      $region41: #{tpu_custom_call.1} parent=11 // pred_check
        %p271 = pneg %p209
      $region42: #{tpu_custom_call.1} parent=11 // pred_check_branch
        %273 = sbr.rel (%p271) target = $region44
      $region43: #{tpu_custom_call.1} parent=11 // pred_region
        _
      $region44: #{tpu_custom_call.1} parent=11 // pred_fallthru
        _
    $region12: #{tpu_custom_call.1} parent=5 // pred_fallthru
      _
    %p274 = scmp.lt.s32.totalorder %s15, 2
    // Predicated region
    $region45: #{tpu_custom_call.1} parent=5 // pred_check
      %p275 = pneg %p274
    $region46: #{tpu_custom_call.1} parent=5 // pred_check_branch
      %277 = sbr.rel (%p275) target = $region48
    $region47: #{tpu_custom_call.1} parent=5 // pred_region
      // Predicated region
      $region49: #{tpu_custom_call.1} parent=47 // pred_check
        %p278 = pneg %p35
      $region50: #{tpu_custom_call.1} parent=47 // pred_check_branch
        %280 = sbr.rel (%p278) target = $region52
      $region51: #{tpu_custom_call.1} parent=47 // pred_region
        %p281 = scmp.lt.s32.totalorder %s15, 1
        %s282 = scalar_select %p281, %s15, 1
        %s283 = smul.addr %s282, 32
        %s284 = smul.addr %s283, 4
        %s285 = scalar_lea.vmem %s0, %s284
      $region52: #{tpu_custom_call.1} parent=47 // pred_fallthru
        _
    $region48: #{tpu_custom_call.1} parent=5 // pred_fallthru
      _
    %p286 = scmp.le.s32.totalorder 1, %s15
    %p287 = scmp.lt.s32.totalorder %s15, 3
    %p288 = pnand %p286, %p287
    %p289 = pneg %p288
    // Predicated region
    $region53: #{tpu_custom_call.1} parent=5 // pred_check
      _
    $region54: #{tpu_custom_call.1} parent=5 // pred_check_branch
      %291 = sbr.rel (%p288) target = $region56
    $region55: #{tpu_custom_call.1} parent=5 // pred_region
      %s292 = ssub.s32 %s15, 1
      %p293 = scmp.lt.s32.totalorder %s20, 1
      %s294 = scalar_select %p293, %s20, 1
      %s295 = smul.addr %s294, 32
      %s296 = smul.addr %s295, 4
      %s297 = scalar_lea.vmem %s0, %s296
      %p298 = pneg %p41
      %p299 = pneg %p38
      %p300 = pneg %p62
      %p301 = pneg %p59
      %p302 = pneg %p83
      %p303 = pneg %p80
      %p304 = pneg %p104
      %p305 = pneg %p101
      %p306 = pneg %p125
      %p307 = pneg %p122
      %p308 = pneg %p146
      %p309 = pneg %p143
      %p310 = pneg %p167
      %p311 = pneg %p164
      %p312 = pneg %p188
      %p313 = pneg %p185
      %p314 = pneg %p209
      %p315 = pneg %p206
      %p316 = pneg %p235
      %p317 = pneg %p232
      %p318 = scmp.lt.s32.totalorder %s20, 1
      %s319 = scalar_select %p318, %s20, 1
      %s320 = smul.addr %s319, 32
      %s321 = smul.addr %s320, 8
      %s322 = scalar_lea.vmem %s9, %s321
      %p323 = scmp.lt.s32.totalorder %s20, 1
      %s324 = scalar_select %p323, %s20, 1
      %s325 = smul.addr %s324, 32
      %s326 = smul.addr %s325, 4
      %s327 = scalar_lea.vmem %s0, %s326
      %p328 = scmp.lt.s32.totalorder %s20, 1
      %s329 = scalar_select %p328, %s20, 1
      %s330 = smul.addr %s329, 32
      %s331 = smul.addr %s330, 8
      %s332 = scalar_lea.vmem %s9, %s331
      %vm334 = vcmask 27648
      %335 = vst.msk [vmem:[#allocation2] sm:$0xf] %vm334, 0
      %336 = vst.msk [vmem:[#allocation2 + $0x4] sm:$0xf] %vm334, 0
      %337 = vst.msk [vmem:[#allocation2 + $0x8] sm:$0xf] %vm334, 0
      %338 = vst.msk [vmem:[#allocation2 + $0xc] sm:$0xf] %vm334, 0
      %s339 = scalar_lea.vmem [#allocation2], 272
      %340 = vst.msk [vmem:[%s339] sm:$0xf] %vm334, 0
      %341 = vst.msk [vmem:[%s339 + $0x4] sm:$0xf] %vm334, 0
      %342 = vst.msk [vmem:[%s339 + $0x8] sm:$0xf] %vm334, 0
      %343 = vst.msk [vmem:[%s339 + $0xc] sm:$0xf] %vm334, 0
      %s344 = scalar_lea.vmem [#allocation2], 16
      %345 = vst.msk [vmem:[%s344 + $0x8] sm:$0xf] %vm334, 0
      %346 = vst.msk [vmem:[%s344 + $0xc] sm:$0xf] %vm334, 0
      %347 = vst.msk [vmem:[%s344 + $0x18] sm:$0xf] %vm334, 0
      %348 = vst.msk [vmem:[%s344 + $0x1c] sm:$0xf] %vm334, 0
      %349 = vst.msk [vmem:[%s344 + $0x28] sm:$0xf] %vm334, 0
      %350 = vst.msk [vmem:[%s344 + $0x2c] sm:$0xf] %vm334, 0
      %351 = vst.msk [vmem:[%s344 + $0x38] sm:$0xf] %vm334, 0
      %352 = vst.msk [vmem:[%s344 + $0x3c] sm:$0xf] %vm334, 0
      %353 = vst.msk [vmem:[%s344 + $0x48] sm:$0xf] %vm334, 0
      %354 = vst.msk [vmem:[%s344 + $0x4c] sm:$0xf] %vm334, 0
      %355 = vst.msk [vmem:[%s344 + $0x58] sm:$0xf] %vm334, 0
      %356 = vst.msk [vmem:[%s344 + $0x5c] sm:$0xf] %vm334, 0
      %357 = vst.msk [vmem:[%s344 + $0x68] sm:$0xf] %vm334, 0
      %358 = vst.msk [vmem:[%s344 + $0x6c] sm:$0xf] %vm334, 0
      %359 = vst.msk [vmem:[%s344 + $0x78] sm:$0xf] %vm334, 0
      %360 = vst.msk [vmem:[%s344 + $0x7c] sm:$0xf] %vm334, 0
      %361 = vst.msk [vmem:[%s344 + $0x88] sm:$0xf] %vm334, 0
      %362 = vst.msk [vmem:[%s344 + $0x8c] sm:$0xf] %vm334, 0
      %363 = vst.msk [vmem:[%s344 + $0x98] sm:$0xf] %vm334, 0
      %364 = vst.msk [vmem:[%s344 + $0x9c] sm:$0xf] %vm334, 0
      %365 = vst.msk [vmem:[%s344 + $0xa8] sm:$0xf] %vm334, 0
      %366 = vst.msk [vmem:[%s344 + $0xac] sm:$0xf] %vm334, 0
      %367 = vst.msk [vmem:[%s344 + $0xb8] sm:$0xf] %vm334, 0
      %368 = vst.msk [vmem:[%s344 + $0xbc] sm:$0xf] %vm334, 0
      %369 = vst.msk [vmem:[%s344 + $0xc8] sm:$0xf] %vm334, 0
      %370 = vst.msk [vmem:[%s344 + $0xcc] sm:$0xf] %vm334, 0
      %371 = vst.msk [vmem:[%s344 + $0xd8] sm:$0xf] %vm334, 0
      %372 = vst.msk [vmem:[%s344 + $0xdc] sm:$0xf] %vm334, 0
      %373 = vst.msk [vmem:[%s344 + $0xe8] sm:$0xf] %vm334, 0
      %374 = vst.msk [vmem:[%s344 + $0xec] sm:$0xf] %vm334, 0
      %375 = vst.msk [vmem:[%s344 + $0xf8] sm:$0xf] %vm334, 0
      %376 = vst.msk [vmem:[%s344 + $0xfc] sm:$0xf] %vm334, 0
      %v377 = vld [vmem:[%s327] sm:$0xf]
      %v378 = vld [vmem:[%s327 + $0x4] sm:$0xf]
      %v379 = vld [vmem:[%s327 + $0x8] sm:$0xf]
      %v380 = vld [vmem:[%s327 + $0xc] sm:$0xf]
      %v381 = vld [vmem:[%s327 + $0x10] sm:$0xf]
      %v382 = vld [vmem:[%s327 + $0x14] sm:$0xf]
      %v383 = vld [vmem:[%s327 + $0x18] sm:$0xf]
      %v384 = vld [vmem:[%s327 + $0x1c] sm:$0xf]
      %v385 = vld [vmem:[%s327 + $0x20] sm:$0xf]
      %v386 = vld [vmem:[%s327 + $0x24] sm:$0xf]
      %v387 = vld [vmem:[%s327 + $0x28] sm:$0xf]
      %v388 = vld [vmem:[%s327 + $0x2c] sm:$0xf]
      %v389 = vld [vmem:[%s327 + $0x30] sm:$0xf]
      %v390 = vld [vmem:[%s327 + $0x34] sm:$0xf]
      %v391 = vld [vmem:[%s327 + $0x38] sm:$0xf]
      %v392 = vld [vmem:[%s327 + $0x3c] sm:$0xf]
      %v393 = vld [vmem:[%s327 + $0x40] sm:$0xf]
      %v394 = vld [vmem:[%s327 + $0x44] sm:$0xf]
      %v395 = vld [vmem:[%s327 + $0x48] sm:$0xf]
      %v396 = vld [vmem:[%s327 + $0x4c] sm:$0xf]
      %v397 = vld [vmem:[%s327 + $0x50] sm:$0xf]
      %v398 = vld [vmem:[%s327 + $0x54] sm:$0xf]
      %v399 = vld [vmem:[%s327 + $0x58] sm:$0xf]
      %v400 = vld [vmem:[%s327 + $0x5c] sm:$0xf]
      %v401 = vld [vmem:[%s327 + $0x60] sm:$0xf]
      %v402 = vld [vmem:[%s327 + $0x64] sm:$0xf]
      %v403 = vld [vmem:[%s327 + $0x68] sm:$0xf]
      %v404 = vld [vmem:[%s327 + $0x6c] sm:$0xf]
      %v405 = vld [vmem:[%s327 + $0x70] sm:$0xf]
      %v406 = vld [vmem:[%s327 + $0x74] sm:$0xf]
      %v407 = vld [vmem:[%s327 + $0x78] sm:$0xf]
      %v408 = vld [vmem:[%s327 + $0x7c] sm:$0xf]
      %v409 = vld [vmem:[%s1] sm:$0xf]
      %v410 = vld [vmem:[%s2] sm:$0x1]
      %v412 = vlaneseq
      %v413 = vshrl.u32 %v412, 7
      %v414 = vsub.s32 0, %v413
      %v415 = vrot.slane %v410, %v414
      %v449 = vunpack.c.l.b16 %v377
      %v450 = vunpack.c.l.b16 %v378
      %v451 = vunpack.c.l.b16 %v379
      %v452 = vunpack.c.l.b16 %v380
      %v453 = vunpack.c.l.b16 %v381
      %v454 = vunpack.c.l.b16 %v382
      %v455 = vunpack.c.l.b16 %v383
      %v456 = vunpack.c.l.b16 %v384
      %v457 = vunpack.c.l.b16 %v385
      %v458 = vunpack.c.l.b16 %v386
      %v459 = vunpack.c.l.b16 %v387
      %v460 = vunpack.c.l.b16 %v388
      %v461 = vunpack.c.l.b16 %v389
      %v462 = vunpack.c.l.b16 %v390
      %v463 = vunpack.c.l.b16 %v391
      %v464 = vunpack.c.l.b16 %v392
      %v465 = vunpack.c.l.b16 %v393
      %v466 = vunpack.c.l.b16 %v394
      %v467 = vunpack.c.l.b16 %v395
      %v468 = vunpack.c.l.b16 %v396
      %v469 = vunpack.c.l.b16 %v397
      %v470 = vunpack.c.l.b16 %v398
      %v471 = vunpack.c.l.b16 %v399
      %v472 = vunpack.c.l.b16 %v400
      %v473 = vunpack.c.l.b16 %v401
      %v474 = vunpack.c.l.b16 %v402
      %v475 = vunpack.c.l.b16 %v403
      %v476 = vunpack.c.l.b16 %v404
      %v477 = vunpack.c.l.b16 %v405
      %v478 = vunpack.c.l.b16 %v406
      %v479 = vunpack.c.l.b16 %v407
      %v480 = vunpack.c.l.b16 %v408
      %v481 = vpack.c.b16 %v450, %v449
      %v482 = vpack.c.b16 %v452, %v451
      %v483 = vpack.c.b16 %v454, %v453
      %v484 = vpack.c.b16 %v456, %v455
      %v485 = vpack.c.b16 %v458, %v457
      %v486 = vpack.c.b16 %v460, %v459
      %v487 = vpack.c.b16 %v462, %v461
      %v488 = vpack.c.b16 %v464, %v463
      %v489 = vpack.c.b16 %v466, %v465
      %v490 = vpack.c.b16 %v468, %v467
      %v491 = vpack.c.b16 %v470, %v469
      %v492 = vpack.c.b16 %v472, %v471
      %v493 = vpack.c.b16 %v474, %v473
      %v494 = vpack.c.b16 %v476, %v475
      %v495 = vpack.c.b16 %v478, %v477
      %v496 = vpack.c.b16 %v480, %v479
      %vm497 = vcmask 64512
      %v499 = vsel %vm497, %v481, 0
      %v502 = vsel %vm497, %v482, 0
      %v505 = vsel %vm497, %v483, 0
      %v508 = vsel %vm497, %v484, 0
      %v511 = vsel %vm497, %v485, 0
      %v514 = vsel %vm497, %v486, 0
      %v517 = vsel %vm497, %v487, 0
      %v520 = vsel %vm497, %v488, 0
      %v523 = vsel %vm497, %v489, 0
      %v526 = vsel %vm497, %v490, 0
      %v529 = vsel %vm497, %v491, 0
      %v532 = vsel %vm497, %v492, 0
      %v535 = vsel %vm497, %v493, 0
      %v538 = vsel %vm497, %v494, 0
      %v541 = vsel %vm497, %v495, 0
      %v544 = vsel %vm497, %v496, 0
      %vm546 = vcmask 1043456
      %v548 = vsel %vm546, %v409, 0
      %550 = vmatprep.subr.bf16.mxu0 0
      %551 = vmatpush1.bf16.msra.mxu0 0
      %552 = vmatprep.subr.bf16.mxu0 0
      %553 = vmatpush1.bf16.msra.mxu0 0
      %554 = vmatprep.subr.bf16.mxu0 0
      %555 = vmatpush1.bf16.msra.mxu0 0
      %556 = vmatprep.subr.bf16.mxu0 0
      %557 = vmatpush1.bf16.msra.mxu0 0
      %558 = vmatprep.subr.bf16.mxu0 0
      %559 = vmatpush1.bf16.msra.mxu0 0
      %560 = vmatprep.subr.bf16.mxu0 0
      %561 = vmatpush1.bf16.msra.mxu0 0
      %562 = vmatprep.subr.bf16.mxu0 0
      %563 = vmatpush1.bf16.msra.mxu0 0
      %564 = vmatprep.subr.bf16.mxu0 0
      %565 = vmatpush1.bf16.msra.mxu0 %v548
      %566 = vmatprep.subr.bf16.mxu0 0
      %567 = vmatpush2.bf16.msra.mxu0 0
      %568 = vmatprep.subr.bf16.mxu0 0
      %569 = vmatpush2.bf16.msra.mxu0 0
      %570 = vmatprep.subr.bf16.mxu0 0
      %571 = vmatpush2.bf16.msra.mxu0 0
      %572 = vmatprep.subr.bf16.mxu0 0
      %573 = vmatpush2.bf16.msra.mxu0 0
      %574 = vmatprep.subr.bf16.mxu0 0
      %575 = vmatpush2.bf16.msra.mxu0 0
      %576 = vmatprep.subr.bf16.mxu0 0
      %577 = vmatpush2.bf16.msra.mxu0 0
      %578 = vmatprep.subr.bf16.mxu0 0
      %579 = vmatpush2.bf16.msra.mxu0 0
      %580 = vmatprep.subr.bf16.mxu0 0
      %581 = vmatpush2.bf16.msra.mxu0 0
      %582 = vmatprep.mubr.bf16.mxu0 0
      %583 = vmatmul.mubr.bf16.gmra.mxu0 %v499
      %v584 = vpop.f32.mrf.mxu0
      %v585 = vadd.f32 %v415, %v584
      %v586 = vpop.f32.mrf.mxu0
      %v587 = vpop.f32.mrf.mxu0
      %v588 = vadd.f32 %v415, %v587
      %v589 = vpop.f32.mrf.mxu0
      %590 = vmatprep.mubr.bf16.mxu0 0
      %591 = vmatmul.mubr.bf16.gmra.mxu0 %v502
      %v592 = vpop.f32.mrf.mxu0
      %v593 = vadd.f32 %v415, %v592
      %v594 = vpop.f32.mrf.mxu0
      %v595 = vpop.f32.mrf.mxu0
      %v596 = vadd.f32 %v415, %v595
      %v597 = vpop.f32.mrf.mxu0
      %598 = vmatprep.mubr.bf16.mxu0 0
      %599 = vmatmul.mubr.bf16.gmra.mxu0 %v505
      %v600 = vpop.f32.mrf.mxu0
      %v601 = vadd.f32 %v415, %v600
      %v602 = vpop.f32.mrf.mxu0
      %v603 = vpop.f32.mrf.mxu0
      %v604 = vadd.f32 %v415, %v603
      %v605 = vpop.f32.mrf.mxu0
      %606 = vmatprep.mubr.bf16.mxu0 0
      %607 = vmatmul.mubr.bf16.gmra.mxu0 %v508
      %v608 = vpop.f32.mrf.mxu0
      %v609 = vadd.f32 %v415, %v608
      %v610 = vpop.f32.mrf.mxu0
      %v611 = vpop.f32.mrf.mxu0
      %v612 = vadd.f32 %v415, %v611
      %v613 = vpop.f32.mrf.mxu0
      %614 = vmatprep.mubr.bf16.mxu0 0
      %615 = vmatmul.mubr.bf16.gmra.mxu0 %v511
      %v616 = vpop.f32.mrf.mxu0
      %v617 = vadd.f32 %v415, %v616
      %v618 = vpop.f32.mrf.mxu0
      %v619 = vpop.f32.mrf.mxu0
      %v620 = vadd.f32 %v415, %v619
      %v621 = vpop.f32.mrf.mxu0
      %622 = vmatprep.mubr.bf16.mxu0 0
      %623 = vmatmul.mubr.bf16.gmra.mxu0 %v514
      %v624 = vpop.f32.mrf.mxu0
      %v625 = vadd.f32 %v415, %v624
      %v626 = vpop.f32.mrf.mxu0
      %v627 = vpop.f32.mrf.mxu0
      %v628 = vadd.f32 %v415, %v627
      %v629 = vpop.f32.mrf.mxu0
      %630 = vmatprep.mubr.bf16.mxu0 0
      %631 = vmatmul.mubr.bf16.gmra.mxu0 %v517
      %v632 = vpop.f32.mrf.mxu0
      %v633 = vadd.f32 %v415, %v632
      %v634 = vpop.f32.mrf.mxu0
      %v635 = vpop.f32.mrf.mxu0
      %v636 = vadd.f32 %v415, %v635
      %v637 = vpop.f32.mrf.mxu0
      %638 = vmatprep.mubr.bf16.mxu0 0
      %639 = vmatmul.mubr.bf16.gmra.mxu0 %v520
      %v640 = vpop.f32.mrf.mxu0
      %v641 = vadd.f32 %v415, %v640
      %v642 = vpop.f32.mrf.mxu0
      %v643 = vpop.f32.mrf.mxu0
      %v644 = vadd.f32 %v415, %v643
      %v645 = vpop.f32.mrf.mxu0
      %646 = vmatprep.mubr.bf16.mxu0 0
      %647 = vmatmul.mubr.bf16.gmra.mxu0 %v523
      %v648 = vpop.f32.mrf.mxu0
      %v649 = vadd.f32 %v415, %v648
      %v650 = vpop.f32.mrf.mxu0
      %v651 = vpop.f32.mrf.mxu0
      %v652 = vadd.f32 %v415, %v651
      %v653 = vpop.f32.mrf.mxu0
      %654 = vmatprep.mubr.bf16.mxu0 0
      %655 = vmatmul.mubr.bf16.gmra.mxu0 %v526
      %v656 = vpop.f32.mrf.mxu0
      %v657 = vadd.f32 %v415, %v656
      %v658 = vpop.f32.mrf.mxu0
      %v659 = vpop.f32.mrf.mxu0
      %v660 = vadd.f32 %v415, %v659
      %v661 = vpop.f32.mrf.mxu0
      %662 = vmatprep.mubr.bf16.mxu0 0
      %663 = vmatmul.mubr.bf16.gmra.mxu0 %v529
      %v664 = vpop.f32.mrf.mxu0
      %v665 = vadd.f32 %v415, %v664
      %v666 = vpop.f32.mrf.mxu0
      %v667 = vpop.f32.mrf.mxu0
      %v668 = vadd.f32 %v415, %v667
      %v669 = vpop.f32.mrf.mxu0
      %670 = vmatprep.mubr.bf16.mxu0 0
      %671 = vmatmul.mubr.bf16.gmra.mxu0 %v532
      %v672 = vpop.f32.mrf.mxu0
      %v673 = vadd.f32 %v415, %v672
      %v674 = vpop.f32.mrf.mxu0
      %v675 = vpop.f32.mrf.mxu0
      %v676 = vadd.f32 %v415, %v675
      %v677 = vpop.f32.mrf.mxu0
      %678 = vmatprep.mubr.bf16.mxu0 0
      %679 = vmatmul.mubr.bf16.gmra.mxu0 %v535
      %v680 = vpop.f32.mrf.mxu0
      %v681 = vadd.f32 %v415, %v680
      %v682 = vpop.f32.mrf.mxu0
      %v683 = vpop.f32.mrf.mxu0
      %v684 = vadd.f32 %v415, %v683
      %v685 = vpop.f32.mrf.mxu0
      %686 = vmatprep.mubr.bf16.mxu0 0
      %687 = vmatmul.mubr.bf16.gmra.mxu0 %v538
      %v688 = vpop.f32.mrf.mxu0
      %v689 = vadd.f32 %v415, %v688
      %v690 = vpop.f32.mrf.mxu0
      %v691 = vpop.f32.mrf.mxu0
      %v692 = vadd.f32 %v415, %v691
      %v693 = vpop.f32.mrf.mxu0
      %694 = vmatprep.mubr.bf16.mxu0 0
      %695 = vmatmul.mubr.bf16.gmra.mxu0 %v541
      %v696 = vpop.f32.mrf.mxu0
      %v697 = vadd.f32 %v415, %v696
      %v698 = vpop.f32.mrf.mxu0
      %v699 = vpop.f32.mrf.mxu0
      %v700 = vadd.f32 %v415, %v699
      %v701 = vpop.f32.mrf.mxu0
      %702 = vmatprep.mubr.bf16.mxu0 0
      %703 = vmatmul.mubr.bf16.gmra.mxu0 %v544
      %v704 = vpop.f32.mrf.mxu0
      %v705 = vadd.f32 %v415, %v704
      %v706 = vpop.f32.mrf.mxu0
      %v707 = vpop.f32.mrf.mxu0
      %v708 = vadd.f32 %v415, %v707
      %v709 = vpop.f32.mrf.mxu0
      %710 = vdwg.mxu0
      %v711 = vxor.u32 %v585, 2147483648
      %v712 = vxor.u32 %v588, 2147483648
      %v713 = vxor.u32 %v593, 2147483648
      %v714 = vxor.u32 %v596, 2147483648
      %v715 = vxor.u32 %v601, 2147483648
      %v716 = vxor.u32 %v604, 2147483648
      %v717 = vxor.u32 %v609, 2147483648
      %v718 = vxor.u32 %v612, 2147483648
      %v719 = vxor.u32 %v617, 2147483648
      %v720 = vxor.u32 %v620, 2147483648
      %v721 = vxor.u32 %v625, 2147483648
      %v722 = vxor.u32 %v628, 2147483648
      %v723 = vxor.u32 %v633, 2147483648
      %v724 = vxor.u32 %v636, 2147483648
      %v725 = vxor.u32 %v641, 2147483648
      %v726 = vxor.u32 %v644, 2147483648
      %v727 = vxor.u32 %v649, 2147483648
      %v728 = vxor.u32 %v652, 2147483648
      %v729 = vxor.u32 %v657, 2147483648
      %v730 = vxor.u32 %v660, 2147483648
      %v731 = vxor.u32 %v665, 2147483648
      %v732 = vxor.u32 %v668, 2147483648
      %v733 = vxor.u32 %v673, 2147483648
      %v734 = vxor.u32 %v676, 2147483648
      %v735 = vxor.u32 %v681, 2147483648
      %v736 = vxor.u32 %v684, 2147483648
      %v737 = vxor.u32 %v689, 2147483648
      %v738 = vxor.u32 %v692, 2147483648
      %v739 = vxor.u32 %v697, 2147483648
      %v740 = vxor.u32 %v700, 2147483648
      %v741 = vxor.u32 %v705, 2147483648
      %v742 = vxor.u32 %v708, 2147483648
      %v743 = vmul.f32 %v711, 1.442695
      %v744 = vpow.pop %v743
      %v745 = vmul.f32 %v712, 1.442695
      %v746 = vpow.pop %v745
      %v747 = vmul.f32 %v713, 1.442695
      %v748 = vpow.pop %v747
      %v749 = vmul.f32 %v714, 1.442695
      %v750 = vpow.pop %v749
      %v751 = vmul.f32 %v715, 1.442695
      %v752 = vpow.pop %v751
      %v753 = vmul.f32 %v716, 1.442695
      %v754 = vpow.pop %v753
      %v755 = vmul.f32 %v717, 1.442695
      %v756 = vpow.pop %v755
      %v757 = vmul.f32 %v718, 1.442695
      %v758 = vpow.pop %v757
      %v759 = vmul.f32 %v719, 1.442695
      %v760 = vpow.pop %v759
      %v761 = vmul.f32 %v720, 1.442695
      %v762 = vpow.pop %v761
      %v763 = vmul.f32 %v721, 1.442695
      %v764 = vpow.pop %v763
      %v765 = vmul.f32 %v722, 1.442695
      %v766 = vpow.pop %v765
      %v767 = vmul.f32 %v723, 1.442695
      %v768 = vpow.pop %v767
      %v769 = vmul.f32 %v724, 1.442695
      %v770 = vpow.pop %v769
      %v771 = vmul.f32 %v725, 1.442695
      %v772 = vpow.pop %v771
      %v773 = vmul.f32 %v726, 1.442695
      %v774 = vpow.pop %v773
      %v775 = vmul.f32 %v727, 1.442695
      %v776 = vpow.pop %v775
      %v777 = vmul.f32 %v728, 1.442695
      %v778 = vpow.pop %v777
      %v779 = vmul.f32 %v729, 1.442695
      %v780 = vpow.pop %v779
      %v781 = vmul.f32 %v730, 1.442695
      %v782 = vpow.pop %v781
      %v783 = vmul.f32 %v731, 1.442695
      %v784 = vpow.pop %v783
      %v785 = vmul.f32 %v732, 1.442695
      %v786 = vpow.pop %v785
      %v787 = vmul.f32 %v733, 1.442695
      %v788 = vpow.pop %v787
      %v789 = vmul.f32 %v734, 1.442695
      %v790 = vpow.pop %v789
      %v791 = vmul.f32 %v735, 1.442695
      %v792 = vpow.pop %v791
      %v793 = vmul.f32 %v736, 1.442695
      %v794 = vpow.pop %v793
      %v795 = vmul.f32 %v737, 1.442695
      %v796 = vpow.pop %v795
      %v797 = vmul.f32 %v738, 1.442695
      %v798 = vpow.pop %v797
      %v799 = vmul.f32 %v739, 1.442695
      %v800 = vpow.pop %v799
      %v801 = vmul.f32 %v740, 1.442695
      %v802 = vpow.pop %v801
      %v803 = vmul.f32 %v741, 1.442695
      %v804 = vpow.pop %v803
      %v805 = vmul.f32 %v742, 1.442695
      %v806 = vpow.pop %v805
      %v807 = vadd.f32 %v744, 1.0
      %v808 = vadd.f32 %v746, 1.0
      %v809 = vadd.f32 %v748, 1.0
      %v810 = vadd.f32 %v750, 1.0
      %v811 = vadd.f32 %v752, 1.0
      %v812 = vadd.f32 %v754, 1.0
      %v813 = vadd.f32 %v756, 1.0
      %v814 = vadd.f32 %v758, 1.0
      %v815 = vadd.f32 %v760, 1.0
      %v816 = vadd.f32 %v762, 1.0
      %v817 = vadd.f32 %v764, 1.0
      %v818 = vadd.f32 %v766, 1.0
      %v819 = vadd.f32 %v768, 1.0
      %v820 = vadd.f32 %v770, 1.0
      %v821 = vadd.f32 %v772, 1.0
      %v822 = vadd.f32 %v774, 1.0
      %v823 = vadd.f32 %v776, 1.0
      %v824 = vadd.f32 %v778, 1.0
      %v825 = vadd.f32 %v780, 1.0
      %v826 = vadd.f32 %v782, 1.0
      %v827 = vadd.f32 %v784, 1.0
      %v828 = vadd.f32 %v786, 1.0
      %v829 = vadd.f32 %v788, 1.0
      %v830 = vadd.f32 %v790, 1.0
      %v831 = vadd.f32 %v792, 1.0
      %v832 = vadd.f32 %v794, 1.0
      %v833 = vadd.f32 %v796, 1.0
      %v834 = vadd.f32 %v798, 1.0
      %v835 = vadd.f32 %v800, 1.0
      %v836 = vadd.f32 %v802, 1.0
      %v837 = vadd.f32 %v804, 1.0
      %v838 = vadd.f32 %v806, 1.0
      %v839 = vrcp.pop %v807
      %v840 = vmul.f32 1.0, %v839
      %v841 = vrcp.pop %v808
      %v842 = vmul.f32 1.0, %v841
      %v843 = vrcp.pop %v809
      %v844 = vmul.f32 1.0, %v843
      %v845 = vrcp.pop %v810
      %v846 = vmul.f32 1.0, %v845
      %v847 = vrcp.pop %v811
      %v848 = vmul.f32 1.0, %v847
      %v849 = vrcp.pop %v812
      %v850 = vmul.f32 1.0, %v849
      %v851 = vrcp.pop %v813
      %v852 = vmul.f32 1.0, %v851
      %v853 = vrcp.pop %v814
      %v854 = vmul.f32 1.0, %v853
      %v855 = vrcp.pop %v815
      %v856 = vmul.f32 1.0, %v855
      %v857 = vrcp.pop %v816
      %v858 = vmul.f32 1.0, %v857
      %v859 = vrcp.pop %v817
      %v860 = vmul.f32 1.0, %v859
      %v861 = vrcp.pop %v818
      %v862 = vmul.f32 1.0, %v861
      %v863 = vrcp.pop %v819
      %v864 = vmul.f32 1.0, %v863
      %v865 = vrcp.pop %v820
      %v866 = vmul.f32 1.0, %v865
      %v867 = vrcp.pop %v821
      %v868 = vmul.f32 1.0, %v867
      %v869 = vrcp.pop %v822
      %v870 = vmul.f32 1.0, %v869
      %v871 = vrcp.pop %v823
      %v872 = vmul.f32 1.0, %v871
      %v873 = vrcp.pop %v824
      %v874 = vmul.f32 1.0, %v873
      %v875 = vrcp.pop %v825
      %v876 = vmul.f32 1.0, %v875
      %v877 = vrcp.pop %v826
      %v878 = vmul.f32 1.0, %v877
      %v879 = vrcp.pop %v827
      %v880 = vmul.f32 1.0, %v879
      %v881 = vrcp.pop %v828
      %v882 = vmul.f32 1.0, %v881
      %v883 = vrcp.pop %v829
      %v884 = vmul.f32 1.0, %v883
      %v885 = vrcp.pop %v830
      %v886 = vmul.f32 1.0, %v885
      %v887 = vrcp.pop %v831
      %v888 = vmul.f32 1.0, %v887
      %v889 = vrcp.pop %v832
      %v890 = vmul.f32 1.0, %v889
      %v891 = vrcp.pop %v833
      %v892 = vmul.f32 1.0, %v891
      %v893 = vrcp.pop %v834
      %v894 = vmul.f32 1.0, %v893
      %v895 = vrcp.pop %v835
      %v896 = vmul.f32 1.0, %v895
      %v897 = vrcp.pop %v836
      %v898 = vmul.f32 1.0, %v897
      %v899 = vrcp.pop %v837
      %v900 = vmul.f32 1.0, %v899
      %v901 = vrcp.pop %v838
      %v902 = vmul.f32 1.0, %v901
      %v903 = vmul.f32 %v585, %v840
      %v904 = vmul.f32 %v588, %v842
      %v905 = vmul.f32 %v593, %v844
      %v906 = vmul.f32 %v596, %v846
      %v907 = vmul.f32 %v601, %v848
      %v908 = vmul.f32 %v604, %v850
      %v909 = vmul.f32 %v609, %v852
      %v910 = vmul.f32 %v612, %v854
      %v911 = vmul.f32 %v617, %v856
      %v912 = vmul.f32 %v620, %v858
      %v913 = vmul.f32 %v625, %v860
      %v914 = vmul.f32 %v628, %v862
      %v915 = vmul.f32 %v633, %v864
      %v916 = vmul.f32 %v636, %v866
      %v917 = vmul.f32 %v641, %v868
      %v918 = vmul.f32 %v644, %v870
      %v919 = vmul.f32 %v649, %v872
      %v920 = vmul.f32 %v652, %v874
      %v921 = vmul.f32 %v657, %v876
      %v922 = vmul.f32 %v660, %v878
      %v923 = vmul.f32 %v665, %v880
      %v924 = vmul.f32 %v668, %v882
      %v925 = vmul.f32 %v673, %v884
      %v926 = vmul.f32 %v676, %v886
      %v927 = vmul.f32 %v681, %v888
      %v928 = vmul.f32 %v684, %v890
      %v929 = vmul.f32 %v689, %v892
      %v930 = vmul.f32 %v692, %v894
      %v931 = vmul.f32 %v697, %v896
      %v932 = vmul.f32 %v700, %v898
      %v933 = vmul.f32 %v705, %v900
      %v934 = vmul.f32 %v708, %v902
      %v935 = vpack.c.bf16 %v904, %v903
      %v936 = vpack.c.bf16 %v906, %v905
      %v937 = vpack.c.bf16 %v908, %v907
      %v938 = vpack.c.bf16 %v910, %v909
      %v939 = vpack.c.bf16 %v912, %v911
      %v940 = vpack.c.bf16 %v914, %v913
      %v941 = vpack.c.bf16 %v916, %v915
      %v942 = vpack.c.bf16 %v918, %v917
      %v943 = vpack.c.bf16 %v920, %v919
      %v944 = vpack.c.bf16 %v922, %v921
      %v945 = vpack.c.bf16 %v924, %v923
      %v946 = vpack.c.bf16 %v926, %v925
      %v947 = vpack.c.bf16 %v928, %v927
      %v948 = vpack.c.bf16 %v930, %v929
      %v949 = vpack.c.bf16 %v932, %v931
      %v950 = vpack.c.bf16 %v934, %v933
      %v967 = vunpack.c.l.b16 %v935
      %v968 = vunpack.c.h.b16 %v935
      %v969 = vunpack.c.l.b16 %v936
      %v970 = vunpack.c.h.b16 %v936
      %v971 = vunpack.c.l.b16 %v937
      %v972 = vunpack.c.h.b16 %v937
      %v973 = vunpack.c.l.b16 %v938
      %v974 = vunpack.c.h.b16 %v938
      %v975 = vunpack.c.l.b16 %v939
      %v976 = vunpack.c.h.b16 %v939
      %v977 = vunpack.c.l.b16 %v940
      %v978 = vunpack.c.h.b16 %v940
      %v979 = vunpack.c.l.b16 %v941
      %v980 = vunpack.c.h.b16 %v941
      %v981 = vunpack.c.l.b16 %v942
      %v982 = vunpack.c.h.b16 %v942
      %v983 = vunpack.c.l.b16 %v943
      %v984 = vunpack.c.h.b16 %v943
      %v985 = vunpack.c.l.b16 %v944
      %v986 = vunpack.c.h.b16 %v944
      %v987 = vunpack.c.l.b16 %v945
      %v988 = vunpack.c.h.b16 %v945
      %v989 = vunpack.c.l.b16 %v946
      %v990 = vunpack.c.h.b16 %v946
      %v991 = vunpack.c.l.b16 %v947
      %v992 = vunpack.c.h.b16 %v947
      %v993 = vunpack.c.l.b16 %v948
      %v994 = vunpack.c.h.b16 %v948
      %v995 = vunpack.c.l.b16 %v949
      %v996 = vunpack.c.h.b16 %v949
      %v997 = vunpack.c.l.b16 %v950
      %v998 = vunpack.c.h.b16 %v950
      %v999 = vpack.c.b16 %v967, %v967
      %v1000 = vpack.c.b16 %v968, %v968
      %v1001 = vpack.c.b16 %v969, %v969
      %v1002 = vpack.c.b16 %v970, %v970
      %v1003 = vpack.c.b16 %v971, %v971
      %v1004 = vpack.c.b16 %v972, %v972
      %v1005 = vpack.c.b16 %v973, %v973
      %v1006 = vpack.c.b16 %v974, %v974
      %v1007 = vpack.c.b16 %v975, %v975
      %v1008 = vpack.c.b16 %v976, %v976
      %v1009 = vpack.c.b16 %v977, %v977
      %v1010 = vpack.c.b16 %v978, %v978
      %v1011 = vpack.c.b16 %v979, %v979
      %v1012 = vpack.c.b16 %v980, %v980
      %v1013 = vpack.c.b16 %v981, %v981
      %v1014 = vpack.c.b16 %v982, %v982
      %v1015 = vpack.c.b16 %v983, %v983
      %v1016 = vpack.c.b16 %v984, %v984
      %v1017 = vpack.c.b16 %v985, %v985
      %v1018 = vpack.c.b16 %v986, %v986
      %v1019 = vpack.c.b16 %v987, %v987
      %v1020 = vpack.c.b16 %v988, %v988
      %v1021 = vpack.c.b16 %v989, %v989
      %v1022 = vpack.c.b16 %v990, %v990
      %v1023 = vpack.c.b16 %v991, %v991
      %v1024 = vpack.c.b16 %v992, %v992
      %v1025 = vpack.c.b16 %v993, %v993
      %v1026 = vpack.c.b16 %v994, %v994
      %v1027 = vpack.c.b16 %v995, %v995
      %v1028 = vpack.c.b16 %v996, %v996
      %v1029 = vpack.c.b16 %v997, %v997
      %v1030 = vpack.c.b16 %v998, %v998
      %1031 = vrot.lane.b32.xlu0 %v999, 124
      %v1032 = vpop.permute.xlu0 %1031
      %1033 = vrot.lane.b32.xlu0 %v1000, 124
      %v1034 = vpop.permute.xlu0 %1033
      %1035 = vrot.lane.b32.xlu0 %v1001, 124
      %v1036 = vpop.permute.xlu0 %1035
      %1037 = vrot.lane.b32.xlu0 %v1002, 124
      %v1038 = vpop.permute.xlu0 %1037
      %1039 = vrot.lane.b32.xlu0 %v1003, 124
      %v1040 = vpop.permute.xlu0 %1039
      %1041 = vrot.lane.b32.xlu0 %v1004, 124
      %v1042 = vpop.permute.xlu0 %1041
      %1043 = vrot.lane.b32.xlu0 %v1005, 124
      %v1044 = vpop.permute.xlu0 %1043
      %1045 = vrot.lane.b32.xlu0 %v1006, 124
      %v1046 = vpop.permute.xlu0 %1045
      %1047 = vrot.lane.b32.xlu0 %v1007, 124
      %v1048 = vpop.permute.xlu0 %1047
      %1049 = vrot.lane.b32.xlu0 %v1008, 124
      %v1050 = vpop.permute.xlu0 %1049
      %1051 = vrot.lane.b32.xlu0 %v1009, 124
      %v1052 = vpop.permute.xlu0 %1051
      %1053 = vrot.lane.b32.xlu0 %v1010, 124
      %v1054 = vpop.permute.xlu0 %1053
      %1055 = vrot.lane.b32.xlu0 %v1011, 124
      %v1056 = vpop.permute.xlu0 %1055
      %1057 = vrot.lane.b32.xlu0 %v1012, 124
      %v1058 = vpop.permute.xlu0 %1057
      %1059 = vrot.lane.b32.xlu0 %v1013, 124
      %v1060 = vpop.permute.xlu0 %1059
      %1061 = vrot.lane.b32.xlu0 %v1014, 124
      %v1062 = vpop.permute.xlu0 %1061
      %1063 = vrot.lane.b32.xlu0 %v1015, 124
      %v1064 = vpop.permute.xlu0 %1063
      %1065 = vrot.lane.b32.xlu0 %v1016, 124
      %v1066 = vpop.permute.xlu0 %1065
      %1067 = vrot.lane.b32.xlu0 %v1017, 124
      %v1068 = vpop.permute.xlu0 %1067
      %1069 = vrot.lane.b32.xlu0 %v1018, 124
      %v1070 = vpop.permute.xlu0 %1069
      %1071 = vrot.lane.b32.xlu0 %v1019, 124
      %v1072 = vpop.permute.xlu0 %1071
      %1073 = vrot.lane.b32.xlu0 %v1020, 124
      %v1074 = vpop.permute.xlu0 %1073
      %1075 = vrot.lane.b32.xlu0 %v1021, 124
      %v1076 = vpop.permute.xlu0 %1075
      %1077 = vrot.lane.b32.xlu0 %v1022, 124
      %v1078 = vpop.permute.xlu0 %1077
      %1079 = vrot.lane.b32.xlu0 %v1023, 124
      %v1080 = vpop.permute.xlu0 %1079
      %1081 = vrot.lane.b32.xlu0 %v1024, 124
      %v1082 = vpop.permute.xlu0 %1081
      %1083 = vrot.lane.b32.xlu0 %v1025, 124
      %v1084 = vpop.permute.xlu0 %1083
      %1085 = vrot.lane.b32.xlu0 %v1026, 124
      %v1086 = vpop.permute.xlu0 %1085
      %1087 = vrot.lane.b32.xlu0 %v1027, 124
      %v1088 = vpop.permute.xlu0 %1087
      %1089 = vrot.lane.b32.xlu0 %v1028, 124
      %v1090 = vpop.permute.xlu0 %1089
      %1091 = vrot.lane.b32.xlu0 %v1029, 124
      %v1092 = vpop.permute.xlu0 %1091
      %1093 = vrot.lane.b32.xlu0 %v1030, 124
      %v1094 = vpop.permute.xlu0 %1093
      %1127 = vst.msk [vmem:[#allocation3] sm:$0xf] %vm334, %v1032
      %1128 = vst.msk [vmem:[#allocation3 + $0x4] sm:$0xf] %vm334, %v1034
      %1129 = vst.msk [vmem:[#allocation3 + $0x8] sm:$0xf] %vm334, %v1036
      %1130 = vst.msk [vmem:[#allocation3 + $0xc] sm:$0xf] %vm334, %v1038
      %1131 = vst.msk [vmem:[#allocation3 + $0x10] sm:$0xf] %vm334, %v1040
      %1132 = vst.msk [vmem:[#allocation3 + $0x14] sm:$0xf] %vm334, %v1042
      %1133 = vst.msk [vmem:[#allocation3 + $0x18] sm:$0xf] %vm334, %v1044
      %1134 = vst.msk [vmem:[#allocation3 + $0x1c] sm:$0xf] %vm334, %v1046
      %1135 = vst.msk [vmem:[#allocation3 + $0x20] sm:$0xf] %vm334, %v1048
      %1136 = vst.msk [vmem:[#allocation3 + $0x24] sm:$0xf] %vm334, %v1050
      %1137 = vst.msk [vmem:[#allocation3 + $0x28] sm:$0xf] %vm334, %v1052
      %1138 = vst.msk [vmem:[#allocation3 + $0x2c] sm:$0xf] %vm334, %v1054
      %1139 = vst.msk [vmem:[#allocation3 + $0x30] sm:$0xf] %vm334, %v1056
      %1140 = vst.msk [vmem:[#allocation3 + $0x34] sm:$0xf] %vm334, %v1058
      %1141 = vst.msk [vmem:[#allocation3 + $0x38] sm:$0xf] %vm334, %v1060
      %1142 = vst.msk [vmem:[#allocation3 + $0x3c] sm:$0xf] %vm334, %v1062
      %1143 = vst.msk [vmem:[#allocation3 + $0x40] sm:$0xf] %vm334, %v1064
      %1144 = vst.msk [vmem:[#allocation3 + $0x44] sm:$0xf] %vm334, %v1066
      %1145 = vst.msk [vmem:[#allocation3 + $0x48] sm:$0xf] %vm334, %v1068
      %1146 = vst.msk [vmem:[#allocation3 + $0x4c] sm:$0xf] %vm334, %v1070
      %1147 = vst.msk [vmem:[#allocation3 + $0x50] sm:$0xf] %vm334, %v1072
      %1148 = vst.msk [vmem:[#allocation3 + $0x54] sm:$0xf] %vm334, %v1074
      %1149 = vst.msk [vmem:[#allocation3 + $0x58] sm:$0xf] %vm334, %v1076
      %1150 = vst.msk [vmem:[#allocation3 + $0x5c] sm:$0xf] %vm334, %v1078
      %1151 = vst.msk [vmem:[#allocation3 + $0x60] sm:$0xf] %vm334, %v1080
      %1152 = vst.msk [vmem:[#allocation3 + $0x64] sm:$0xf] %vm334, %v1082
      %1153 = vst.msk [vmem:[#allocation3 + $0x68] sm:$0xf] %vm334, %v1084
      %1154 = vst.msk [vmem:[#allocation3 + $0x6c] sm:$0xf] %vm334, %v1086
      %1155 = vst.msk [vmem:[#allocation3 + $0x70] sm:$0xf] %vm334, %v1088
      %1156 = vst.msk [vmem:[#allocation3 + $0x74] sm:$0xf] %vm334, %v1090
      %1157 = vst.msk [vmem:[#allocation3 + $0x78] sm:$0xf] %vm334, %v1092
      %1158 = vst.msk [vmem:[#allocation3 + $0x7c] sm:$0xf] %vm334, %v1094
      %1191 = vst.msk [vmem:[%s344] sm:$0xf] %vm334, %v999
      %1192 = vst.msk [vmem:[%s344 + $0x4] sm:$0xf] %vm334, %v1000
      %1193 = vst.msk [vmem:[%s344 + $0x10] sm:$0xf] %vm334, %v1001
      %1194 = vst.msk [vmem:[%s344 + $0x14] sm:$0xf] %vm334, %v1002
      %1195 = vst.msk [vmem:[%s344 + $0x20] sm:$0xf] %vm334, %v1003
      %1196 = vst.msk [vmem:[%s344 + $0x24] sm:$0xf] %vm334, %v1004
      %1197 = vst.msk [vmem:[%s344 + $0x30] sm:$0xf] %vm334, %v1005
      %1198 = vst.msk [vmem:[%s344 + $0x34] sm:$0xf] %vm334, %v1006
      %1199 = vst.msk [vmem:[%s344 + $0x40] sm:$0xf] %vm334, %v1007
      %1200 = vst.msk [vmem:[%s344 + $0x44] sm:$0xf] %vm334, %v1008
      %1201 = vst.msk [vmem:[%s344 + $0x50] sm:$0xf] %vm334, %v1009
      %1202 = vst.msk [vmem:[%s344 + $0x54] sm:$0xf] %vm334, %v1010
      %1203 = vst.msk [vmem:[%s344 + $0x60] sm:$0xf] %vm334, %v1011
      %1204 = vst.msk [vmem:[%s344 + $0x64] sm:$0xf] %vm334, %v1012
      %1205 = vst.msk [vmem:[%s344 + $0x70] sm:$0xf] %vm334, %v1013
      %1206 = vst.msk [vmem:[%s344 + $0x74] sm:$0xf] %vm334, %v1014
      %1207 = vst.msk [vmem:[%s344 + $0x80] sm:$0xf] %vm334, %v1015
      %1208 = vst.msk [vmem:[%s344 + $0x84] sm:$0xf] %vm334, %v1016
      %1209 = vst.msk [vmem:[%s344 + $0x90] sm:$0xf] %vm334, %v1017
      %1210 = vst.msk [vmem:[%s344 + $0x94] sm:$0xf] %vm334, %v1018
      %1211 = vst.msk [vmem:[%s344 + $0xa0] sm:$0xf] %vm334, %v1019
      %1212 = vst.msk [vmem:[%s344 + $0xa4] sm:$0xf] %vm334, %v1020
      %1213 = vst.msk [vmem:[%s344 + $0xb0] sm:$0xf] %vm334, %v1021
      %1214 = vst.msk [vmem:[%s344 + $0xb4] sm:$0xf] %vm334, %v1022
      %1215 = vst.msk [vmem:[%s344 + $0xc0] sm:$0xf] %vm334, %v1023
      %1216 = vst.msk [vmem:[%s344 + $0xc4] sm:$0xf] %vm334, %v1024
      %1217 = vst.msk [vmem:[%s344 + $0xd0] sm:$0xf] %vm334, %v1025
      %1218 = vst.msk [vmem:[%s344 + $0xd4] sm:$0xf] %vm334, %v1026
      %1219 = vst.msk [vmem:[%s344 + $0xe0] sm:$0xf] %vm334, %v1027
      %1220 = vst.msk [vmem:[%s344 + $0xe4] sm:$0xf] %vm334, %v1028
      %1221 = vst.msk [vmem:[%s344 + $0xf0] sm:$0xf] %vm334, %v1029
      %1222 = vst.msk [vmem:[%s344 + $0xf4] sm:$0xf] %vm334, %v1030
      %v1223 = vld [vmem:[%s344] sm:$0xf]
      %v1224 = vld [vmem:[%s344 + $0x4] sm:$0xf]
      %v1225 = vld [vmem:[%s344 + $0x10] sm:$0xf]
      %v1226 = vld [vmem:[%s344 + $0x14] sm:$0xf]
      %v1227 = vld [vmem:[%s344 + $0x20] sm:$0xf]
      %v1228 = vld [vmem:[%s344 + $0x24] sm:$0xf]
      %v1229 = vld [vmem:[%s344 + $0x30] sm:$0xf]
      %v1230 = vld [vmem:[%s344 + $0x34] sm:$0xf]
      %v1231 = vld [vmem:[%s344 + $0x40] sm:$0xf]
      %v1232 = vld [vmem:[%s344 + $0x44] sm:$0xf]
      %v1233 = vld [vmem:[%s344 + $0x50] sm:$0xf]
      %v1234 = vld [vmem:[%s344 + $0x54] sm:$0xf]
      %v1235 = vld [vmem:[%s344 + $0x60] sm:$0xf]
      %v1236 = vld [vmem:[%s344 + $0x64] sm:$0xf]
      %v1237 = vld [vmem:[%s344 + $0x70] sm:$0xf]
      %v1238 = vld [vmem:[%s344 + $0x74] sm:$0xf]
      %v1239 = vld [vmem:[%s344 + $0x80] sm:$0xf]
      %v1240 = vld [vmem:[%s344 + $0x84] sm:$0xf]
      %v1241 = vld [vmem:[%s344 + $0x90] sm:$0xf]
      %v1242 = vld [vmem:[%s344 + $0x94] sm:$0xf]
      %v1243 = vld [vmem:[%s344 + $0xa0] sm:$0xf]
      %v1244 = vld [vmem:[%s344 + $0xa4] sm:$0xf]
      %v1245 = vld [vmem:[%s344 + $0xb0] sm:$0xf]
      %v1246 = vld [vmem:[%s344 + $0xb4] sm:$0xf]
      %v1247 = vld [vmem:[%s344 + $0xc0] sm:$0xf]
      %v1248 = vld [vmem:[%s344 + $0xc4] sm:$0xf]
      %v1249 = vld [vmem:[%s344 + $0xd0] sm:$0xf]
      %v1250 = vld [vmem:[%s344 + $0xd4] sm:$0xf]
      %v1251 = vld [vmem:[%s344 + $0xe0] sm:$0xf]
      %v1252 = vld [vmem:[%s344 + $0xe4] sm:$0xf]
      %v1253 = vld [vmem:[%s344 + $0xf0] sm:$0xf]
      %v1254 = vld [vmem:[%s344 + $0xf4] sm:$0xf]
      %1255 = vst.msk [vmem:[#allocation4] sm:$0xf] %vm334, %v1223
      %1256 = vst.msk [vmem:[#allocation4 + $0x4] sm:$0xf] %vm334, %v1224
      %1257 = vst.msk [vmem:[#allocation4 + $0x8] sm:$0xf] %vm334, %v1225
      %1258 = vst.msk [vmem:[#allocation4 + $0xc] sm:$0xf] %vm334, %v1226
      %1259 = vst.msk [vmem:[#allocation4 + $0x10] sm:$0xf] %vm334, %v1227
      %1260 = vst.msk [vmem:[#allocation4 + $0x14] sm:$0xf] %vm334, %v1228
      %1261 = vst.msk [vmem:[#allocation4 + $0x18] sm:$0xf] %vm334, %v1229
      %1262 = vst.msk [vmem:[#allocation4 + $0x1c] sm:$0xf] %vm334, %v1230
      %1263 = vst.msk [vmem:[#allocation4 + $0x20] sm:$0xf] %vm334, %v1231
      %1264 = vst.msk [vmem:[#allocation4 + $0x24] sm:$0xf] %vm334, %v1232
      %1265 = vst.msk [vmem:[#allocation4 + $0x28] sm:$0xf] %vm334, %v1233
      %1266 = vst.msk [vmem:[#allocation4 + $0x2c] sm:$0xf] %vm334, %v1234
      %1267 = vst.msk [vmem:[#allocation4 + $0x30] sm:$0xf] %vm334, %v1235
      %1268 = vst.msk [vmem:[#allocation4 + $0x34] sm:$0xf] %vm334, %v1236
      %1269 = vst.msk [vmem:[#allocation4 + $0x38] sm:$0xf] %vm334, %v1237
      %1270 = vst.msk [vmem:[#allocation4 + $0x3c] sm:$0xf] %vm334, %v1238
      %1271 = vst.msk [vmem:[#allocation4 + $0x40] sm:$0xf] %vm334, %v1239
      %1272 = vst.msk [vmem:[#allocation4 + $0x44] sm:$0xf] %vm334, %v1240
      %1273 = vst.msk [vmem:[#allocation4 + $0x48] sm:$0xf] %vm334, %v1241
      %1274 = vst.msk [vmem:[#allocation4 + $0x4c] sm:$0xf] %vm334, %v1242
      %1275 = vst.msk [vmem:[#allocation4 + $0x50] sm:$0xf] %vm334, %v1243
      %1276 = vst.msk [vmem:[#allocation4 + $0x54] sm:$0xf] %vm334, %v1244
      %1277 = vst.msk [vmem:[#allocation4 + $0x58] sm:$0xf] %vm334, %v1245
      %1278 = vst.msk [vmem:[#allocation4 + $0x5c] sm:$0xf] %vm334, %v1246
      %1279 = vst.msk [vmem:[#allocation4 + $0x60] sm:$0xf] %vm334, %v1247
      %1280 = vst.msk [vmem:[#allocation4 + $0x64] sm:$0xf] %vm334, %v1248
      %1281 = vst.msk [vmem:[#allocation4 + $0x68] sm:$0xf] %vm334, %v1249
      %1282 = vst.msk [vmem:[#allocation4 + $0x6c] sm:$0xf] %vm334, %v1250
      %1283 = vst.msk [vmem:[#allocation4 + $0x70] sm:$0xf] %vm334, %v1251
      %1284 = vst.msk [vmem:[#allocation4 + $0x74] sm:$0xf] %vm334, %v1252
      %1285 = vst.msk [vmem:[#allocation4 + $0x78] sm:$0xf] %vm334, %v1253
      %1286 = vst.msk [vmem:[#allocation4 + $0x7c] sm:$0xf] %vm334, %v1254
      %v1287 = vld [vmem:[#allocation2] sm:$0xf]
      %v1288 = vld [vmem:[#allocation2 + $0x4] sm:$0xf]
      %v1289 = vld [vmem:[#allocation2 + $0x8] sm:$0xf]
      %v1290 = vld [vmem:[#allocation2 + $0xc] sm:$0xf]
      %v1291 = vld [vmem:[#allocation2 + $0x10] sm:$0xf]
      %v1292 = vld [vmem:[#allocation2 + $0x14] sm:$0xf]
      %v1293 = vld [vmem:[#allocation2 + $0x18] sm:$0xf]
      %v1294 = vld [vmem:[#allocation2 + $0x1c] sm:$0xf]
      %v1295 = vld [vmem:[#allocation2 + $0x20] sm:$0xf]
      %v1296 = vld [vmem:[#allocation2 + $0x24] sm:$0xf]
      %v1297 = vld [vmem:[#allocation2 + $0x28] sm:$0xf]
      %v1298 = vld [vmem:[#allocation2 + $0x2c] sm:$0xf]
      %v1299 = vld [vmem:[#allocation2 + $0x30] sm:$0xf]
      %v1300 = vld [vmem:[#allocation2 + $0x34] sm:$0xf]
      %v1301 = vld [vmem:[#allocation2 + $0x38] sm:$0xf]
      %v1302 = vld [vmem:[#allocation2 + $0x3c] sm:$0xf]
      %v1303 = vld [vmem:[#allocation2 + $0x40] sm:$0xf]
      %v1304 = vld [vmem:[#allocation2 + $0x44] sm:$0xf]
      %v1305 = vld [vmem:[#allocation2 + $0x48] sm:$0xf]
      %v1306 = vld [vmem:[#allocation2 + $0x4c] sm:$0xf]
      %v1307 = vld [vmem:[#allocation2 + $0x50] sm:$0xf]
      %v1308 = vld [vmem:[#allocation2 + $0x54] sm:$0xf]
      %v1309 = vld [vmem:[#allocation2 + $0x58] sm:$0xf]
      %v1310 = vld [vmem:[#allocation2 + $0x5c] sm:$0xf]
      %v1311 = vld [vmem:[#allocation2 + $0x60] sm:$0xf]
      %v1312 = vld [vmem:[#allocation2 + $0x64] sm:$0xf]
      %v1313 = vld [vmem:[#allocation2 + $0x68] sm:$0xf]
      %v1314 = vld [vmem:[#allocation2 + $0x6c] sm:$0xf]
      %v1315 = vld [vmem:[#allocation2 + $0x70] sm:$0xf]
      %v1316 = vld [vmem:[#allocation2 + $0x74] sm:$0xf]
      %v1317 = vld [vmem:[#allocation2 + $0x78] sm:$0xf]
      %v1318 = vld [vmem:[#allocation2 + $0x7c] sm:$0xf]
      %v1319 = vld [vmem:[#allocation2 + $0x80] sm:$0xf]
      %v1320 = vld [vmem:[#allocation2 + $0x84] sm:$0xf]
      %v1321 = vld [vmem:[#allocation2 + $0x88] sm:$0xf]
      %v1322 = vld [vmem:[#allocation2 + $0x8c] sm:$0xf]
      %v1323 = vld [vmem:[#allocation2 + $0x90] sm:$0xf]
      %v1324 = vld [vmem:[#allocation2 + $0x94] sm:$0xf]
      %v1325 = vld [vmem:[#allocation2 + $0x98] sm:$0xf]
      %v1326 = vld [vmem:[#allocation2 + $0x9c] sm:$0xf]
      %v1327 = vld [vmem:[#allocation2 + $0xa0] sm:$0xf]
      %v1328 = vld [vmem:[#allocation2 + $0xa4] sm:$0xf]
      %v1329 = vld [vmem:[#allocation2 + $0xa8] sm:$0xf]
      %v1330 = vld [vmem:[#allocation2 + $0xac] sm:$0xf]
      %v1331 = vld [vmem:[#allocation2 + $0xb0] sm:$0xf]
      %v1332 = vld [vmem:[#allocation2 + $0xb4] sm:$0xf]
      %v1333 = vld [vmem:[#allocation2 + $0xb8] sm:$0xf]
      %v1334 = vld [vmem:[#allocation2 + $0xbc] sm:$0xf]
      %v1335 = vld [vmem:[#allocation2 + $0xc0] sm:$0xf]
      %v1336 = vld [vmem:[#allocation2 + $0xc4] sm:$0xf]
      %v1337 = vld [vmem:[#allocation2 + $0xc8] sm:$0xf]
      %v1338 = vld [vmem:[#allocation2 + $0xcc] sm:$0xf]
      %v1339 = vld [vmem:[#allocation2 + $0xd0] sm:$0xf]
      %v1340 = vld [vmem:[#allocation2 + $0xd4] sm:$0xf]
      %v1341 = vld [vmem:[#allocation2 + $0xd8] sm:$0xf]
      %v1342 = vld [vmem:[#allocation2 + $0xdc] sm:$0xf]
      %v1343 = vld [vmem:[#allocation2 + $0xe0] sm:$0xf]
      %v1344 = vld [vmem:[#allocation2 + $0xe4] sm:$0xf]
      %v1345 = vld [vmem:[#allocation2 + $0xe8] sm:$0xf]
      %v1346 = vld [vmem:[#allocation2 + $0xec] sm:$0xf]
      %v1347 = vld [vmem:[#allocation2 + $0xf0] sm:$0xf]
      %v1348 = vld [vmem:[#allocation2 + $0xf4] sm:$0xf]
      %v1349 = vld [vmem:[#allocation2 + $0xf8] sm:$0xf]
      %v1350 = vld [vmem:[#allocation2 + $0xfc] sm:$0xf]
      %v1351 = vunpack.c.l.bf16 %v1287
      %v1352 = vunpack.c.l.bf16 %v1288
      %v1353 = vunpack.c.l.bf16 %v1289
      %v1354 = vunpack.c.l.bf16 %v1290
      %v1355 = vunpack.c.l.bf16 %v1291
      %v1356 = vunpack.c.l.bf16 %v1292
      %v1357 = vunpack.c.l.bf16 %v1293
      %v1358 = vunpack.c.l.bf16 %v1294
      %v1359 = vunpack.c.l.bf16 %v1295
      %v1360 = vunpack.c.l.bf16 %v1296
      %v1361 = vunpack.c.l.bf16 %v1297
      %v1362 = vunpack.c.l.bf16 %v1298
      %v1363 = vunpack.c.l.bf16 %v1299
      %v1364 = vunpack.c.l.bf16 %v1300
      %v1365 = vunpack.c.l.bf16 %v1301
      %v1366 = vunpack.c.l.bf16 %v1302
      %v1367 = vunpack.c.l.bf16 %v1303
      %v1368 = vunpack.c.l.bf16 %v1304
      %v1369 = vunpack.c.l.bf16 %v1305
      %v1370 = vunpack.c.l.bf16 %v1306
      %v1371 = vunpack.c.l.bf16 %v1307
      %v1372 = vunpack.c.l.bf16 %v1308
      %v1373 = vunpack.c.l.bf16 %v1309
      %v1374 = vunpack.c.l.bf16 %v1310
      %v1375 = vunpack.c.l.bf16 %v1311
      %v1376 = vunpack.c.l.bf16 %v1312
      %v1377 = vunpack.c.l.bf16 %v1313
      %v1378 = vunpack.c.l.bf16 %v1314
      %v1379 = vunpack.c.l.bf16 %v1315
      %v1380 = vunpack.c.l.bf16 %v1316
      %v1381 = vunpack.c.l.bf16 %v1317
      %v1382 = vunpack.c.l.bf16 %v1318
      %v1383 = vunpack.c.l.bf16 %v1319
      %v1384 = vunpack.c.l.bf16 %v1320
      %v1385 = vunpack.c.l.bf16 %v1321
      %v1386 = vunpack.c.l.bf16 %v1322
      %v1387 = vunpack.c.l.bf16 %v1323
      %v1388 = vunpack.c.l.bf16 %v1324
      %v1389 = vunpack.c.l.bf16 %v1325
      %v1390 = vunpack.c.l.bf16 %v1326
      %v1391 = vunpack.c.l.bf16 %v1327
      %v1392 = vunpack.c.l.bf16 %v1328
      %v1393 = vunpack.c.l.bf16 %v1329
      %v1394 = vunpack.c.l.bf16 %v1330
      %v1395 = vunpack.c.l.bf16 %v1331
      %v1396 = vunpack.c.l.bf16 %v1332
      %v1397 = vunpack.c.l.bf16 %v1333
      %v1398 = vunpack.c.l.bf16 %v1334
      %v1399 = vunpack.c.l.bf16 %v1335
      %v1400 = vunpack.c.l.bf16 %v1336
      %v1401 = vunpack.c.l.bf16 %v1337
      %v1402 = vunpack.c.l.bf16 %v1338
      %v1403 = vunpack.c.l.bf16 %v1339
      %v1404 = vunpack.c.l.bf16 %v1340
      %v1405 = vunpack.c.l.bf16 %v1341
      %v1406 = vunpack.c.l.bf16 %v1342
      %v1407 = vunpack.c.l.bf16 %v1343
      %v1408 = vunpack.c.l.bf16 %v1344
      %v1409 = vunpack.c.l.bf16 %v1345
      %v1410 = vunpack.c.l.bf16 %v1346
      %v1411 = vunpack.c.l.bf16 %v1347
      %v1412 = vunpack.c.l.bf16 %v1348
      %v1413 = vunpack.c.l.bf16 %v1349
      %v1414 = vunpack.c.l.bf16 %v1350
      %v1415 = vrot.slane %v1351, 7
      %v1416 = vrot.slane %v1352, 7
      %v1417 = vrot.slane %v1353, 7
      %v1418 = vrot.slane %v1354, 7
      %v1419 = vrot.slane %v1355, 7
      %v1420 = vrot.slane %v1356, 7
      %v1421 = vrot.slane %v1357, 7
      %v1422 = vrot.slane %v1358, 7
      %v1423 = vrot.slane %v1359, 7
      %v1424 = vrot.slane %v1360, 7
      %v1425 = vrot.slane %v1361, 7
      %v1426 = vrot.slane %v1362, 7
      %v1427 = vrot.slane %v1363, 7
      %v1428 = vrot.slane %v1364, 7
      %v1429 = vrot.slane %v1365, 7
      %v1430 = vrot.slane %v1366, 7
      %v1431 = vrot.slane %v1367, 7
      %v1432 = vrot.slane %v1368, 7
      %v1433 = vrot.slane %v1369, 7
      %v1434 = vrot.slane %v1370, 7
      %v1435 = vrot.slane %v1371, 7
      %v1436 = vrot.slane %v1372, 7
      %v1437 = vrot.slane %v1373, 7
      %v1438 = vrot.slane %v1374, 7
      %v1439 = vrot.slane %v1375, 7
      %v1440 = vrot.slane %v1376, 7
      %v1441 = vrot.slane %v1377, 7
      %v1442 = vrot.slane %v1378, 7
      %v1443 = vrot.slane %v1379, 7
      %v1444 = vrot.slane %v1380, 7
      %v1445 = vrot.slane %v1381, 7
      %v1446 = vrot.slane %v1382, 7
      %v1447 = vrot.slane %v1383, 7
      %v1448 = vrot.slane %v1384, 7
      %v1449 = vrot.slane %v1385, 7
      %v1450 = vrot.slane %v1386, 7
      %v1451 = vrot.slane %v1387, 7
      %v1452 = vrot.slane %v1388, 7
      %v1453 = vrot.slane %v1389, 7
      %v1454 = vrot.slane %v1390, 7
      %v1455 = vrot.slane %v1391, 7
      %v1456 = vrot.slane %v1392, 7
      %v1457 = vrot.slane %v1393, 7
      %v1458 = vrot.slane %v1394, 7
      %v1459 = vrot.slane %v1395, 7
      %v1460 = vrot.slane %v1396, 7
      %v1461 = vrot.slane %v1397, 7
      %v1462 = vrot.slane %v1398, 7
      %v1463 = vrot.slane %v1399, 7
      %v1464 = vrot.slane %v1400, 7
      %v1465 = vrot.slane %v1401, 7
      %v1466 = vrot.slane %v1402, 7
      %v1467 = vrot.slane %v1403, 7
      %v1468 = vrot.slane %v1404, 7
      %v1469 = vrot.slane %v1405, 7
      %v1470 = vrot.slane %v1406, 7
      %v1471 = vrot.slane %v1407, 7
      %v1472 = vrot.slane %v1408, 7
      %v1473 = vrot.slane %v1409, 7
      %v1474 = vrot.slane %v1410, 7
      %v1475 = vrot.slane %v1411, 7
      %v1476 = vrot.slane %v1412, 7
      %v1477 = vrot.slane %v1413, 7
      %v1478 = vrot.slane %v1414, 7
      %v1479 = vlaneseq
      %v1480 = vshrl.u32 %v1479, 7
      %vm1481 = vcmp.lt.s32.totalorder %v1480, 1
      %v1482 = vsel %vm1481, %v1477, %v1478
      %v1483 = vsel %vm1481, %v1476, %v1477
      %v1484 = vsel %vm1481, %v1475, %v1476
      %v1485 = vsel %vm1481, %v1474, %v1475
      %v1486 = vsel %vm1481, %v1473, %v1474
      %v1487 = vsel %vm1481, %v1472, %v1473
      %v1488 = vsel %vm1481, %v1471, %v1472
      %v1489 = vsel %vm1481, %v1470, %v1471
      %v1490 = vsel %vm1481, %v1469, %v1470
      %v1491 = vsel %vm1481, %v1468, %v1469
      %v1492 = vsel %vm1481, %v1467, %v1468
      %v1493 = vsel %vm1481, %v1466, %v1467
      %v1494 = vsel %vm1481, %v1465, %v1466
      %v1495 = vsel %vm1481, %v1464, %v1465
      %v1496 = vsel %vm1481, %v1463, %v1464
      %v1497 = vsel %vm1481, %v1462, %v1463
      %v1498 = vsel %vm1481, %v1461, %v1462
      %v1499 = vsel %vm1481, %v1460, %v1461
      %v1500 = vsel %vm1481, %v1459, %v1460
      %v1501 = vsel %vm1481, %v1458, %v1459
      %v1502 = vsel %vm1481, %v1457, %v1458
      %v1503 = vsel %vm1481, %v1456, %v1457
      %v1504 = vsel %vm1481, %v1455, %v1456
      %v1505 = vsel %vm1481, %v1454, %v1455
      %v1506 = vsel %vm1481, %v1453, %v1454
      %v1507 = vsel %vm1481, %v1452, %v1453
      %v1508 = vsel %vm1481, %v1451, %v1452
      %v1509 = vsel %vm1481, %v1450, %v1451
      %v1510 = vsel %vm1481, %v1449, %v1450
      %v1511 = vsel %vm1481, %v1448, %v1449
      %v1512 = vsel %vm1481, %v1447, %v1448
      %v1513 = vsel %vm1481, %v1446, %v1447
      %v1514 = vsel %vm1481, %v1445, %v1446
      %v1515 = vsel %vm1481, %v1444, %v1445
      %v1516 = vsel %vm1481, %v1443, %v1444
      %v1517 = vsel %vm1481, %v1442, %v1443
      %v1518 = vsel %vm1481, %v1441, %v1442
      %v1519 = vsel %vm1481, %v1440, %v1441
      %v1520 = vsel %vm1481, %v1439, %v1440
      %v1521 = vsel %vm1481, %v1438, %v1439
      %v1522 = vsel %vm1481, %v1437, %v1438
      %v1523 = vsel %vm1481, %v1436, %v1437
      %v1524 = vsel %vm1481, %v1435, %v1436
      %v1525 = vsel %vm1481, %v1434, %v1435
      %v1526 = vsel %vm1481, %v1433, %v1434
      %v1527 = vsel %vm1481, %v1432, %v1433
      %v1528 = vsel %vm1481, %v1431, %v1432
      %v1529 = vsel %vm1481, %v1430, %v1431
      %v1530 = vsel %vm1481, %v1429, %v1430
      %v1531 = vsel %vm1481, %v1428, %v1429
      %v1532 = vsel %vm1481, %v1427, %v1428
      %v1533 = vsel %vm1481, %v1426, %v1427
      %v1534 = vsel %vm1481, %v1425, %v1426
      %v1535 = vsel %vm1481, %v1424, %v1425
      %v1536 = vsel %vm1481, %v1423, %v1424
      %v1537 = vsel %vm1481, %v1422, %v1423
      %v1538 = vsel %vm1481, %v1421, %v1422
      %v1539 = vsel %vm1481, %v1420, %v1421
      %v1540 = vsel %vm1481, %v1419, %v1420
      %v1541 = vsel %vm1481, %v1418, %v1419
      %v1542 = vsel %vm1481, %v1417, %v1418
      %v1543 = vsel %vm1481, %v1416, %v1417
      %v1544 = vsel %vm1481, %v1415, %v1416
      %v1545 = vsel %vm1481, %v1478, %v1415
      %v1546 = vrot.slane %v1351, 1
      %v1547 = vrot.slane %v1352, 1
      %v1548 = vrot.slane %v1353, 1
      %v1549 = vrot.slane %v1354, 1
      %v1550 = vrot.slane %v1355, 1
      %v1551 = vrot.slane %v1356, 1
      %v1552 = vrot.slane %v1357, 1
      %v1553 = vrot.slane %v1358, 1
      %v1554 = vrot.slane %v1359, 1
      %v1555 = vrot.slane %v1360, 1
      %v1556 = vrot.slane %v1361, 1
      %v1557 = vrot.slane %v1362, 1
      %v1558 = vrot.slane %v1363, 1
      %v1559 = vrot.slane %v1364, 1
      %v1560 = vrot.slane %v1365, 1
      %v1561 = vrot.slane %v1366, 1
      %v1562 = vrot.slane %v1367, 1
      %v1563 = vrot.slane %v1368, 1
      %v1564 = vrot.slane %v1369, 1
      %v1565 = vrot.slane %v1370, 1
      %v1566 = vrot.slane %v1371, 1
      %v1567 = vrot.slane %v1372, 1
      %v1568 = vrot.slane %v1373, 1
      %v1569 = vrot.slane %v1374, 1
      %v1570 = vrot.slane %v1375, 1
      %v1571 = vrot.slane %v1376, 1
      %v1572 = vrot.slane %v1377, 1
      %v1573 = vrot.slane %v1378, 1
      %v1574 = vrot.slane %v1379, 1
      %v1575 = vrot.slane %v1380, 1
      %v1576 = vrot.slane %v1381, 1
      %v1577 = vrot.slane %v1382, 1
      %v1578 = vrot.slane %v1383, 1
      %v1579 = vrot.slane %v1384, 1
      %v1580 = vrot.slane %v1385, 1
      %v1581 = vrot.slane %v1386, 1
      %v1582 = vrot.slane %v1387, 1
      %v1583 = vrot.slane %v1388, 1
      %v1584 = vrot.slane %v1389, 1
      %v1585 = vrot.slane %v1390, 1
      %v1586 = vrot.slane %v1391, 1
      %v1587 = vrot.slane %v1392, 1
      %v1588 = vrot.slane %v1393, 1
      %v1589 = vrot.slane %v1394, 1
      %v1590 = vrot.slane %v1395, 1
      %v1591 = vrot.slane %v1396, 1
      %v1592 = vrot.slane %v1397, 1
      %v1593 = vrot.slane %v1398, 1
      %v1594 = vrot.slane %v1399, 1
      %v1595 = vrot.slane %v1400, 1
      %v1596 = vrot.slane %v1401, 1
      %v1597 = vrot.slane %v1402, 1
      %v1598 = vrot.slane %v1403, 1
      %v1599 = vrot.slane %v1404, 1
      %v1600 = vrot.slane %v1405, 1
      %v1601 = vrot.slane %v1406, 1
      %v1602 = vrot.slane %v1407, 1
      %v1603 = vrot.slane %v1408, 1
      %v1604 = vrot.slane %v1409, 1
      %v1605 = vrot.slane %v1410, 1
      %v1606 = vrot.slane %v1411, 1
      %v1607 = vrot.slane %v1412, 1
      %v1608 = vrot.slane %v1413, 1
      %v1609 = vrot.slane %v1414, 1
      %vm1610 = vcmp.lt.s32.totalorder %v1480, 7
      %v1611 = vsel %vm1610, %v1608, %v1609
      %v1612 = vsel %vm1610, %v1607, %v1608
      %v1613 = vsel %vm1610, %v1606, %v1607
      %v1614 = vsel %vm1610, %v1605, %v1606
      %v1615 = vsel %vm1610, %v1604, %v1605
      %v1616 = vsel %vm1610, %v1603, %v1604
      %v1617 = vsel %vm1610, %v1602, %v1603
      %v1618 = vsel %vm1610, %v1601, %v1602
      %v1619 = vsel %vm1610, %v1600, %v1601
      %v1620 = vsel %vm1610, %v1599, %v1600
      %v1621 = vsel %vm1610, %v1598, %v1599
      %v1622 = vsel %vm1610, %v1597, %v1598
      %v1623 = vsel %vm1610, %v1596, %v1597
      %v1624 = vsel %vm1610, %v1595, %v1596
      %v1625 = vsel %vm1610, %v1594, %v1595
      %v1626 = vsel %vm1610, %v1593, %v1594
      %v1627 = vsel %vm1610, %v1592, %v1593
      %v1628 = vsel %vm1610, %v1591, %v1592
      %v1629 = vsel %vm1610, %v1590, %v1591
      %v1630 = vsel %vm1610, %v1589, %v1590
      %v1631 = vsel %vm1610, %v1588, %v1589
      %v1632 = vsel %vm1610, %v1587, %v1588
      %v1633 = vsel %vm1610, %v1586, %v1587
      %v1634 = vsel %vm1610, %v1585, %v1586
      %v1635 = vsel %vm1610, %v1584, %v1585
      %v1636 = vsel %vm1610, %v1583, %v1584
      %v1637 = vsel %vm1610, %v1582, %v1583
      %v1638 = vsel %vm1610, %v1581, %v1582
      %v1639 = vsel %vm1610, %v1580, %v1581
      %v1640 = vsel %vm1610, %v1579, %v1580
      %v1641 = vsel %vm1610, %v1578, %v1579
      %v1642 = vsel %vm1610, %v1577, %v1578
      %v1643 = vsel %vm1610, %v1576, %v1577
      %v1644 = vsel %vm1610, %v1575, %v1576
      %v1645 = vsel %vm1610, %v1574, %v1575
      %v1646 = vsel %vm1610, %v1573, %v1574
      %v1647 = vsel %vm1610, %v1572, %v1573
      %v1648 = vsel %vm1610, %v1571, %v1572
      %v1649 = vsel %vm1610, %v1570, %v1571
      %v1650 = vsel %vm1610, %v1569, %v1570
      %v1651 = vsel %vm1610, %v1568, %v1569
      %v1652 = vsel %vm1610, %v1567, %v1568
      %v1653 = vsel %vm1610, %v1566, %v1567
      %v1654 = vsel %vm1610, %v1565, %v1566
      %v1655 = vsel %vm1610, %v1564, %v1565
      %v1656 = vsel %vm1610, %v1563, %v1564
      %v1657 = vsel %vm1610, %v1562, %v1563
      %v1658 = vsel %vm1610, %v1561, %v1562
      %v1659 = vsel %vm1610, %v1560, %v1561
      %v1660 = vsel %vm1610, %v1559, %v1560
      %v1661 = vsel %vm1610, %v1558, %v1559
      %v1662 = vsel %vm1610, %v1557, %v1558
      %v1663 = vsel %vm1610, %v1556, %v1557
      %v1664 = vsel %vm1610, %v1555, %v1556
      %v1665 = vsel %vm1610, %v1554, %v1555
      %v1666 = vsel %vm1610, %v1553, %v1554
      %v1667 = vsel %vm1610, %v1552, %v1553
      %v1668 = vsel %vm1610, %v1551, %v1552
      %v1669 = vsel %vm1610, %v1550, %v1551
      %v1670 = vsel %vm1610, %v1549, %v1550
      %v1671 = vsel %vm1610, %v1548, %v1549
      %v1672 = vsel %vm1610, %v1547, %v1548
      %v1673 = vsel %vm1610, %v1546, %v1547
      %v1674 = vsel %vm1610, %v1609, %v1546
      %1739 = vrot.lane.b32.xlu0 %v1351, 4
      %v1740 = vpop.permute.xlu0 %1739
      %1741 = vrot.lane.b32.xlu0 %v1352, 4
      %v1742 = vpop.permute.xlu0 %1741
      %1743 = vrot.lane.b32.xlu0 %v1353, 4
      %v1744 = vpop.permute.xlu0 %1743
      %1745 = vrot.lane.b32.xlu0 %v1354, 4
      %v1746 = vpop.permute.xlu0 %1745
      %1747 = vrot.lane.b32.xlu0 %v1355, 4
      %v1748 = vpop.permute.xlu0 %1747
      %1749 = vrot.lane.b32.xlu0 %v1356, 4
      %v1750 = vpop.permute.xlu0 %1749
      %1751 = vrot.lane.b32.xlu0 %v1357, 4
      %v1752 = vpop.permute.xlu0 %1751
      %1753 = vrot.lane.b32.xlu0 %v1358, 4
      %v1754 = vpop.permute.xlu0 %1753
      %1755 = vrot.lane.b32.xlu0 %v1359, 4
      %v1756 = vpop.permute.xlu0 %1755
      %1757 = vrot.lane.b32.xlu0 %v1360, 4
      %v1758 = vpop.permute.xlu0 %1757
      %1759 = vrot.lane.b32.xlu0 %v1361, 4
      %v1760 = vpop.permute.xlu0 %1759
      %1761 = vrot.lane.b32.xlu0 %v1362, 4
      %v1762 = vpop.permute.xlu0 %1761
      %1763 = vrot.lane.b32.xlu0 %v1363, 4
      %v1764 = vpop.permute.xlu0 %1763
      %1765 = vrot.lane.b32.xlu0 %v1364, 4
      %v1766 = vpop.permute.xlu0 %1765
      %1767 = vrot.lane.b32.xlu0 %v1365, 4
      %v1768 = vpop.permute.xlu0 %1767
      %1769 = vrot.lane.b32.xlu0 %v1366, 4
      %v1770 = vpop.permute.xlu0 %1769
      %1771 = vrot.lane.b32.xlu0 %v1367, 4
      %v1772 = vpop.permute.xlu0 %1771
      %1773 = vrot.lane.b32.xlu0 %v1368, 4
      %v1774 = vpop.permute.xlu0 %1773
      %1775 = vrot.lane.b32.xlu0 %v1369, 4
      %v1776 = vpop.permute.xlu0 %1775
      %1777 = vrot.lane.b32.xlu0 %v1370, 4
      %v1778 = vpop.permute.xlu0 %1777
      %1779 = vrot.lane.b32.xlu0 %v1371, 4
      %v1780 = vpop.permute.xlu0 %1779
      %1781 = vrot.lane.b32.xlu0 %v1372, 4
      %v1782 = vpop.permute.xlu0 %1781
      %1783 = vrot.lane.b32.xlu0 %v1373, 4
      %v1784 = vpop.permute.xlu0 %1783
      %1785 = vrot.lane.b32.xlu0 %v1374, 4
      %v1786 = vpop.permute.xlu0 %1785
      %1787 = vrot.lane.b32.xlu0 %v1375, 4
      %v1788 = vpop.permute.xlu0 %1787
      %1789 = vrot.lane.b32.xlu0 %v1376, 4
      %v1790 = vpop.permute.xlu0 %1789
      %1791 = vrot.lane.b32.xlu0 %v1377, 4
      %v1792 = vpop.permute.xlu0 %1791
      %1793 = vrot.lane.b32.xlu0 %v1378, 4
      %v1794 = vpop.permute.xlu0 %1793
      %1795 = vrot.lane.b32.xlu0 %v1379, 4
      %v1796 = vpop.permute.xlu0 %1795
      %1797 = vrot.lane.b32.xlu0 %v1380, 4
      %v1798 = vpop.permute.xlu0 %1797
      %1799 = vrot.lane.b32.xlu0 %v1381, 4
      %v1800 = vpop.permute.xlu0 %1799
      %1801 = vrot.lane.b32.xlu0 %v1382, 4
      %v1802 = vpop.permute.xlu0 %1801
      %1803 = vrot.lane.b32.xlu0 %v1383, 4
      %v1804 = vpop.permute.xlu0 %1803
      %1805 = vrot.lane.b32.xlu0 %v1384, 4
      %v1806 = vpop.permute.xlu0 %1805
      %1807 = vrot.lane.b32.xlu0 %v1385, 4
      %v1808 = vpop.permute.xlu0 %1807
      %1809 = vrot.lane.b32.xlu0 %v1386, 4
      %v1810 = vpop.permute.xlu0 %1809
      %1811 = vrot.lane.b32.xlu0 %v1387, 4
      %v1812 = vpop.permute.xlu0 %1811
      %1813 = vrot.lane.b32.xlu0 %v1388, 4
      %v1814 = vpop.permute.xlu0 %1813
      %1815 = vrot.lane.b32.xlu0 %v1389, 4
      %v1816 = vpop.permute.xlu0 %1815
      %1817 = vrot.lane.b32.xlu0 %v1390, 4
      %v1818 = vpop.permute.xlu0 %1817
      %1819 = vrot.lane.b32.xlu0 %v1391, 4
      %v1820 = vpop.permute.xlu0 %1819
      %1821 = vrot.lane.b32.xlu0 %v1392, 4
      %v1822 = vpop.permute.xlu0 %1821
      %1823 = vrot.lane.b32.xlu0 %v1393, 4
      %v1824 = vpop.permute.xlu0 %1823
      %1825 = vrot.lane.b32.xlu0 %v1394, 4
      %v1826 = vpop.permute.xlu0 %1825
      %1827 = vrot.lane.b32.xlu0 %v1395, 4
      %v1828 = vpop.permute.xlu0 %1827
      %1829 = vrot.lane.b32.xlu0 %v1396, 4
      %v1830 = vpop.permute.xlu0 %1829
      %1831 = vrot.lane.b32.xlu0 %v1397, 4
      %v1832 = vpop.permute.xlu0 %1831
      %1833 = vrot.lane.b32.xlu0 %v1398, 4
      %v1834 = vpop.permute.xlu0 %1833
      %1835 = vrot.lane.b32.xlu0 %v1399, 4
      %v1836 = vpop.permute.xlu0 %1835
      %1837 = vrot.lane.b32.xlu0 %v1400, 4
      %v1838 = vpop.permute.xlu0 %1837
      %1839 = vrot.lane.b32.xlu0 %v1401, 4
      %v1840 = vpop.permute.xlu0 %1839
      %1841 = vrot.lane.b32.xlu0 %v1402, 4
      %v1842 = vpop.permute.xlu0 %1841
      %1843 = vrot.lane.b32.xlu0 %v1403, 4
      %v1844 = vpop.permute.xlu0 %1843
      %1845 = vrot.lane.b32.xlu0 %v1404, 4
      %v1846 = vpop.permute.xlu0 %1845
      %1847 = vrot.lane.b32.xlu0 %v1405, 4
      %v1848 = vpop.permute.xlu0 %1847
      %1849 = vrot.lane.b32.xlu0 %v1406, 4
      %v1850 = vpop.permute.xlu0 %1849
      %1851 = vrot.lane.b32.xlu0 %v1407, 4
      %v1852 = vpop.permute.xlu0 %1851
      %1853 = vrot.lane.b32.xlu0 %v1408, 4
      %v1854 = vpop.permute.xlu0 %1853
      %1855 = vrot.lane.b32.xlu0 %v1409, 4
      %v1856 = vpop.permute.xlu0 %1855
      %1857 = vrot.lane.b32.xlu0 %v1410, 4
      %v1858 = vpop.permute.xlu0 %1857
      %1859 = vrot.lane.b32.xlu0 %v1411, 4
      %v1860 = vpop.permute.xlu0 %1859
      %1861 = vrot.lane.b32.xlu0 %v1412, 4
      %v1862 = vpop.permute.xlu0 %1861
      %1863 = vrot.lane.b32.xlu0 %v1413, 4
      %v1864 = vpop.permute.xlu0 %1863
      %1865 = vrot.lane.b32.xlu0 %v1414, 4
      %v1866 = vpop.permute.xlu0 %1865
      %1995 = vrot.lane.b32.xlu0 %v1673, 8
      %v1996 = vpop.permute.xlu0 %1995
      %1997 = vrot.lane.b32.xlu0 %v1672, 8
      %v1998 = vpop.permute.xlu0 %1997
      %1999 = vrot.lane.b32.xlu0 %v1671, 8
      %v2000 = vpop.permute.xlu0 %1999
      %2001 = vrot.lane.b32.xlu0 %v1670, 8
      %v2002 = vpop.permute.xlu0 %2001
      %2003 = vrot.lane.b32.xlu0 %v1669, 8
      %v2004 = vpop.permute.xlu0 %2003
      %2005 = vrot.lane.b32.xlu0 %v1668, 8
      %v2006 = vpop.permute.xlu0 %2005
      %2007 = vrot.lane.b32.xlu0 %v1667, 8
      %v2008 = vpop.permute.xlu0 %2007
      %2009 = vrot.lane.b32.xlu0 %v1666, 8
      %v2010 = vpop.permute.xlu0 %2009
      %2011 = vrot.lane.b32.xlu0 %v1665, 8
      %v2012 = vpop.permute.xlu0 %2011
      %2013 = vrot.lane.b32.xlu0 %v1664, 8
      %v2014 = vpop.permute.xlu0 %2013
      %2015 = vrot.lane.b32.xlu0 %v1663, 8
      %v2016 = vpop.permute.xlu0 %2015
      %2017 = vrot.lane.b32.xlu0 %v1662, 8
      %v2018 = vpop.permute.xlu0 %2017
      %2019 = vrot.lane.b32.xlu0 %v1661, 8
      %v2020 = vpop.permute.xlu0 %2019
      %2021 = vrot.lane.b32.xlu0 %v1660, 8
      %v2022 = vpop.permute.xlu0 %2021
      %2023 = vrot.lane.b32.xlu0 %v1659, 8
      %v2024 = vpop.permute.xlu0 %2023
      %2025 = vrot.lane.b32.xlu0 %v1658, 8
      %v2026 = vpop.permute.xlu0 %2025
      %2027 = vrot.lane.b32.xlu0 %v1657, 8
      %v2028 = vpop.permute.xlu0 %2027
      %2029 = vrot.lane.b32.xlu0 %v1656, 8
      %v2030 = vpop.permute.xlu0 %2029
      %2031 = vrot.lane.b32.xlu0 %v1655, 8
      %v2032 = vpop.permute.xlu0 %2031
      %2033 = vrot.lane.b32.xlu0 %v1654, 8
      %v2034 = vpop.permute.xlu0 %2033
      %2035 = vrot.lane.b32.xlu0 %v1653, 8
      %v2036 = vpop.permute.xlu0 %2035
      %2037 = vrot.lane.b32.xlu0 %v1652, 8
      %v2038 = vpop.permute.xlu0 %2037
      %2039 = vrot.lane.b32.xlu0 %v1651, 8
      %v2040 = vpop.permute.xlu0 %2039
      %2041 = vrot.lane.b32.xlu0 %v1650, 8
      %v2042 = vpop.permute.xlu0 %2041
      %2043 = vrot.lane.b32.xlu0 %v1649, 8
      %v2044 = vpop.permute.xlu0 %2043
      %2045 = vrot.lane.b32.xlu0 %v1648, 8
      %v2046 = vpop.permute.xlu0 %2045
      %2047 = vrot.lane.b32.xlu0 %v1647, 8
      %v2048 = vpop.permute.xlu0 %2047
      %2049 = vrot.lane.b32.xlu0 %v1646, 8
      %v2050 = vpop.permute.xlu0 %2049
      %2051 = vrot.lane.b32.xlu0 %v1645, 8
      %v2052 = vpop.permute.xlu0 %2051
      %2053 = vrot.lane.b32.xlu0 %v1644, 8
      %v2054 = vpop.permute.xlu0 %2053
      %2055 = vrot.lane.b32.xlu0 %v1643, 8
      %v2056 = vpop.permute.xlu0 %2055
      %2057 = vrot.lane.b32.xlu0 %v1642, 8
      %v2058 = vpop.permute.xlu0 %2057
      %2059 = vrot.lane.b32.xlu0 %v1641, 8
      %v2060 = vpop.permute.xlu0 %2059
      %2061 = vrot.lane.b32.xlu0 %v1640, 8
      %v2062 = vpop.permute.xlu0 %2061
      %2063 = vrot.lane.b32.xlu0 %v1639, 8
      %v2064 = vpop.permute.xlu0 %2063
      %2065 = vrot.lane.b32.xlu0 %v1638, 8
      %v2066 = vpop.permute.xlu0 %2065
      %2067 = vrot.lane.b32.xlu0 %v1637, 8
      %v2068 = vpop.permute.xlu0 %2067
      %2069 = vrot.lane.b32.xlu0 %v1636, 8
      %v2070 = vpop.permute.xlu0 %2069
      %2071 = vrot.lane.b32.xlu0 %v1635, 8
      %v2072 = vpop.permute.xlu0 %2071
      %2073 = vrot.lane.b32.xlu0 %v1634, 8
      %v2074 = vpop.permute.xlu0 %2073
      %2075 = vrot.lane.b32.xlu0 %v1633, 8
      %v2076 = vpop.permute.xlu0 %2075
      %2077 = vrot.lane.b32.xlu0 %v1632, 8
      %v2078 = vpop.permute.xlu0 %2077
      %2079 = vrot.lane.b32.xlu0 %v1631, 8
      %v2080 = vpop.permute.xlu0 %2079
      %2081 = vrot.lane.b32.xlu0 %v1630, 8
      %v2082 = vpop.permute.xlu0 %2081
      %2083 = vrot.lane.b32.xlu0 %v1629, 8
      %v2084 = vpop.permute.xlu0 %2083
      %2085 = vrot.lane.b32.xlu0 %v1628, 8
      %v2086 = vpop.permute.xlu0 %2085
      %2087 = vrot.lane.b32.xlu0 %v1627, 8
      %v2088 = vpop.permute.xlu0 %2087
      %2089 = vrot.lane.b32.xlu0 %v1626, 8
      %v2090 = vpop.permute.xlu0 %2089
      %2091 = vrot.lane.b32.xlu0 %v1625, 8
      %v2092 = vpop.permute.xlu0 %2091
      %2093 = vrot.lane.b32.xlu0 %v1624, 8
      %v2094 = vpop.permute.xlu0 %2093
      %2095 = vrot.lane.b32.xlu0 %v1623, 8
      %v2096 = vpop.permute.xlu0 %2095
      %2097 = vrot.lane.b32.xlu0 %v1622, 8
      %v2098 = vpop.permute.xlu0 %2097
      %2099 = vrot.lane.b32.xlu0 %v1621, 8
      %v2100 = vpop.permute.xlu0 %2099
      %2101 = vrot.lane.b32.xlu0 %v1620, 8
      %v2102 = vpop.permute.xlu0 %2101
      %2103 = vrot.lane.b32.xlu0 %v1619, 8
      %v2104 = vpop.permute.xlu0 %2103
      %2105 = vrot.lane.b32.xlu0 %v1618, 8
      %v2106 = vpop.permute.xlu0 %2105
      %2107 = vrot.lane.b32.xlu0 %v1617, 8
      %v2108 = vpop.permute.xlu0 %2107
      %2109 = vrot.lane.b32.xlu0 %v1616, 8
      %v2110 = vpop.permute.xlu0 %2109
      %2111 = vrot.lane.b32.xlu0 %v1615, 8
      %v2112 = vpop.permute.xlu0 %2111
      %2113 = vrot.lane.b32.xlu0 %v1614, 8
      %v2114 = vpop.permute.xlu0 %2113
      %2115 = vrot.lane.b32.xlu0 %v1613, 8
      %v2116 = vpop.permute.xlu0 %2115
      %2117 = vrot.lane.b32.xlu0 %v1612, 8
      %v2118 = vpop.permute.xlu0 %2117
      %2119 = vrot.lane.b32.xlu0 %v1611, 8
      %v2120 = vpop.permute.xlu0 %2119
      %2121 = vrot.lane.b32.xlu0 %v1674, 8
      %v2122 = vpop.permute.xlu0 %2121
      %vm2187 = vcmask 31744
      %v2188 = vsel %vm2187, %v1545, %v1740
      %v2189 = vsel %vm2187, %v1544, %v1742
      %v2190 = vsel %vm2187, %v1543, %v1744
      %v2191 = vsel %vm2187, %v1542, %v1746
      %v2192 = vsel %vm2187, %v1541, %v1748
      %v2193 = vsel %vm2187, %v1540, %v1750
      %v2194 = vsel %vm2187, %v1539, %v1752
      %v2195 = vsel %vm2187, %v1538, %v1754
      %v2196 = vsel %vm2187, %v1537, %v1756
      %v2197 = vsel %vm2187, %v1536, %v1758
      %v2198 = vsel %vm2187, %v1535, %v1760
      %v2199 = vsel %vm2187, %v1534, %v1762
      %v2200 = vsel %vm2187, %v1533, %v1764
      %v2201 = vsel %vm2187, %v1532, %v1766
      %v2202 = vsel %vm2187, %v1531, %v1768
      %v2203 = vsel %vm2187, %v1530, %v1770
      %v2204 = vsel %vm2187, %v1529, %v1772
      %v2205 = vsel %vm2187, %v1528, %v1774
      %v2206 = vsel %vm2187, %v1527, %v1776
      %v2207 = vsel %vm2187, %v1526, %v1778
      %v2208 = vsel %vm2187, %v1525, %v1780
      %v2209 = vsel %vm2187, %v1524, %v1782
      %v2210 = vsel %vm2187, %v1523, %v1784
      %v2211 = vsel %vm2187, %v1522, %v1786
      %v2212 = vsel %vm2187, %v1521, %v1788
      %v2213 = vsel %vm2187, %v1520, %v1790
      %v2214 = vsel %vm2187, %v1519, %v1792
      %v2215 = vsel %vm2187, %v1518, %v1794
      %v2216 = vsel %vm2187, %v1517, %v1796
      %v2217 = vsel %vm2187, %v1516, %v1798
      %v2218 = vsel %vm2187, %v1515, %v1800
      %v2219 = vsel %vm2187, %v1514, %v1802
      %v2220 = vsel %vm2187, %v1513, %v1804
      %v2221 = vsel %vm2187, %v1512, %v1806
      %v2222 = vsel %vm2187, %v1511, %v1808
      %v2223 = vsel %vm2187, %v1510, %v1810
      %v2224 = vsel %vm2187, %v1509, %v1812
      %v2225 = vsel %vm2187, %v1508, %v1814
      %v2226 = vsel %vm2187, %v1507, %v1816
      %v2227 = vsel %vm2187, %v1506, %v1818
      %v2228 = vsel %vm2187, %v1505, %v1820
      %v2229 = vsel %vm2187, %v1504, %v1822
      %v2230 = vsel %vm2187, %v1503, %v1824
      %v2231 = vsel %vm2187, %v1502, %v1826
      %v2232 = vsel %vm2187, %v1501, %v1828
      %v2233 = vsel %vm2187, %v1500, %v1830
      %v2234 = vsel %vm2187, %v1499, %v1832
      %v2235 = vsel %vm2187, %v1498, %v1834
      %v2236 = vsel %vm2187, %v1497, %v1836
      %v2237 = vsel %vm2187, %v1496, %v1838
      %v2238 = vsel %vm2187, %v1495, %v1840
      %v2239 = vsel %vm2187, %v1494, %v1842
      %v2240 = vsel %vm2187, %v1493, %v1844
      %v2241 = vsel %vm2187, %v1492, %v1846
      %v2242 = vsel %vm2187, %v1491, %v1848
      %v2243 = vsel %vm2187, %v1490, %v1850
      %v2244 = vsel %vm2187, %v1489, %v1852
      %v2245 = vsel %vm2187, %v1488, %v1854
      %v2246 = vsel %vm2187, %v1487, %v1856
      %v2247 = vsel %vm2187, %v1486, %v1858
      %v2248 = vsel %vm2187, %v1485, %v1860
      %v2249 = vsel %vm2187, %v1484, %v1862
      %v2250 = vsel %vm2187, %v1483, %v1864
      %v2251 = vsel %vm2187, %v1482, %v1866
      %v2252 = vsel %vm497, %v2188, %v1996
      %v2253 = vsel %vm497, %v2189, %v1998
      %v2254 = vsel %vm497, %v2190, %v2000
      %v2255 = vsel %vm497, %v2191, %v2002
      %v2256 = vsel %vm497, %v2192, %v2004
      %v2257 = vsel %vm497, %v2193, %v2006
      %v2258 = vsel %vm497, %v2194, %v2008
      %v2259 = vsel %vm497, %v2195, %v2010
      %v2260 = vsel %vm497, %v2196, %v2012
      %v2261 = vsel %vm497, %v2197, %v2014
      %v2262 = vsel %vm497, %v2198, %v2016
      %v2263 = vsel %vm497, %v2199, %v2018
      %v2264 = vsel %vm497, %v2200, %v2020
      %v2265 = vsel %vm497, %v2201, %v2022
      %v2266 = vsel %vm497, %v2202, %v2024
      %v2267 = vsel %vm497, %v2203, %v2026
      %v2268 = vsel %vm497, %v2204, %v2028
      %v2269 = vsel %vm497, %v2205, %v2030
      %v2270 = vsel %vm497, %v2206, %v2032
      %v2271 = vsel %vm497, %v2207, %v2034
      %v2272 = vsel %vm497, %v2208, %v2036
      %v2273 = vsel %vm497, %v2209, %v2038
      %v2274 = vsel %vm497, %v2210, %v2040
      %v2275 = vsel %vm497, %v2211, %v2042
      %v2276 = vsel %vm497, %v2212, %v2044
      %v2277 = vsel %vm497, %v2213, %v2046
      %v2278 = vsel %vm497, %v2214, %v2048
      %v2279 = vsel %vm497, %v2215, %v2050
      %v2280 = vsel %vm497, %v2216, %v2052
      %v2281 = vsel %vm497, %v2217, %v2054
      %v2282 = vsel %vm497, %v2218, %v2056
      %v2283 = vsel %vm497, %v2219, %v2058
      %v2284 = vsel %vm497, %v2220, %v2060
      %v2285 = vsel %vm497, %v2221, %v2062
      %v2286 = vsel %vm497, %v2222, %v2064
      %v2287 = vsel %vm497, %v2223, %v2066
      %v2288 = vsel %vm497, %v2224, %v2068
      %v2289 = vsel %vm497, %v2225, %v2070
      %v2290 = vsel %vm497, %v2226, %v2072
      %v2291 = vsel %vm497, %v2227, %v2074
      %v2292 = vsel %vm497, %v2228, %v2076
      %v2293 = vsel %vm497, %v2229, %v2078
      %v2294 = vsel %vm497, %v2230, %v2080
      %v2295 = vsel %vm497, %v2231, %v2082
      %v2296 = vsel %vm497, %v2232, %v2084
      %v2297 = vsel %vm497, %v2233, %v2086
      %v2298 = vsel %vm497, %v2234, %v2088
      %v2299 = vsel %vm497, %v2235, %v2090
      %v2300 = vsel %vm497, %v2236, %v2092
      %v2301 = vsel %vm497, %v2237, %v2094
      %v2302 = vsel %vm497, %v2238, %v2096
      %v2303 = vsel %vm497, %v2239, %v2098
      %v2304 = vsel %vm497, %v2240, %v2100
      %v2305 = vsel %vm497, %v2241, %v2102
      %v2306 = vsel %vm497, %v2242, %v2104
      %v2307 = vsel %vm497, %v2243, %v2106
      %v2308 = vsel %vm497, %v2244, %v2108
      %v2309 = vsel %vm497, %v2245, %v2110
      %v2310 = vsel %vm497, %v2246, %v2112
      %v2311 = vsel %vm497, %v2247, %v2114
      %v2312 = vsel %vm497, %v2248, %v2116
      %v2313 = vsel %vm497, %v2249, %v2118
      %v2314 = vsel %vm497, %v2250, %v2120
      %v2315 = vsel %vm497, %v2251, %v2122
      %v2316 = vpack.c.bf16 %v2253, %v2252
      %v2317 = vpack.c.bf16 %v2255, %v2254
      %v2318 = vpack.c.bf16 %v2257, %v2256
      %v2319 = vpack.c.bf16 %v2259, %v2258
      %v2320 = vpack.c.bf16 %v2261, %v2260
      %v2321 = vpack.c.bf16 %v2263, %v2262
      %v2322 = vpack.c.bf16 %v2265, %v2264
      %v2323 = vpack.c.bf16 %v2267, %v2266
      %v2324 = vpack.c.bf16 %v2269, %v2268
      %v2325 = vpack.c.bf16 %v2271, %v2270
      %v2326 = vpack.c.bf16 %v2273, %v2272
      %v2327 = vpack.c.bf16 %v2275, %v2274
      %v2328 = vpack.c.bf16 %v2277, %v2276
      %v2329 = vpack.c.bf16 %v2279, %v2278
      %v2330 = vpack.c.bf16 %v2281, %v2280
      %v2331 = vpack.c.bf16 %v2283, %v2282
      %v2332 = vpack.c.bf16 %v2285, %v2284
      %v2333 = vpack.c.bf16 %v2287, %v2286
      %v2334 = vpack.c.bf16 %v2289, %v2288
      %v2335 = vpack.c.bf16 %v2291, %v2290
      %v2336 = vpack.c.bf16 %v2293, %v2292
      %v2337 = vpack.c.bf16 %v2295, %v2294
      %v2338 = vpack.c.bf16 %v2297, %v2296
      %v2339 = vpack.c.bf16 %v2299, %v2298
      %v2340 = vpack.c.bf16 %v2301, %v2300
      %v2341 = vpack.c.bf16 %v2303, %v2302
      %v2342 = vpack.c.bf16 %v2305, %v2304
      %v2343 = vpack.c.bf16 %v2307, %v2306
      %v2344 = vpack.c.bf16 %v2309, %v2308
      %v2345 = vpack.c.bf16 %v2311, %v2310
      %v2346 = vpack.c.bf16 %v2313, %v2312
      %v2347 = vpack.c.bf16 %v2315, %v2314
      %v2348 = vld [vmem:[%s3] sm:$0xf]
      %v2349 = vld [vmem:[%s3 + $0x4] sm:$0x3]
      %v2350 = vld [vmem:[%s344] sm:$0xf]
      %v2351 = vld [vmem:[%s344 + $0x4] sm:$0xf]
      %v2352 = vld [vmem:[%s344 + $0x8] sm:$0xf]
      %v2353 = vld [vmem:[%s344 + $0xc] sm:$0xf]
      %v2354 = vld [vmem:[%s344 + $0x10] sm:$0xf]
      %v2355 = vld [vmem:[%s344 + $0x14] sm:$0xf]
      %v2356 = vld [vmem:[%s344 + $0x18] sm:$0xf]
      %v2357 = vld [vmem:[%s344 + $0x1c] sm:$0xf]
      %v2358 = vld [vmem:[%s344 + $0x20] sm:$0xf]
      %v2359 = vld [vmem:[%s344 + $0x24] sm:$0xf]
      %v2360 = vld [vmem:[%s344 + $0x28] sm:$0xf]
      %v2361 = vld [vmem:[%s344 + $0x2c] sm:$0xf]
      %v2362 = vld [vmem:[%s344 + $0x30] sm:$0xf]
      %v2363 = vld [vmem:[%s344 + $0x34] sm:$0xf]
      %v2364 = vld [vmem:[%s344 + $0x38] sm:$0xf]
      %v2365 = vld [vmem:[%s344 + $0x3c] sm:$0xf]
      %v2366 = vld [vmem:[%s344 + $0x40] sm:$0xf]
      %v2367 = vld [vmem:[%s344 + $0x44] sm:$0xf]
      %v2368 = vld [vmem:[%s344 + $0x48] sm:$0xf]
      %v2369 = vld [vmem:[%s344 + $0x4c] sm:$0xf]
      %v2370 = vld [vmem:[%s344 + $0x50] sm:$0xf]
      %v2371 = vld [vmem:[%s344 + $0x54] sm:$0xf]
      %v2372 = vld [vmem:[%s344 + $0x58] sm:$0xf]
      %v2373 = vld [vmem:[%s344 + $0x5c] sm:$0xf]
      %v2374 = vld [vmem:[%s344 + $0x60] sm:$0xf]
      %v2375 = vld [vmem:[%s344 + $0x64] sm:$0xf]
      %v2376 = vld [vmem:[%s344 + $0x68] sm:$0xf]
      %v2377 = vld [vmem:[%s344 + $0x6c] sm:$0xf]
      %v2378 = vld [vmem:[%s344 + $0x70] sm:$0xf]
      %v2379 = vld [vmem:[%s344 + $0x74] sm:$0xf]
      %v2380 = vld [vmem:[%s344 + $0x78] sm:$0xf]
      %v2381 = vld [vmem:[%s344 + $0x7c] sm:$0xf]
      %v2382 = vld [vmem:[%s344 + $0x80] sm:$0xf]
      %v2383 = vld [vmem:[%s344 + $0x84] sm:$0xf]
      %v2384 = vld [vmem:[%s344 + $0x88] sm:$0xf]
      %v2385 = vld [vmem:[%s344 + $0x8c] sm:$0xf]
      %v2386 = vld [vmem:[%s344 + $0x90] sm:$0xf]
      %v2387 = vld [vmem:[%s344 + $0x94] sm:$0xf]
      %v2388 = vld [vmem:[%s344 + $0x98] sm:$0xf]
      %v2389 = vld [vmem:[%s344 + $0x9c] sm:$0xf]
      %v2390 = vld [vmem:[%s344 + $0xa0] sm:$0xf]
      %v2391 = vld [vmem:[%s344 + $0xa4] sm:$0xf]
      %v2392 = vld [vmem:[%s344 + $0xa8] sm:$0xf]
      %v2393 = vld [vmem:[%s344 + $0xac] sm:$0xf]
      %v2394 = vld [vmem:[%s344 + $0xb0] sm:$0xf]
      %v2395 = vld [vmem:[%s344 + $0xb4] sm:$0xf]
      %v2396 = vld [vmem:[%s344 + $0xb8] sm:$0xf]
      %v2397 = vld [vmem:[%s344 + $0xbc] sm:$0xf]
      %v2398 = vld [vmem:[%s344 + $0xc0] sm:$0xf]
      %v2399 = vld [vmem:[%s344 + $0xc4] sm:$0xf]
      %v2400 = vld [vmem:[%s344 + $0xc8] sm:$0xf]
      %v2401 = vld [vmem:[%s344 + $0xcc] sm:$0xf]
      %v2402 = vld [vmem:[%s344 + $0xd0] sm:$0xf]
      %v2403 = vld [vmem:[%s344 + $0xd4] sm:$0xf]
      %v2404 = vld [vmem:[%s344 + $0xd8] sm:$0xf]
      %v2405 = vld [vmem:[%s344 + $0xdc] sm:$0xf]
      %v2406 = vld [vmem:[%s344 + $0xe0] sm:$0xf]
      %v2407 = vld [vmem:[%s344 + $0xe4] sm:$0xf]
      %v2408 = vld [vmem:[%s344 + $0xe8] sm:$0xf]
      %v2409 = vld [vmem:[%s344 + $0xec] sm:$0xf]
      %v2410 = vld [vmem:[%s344 + $0xf0] sm:$0xf]
      %v2411 = vld [vmem:[%s344 + $0xf4] sm:$0xf]
      %v2412 = vld [vmem:[%s344 + $0xf8] sm:$0xf]
      %v2413 = vld [vmem:[%s344 + $0xfc] sm:$0xf]
      %v2414 = vunpack.c.l.bf16 %v2350
      %v2415 = vunpack.c.l.bf16 %v2351
      %v2416 = vunpack.c.l.bf16 %v2352
      %v2417 = vunpack.c.l.bf16 %v2353
      %v2418 = vunpack.c.l.bf16 %v2354
      %v2419 = vunpack.c.l.bf16 %v2355
      %v2420 = vunpack.c.l.bf16 %v2356
      %v2421 = vunpack.c.l.bf16 %v2357
      %v2422 = vunpack.c.l.bf16 %v2358
      %v2423 = vunpack.c.l.bf16 %v2359
      %v2424 = vunpack.c.l.bf16 %v2360
      %v2425 = vunpack.c.l.bf16 %v2361
      %v2426 = vunpack.c.l.bf16 %v2362
      %v2427 = vunpack.c.l.bf16 %v2363
      %v2428 = vunpack.c.l.bf16 %v2364
      %v2429 = vunpack.c.l.bf16 %v2365
      %v2430 = vunpack.c.l.bf16 %v2366
      %v2431 = vunpack.c.l.bf16 %v2367
      %v2432 = vunpack.c.l.bf16 %v2368
      %v2433 = vunpack.c.l.bf16 %v2369
      %v2434 = vunpack.c.l.bf16 %v2370
      %v2435 = vunpack.c.l.bf16 %v2371
      %v2436 = vunpack.c.l.bf16 %v2372
      %v2437 = vunpack.c.l.bf16 %v2373
      %v2438 = vunpack.c.l.bf16 %v2374
      %v2439 = vunpack.c.l.bf16 %v2375
      %v2440 = vunpack.c.l.bf16 %v2376
      %v2441 = vunpack.c.l.bf16 %v2377
      %v2442 = vunpack.c.l.bf16 %v2378
      %v2443 = vunpack.c.l.bf16 %v2379
      %v2444 = vunpack.c.l.bf16 %v2380
      %v2445 = vunpack.c.l.bf16 %v2381
      %v2446 = vunpack.c.l.bf16 %v2382
      %v2447 = vunpack.c.l.bf16 %v2383
      %v2448 = vunpack.c.l.bf16 %v2384
      %v2449 = vunpack.c.l.bf16 %v2385
      %v2450 = vunpack.c.l.bf16 %v2386
      %v2451 = vunpack.c.l.bf16 %v2387
      %v2452 = vunpack.c.l.bf16 %v2388
      %v2453 = vunpack.c.l.bf16 %v2389
      %v2454 = vunpack.c.l.bf16 %v2390
      %v2455 = vunpack.c.l.bf16 %v2391
      %v2456 = vunpack.c.l.bf16 %v2392
      %v2457 = vunpack.c.l.bf16 %v2393
      %v2458 = vunpack.c.l.bf16 %v2394
      %v2459 = vunpack.c.l.bf16 %v2395
      %v2460 = vunpack.c.l.bf16 %v2396
      %v2461 = vunpack.c.l.bf16 %v2397
      %v2462 = vunpack.c.l.bf16 %v2398
      %v2463 = vunpack.c.l.bf16 %v2399
      %v2464 = vunpack.c.l.bf16 %v2400
      %v2465 = vunpack.c.l.bf16 %v2401
      %v2466 = vunpack.c.l.bf16 %v2402
      %v2467 = vunpack.c.l.bf16 %v2403
      %v2468 = vunpack.c.l.bf16 %v2404
      %v2469 = vunpack.c.l.bf16 %v2405
      %v2470 = vunpack.c.l.bf16 %v2406
      %v2471 = vunpack.c.l.bf16 %v2407
      %v2472 = vunpack.c.l.bf16 %v2408
      %v2473 = vunpack.c.l.bf16 %v2409
      %v2474 = vunpack.c.l.bf16 %v2410
      %v2475 = vunpack.c.l.bf16 %v2411
      %v2476 = vunpack.c.l.bf16 %v2412
      %v2477 = vunpack.c.l.bf16 %v2413
      %v2478 = vrot.slane %v2414, 7
      %v2479 = vrot.slane %v2415, 7
      %v2480 = vrot.slane %v2416, 7
      %v2481 = vrot.slane %v2417, 7
      %v2482 = vrot.slane %v2418, 7
      %v2483 = vrot.slane %v2419, 7
      %v2484 = vrot.slane %v2420, 7
      %v2485 = vrot.slane %v2421, 7
      %v2486 = vrot.slane %v2422, 7
      %v2487 = vrot.slane %v2423, 7
      %v2488 = vrot.slane %v2424, 7
      %v2489 = vrot.slane %v2425, 7
      %v2490 = vrot.slane %v2426, 7
      %v2491 = vrot.slane %v2427, 7
      %v2492 = vrot.slane %v2428, 7
      %v2493 = vrot.slane %v2429, 7
      %v2494 = vrot.slane %v2430, 7
      %v2495 = vrot.slane %v2431, 7
      %v2496 = vrot.slane %v2432, 7
      %v2497 = vrot.slane %v2433, 7
      %v2498 = vrot.slane %v2434, 7
      %v2499 = vrot.slane %v2435, 7
      %v2500 = vrot.slane %v2436, 7
      %v2501 = vrot.slane %v2437, 7
      %v2502 = vrot.slane %v2438, 7
      %v2503 = vrot.slane %v2439, 7
      %v2504 = vrot.slane %v2440, 7
      %v2505 = vrot.slane %v2441, 7
      %v2506 = vrot.slane %v2442, 7
      %v2507 = vrot.slane %v2443, 7
      %v2508 = vrot.slane %v2444, 7
      %v2509 = vrot.slane %v2445, 7
      %v2510 = vrot.slane %v2446, 7
      %v2511 = vrot.slane %v2447, 7
      %v2512 = vrot.slane %v2448, 7
      %v2513 = vrot.slane %v2449, 7
      %v2514 = vrot.slane %v2450, 7
      %v2515 = vrot.slane %v2451, 7
      %v2516 = vrot.slane %v2452, 7
      %v2517 = vrot.slane %v2453, 7
      %v2518 = vrot.slane %v2454, 7
      %v2519 = vrot.slane %v2455, 7
      %v2520 = vrot.slane %v2456, 7
      %v2521 = vrot.slane %v2457, 7
      %v2522 = vrot.slane %v2458, 7
      %v2523 = vrot.slane %v2459, 7
      %v2524 = vrot.slane %v2460, 7
      %v2525 = vrot.slane %v2461, 7
      %v2526 = vrot.slane %v2462, 7
      %v2527 = vrot.slane %v2463, 7
      %v2528 = vrot.slane %v2464, 7
      %v2529 = vrot.slane %v2465, 7
      %v2530 = vrot.slane %v2466, 7
      %v2531 = vrot.slane %v2467, 7
      %v2532 = vrot.slane %v2468, 7
      %v2533 = vrot.slane %v2469, 7
      %v2534 = vrot.slane %v2470, 7
      %v2535 = vrot.slane %v2471, 7
      %v2536 = vrot.slane %v2472, 7
      %v2537 = vrot.slane %v2473, 7
      %v2538 = vrot.slane %v2474, 7
      %v2539 = vrot.slane %v2475, 7
      %v2540 = vrot.slane %v2476, 7
      %v2541 = vrot.slane %v2477, 7
      %v2542 = vsel %vm1481, %v2540, %v2541
      %v2543 = vsel %vm1481, %v2539, %v2540
      %v2544 = vsel %vm1481, %v2538, %v2539
      %v2545 = vsel %vm1481, %v2537, %v2538
      %v2546 = vsel %vm1481, %v2536, %v2537
      %v2547 = vsel %vm1481, %v2535, %v2536
      %v2548 = vsel %vm1481, %v2534, %v2535
      %v2549 = vsel %vm1481, %v2533, %v2534
      %v2550 = vsel %vm1481, %v2532, %v2533
      %v2551 = vsel %vm1481, %v2531, %v2532
      %v2552 = vsel %vm1481, %v2530, %v2531
      %v2553 = vsel %vm1481, %v2529, %v2530
      %v2554 = vsel %vm1481, %v2528, %v2529
      %v2555 = vsel %vm1481, %v2527, %v2528
      %v2556 = vsel %vm1481, %v2526, %v2527
      %v2557 = vsel %vm1481, %v2525, %v2526
      %v2558 = vsel %vm1481, %v2524, %v2525
      %v2559 = vsel %vm1481, %v2523, %v2524
      %v2560 = vsel %vm1481, %v2522, %v2523
      %v2561 = vsel %vm1481, %v2521, %v2522
      %v2562 = vsel %vm1481, %v2520, %v2521
      %v2563 = vsel %vm1481, %v2519, %v2520
      %v2564 = vsel %vm1481, %v2518, %v2519
      %v2565 = vsel %vm1481, %v2517, %v2518
      %v2566 = vsel %vm1481, %v2516, %v2517
      %v2567 = vsel %vm1481, %v2515, %v2516
      %v2568 = vsel %vm1481, %v2514, %v2515
      %v2569 = vsel %vm1481, %v2513, %v2514
      %v2570 = vsel %vm1481, %v2512, %v2513
      %v2571 = vsel %vm1481, %v2511, %v2512
      %v2572 = vsel %vm1481, %v2510, %v2511
      %v2573 = vsel %vm1481, %v2509, %v2510
      %v2574 = vsel %vm1481, %v2508, %v2509
      %v2575 = vsel %vm1481, %v2507, %v2508
      %v2576 = vsel %vm1481, %v2506, %v2507
      %v2577 = vsel %vm1481, %v2505, %v2506
      %v2578 = vsel %vm1481, %v2504, %v2505
      %v2579 = vsel %vm1481, %v2503, %v2504
      %v2580 = vsel %vm1481, %v2502, %v2503
      %v2581 = vsel %vm1481, %v2501, %v2502
      %v2582 = vsel %vm1481, %v2500, %v2501
      %v2583 = vsel %vm1481, %v2499, %v2500
      %v2584 = vsel %vm1481, %v2498, %v2499
      %v2585 = vsel %vm1481, %v2497, %v2498
      %v2586 = vsel %vm1481, %v2496, %v2497
      %v2587 = vsel %vm1481, %v2495, %v2496
      %v2588 = vsel %vm1481, %v2494, %v2495
      %v2589 = vsel %vm1481, %v2493, %v2494
      %v2590 = vsel %vm1481, %v2492, %v2493
      %v2591 = vsel %vm1481, %v2491, %v2492
      %v2592 = vsel %vm1481, %v2490, %v2491
      %v2593 = vsel %vm1481, %v2489, %v2490
      %v2594 = vsel %vm1481, %v2488, %v2489
      %v2595 = vsel %vm1481, %v2487, %v2488
      %v2596 = vsel %vm1481, %v2486, %v2487
      %v2597 = vsel %vm1481, %v2485, %v2486
      %v2598 = vsel %vm1481, %v2484, %v2485
      %v2599 = vsel %vm1481, %v2483, %v2484
      %v2600 = vsel %vm1481, %v2482, %v2483
      %v2601 = vsel %vm1481, %v2481, %v2482
      %v2602 = vsel %vm1481, %v2480, %v2481
      %v2603 = vsel %vm1481, %v2479, %v2480
      %v2604 = vsel %vm1481, %v2478, %v2479
      %v2605 = vsel %vm1481, %v2541, %v2478
      %v2606 = vrot.slane %v2414, 1
      %v2607 = vrot.slane %v2415, 1
      %v2608 = vrot.slane %v2416, 1
      %v2609 = vrot.slane %v2417, 1
      %v2610 = vrot.slane %v2418, 1
      %v2611 = vrot.slane %v2419, 1
      %v2612 = vrot.slane %v2420, 1
      %v2613 = vrot.slane %v2421, 1
      %v2614 = vrot.slane %v2422, 1
      %v2615 = vrot.slane %v2423, 1
      %v2616 = vrot.slane %v2424, 1
      %v2617 = vrot.slane %v2425, 1
      %v2618 = vrot.slane %v2426, 1
      %v2619 = vrot.slane %v2427, 1
      %v2620 = vrot.slane %v2428, 1
      %v2621 = vrot.slane %v2429, 1
      %v2622 = vrot.slane %v2430, 1
      %v2623 = vrot.slane %v2431, 1
      %v2624 = vrot.slane %v2432, 1
      %v2625 = vrot.slane %v2433, 1
      %v2626 = vrot.slane %v2434, 1
      %v2627 = vrot.slane %v2435, 1
      %v2628 = vrot.slane %v2436, 1
      %v2629 = vrot.slane %v2437, 1
      %v2630 = vrot.slane %v2438, 1
      %v2631 = vrot.slane %v2439, 1
      %v2632 = vrot.slane %v2440, 1
      %v2633 = vrot.slane %v2441, 1
      %v2634 = vrot.slane %v2442, 1
      %v2635 = vrot.slane %v2443, 1
      %v2636 = vrot.slane %v2444, 1
      %v2637 = vrot.slane %v2445, 1
      %v2638 = vrot.slane %v2446, 1
      %v2639 = vrot.slane %v2447, 1
      %v2640 = vrot.slane %v2448, 1
      %v2641 = vrot.slane %v2449, 1
      %v2642 = vrot.slane %v2450, 1
      %v2643 = vrot.slane %v2451, 1
      %v2644 = vrot.slane %v2452, 1
      %v2645 = vrot.slane %v2453, 1
      %v2646 = vrot.slane %v2454, 1
      %v2647 = vrot.slane %v2455, 1
      %v2648 = vrot.slane %v2456, 1
      %v2649 = vrot.slane %v2457, 1
      %v2650 = vrot.slane %v2458, 1
      %v2651 = vrot.slane %v2459, 1
      %v2652 = vrot.slane %v2460, 1
      %v2653 = vrot.slane %v2461, 1
      %v2654 = vrot.slane %v2462, 1
      %v2655 = vrot.slane %v2463, 1
      %v2656 = vrot.slane %v2464, 1
      %v2657 = vrot.slane %v2465, 1
      %v2658 = vrot.slane %v2466, 1
      %v2659 = vrot.slane %v2467, 1
      %v2660 = vrot.slane %v2468, 1
      %v2661 = vrot.slane %v2469, 1
      %v2662 = vrot.slane %v2470, 1
      %v2663 = vrot.slane %v2471, 1
      %v2664 = vrot.slane %v2472, 1
      %v2665 = vrot.slane %v2473, 1
      %v2666 = vrot.slane %v2474, 1
      %v2667 = vrot.slane %v2475, 1
      %v2668 = vrot.slane %v2476, 1
      %v2669 = vrot.slane %v2477, 1
      %v2670 = vsel %vm1610, %v2668, %v2669
      %v2671 = vsel %vm1610, %v2667, %v2668
      %v2672 = vsel %vm1610, %v2666, %v2667
      %v2673 = vsel %vm1610, %v2665, %v2666
      %v2674 = vsel %vm1610, %v2664, %v2665
      %v2675 = vsel %vm1610, %v2663, %v2664
      %v2676 = vsel %vm1610, %v2662, %v2663
      %v2677 = vsel %vm1610, %v2661, %v2662
      %v2678 = vsel %vm1610, %v2660, %v2661
      %v2679 = vsel %vm1610, %v2659, %v2660
      %v2680 = vsel %vm1610, %v2658, %v2659
      %v2681 = vsel %vm1610, %v2657, %v2658
      %v2682 = vsel %vm1610, %v2656, %v2657
      %v2683 = vsel %vm1610, %v2655, %v2656
      %v2684 = vsel %vm1610, %v2654, %v2655
      %v2685 = vsel %vm1610, %v2653, %v2654
      %v2686 = vsel %vm1610, %v2652, %v2653
      %v2687 = vsel %vm1610, %v2651, %v2652
      %v2688 = vsel %vm1610, %v2650, %v2651
      %v2689 = vsel %vm1610, %v2649, %v2650
      %v2690 = vsel %vm1610, %v2648, %v2649
      %v2691 = vsel %vm1610, %v2647, %v2648
      %v2692 = vsel %vm1610, %v2646, %v2647
      %v2693 = vsel %vm1610, %v2645, %v2646
      %v2694 = vsel %vm1610, %v2644, %v2645
      %v2695 = vsel %vm1610, %v2643, %v2644
      %v2696 = vsel %vm1610, %v2642, %v2643
      %v2697 = vsel %vm1610, %v2641, %v2642
      %v2698 = vsel %vm1610, %v2640, %v2641
      %v2699 = vsel %vm1610, %v2639, %v2640
      %v2700 = vsel %vm1610, %v2638, %v2639
      %v2701 = vsel %vm1610, %v2637, %v2638
      %v2702 = vsel %vm1610, %v2636, %v2637
      %v2703 = vsel %vm1610, %v2635, %v2636
      %v2704 = vsel %vm1610, %v2634, %v2635
      %v2705 = vsel %vm1610, %v2633, %v2634
      %v2706 = vsel %vm1610, %v2632, %v2633
      %v2707 = vsel %vm1610, %v2631, %v2632
      %v2708 = vsel %vm1610, %v2630, %v2631
      %v2709 = vsel %vm1610, %v2629, %v2630
      %v2710 = vsel %vm1610, %v2628, %v2629
      %v2711 = vsel %vm1610, %v2627, %v2628
      %v2712 = vsel %vm1610, %v2626, %v2627
      %v2713 = vsel %vm1610, %v2625, %v2626
      %v2714 = vsel %vm1610, %v2624, %v2625
      %v2715 = vsel %vm1610, %v2623, %v2624
      %v2716 = vsel %vm1610, %v2622, %v2623
      %v2717 = vsel %vm1610, %v2621, %v2622
      %v2718 = vsel %vm1610, %v2620, %v2621
      %v2719 = vsel %vm1610, %v2619, %v2620
      %v2720 = vsel %vm1610, %v2618, %v2619
      %v2721 = vsel %vm1610, %v2617, %v2618
      %v2722 = vsel %vm1610, %v2616, %v2617
      %v2723 = vsel %vm1610, %v2615, %v2616
      %v2724 = vsel %vm1610, %v2614, %v2615
      %v2725 = vsel %vm1610, %v2613, %v2614
      %v2726 = vsel %vm1610, %v2612, %v2613
      %v2727 = vsel %vm1610, %v2611, %v2612
      %v2728 = vsel %vm1610, %v2610, %v2611
      %v2729 = vsel %vm1610, %v2609, %v2610
      %v2730 = vsel %vm1610, %v2608, %v2609
      %v2731 = vsel %vm1610, %v2607, %v2608
      %v2732 = vsel %vm1610, %v2606, %v2607
      %v2733 = vsel %vm1610, %v2669, %v2606
      %2798 = vrot.lane.b32.xlu0 %v2414, 4
      %v2799 = vpop.permute.xlu0 %2798
      %2800 = vrot.lane.b32.xlu0 %v2415, 4
      %v2801 = vpop.permute.xlu0 %2800
      %2802 = vrot.lane.b32.xlu0 %v2416, 4
      %v2803 = vpop.permute.xlu0 %2802
      %2804 = vrot.lane.b32.xlu0 %v2417, 4
      %v2805 = vpop.permute.xlu0 %2804
      %2806 = vrot.lane.b32.xlu0 %v2418, 4
      %v2807 = vpop.permute.xlu0 %2806
      %2808 = vrot.lane.b32.xlu0 %v2419, 4
      %v2809 = vpop.permute.xlu0 %2808
      %2810 = vrot.lane.b32.xlu0 %v2420, 4
      %v2811 = vpop.permute.xlu0 %2810
      %2812 = vrot.lane.b32.xlu0 %v2421, 4
      %v2813 = vpop.permute.xlu0 %2812
      %2814 = vrot.lane.b32.xlu0 %v2422, 4
      %v2815 = vpop.permute.xlu0 %2814
      %2816 = vrot.lane.b32.xlu0 %v2423, 4
      %v2817 = vpop.permute.xlu0 %2816
      %2818 = vrot.lane.b32.xlu0 %v2424, 4
      %v2819 = vpop.permute.xlu0 %2818
      %2820 = vrot.lane.b32.xlu0 %v2425, 4
      %v2821 = vpop.permute.xlu0 %2820
      %2822 = vrot.lane.b32.xlu0 %v2426, 4
      %v2823 = vpop.permute.xlu0 %2822
      %2824 = vrot.lane.b32.xlu0 %v2427, 4
      %v2825 = vpop.permute.xlu0 %2824
      %2826 = vrot.lane.b32.xlu0 %v2428, 4
      %v2827 = vpop.permute.xlu0 %2826
      %2828 = vrot.lane.b32.xlu0 %v2429, 4
      %v2829 = vpop.permute.xlu0 %2828
      %2830 = vrot.lane.b32.xlu0 %v2430, 4
      %v2831 = vpop.permute.xlu0 %2830
      %2832 = vrot.lane.b32.xlu0 %v2431, 4
      %v2833 = vpop.permute.xlu0 %2832
      %2834 = vrot.lane.b32.xlu0 %v2432, 4
      %v2835 = vpop.permute.xlu0 %2834
      %2836 = vrot.lane.b32.xlu0 %v2433, 4
      %v2837 = vpop.permute.xlu0 %2836
      %2838 = vrot.lane.b32.xlu0 %v2434, 4
      %v2839 = vpop.permute.xlu0 %2838
      %2840 = vrot.lane.b32.xlu0 %v2435, 4
      %v2841 = vpop.permute.xlu0 %2840
      %2842 = vrot.lane.b32.xlu0 %v2436, 4
      %v2843 = vpop.permute.xlu0 %2842
      %2844 = vrot.lane.b32.xlu0 %v2437, 4
      %v2845 = vpop.permute.xlu0 %2844
      %2846 = vrot.lane.b32.xlu0 %v2438, 4
      %v2847 = vpop.permute.xlu0 %2846
      %2848 = vrot.lane.b32.xlu0 %v2439, 4
      %v2849 = vpop.permute.xlu0 %2848
      %2850 = vrot.lane.b32.xlu0 %v2440, 4
      %v2851 = vpop.permute.xlu0 %2850
      %2852 = vrot.lane.b32.xlu0 %v2441, 4
      %v2853 = vpop.permute.xlu0 %2852
      %2854 = vrot.lane.b32.xlu0 %v2442, 4
      %v2855 = vpop.permute.xlu0 %2854
      %2856 = vrot.lane.b32.xlu0 %v2443, 4
      %v2857 = vpop.permute.xlu0 %2856
      %2858 = vrot.lane.b32.xlu0 %v2444, 4
      %v2859 = vpop.permute.xlu0 %2858
      %2860 = vrot.lane.b32.xlu0 %v2445, 4
      %v2861 = vpop.permute.xlu0 %2860
      %2862 = vrot.lane.b32.xlu0 %v2446, 4
      %v2863 = vpop.permute.xlu0 %2862
      %2864 = vrot.lane.b32.xlu0 %v2447, 4
      %v2865 = vpop.permute.xlu0 %2864
      %2866 = vrot.lane.b32.xlu0 %v2448, 4
      %v2867 = vpop.permute.xlu0 %2866
      %2868 = vrot.lane.b32.xlu0 %v2449, 4
      %v2869 = vpop.permute.xlu0 %2868
      %2870 = vrot.lane.b32.xlu0 %v2450, 4
      %v2871 = vpop.permute.xlu0 %2870
      %2872 = vrot.lane.b32.xlu0 %v2451, 4
      %v2873 = vpop.permute.xlu0 %2872
      %2874 = vrot.lane.b32.xlu0 %v2452, 4
      %v2875 = vpop.permute.xlu0 %2874
      %2876 = vrot.lane.b32.xlu0 %v2453, 4
      %v2877 = vpop.permute.xlu0 %2876
      %2878 = vrot.lane.b32.xlu0 %v2454, 4
      %v2879 = vpop.permute.xlu0 %2878
      %2880 = vrot.lane.b32.xlu0 %v2455, 4
      %v2881 = vpop.permute.xlu0 %2880
      %2882 = vrot.lane.b32.xlu0 %v2456, 4
      %v2883 = vpop.permute.xlu0 %2882
      %2884 = vrot.lane.b32.xlu0 %v2457, 4
      %v2885 = vpop.permute.xlu0 %2884
      %2886 = vrot.lane.b32.xlu0 %v2458, 4
      %v2887 = vpop.permute.xlu0 %2886
      %2888 = vrot.lane.b32.xlu0 %v2459, 4
      %v2889 = vpop.permute.xlu0 %2888
      %2890 = vrot.lane.b32.xlu0 %v2460, 4
      %v2891 = vpop.permute.xlu0 %2890
      %2892 = vrot.lane.b32.xlu0 %v2461, 4
      %v2893 = vpop.permute.xlu0 %2892
      %2894 = vrot.lane.b32.xlu0 %v2462, 4
      %v2895 = vpop.permute.xlu0 %2894
      %2896 = vrot.lane.b32.xlu0 %v2463, 4
      %v2897 = vpop.permute.xlu0 %2896
      %2898 = vrot.lane.b32.xlu0 %v2464, 4
      %v2899 = vpop.permute.xlu0 %2898
      %2900 = vrot.lane.b32.xlu0 %v2465, 4
      %v2901 = vpop.permute.xlu0 %2900
      %2902 = vrot.lane.b32.xlu0 %v2466, 4
      %v2903 = vpop.permute.xlu0 %2902
      %2904 = vrot.lane.b32.xlu0 %v2467, 4
      %v2905 = vpop.permute.xlu0 %2904
      %2906 = vrot.lane.b32.xlu0 %v2468, 4
      %v2907 = vpop.permute.xlu0 %2906
      %2908 = vrot.lane.b32.xlu0 %v2469, 4
      %v2909 = vpop.permute.xlu0 %2908
      %2910 = vrot.lane.b32.xlu0 %v2470, 4
      %v2911 = vpop.permute.xlu0 %2910
      %2912 = vrot.lane.b32.xlu0 %v2471, 4
      %v2913 = vpop.permute.xlu0 %2912
      %2914 = vrot.lane.b32.xlu0 %v2472, 4
      %v2915 = vpop.permute.xlu0 %2914
      %2916 = vrot.lane.b32.xlu0 %v2473, 4
      %v2917 = vpop.permute.xlu0 %2916
      %2918 = vrot.lane.b32.xlu0 %v2474, 4
      %v2919 = vpop.permute.xlu0 %2918
      %2920 = vrot.lane.b32.xlu0 %v2475, 4
      %v2921 = vpop.permute.xlu0 %2920
      %2922 = vrot.lane.b32.xlu0 %v2476, 4
      %v2923 = vpop.permute.xlu0 %2922
      %2924 = vrot.lane.b32.xlu0 %v2477, 4
      %v2925 = vpop.permute.xlu0 %2924
      %3054 = vrot.lane.b32.xlu0 %v2732, 8
      %v3055 = vpop.permute.xlu0 %3054
      %3056 = vrot.lane.b32.xlu0 %v2731, 8
      %v3057 = vpop.permute.xlu0 %3056
      %3058 = vrot.lane.b32.xlu0 %v2730, 8
      %v3059 = vpop.permute.xlu0 %3058
      %3060 = vrot.lane.b32.xlu0 %v2729, 8
      %v3061 = vpop.permute.xlu0 %3060
      %3062 = vrot.lane.b32.xlu0 %v2728, 8
      %v3063 = vpop.permute.xlu0 %3062
      %3064 = vrot.lane.b32.xlu0 %v2727, 8
      %v3065 = vpop.permute.xlu0 %3064
      %3066 = vrot.lane.b32.xlu0 %v2726, 8
      %v3067 = vpop.permute.xlu0 %3066
      %3068 = vrot.lane.b32.xlu0 %v2725, 8
      %v3069 = vpop.permute.xlu0 %3068
      %3070 = vrot.lane.b32.xlu0 %v2724, 8
      %v3071 = vpop.permute.xlu0 %3070
      %3072 = vrot.lane.b32.xlu0 %v2723, 8
      %v3073 = vpop.permute.xlu0 %3072
      %3074 = vrot.lane.b32.xlu0 %v2722, 8
      %v3075 = vpop.permute.xlu0 %3074
      %3076 = vrot.lane.b32.xlu0 %v2721, 8
      %v3077 = vpop.permute.xlu0 %3076
      %3078 = vrot.lane.b32.xlu0 %v2720, 8
      %v3079 = vpop.permute.xlu0 %3078
      %3080 = vrot.lane.b32.xlu0 %v2719, 8
      %v3081 = vpop.permute.xlu0 %3080
      %3082 = vrot.lane.b32.xlu0 %v2718, 8
      %v3083 = vpop.permute.xlu0 %3082
      %3084 = vrot.lane.b32.xlu0 %v2717, 8
      %v3085 = vpop.permute.xlu0 %3084
      %3086 = vrot.lane.b32.xlu0 %v2716, 8
      %v3087 = vpop.permute.xlu0 %3086
      %3088 = vrot.lane.b32.xlu0 %v2715, 8
      %v3089 = vpop.permute.xlu0 %3088
      %3090 = vrot.lane.b32.xlu0 %v2714, 8
      %v3091 = vpop.permute.xlu0 %3090
      %3092 = vrot.lane.b32.xlu0 %v2713, 8
      %v3093 = vpop.permute.xlu0 %3092
      %3094 = vrot.lane.b32.xlu0 %v2712, 8
      %v3095 = vpop.permute.xlu0 %3094
      %3096 = vrot.lane.b32.xlu0 %v2711, 8
      %v3097 = vpop.permute.xlu0 %3096
      %3098 = vrot.lane.b32.xlu0 %v2710, 8
      %v3099 = vpop.permute.xlu0 %3098
      %3100 = vrot.lane.b32.xlu0 %v2709, 8
      %v3101 = vpop.permute.xlu0 %3100
      %3102 = vrot.lane.b32.xlu0 %v2708, 8
      %v3103 = vpop.permute.xlu0 %3102
      %3104 = vrot.lane.b32.xlu0 %v2707, 8
      %v3105 = vpop.permute.xlu0 %3104
      %3106 = vrot.lane.b32.xlu0 %v2706, 8
      %v3107 = vpop.permute.xlu0 %3106
      %3108 = vrot.lane.b32.xlu0 %v2705, 8
      %v3109 = vpop.permute.xlu0 %3108
      %3110 = vrot.lane.b32.xlu0 %v2704, 8
      %v3111 = vpop.permute.xlu0 %3110
      %3112 = vrot.lane.b32.xlu0 %v2703, 8
      %v3113 = vpop.permute.xlu0 %3112
      %3114 = vrot.lane.b32.xlu0 %v2702, 8
      %v3115 = vpop.permute.xlu0 %3114
      %3116 = vrot.lane.b32.xlu0 %v2701, 8
      %v3117 = vpop.permute.xlu0 %3116
      %3118 = vrot.lane.b32.xlu0 %v2700, 8
      %v3119 = vpop.permute.xlu0 %3118
      %3120 = vrot.lane.b32.xlu0 %v2699, 8
      %v3121 = vpop.permute.xlu0 %3120
      %3122 = vrot.lane.b32.xlu0 %v2698, 8
      %v3123 = vpop.permute.xlu0 %3122
      %3124 = vrot.lane.b32.xlu0 %v2697, 8
      %v3125 = vpop.permute.xlu0 %3124
      %3126 = vrot.lane.b32.xlu0 %v2696, 8
      %v3127 = vpop.permute.xlu0 %3126
      %3128 = vrot.lane.b32.xlu0 %v2695, 8
      %v3129 = vpop.permute.xlu0 %3128
      %3130 = vrot.lane.b32.xlu0 %v2694, 8
      %v3131 = vpop.permute.xlu0 %3130
      %3132 = vrot.lane.b32.xlu0 %v2693, 8
      %v3133 = vpop.permute.xlu0 %3132
      %3134 = vrot.lane.b32.xlu0 %v2692, 8
      %v3135 = vpop.permute.xlu0 %3134
      %3136 = vrot.lane.b32.xlu0 %v2691, 8
      %v3137 = vpop.permute.xlu0 %3136
      %3138 = vrot.lane.b32.xlu0 %v2690, 8
      %v3139 = vpop.permute.xlu0 %3138
      %3140 = vrot.lane.b32.xlu0 %v2689, 8
      %v3141 = vpop.permute.xlu0 %3140
      %3142 = vrot.lane.b32.xlu0 %v2688, 8
      %v3143 = vpop.permute.xlu0 %3142
      %3144 = vrot.lane.b32.xlu0 %v2687, 8
      %v3145 = vpop.permute.xlu0 %3144
      %3146 = vrot.lane.b32.xlu0 %v2686, 8
      %v3147 = vpop.permute.xlu0 %3146
      %3148 = vrot.lane.b32.xlu0 %v2685, 8
      %v3149 = vpop.permute.xlu0 %3148
      %3150 = vrot.lane.b32.xlu0 %v2684, 8
      %v3151 = vpop.permute.xlu0 %3150
      %3152 = vrot.lane.b32.xlu0 %v2683, 8
      %v3153 = vpop.permute.xlu0 %3152
      %3154 = vrot.lane.b32.xlu0 %v2682, 8
      %v3155 = vpop.permute.xlu0 %3154
      %3156 = vrot.lane.b32.xlu0 %v2681, 8
      %v3157 = vpop.permute.xlu0 %3156
      %3158 = vrot.lane.b32.xlu0 %v2680, 8
      %v3159 = vpop.permute.xlu0 %3158
      %3160 = vrot.lane.b32.xlu0 %v2679, 8
      %v3161 = vpop.permute.xlu0 %3160
      %3162 = vrot.lane.b32.xlu0 %v2678, 8
      %v3163 = vpop.permute.xlu0 %3162
      %3164 = vrot.lane.b32.xlu0 %v2677, 8
      %v3165 = vpop.permute.xlu0 %3164
      %3166 = vrot.lane.b32.xlu0 %v2676, 8
      %v3167 = vpop.permute.xlu0 %3166
      %3168 = vrot.lane.b32.xlu0 %v2675, 8
      %v3169 = vpop.permute.xlu0 %3168
      %3170 = vrot.lane.b32.xlu0 %v2674, 8
      %v3171 = vpop.permute.xlu0 %3170
      %3172 = vrot.lane.b32.xlu0 %v2673, 8
      %v3173 = vpop.permute.xlu0 %3172
      %3174 = vrot.lane.b32.xlu0 %v2672, 8
      %v3175 = vpop.permute.xlu0 %3174
      %3176 = vrot.lane.b32.xlu0 %v2671, 8
      %v3177 = vpop.permute.xlu0 %3176
      %3178 = vrot.lane.b32.xlu0 %v2670, 8
      %v3179 = vpop.permute.xlu0 %3178
      %3180 = vrot.lane.b32.xlu0 %v2733, 8
      %v3181 = vpop.permute.xlu0 %3180
      %v3246 = vsel %vm2187, %v2605, %v2799
      %v3247 = vsel %vm2187, %v2604, %v2801
      %v3248 = vsel %vm2187, %v2603, %v2803
      %v3249 = vsel %vm2187, %v2602, %v2805
      %v3250 = vsel %vm2187, %v2601, %v2807
      %v3251 = vsel %vm2187, %v2600, %v2809
      %v3252 = vsel %vm2187, %v2599, %v2811
      %v3253 = vsel %vm2187, %v2598, %v2813
      %v3254 = vsel %vm2187, %v2597, %v2815
      %v3255 = vsel %vm2187, %v2596, %v2817
      %v3256 = vsel %vm2187, %v2595, %v2819
      %v3257 = vsel %vm2187, %v2594, %v2821
      %v3258 = vsel %vm2187, %v2593, %v2823
      %v3259 = vsel %vm2187, %v2592, %v2825
      %v3260 = vsel %vm2187, %v2591, %v2827
      %v3261 = vsel %vm2187, %v2590, %v2829
      %v3262 = vsel %vm2187, %v2589, %v2831
      %v3263 = vsel %vm2187, %v2588, %v2833
      %v3264 = vsel %vm2187, %v2587, %v2835
      %v3265 = vsel %vm2187, %v2586, %v2837
      %v3266 = vsel %vm2187, %v2585, %v2839
      %v3267 = vsel %vm2187, %v2584, %v2841
      %v3268 = vsel %vm2187, %v2583, %v2843
      %v3269 = vsel %vm2187, %v2582, %v2845
      %v3270 = vsel %vm2187, %v2581, %v2847
      %v3271 = vsel %vm2187, %v2580, %v2849
      %v3272 = vsel %vm2187, %v2579, %v2851
      %v3273 = vsel %vm2187, %v2578, %v2853
      %v3274 = vsel %vm2187, %v2577, %v2855
      %v3275 = vsel %vm2187, %v2576, %v2857
      %v3276 = vsel %vm2187, %v2575, %v2859
      %v3277 = vsel %vm2187, %v2574, %v2861
      %v3278 = vsel %vm2187, %v2573, %v2863
      %v3279 = vsel %vm2187, %v2572, %v2865
      %v3280 = vsel %vm2187, %v2571, %v2867
      %v3281 = vsel %vm2187, %v2570, %v2869
      %v3282 = vsel %vm2187, %v2569, %v2871
      %v3283 = vsel %vm2187, %v2568, %v2873
      %v3284 = vsel %vm2187, %v2567, %v2875
      %v3285 = vsel %vm2187, %v2566, %v2877
      %v3286 = vsel %vm2187, %v2565, %v2879
      %v3287 = vsel %vm2187, %v2564, %v2881
      %v3288 = vsel %vm2187, %v2563, %v2883
      %v3289 = vsel %vm2187, %v2562, %v2885
      %v3290 = vsel %vm2187, %v2561, %v2887
      %v3291 = vsel %vm2187, %v2560, %v2889
      %v3292 = vsel %vm2187, %v2559, %v2891
      %v3293 = vsel %vm2187, %v2558, %v2893
      %v3294 = vsel %vm2187, %v2557, %v2895
      %v3295 = vsel %vm2187, %v2556, %v2897
      %v3296 = vsel %vm2187, %v2555, %v2899
      %v3297 = vsel %vm2187, %v2554, %v2901
      %v3298 = vsel %vm2187, %v2553, %v2903
      %v3299 = vsel %vm2187, %v2552, %v2905
      %v3300 = vsel %vm2187, %v2551, %v2907
      %v3301 = vsel %vm2187, %v2550, %v2909
      %v3302 = vsel %vm2187, %v2549, %v2911
      %v3303 = vsel %vm2187, %v2548, %v2913
      %v3304 = vsel %vm2187, %v2547, %v2915
      %v3305 = vsel %vm2187, %v2546, %v2917
      %v3306 = vsel %vm2187, %v2545, %v2919
      %v3307 = vsel %vm2187, %v2544, %v2921
      %v3308 = vsel %vm2187, %v2543, %v2923
      %v3309 = vsel %vm2187, %v2542, %v2925
      %v3310 = vsel %vm497, %v3246, %v3055
      %v3311 = vsel %vm497, %v3247, %v3057
      %v3312 = vsel %vm497, %v3248, %v3059
      %v3313 = vsel %vm497, %v3249, %v3061
      %v3314 = vsel %vm497, %v3250, %v3063
      %v3315 = vsel %vm497, %v3251, %v3065
      %v3316 = vsel %vm497, %v3252, %v3067
      %v3317 = vsel %vm497, %v3253, %v3069
      %v3318 = vsel %vm497, %v3254, %v3071
      %v3319 = vsel %vm497, %v3255, %v3073
      %v3320 = vsel %vm497, %v3256, %v3075
      %v3321 = vsel %vm497, %v3257, %v3077
      %v3322 = vsel %vm497, %v3258, %v3079
      %v3323 = vsel %vm497, %v3259, %v3081
      %v3324 = vsel %vm497, %v3260, %v3083
      %v3325 = vsel %vm497, %v3261, %v3085
      %v3326 = vsel %vm497, %v3262, %v3087
      %v3327 = vsel %vm497, %v3263, %v3089
      %v3328 = vsel %vm497, %v3264, %v3091
      %v3329 = vsel %vm497, %v3265, %v3093
      %v3330 = vsel %vm497, %v3266, %v3095
      %v3331 = vsel %vm497, %v3267, %v3097
      %v3332 = vsel %vm497, %v3268, %v3099
      %v3333 = vsel %vm497, %v3269, %v3101
      %v3334 = vsel %vm497, %v3270, %v3103
      %v3335 = vsel %vm497, %v3271, %v3105
      %v3336 = vsel %vm497, %v3272, %v3107
      %v3337 = vsel %vm497, %v3273, %v3109
      %v3338 = vsel %vm497, %v3274, %v3111
      %v3339 = vsel %vm497, %v3275, %v3113
      %v3340 = vsel %vm497, %v3276, %v3115
      %v3341 = vsel %vm497, %v3277, %v3117
      %v3342 = vsel %vm497, %v3278, %v3119
      %v3343 = vsel %vm497, %v3279, %v3121
      %v3344 = vsel %vm497, %v3280, %v3123
      %v3345 = vsel %vm497, %v3281, %v3125
      %v3346 = vsel %vm497, %v3282, %v3127
      %v3347 = vsel %vm497, %v3283, %v3129
      %v3348 = vsel %vm497, %v3284, %v3131
      %v3349 = vsel %vm497, %v3285, %v3133
      %v3350 = vsel %vm497, %v3286, %v3135
      %v3351 = vsel %vm497, %v3287, %v3137
      %v3352 = vsel %vm497, %v3288, %v3139
      %v3353 = vsel %vm497, %v3289, %v3141
      %v3354 = vsel %vm497, %v3290, %v3143
      %v3355 = vsel %vm497, %v3291, %v3145
      %v3356 = vsel %vm497, %v3292, %v3147
      %v3357 = vsel %vm497, %v3293, %v3149
      %v3358 = vsel %vm497, %v3294, %v3151
      %v3359 = vsel %vm497, %v3295, %v3153
      %v3360 = vsel %vm497, %v3296, %v3155
      %v3361 = vsel %vm497, %v3297, %v3157
      %v3362 = vsel %vm497, %v3298, %v3159
      %v3363 = vsel %vm497, %v3299, %v3161
      %v3364 = vsel %vm497, %v3300, %v3163
      %v3365 = vsel %vm497, %v3301, %v3165
      %v3366 = vsel %vm497, %v3302, %v3167
      %v3367 = vsel %vm497, %v3303, %v3169
      %v3368 = vsel %vm497, %v3304, %v3171
      %v3369 = vsel %vm497, %v3305, %v3173
      %v3370 = vsel %vm497, %v3306, %v3175
      %v3371 = vsel %vm497, %v3307, %v3177
      %v3372 = vsel %vm497, %v3308, %v3179
      %v3373 = vsel %vm497, %v3309, %v3181
      %v3374 = vpack.c.bf16 %v3311, %v3310
      %v3375 = vpack.c.bf16 %v3313, %v3312
      %v3376 = vpack.c.bf16 %v3315, %v3314
      %v3377 = vpack.c.bf16 %v3317, %v3316
      %v3378 = vpack.c.bf16 %v3319, %v3318
      %v3379 = vpack.c.bf16 %v3321, %v3320
      %v3380 = vpack.c.bf16 %v3323, %v3322
      %v3381 = vpack.c.bf16 %v3325, %v3324
      %v3382 = vpack.c.bf16 %v3327, %v3326
      %v3383 = vpack.c.bf16 %v3329, %v3328
      %v3384 = vpack.c.bf16 %v3331, %v3330
      %v3385 = vpack.c.bf16 %v3333, %v3332
      %v3386 = vpack.c.bf16 %v3335, %v3334
      %v3387 = vpack.c.bf16 %v3337, %v3336
      %v3388 = vpack.c.bf16 %v3339, %v3338
      %v3389 = vpack.c.bf16 %v3341, %v3340
      %v3390 = vpack.c.bf16 %v3343, %v3342
      %v3391 = vpack.c.bf16 %v3345, %v3344
      %v3392 = vpack.c.bf16 %v3347, %v3346
      %v3393 = vpack.c.bf16 %v3349, %v3348
      %v3394 = vpack.c.bf16 %v3351, %v3350
      %v3395 = vpack.c.bf16 %v3353, %v3352
      %v3396 = vpack.c.bf16 %v3355, %v3354
      %v3397 = vpack.c.bf16 %v3357, %v3356
      %v3398 = vpack.c.bf16 %v3359, %v3358
      %v3399 = vpack.c.bf16 %v3361, %v3360
      %v3400 = vpack.c.bf16 %v3363, %v3362
      %v3401 = vpack.c.bf16 %v3365, %v3364
      %v3402 = vpack.c.bf16 %v3367, %v3366
      %v3403 = vpack.c.bf16 %v3369, %v3368
      %v3404 = vpack.c.bf16 %v3371, %v3370
      %v3405 = vpack.c.bf16 %v3373, %v3372
      %s3406 = scalar_lea.vmem %s3, 8
      %v3407 = vld [vmem:[%s3406] sm:$0xf]
      %v3408 = vld [vmem:[%s3406 + $0x4] sm:$0x3]
      %v3411 = vunpack.c.l.b16 %v3407
      %v3412 = vunpack.c.l.b16 %v3408
      %v3413 = vpack.c.b16 %v3412, %v3411
      %vm3414 = vcmask 97280
      %v3416 = vsel %vm3414, %v3374, 0
      %v3419 = vsel %vm3414, %v3375, 0
      %v3422 = vsel %vm3414, %v3376, 0
      %v3425 = vsel %vm3414, %v3377, 0
      %v3428 = vsel %vm3414, %v3378, 0
      %v3431 = vsel %vm3414, %v3379, 0
      %v3434 = vsel %vm3414, %v3380, 0
      %v3437 = vsel %vm3414, %v3381, 0
      %v3440 = vsel %vm3414, %v3382, 0
      %v3443 = vsel %vm3414, %v3383, 0
      %v3446 = vsel %vm3414, %v3384, 0
      %v3449 = vsel %vm3414, %v3385, 0
      %v3452 = vsel %vm3414, %v3386, 0
      %v3455 = vsel %vm3414, %v3387, 0
      %v3458 = vsel %vm3414, %v3388, 0
      %v3461 = vsel %vm3414, %v3389, 0
      %v3464 = vsel %vm3414, %v3390, 0
      %v3467 = vsel %vm3414, %v3391, 0
      %v3470 = vsel %vm3414, %v3392, 0
      %v3473 = vsel %vm3414, %v3393, 0
      %v3476 = vsel %vm3414, %v3394, 0
      %v3479 = vsel %vm3414, %v3395, 0
      %v3482 = vsel %vm3414, %v3396, 0
      %v3485 = vsel %vm3414, %v3397, 0
      %v3488 = vsel %vm3414, %v3398, 0
      %v3491 = vsel %vm3414, %v3399, 0
      %v3494 = vsel %vm3414, %v3400, 0
      %v3497 = vsel %vm3414, %v3401, 0
      %v3500 = vsel %vm3414, %v3402, 0
      %v3503 = vsel %vm3414, %v3403, 0
      %v3506 = vsel %vm3414, %v3404, 0
      %v3509 = vsel %vm3414, %v3405, 0
      %vm3511 = vcmask 1045504
      %v3513 = vsel %vm3511, %v3413, 0
      %3515 = vmatprep.subr.bf16.mxu0 0
      %3516 = vmatpush1.bf16.msra.mxu0 0
      %3517 = vmatprep.subr.bf16.mxu0 0
      %3518 = vmatpush1.bf16.msra.mxu0 0
      %3519 = vmatprep.subr.bf16.mxu0 0
      %3520 = vmatpush1.bf16.msra.mxu0 0
      %3521 = vmatprep.subr.bf16.mxu0 0
      %3522 = vmatpush1.bf16.msra.mxu0 0
      %3523 = vmatprep.subr.bf16.mxu0 0
      %3524 = vmatpush1.bf16.msra.mxu0 0
      %3525 = vmatprep.subr.bf16.mxu0 0
      %3526 = vmatpush1.bf16.msra.mxu0 0
      %3527 = vmatprep.subr.bf16.mxu0 0
      %3528 = vmatpush1.bf16.msra.mxu0 0
      %3529 = vmatprep.subr.bf16.mxu0 0
      %3530 = vmatpush1.bf16.msra.mxu0 %v3513
      %3531 = vmatprep.subr.bf16.mxu0 0
      %3532 = vmatpush2.bf16.msra.mxu0 0
      %3533 = vmatprep.subr.bf16.mxu0 0
      %3534 = vmatpush2.bf16.msra.mxu0 0
      %3535 = vmatprep.subr.bf16.mxu0 0
      %3536 = vmatpush2.bf16.msra.mxu0 0
      %3537 = vmatprep.subr.bf16.mxu0 0
      %3538 = vmatpush2.bf16.msra.mxu0 0
      %3539 = vmatprep.subr.bf16.mxu0 0
      %3540 = vmatpush2.bf16.msra.mxu0 0
      %3541 = vmatprep.subr.bf16.mxu0 0
      %3542 = vmatpush2.bf16.msra.mxu0 0
      %3543 = vmatprep.subr.bf16.mxu0 0
      %3544 = vmatpush2.bf16.msra.mxu0 0
      %3545 = vmatprep.subr.bf16.mxu0 0
      %3546 = vmatpush2.bf16.msra.mxu0 0
      %3547 = vmatprep.mubr.bf16.mxu0 0
      %3548 = vmatmul.mubr.bf16.gmra.mxu0 %v3416
      %v3549 = vpop.f32.mrf.mxu0
      %v3550 = vadd.f32 0.0, %v3549
      %v3551 = vpop.f32.mrf.mxu0
      %v3552 = vpop.f32.mrf.mxu0
      %v3553 = vadd.f32 0.0, %v3552
      %v3554 = vpop.f32.mrf.mxu0
      %3555 = vmatprep.mubr.bf16.mxu0 0
      %3556 = vmatmul.mubr.bf16.gmra.mxu0 %v3419
      %v3557 = vpop.f32.mrf.mxu0
      %v3558 = vpop.f32.mrf.mxu0
      %v3559 = vpop.f32.mrf.mxu0
      %v3560 = vpop.f32.mrf.mxu0
      %3561 = vmatprep.mubr.bf16.mxu0 0
      %3562 = vmatmul.mubr.bf16.gmra.mxu0 %v3422
      %v3563 = vpop.f32.mrf.mxu0
      %v3564 = vadd.f32 0.0, %v3563
      %v3565 = vpop.f32.mrf.mxu0
      %v3566 = vpop.f32.mrf.mxu0
      %v3567 = vadd.f32 0.0, %v3566
      %v3568 = vpop.f32.mrf.mxu0
      %3569 = vmatprep.mubr.bf16.mxu0 0
      %3570 = vmatmul.mubr.bf16.gmra.mxu0 %v3425
      %v3571 = vpop.f32.mrf.mxu0
      %v3572 = vpop.f32.mrf.mxu0
      %v3573 = vpop.f32.mrf.mxu0
      %v3574 = vpop.f32.mrf.mxu0
      %3575 = vmatprep.mubr.bf16.mxu0 0
      %3576 = vmatmul.mubr.bf16.gmra.mxu0 %v3428
      %v3577 = vpop.f32.mrf.mxu0
      %v3578 = vadd.f32 0.0, %v3577
      %v3579 = vpop.f32.mrf.mxu0
      %v3580 = vpop.f32.mrf.mxu0
      %v3581 = vadd.f32 0.0, %v3580
      %v3582 = vpop.f32.mrf.mxu0
      %3583 = vmatprep.mubr.bf16.mxu0 0
      %3584 = vmatmul.mubr.bf16.gmra.mxu0 %v3431
      %v3585 = vpop.f32.mrf.mxu0
      %v3586 = vpop.f32.mrf.mxu0
      %v3587 = vpop.f32.mrf.mxu0
      %v3588 = vpop.f32.mrf.mxu0
      %3589 = vmatprep.mubr.bf16.mxu0 0
      %3590 = vmatmul.mubr.bf16.gmra.mxu0 %v3434
      %v3591 = vpop.f32.mrf.mxu0
      %v3592 = vadd.f32 0.0, %v3591
      %v3593 = vpop.f32.mrf.mxu0
      %v3594 = vpop.f32.mrf.mxu0
      %v3595 = vadd.f32 0.0, %v3594
      %v3596 = vpop.f32.mrf.mxu0
      %3597 = vmatprep.mubr.bf16.mxu0 0
      %3598 = vmatmul.mubr.bf16.gmra.mxu0 %v3437
      %v3599 = vpop.f32.mrf.mxu0
      %v3600 = vpop.f32.mrf.mxu0
      %v3601 = vpop.f32.mrf.mxu0
      %v3602 = vpop.f32.mrf.mxu0
      %3603 = vmatprep.mubr.bf16.mxu0 0
      %3604 = vmatmul.mubr.bf16.gmra.mxu0 %v3440
      %v3605 = vpop.f32.mrf.mxu0
      %v3606 = vadd.f32 0.0, %v3605
      %v3607 = vpop.f32.mrf.mxu0
      %v3608 = vpop.f32.mrf.mxu0
      %v3609 = vadd.f32 0.0, %v3608
      %v3610 = vpop.f32.mrf.mxu0
      %3611 = vmatprep.mubr.bf16.mxu0 0
      %3612 = vmatmul.mubr.bf16.gmra.mxu0 %v3443
      %v3613 = vpop.f32.mrf.mxu0
      %v3614 = vpop.f32.mrf.mxu0
      %v3615 = vpop.f32.mrf.mxu0
      %v3616 = vpop.f32.mrf.mxu0
      %3617 = vmatprep.mubr.bf16.mxu0 0
      %3618 = vmatmul.mubr.bf16.gmra.mxu0 %v3446
      %v3619 = vpop.f32.mrf.mxu0
      %v3620 = vadd.f32 0.0, %v3619
      %v3621 = vpop.f32.mrf.mxu0
      %v3622 = vpop.f32.mrf.mxu0
      %v3623 = vadd.f32 0.0, %v3622
      %v3624 = vpop.f32.mrf.mxu0
      %3625 = vmatprep.mubr.bf16.mxu0 0
      %3626 = vmatmul.mubr.bf16.gmra.mxu0 %v3449
      %v3627 = vpop.f32.mrf.mxu0
      %v3628 = vpop.f32.mrf.mxu0
      %v3629 = vpop.f32.mrf.mxu0
      %v3630 = vpop.f32.mrf.mxu0
      %3631 = vmatprep.mubr.bf16.mxu0 0
      %3632 = vmatmul.mubr.bf16.gmra.mxu0 %v3452
      %v3633 = vpop.f32.mrf.mxu0
      %v3634 = vadd.f32 0.0, %v3633
      %v3635 = vpop.f32.mrf.mxu0
      %v3636 = vpop.f32.mrf.mxu0
      %v3637 = vadd.f32 0.0, %v3636
      %v3638 = vpop.f32.mrf.mxu0
      %3639 = vmatprep.mubr.bf16.mxu0 0
      %3640 = vmatmul.mubr.bf16.gmra.mxu0 %v3455
      %v3641 = vpop.f32.mrf.mxu0
      %v3642 = vpop.f32.mrf.mxu0
      %v3643 = vpop.f32.mrf.mxu0
      %v3644 = vpop.f32.mrf.mxu0
      %3645 = vmatprep.mubr.bf16.mxu0 0
      %3646 = vmatmul.mubr.bf16.gmra.mxu0 %v3458
      %v3647 = vpop.f32.mrf.mxu0
      %v3648 = vadd.f32 0.0, %v3647
      %v3649 = vpop.f32.mrf.mxu0
      %v3650 = vpop.f32.mrf.mxu0
      %v3651 = vadd.f32 0.0, %v3650
      %v3652 = vpop.f32.mrf.mxu0
      %3653 = vmatprep.mubr.bf16.mxu0 0
      %3654 = vmatmul.mubr.bf16.gmra.mxu0 %v3461
      %v3655 = vpop.f32.mrf.mxu0
      %v3656 = vpop.f32.mrf.mxu0
      %v3657 = vpop.f32.mrf.mxu0
      %v3658 = vpop.f32.mrf.mxu0
      %3659 = vmatprep.mubr.bf16.mxu0 0
      %3660 = vmatmul.mubr.bf16.gmra.mxu0 %v3464
      %v3661 = vpop.f32.mrf.mxu0
      %v3662 = vadd.f32 0.0, %v3661
      %v3663 = vpop.f32.mrf.mxu0
      %v3664 = vpop.f32.mrf.mxu0
      %v3665 = vadd.f32 0.0, %v3664
      %v3666 = vpop.f32.mrf.mxu0
      %3667 = vmatprep.mubr.bf16.mxu0 0
      %3668 = vmatmul.mubr.bf16.gmra.mxu0 %v3467
      %v3669 = vpop.f32.mrf.mxu0
      %v3670 = vpop.f32.mrf.mxu0
      %v3671 = vpop.f32.mrf.mxu0
      %v3672 = vpop.f32.mrf.mxu0
      %3673 = vmatprep.mubr.bf16.mxu0 0
      %3674 = vmatmul.mubr.bf16.gmra.mxu0 %v3470
      %v3675 = vpop.f32.mrf.mxu0
      %v3676 = vadd.f32 0.0, %v3675
      %v3677 = vpop.f32.mrf.mxu0
      %v3678 = vpop.f32.mrf.mxu0
      %v3679 = vadd.f32 0.0, %v3678
      %v3680 = vpop.f32.mrf.mxu0
      %3681 = vmatprep.mubr.bf16.mxu0 0
      %3682 = vmatmul.mubr.bf16.gmra.mxu0 %v3473
      %v3683 = vpop.f32.mrf.mxu0
      %v3684 = vpop.f32.mrf.mxu0
      %v3685 = vpop.f32.mrf.mxu0
      %v3686 = vpop.f32.mrf.mxu0
      %3687 = vmatprep.mubr.bf16.mxu0 0
      %3688 = vmatmul.mubr.bf16.gmra.mxu0 %v3476
      %v3689 = vpop.f32.mrf.mxu0
      %v3690 = vadd.f32 0.0, %v3689
      %v3691 = vpop.f32.mrf.mxu0
      %v3692 = vpop.f32.mrf.mxu0
      %v3693 = vadd.f32 0.0, %v3692
      %v3694 = vpop.f32.mrf.mxu0
      %3695 = vmatprep.mubr.bf16.mxu0 0
      %3696 = vmatmul.mubr.bf16.gmra.mxu0 %v3479
      %v3697 = vpop.f32.mrf.mxu0
      %v3698 = vpop.f32.mrf.mxu0
      %v3699 = vpop.f32.mrf.mxu0
      %v3700 = vpop.f32.mrf.mxu0
      %3701 = vmatprep.mubr.bf16.mxu0 0
      %3702 = vmatmul.mubr.bf16.gmra.mxu0 %v3482
      %v3703 = vpop.f32.mrf.mxu0
      %v3704 = vadd.f32 0.0, %v3703
      %v3705 = vpop.f32.mrf.mxu0
      %v3706 = vpop.f32.mrf.mxu0
      %v3707 = vadd.f32 0.0, %v3706
      %v3708 = vpop.f32.mrf.mxu0
      %3709 = vmatprep.mubr.bf16.mxu0 0
      %3710 = vmatmul.mubr.bf16.gmra.mxu0 %v3485
      %v3711 = vpop.f32.mrf.mxu0
      %v3712 = vpop.f32.mrf.mxu0
      %v3713 = vpop.f32.mrf.mxu0
      %v3714 = vpop.f32.mrf.mxu0
      %3715 = vmatprep.mubr.bf16.mxu0 0
      %3716 = vmatmul.mubr.bf16.gmra.mxu0 %v3488
      %v3717 = vpop.f32.mrf.mxu0
      %v3718 = vadd.f32 0.0, %v3717
      %v3719 = vpop.f32.mrf.mxu0
      %v3720 = vpop.f32.mrf.mxu0
      %v3721 = vadd.f32 0.0, %v3720
      %v3722 = vpop.f32.mrf.mxu0
      %3723 = vmatprep.mubr.bf16.mxu0 0
      %3724 = vmatmul.mubr.bf16.gmra.mxu0 %v3491
      %v3725 = vpop.f32.mrf.mxu0
      %v3726 = vpop.f32.mrf.mxu0
      %v3727 = vpop.f32.mrf.mxu0
      %v3728 = vpop.f32.mrf.mxu0
      %3729 = vmatprep.mubr.bf16.mxu0 0
      %3730 = vmatmul.mubr.bf16.gmra.mxu0 %v3494
      %v3731 = vpop.f32.mrf.mxu0
      %v3732 = vadd.f32 0.0, %v3731
      %v3733 = vpop.f32.mrf.mxu0
      %v3734 = vpop.f32.mrf.mxu0
      %v3735 = vadd.f32 0.0, %v3734
      %v3736 = vpop.f32.mrf.mxu0
      %3737 = vmatprep.mubr.bf16.mxu0 0
      %3738 = vmatmul.mubr.bf16.gmra.mxu0 %v3497
      %v3739 = vpop.f32.mrf.mxu0
      %v3740 = vpop.f32.mrf.mxu0
      %v3741 = vpop.f32.mrf.mxu0
      %v3742 = vpop.f32.mrf.mxu0
      %3743 = vmatprep.mubr.bf16.mxu0 0
      %3744 = vmatmul.mubr.bf16.gmra.mxu0 %v3500
      %v3745 = vpop.f32.mrf.mxu0
      %v3746 = vadd.f32 0.0, %v3745
      %v3747 = vpop.f32.mrf.mxu0
      %v3748 = vpop.f32.mrf.mxu0
      %v3749 = vadd.f32 0.0, %v3748
      %v3750 = vpop.f32.mrf.mxu0
      %3751 = vmatprep.mubr.bf16.mxu0 0
      %3752 = vmatmul.mubr.bf16.gmra.mxu0 %v3503
      %v3753 = vpop.f32.mrf.mxu0
      %v3754 = vpop.f32.mrf.mxu0
      %v3755 = vpop.f32.mrf.mxu0
      %v3756 = vpop.f32.mrf.mxu0
      %3757 = vmatprep.mubr.bf16.mxu0 0
      %3758 = vmatmul.mubr.bf16.gmra.mxu0 %v3506
      %v3759 = vpop.f32.mrf.mxu0
      %v3760 = vadd.f32 0.0, %v3759
      %v3761 = vpop.f32.mrf.mxu0
      %v3762 = vpop.f32.mrf.mxu0
      %v3763 = vadd.f32 0.0, %v3762
      %v3764 = vpop.f32.mrf.mxu0
      %3765 = vmatprep.mubr.bf16.mxu0 0
      %3766 = vmatmul.mubr.bf16.gmra.mxu0 %v3509
      %v3767 = vpop.f32.mrf.mxu0
      %v3768 = vpop.f32.mrf.mxu0
      %v3769 = vpop.f32.mrf.mxu0
      %v3770 = vpop.f32.mrf.mxu0
      %3771 = vdwg.mxu0
      %v3774 = vunpack.c.l.b16 %v2348
      %v3775 = vunpack.c.l.b16 %v2349
      %v3776 = vpack.c.b16 %v3775, %v3774
      %v3778 = vsel %vm3414, %v2316, 0
      %v3781 = vsel %vm3414, %v2317, 0
      %v3784 = vsel %vm3414, %v2318, 0
      %v3787 = vsel %vm3414, %v2319, 0
      %v3790 = vsel %vm3414, %v2320, 0
      %v3793 = vsel %vm3414, %v2321, 0
      %v3796 = vsel %vm3414, %v2322, 0
      %v3799 = vsel %vm3414, %v2323, 0
      %v3802 = vsel %vm3414, %v2324, 0
      %v3805 = vsel %vm3414, %v2325, 0
      %v3808 = vsel %vm3414, %v2326, 0
      %v3811 = vsel %vm3414, %v2327, 0
      %v3814 = vsel %vm3414, %v2328, 0
      %v3817 = vsel %vm3414, %v2329, 0
      %v3820 = vsel %vm3414, %v2330, 0
      %v3823 = vsel %vm3414, %v2331, 0
      %v3826 = vsel %vm3414, %v2332, 0
      %v3829 = vsel %vm3414, %v2333, 0
      %v3832 = vsel %vm3414, %v2334, 0
      %v3835 = vsel %vm3414, %v2335, 0
      %v3838 = vsel %vm3414, %v2336, 0
      %v3841 = vsel %vm3414, %v2337, 0
      %v3844 = vsel %vm3414, %v2338, 0
      %v3847 = vsel %vm3414, %v2339, 0
      %v3850 = vsel %vm3414, %v2340, 0
      %v3853 = vsel %vm3414, %v2341, 0
      %v3856 = vsel %vm3414, %v2342, 0
      %v3859 = vsel %vm3414, %v2343, 0
      %v3862 = vsel %vm3414, %v2344, 0
      %v3865 = vsel %vm3414, %v2345, 0
      %v3868 = vsel %vm3414, %v2346, 0
      %v3871 = vsel %vm3414, %v2347, 0
      %v3874 = vsel %vm3511, %v3776, 0
      %3876 = vmatprep.subr.bf16.mxu0 0
      %3877 = vmatpush1.bf16.msra.mxu0 0
      %3878 = vmatprep.subr.bf16.mxu0 0
      %3879 = vmatpush1.bf16.msra.mxu0 0
      %3880 = vmatprep.subr.bf16.mxu0 0
      %3881 = vmatpush1.bf16.msra.mxu0 0
      %3882 = vmatprep.subr.bf16.mxu0 0
      %3883 = vmatpush1.bf16.msra.mxu0 0
      %3884 = vmatprep.subr.bf16.mxu0 0
      %3885 = vmatpush1.bf16.msra.mxu0 0
      %3886 = vmatprep.subr.bf16.mxu0 0
      %3887 = vmatpush1.bf16.msra.mxu0 0
      %3888 = vmatprep.subr.bf16.mxu0 0
      %3889 = vmatpush1.bf16.msra.mxu0 0
      %3890 = vmatprep.subr.bf16.mxu0 0
      %3891 = vmatpush1.bf16.msra.mxu0 %v3874
      %3892 = vmatprep.subr.bf16.mxu0 0
      %3893 = vmatpush2.bf16.msra.mxu0 0
      %3894 = vmatprep.subr.bf16.mxu0 0
      %3895 = vmatpush2.bf16.msra.mxu0 0
      %3896 = vmatprep.subr.bf16.mxu0 0
      %3897 = vmatpush2.bf16.msra.mxu0 0
      %3898 = vmatprep.subr.bf16.mxu0 0
      %3899 = vmatpush2.bf16.msra.mxu0 0
      %3900 = vmatprep.subr.bf16.mxu0 0
      %3901 = vmatpush2.bf16.msra.mxu0 0
      %3902 = vmatprep.subr.bf16.mxu0 0
      %3903 = vmatpush2.bf16.msra.mxu0 0
      %3904 = vmatprep.subr.bf16.mxu0 0
      %3905 = vmatpush2.bf16.msra.mxu0 0
      %3906 = vmatprep.subr.bf16.mxu0 0
      %3907 = vmatpush2.bf16.msra.mxu0 0
      %3908 = vmatprep.mubr.bf16.mxu0 0
      %3909 = vmatmul.mubr.bf16.gmra.mxu0 %v3778
      %v3910 = vpop.f32.mrf.mxu0
      %v3911 = vadd.f32 %v3550, %v3910
      %v3912 = vpop.f32.mrf.mxu0
      %v3913 = vpop.f32.mrf.mxu0
      %v3914 = vadd.f32 %v3553, %v3913
      %v3915 = vpop.f32.mrf.mxu0
      %3916 = vmatprep.mubr.bf16.mxu0 0
      %3917 = vmatmul.mubr.bf16.gmra.mxu0 %v3781
      %v3918 = vpop.f32.mrf.mxu0
      %v3919 = vpop.f32.mrf.mxu0
      %v3920 = vpop.f32.mrf.mxu0
      %v3921 = vpop.f32.mrf.mxu0
      %3922 = vmatprep.mubr.bf16.mxu0 0
      %3923 = vmatmul.mubr.bf16.gmra.mxu0 %v3784
      %v3924 = vpop.f32.mrf.mxu0
      %v3925 = vadd.f32 %v3564, %v3924
      %v3926 = vpop.f32.mrf.mxu0
      %v3927 = vpop.f32.mrf.mxu0
      %v3928 = vadd.f32 %v3567, %v3927
      %v3929 = vpop.f32.mrf.mxu0
      %3930 = vmatprep.mubr.bf16.mxu0 0
      %3931 = vmatmul.mubr.bf16.gmra.mxu0 %v3787
      %v3932 = vpop.f32.mrf.mxu0
      %v3933 = vpop.f32.mrf.mxu0
      %v3934 = vpop.f32.mrf.mxu0
      %v3935 = vpop.f32.mrf.mxu0
      %3936 = vmatprep.mubr.bf16.mxu0 0
      %3937 = vmatmul.mubr.bf16.gmra.mxu0 %v3790
      %v3938 = vpop.f32.mrf.mxu0
      %v3939 = vadd.f32 %v3578, %v3938
      %v3940 = vpop.f32.mrf.mxu0
      %v3941 = vpop.f32.mrf.mxu0
      %v3942 = vadd.f32 %v3581, %v3941
      %v3943 = vpop.f32.mrf.mxu0
      %3944 = vmatprep.mubr.bf16.mxu0 0
      %3945 = vmatmul.mubr.bf16.gmra.mxu0 %v3793
      %v3946 = vpop.f32.mrf.mxu0
      %v3947 = vpop.f32.mrf.mxu0
      %v3948 = vpop.f32.mrf.mxu0
      %v3949 = vpop.f32.mrf.mxu0
      %3950 = vmatprep.mubr.bf16.mxu0 0
      %3951 = vmatmul.mubr.bf16.gmra.mxu0 %v3796
      %v3952 = vpop.f32.mrf.mxu0
      %v3953 = vadd.f32 %v3592, %v3952
      %v3954 = vpop.f32.mrf.mxu0
      %v3955 = vpop.f32.mrf.mxu0
      %v3956 = vadd.f32 %v3595, %v3955
      %v3957 = vpop.f32.mrf.mxu0
      %3958 = vmatprep.mubr.bf16.mxu0 0
      %3959 = vmatmul.mubr.bf16.gmra.mxu0 %v3799
      %v3960 = vpop.f32.mrf.mxu0
      %v3961 = vpop.f32.mrf.mxu0
      %v3962 = vpop.f32.mrf.mxu0
      %v3963 = vpop.f32.mrf.mxu0
      %3964 = vmatprep.mubr.bf16.mxu0 0
      %3965 = vmatmul.mubr.bf16.gmra.mxu0 %v3802
      %v3966 = vpop.f32.mrf.mxu0
      %v3967 = vadd.f32 %v3606, %v3966
      %v3968 = vpop.f32.mrf.mxu0
      %v3969 = vpop.f32.mrf.mxu0
      %v3970 = vadd.f32 %v3609, %v3969
      %v3971 = vpop.f32.mrf.mxu0
      %3972 = vmatprep.mubr.bf16.mxu0 0
      %3973 = vmatmul.mubr.bf16.gmra.mxu0 %v3805
      %v3974 = vpop.f32.mrf.mxu0
      %v3975 = vpop.f32.mrf.mxu0
      %v3976 = vpop.f32.mrf.mxu0
      %v3977 = vpop.f32.mrf.mxu0
      %3978 = vmatprep.mubr.bf16.mxu0 0
      %3979 = vmatmul.mubr.bf16.gmra.mxu0 %v3808
      %v3980 = vpop.f32.mrf.mxu0
      %v3981 = vadd.f32 %v3620, %v3980
      %v3982 = vpop.f32.mrf.mxu0
      %v3983 = vpop.f32.mrf.mxu0
      %v3984 = vadd.f32 %v3623, %v3983
      %v3985 = vpop.f32.mrf.mxu0
      %3986 = vmatprep.mubr.bf16.mxu0 0
      %3987 = vmatmul.mubr.bf16.gmra.mxu0 %v3811
      %v3988 = vpop.f32.mrf.mxu0
      %v3989 = vpop.f32.mrf.mxu0
      %v3990 = vpop.f32.mrf.mxu0
      %v3991 = vpop.f32.mrf.mxu0
      %3992 = vmatprep.mubr.bf16.mxu0 0
      %3993 = vmatmul.mubr.bf16.gmra.mxu0 %v3814
      %v3994 = vpop.f32.mrf.mxu0
      %v3995 = vadd.f32 %v3634, %v3994
      %v3996 = vpop.f32.mrf.mxu0
      %v3997 = vpop.f32.mrf.mxu0
      %v3998 = vadd.f32 %v3637, %v3997
      %v3999 = vpop.f32.mrf.mxu0
      %4000 = vmatprep.mubr.bf16.mxu0 0
      %4001 = vmatmul.mubr.bf16.gmra.mxu0 %v3817
      %v4002 = vpop.f32.mrf.mxu0
      %v4003 = vpop.f32.mrf.mxu0
      %v4004 = vpop.f32.mrf.mxu0
      %v4005 = vpop.f32.mrf.mxu0
      %4006 = vmatprep.mubr.bf16.mxu0 0
      %4007 = vmatmul.mubr.bf16.gmra.mxu0 %v3820
      %v4008 = vpop.f32.mrf.mxu0
      %v4009 = vadd.f32 %v3648, %v4008
      %v4010 = vpop.f32.mrf.mxu0
      %v4011 = vpop.f32.mrf.mxu0
      %v4012 = vadd.f32 %v3651, %v4011
      %v4013 = vpop.f32.mrf.mxu0
      %4014 = vmatprep.mubr.bf16.mxu0 0
      %4015 = vmatmul.mubr.bf16.gmra.mxu0 %v3823
      %v4016 = vpop.f32.mrf.mxu0
      %v4017 = vpop.f32.mrf.mxu0
      %v4018 = vpop.f32.mrf.mxu0
      %v4019 = vpop.f32.mrf.mxu0
      %4020 = vmatprep.mubr.bf16.mxu0 0
      %4021 = vmatmul.mubr.bf16.gmra.mxu0 %v3826
      %v4022 = vpop.f32.mrf.mxu0
      %v4023 = vadd.f32 %v3662, %v4022
      %v4024 = vpop.f32.mrf.mxu0
      %v4025 = vpop.f32.mrf.mxu0
      %v4026 = vadd.f32 %v3665, %v4025
      %v4027 = vpop.f32.mrf.mxu0
      %4028 = vmatprep.mubr.bf16.mxu0 0
      %4029 = vmatmul.mubr.bf16.gmra.mxu0 %v3829
      %v4030 = vpop.f32.mrf.mxu0
      %v4031 = vpop.f32.mrf.mxu0
      %v4032 = vpop.f32.mrf.mxu0
      %v4033 = vpop.f32.mrf.mxu0
      %4034 = vmatprep.mubr.bf16.mxu0 0
      %4035 = vmatmul.mubr.bf16.gmra.mxu0 %v3832
      %v4036 = vpop.f32.mrf.mxu0
      %v4037 = vadd.f32 %v3676, %v4036
      %v4038 = vpop.f32.mrf.mxu0
      %v4039 = vpop.f32.mrf.mxu0
      %v4040 = vadd.f32 %v3679, %v4039
      %v4041 = vpop.f32.mrf.mxu0
      %4042 = vmatprep.mubr.bf16.mxu0 0
      %4043 = vmatmul.mubr.bf16.gmra.mxu0 %v3835
      %v4044 = vpop.f32.mrf.mxu0
      %v4045 = vpop.f32.mrf.mxu0
      %v4046 = vpop.f32.mrf.mxu0
      %v4047 = vpop.f32.mrf.mxu0
      %4048 = vmatprep.mubr.bf16.mxu0 0
      %4049 = vmatmul.mubr.bf16.gmra.mxu0 %v3838
      %v4050 = vpop.f32.mrf.mxu0
      %v4051 = vadd.f32 %v3690, %v4050
      %v4052 = vpop.f32.mrf.mxu0
      %v4053 = vpop.f32.mrf.mxu0
      %v4054 = vadd.f32 %v3693, %v4053
      %v4055 = vpop.f32.mrf.mxu0
      %4056 = vmatprep.mubr.bf16.mxu0 0
      %4057 = vmatmul.mubr.bf16.gmra.mxu0 %v3841
      %v4058 = vpop.f32.mrf.mxu0
      %v4059 = vpop.f32.mrf.mxu0
      %v4060 = vpop.f32.mrf.mxu0
      %v4061 = vpop.f32.mrf.mxu0
      %4062 = vmatprep.mubr.bf16.mxu0 0
      %4063 = vmatmul.mubr.bf16.gmra.mxu0 %v3844
      %v4064 = vpop.f32.mrf.mxu0
      %v4065 = vadd.f32 %v3704, %v4064
      %v4066 = vpop.f32.mrf.mxu0
      %v4067 = vpop.f32.mrf.mxu0
      %v4068 = vadd.f32 %v3707, %v4067
      %v4069 = vpop.f32.mrf.mxu0
      %4070 = vmatprep.mubr.bf16.mxu0 0
      %4071 = vmatmul.mubr.bf16.gmra.mxu0 %v3847
      %v4072 = vpop.f32.mrf.mxu0
      %v4073 = vpop.f32.mrf.mxu0
      %v4074 = vpop.f32.mrf.mxu0
      %v4075 = vpop.f32.mrf.mxu0
      %4076 = vmatprep.mubr.bf16.mxu0 0
      %4077 = vmatmul.mubr.bf16.gmra.mxu0 %v3850
      %v4078 = vpop.f32.mrf.mxu0
      %v4079 = vadd.f32 %v3718, %v4078
      %v4080 = vpop.f32.mrf.mxu0
      %v4081 = vpop.f32.mrf.mxu0
      %v4082 = vadd.f32 %v3721, %v4081
      %v4083 = vpop.f32.mrf.mxu0
      %4084 = vmatprep.mubr.bf16.mxu0 0
      %4085 = vmatmul.mubr.bf16.gmra.mxu0 %v3853
      %v4086 = vpop.f32.mrf.mxu0
      %v4087 = vpop.f32.mrf.mxu0
      %v4088 = vpop.f32.mrf.mxu0
      %v4089 = vpop.f32.mrf.mxu0
      %4090 = vmatprep.mubr.bf16.mxu0 0
      %4091 = vmatmul.mubr.bf16.gmra.mxu0 %v3856
      %v4092 = vpop.f32.mrf.mxu0
      %v4093 = vadd.f32 %v3732, %v4092
      %v4094 = vpop.f32.mrf.mxu0
      %v4095 = vpop.f32.mrf.mxu0
      %v4096 = vadd.f32 %v3735, %v4095
      %v4097 = vpop.f32.mrf.mxu0
      %4098 = vmatprep.mubr.bf16.mxu0 0
      %4099 = vmatmul.mubr.bf16.gmra.mxu0 %v3859
      %v4100 = vpop.f32.mrf.mxu0
      %v4101 = vpop.f32.mrf.mxu0
      %v4102 = vpop.f32.mrf.mxu0
      %v4103 = vpop.f32.mrf.mxu0
      %4104 = vmatprep.mubr.bf16.mxu0 0
      %4105 = vmatmul.mubr.bf16.gmra.mxu0 %v3862
      %v4106 = vpop.f32.mrf.mxu0
      %v4107 = vadd.f32 %v3746, %v4106
      %v4108 = vpop.f32.mrf.mxu0
      %v4109 = vpop.f32.mrf.mxu0
      %v4110 = vadd.f32 %v3749, %v4109
      %v4111 = vpop.f32.mrf.mxu0
      %4112 = vmatprep.mubr.bf16.mxu0 0
      %4113 = vmatmul.mubr.bf16.gmra.mxu0 %v3865
      %v4114 = vpop.f32.mrf.mxu0
      %v4115 = vpop.f32.mrf.mxu0
      %v4116 = vpop.f32.mrf.mxu0
      %v4117 = vpop.f32.mrf.mxu0
      %4118 = vmatprep.mubr.bf16.mxu0 0
      %4119 = vmatmul.mubr.bf16.gmra.mxu0 %v3868
      %v4120 = vpop.f32.mrf.mxu0
      %v4121 = vadd.f32 %v3760, %v4120
      %v4122 = vpop.f32.mrf.mxu0
      %v4123 = vpop.f32.mrf.mxu0
      %v4124 = vadd.f32 %v3763, %v4123
      %v4125 = vpop.f32.mrf.mxu0
      %4126 = vmatprep.mubr.bf16.mxu0 0
      %4127 = vmatmul.mubr.bf16.gmra.mxu0 %v3871
      %v4128 = vpop.f32.mrf.mxu0
      %v4129 = vpop.f32.mrf.mxu0
      %v4130 = vpop.f32.mrf.mxu0
      %v4131 = vpop.f32.mrf.mxu0
      %4132 = vdwg.mxu0
      %s4133 = scalar_lea.vmem [#allocation2], 32
      %v4134 = vld [vmem:[%s4133] sm:$0xf]
      %v4135 = vld [vmem:[%s4133 + $0x4] sm:$0xf]
      %v4136 = vld [vmem:[%s4133 + $0x8] sm:$0xf]
      %v4137 = vld [vmem:[%s4133 + $0xc] sm:$0xf]
      %v4138 = vld [vmem:[%s4133 + $0x10] sm:$0xf]
      %v4139 = vld [vmem:[%s4133 + $0x14] sm:$0xf]
      %v4140 = vld [vmem:[%s4133 + $0x18] sm:$0xf]
      %v4141 = vld [vmem:[%s4133 + $0x1c] sm:$0xf]
      %v4142 = vld [vmem:[%s4133 + $0x20] sm:$0xf]
      %v4143 = vld [vmem:[%s4133 + $0x24] sm:$0xf]
      %v4144 = vld [vmem:[%s4133 + $0x28] sm:$0xf]
      %v4145 = vld [vmem:[%s4133 + $0x2c] sm:$0xf]
      %v4146 = vld [vmem:[%s4133 + $0x30] sm:$0xf]
      %v4147 = vld [vmem:[%s4133 + $0x34] sm:$0xf]
      %v4148 = vld [vmem:[%s4133 + $0x38] sm:$0xf]
      %v4149 = vld [vmem:[%s4133 + $0x3c] sm:$0xf]
      %v4150 = vld [vmem:[%s4133 + $0x40] sm:$0xf]
      %v4151 = vld [vmem:[%s4133 + $0x44] sm:$0xf]
      %v4152 = vld [vmem:[%s4133 + $0x48] sm:$0xf]
      %v4153 = vld [vmem:[%s4133 + $0x4c] sm:$0xf]
      %v4154 = vld [vmem:[%s4133 + $0x50] sm:$0xf]
      %v4155 = vld [vmem:[%s4133 + $0x54] sm:$0xf]
      %v4156 = vld [vmem:[%s4133 + $0x58] sm:$0xf]
      %v4157 = vld [vmem:[%s4133 + $0x5c] sm:$0xf]
      %v4158 = vld [vmem:[%s4133 + $0x60] sm:$0xf]
      %v4159 = vld [vmem:[%s4133 + $0x64] sm:$0xf]
      %v4160 = vld [vmem:[%s4133 + $0x68] sm:$0xf]
      %v4161 = vld [vmem:[%s4133 + $0x6c] sm:$0xf]
      %v4162 = vld [vmem:[%s4133 + $0x70] sm:$0xf]
      %v4163 = vld [vmem:[%s4133 + $0x74] sm:$0xf]
      %v4164 = vld [vmem:[%s4133 + $0x78] sm:$0xf]
      %v4165 = vld [vmem:[%s4133 + $0x7c] sm:$0xf]
      %v4166 = vld [vmem:[%s4133 + $0x80] sm:$0xf]
      %v4167 = vld [vmem:[%s4133 + $0x84] sm:$0xf]
      %v4168 = vld [vmem:[%s4133 + $0x88] sm:$0xf]
      %v4169 = vld [vmem:[%s4133 + $0x8c] sm:$0xf]
      %v4170 = vld [vmem:[%s4133 + $0x90] sm:$0xf]
      %v4171 = vld [vmem:[%s4133 + $0x94] sm:$0xf]
      %v4172 = vld [vmem:[%s4133 + $0x98] sm:$0xf]
      %v4173 = vld [vmem:[%s4133 + $0x9c] sm:$0xf]
      %v4174 = vld [vmem:[%s4133 + $0xa0] sm:$0xf]
      %v4175 = vld [vmem:[%s4133 + $0xa4] sm:$0xf]
      %v4176 = vld [vmem:[%s4133 + $0xa8] sm:$0xf]
      %v4177 = vld [vmem:[%s4133 + $0xac] sm:$0xf]
      %v4178 = vld [vmem:[%s4133 + $0xb0] sm:$0xf]
      %v4179 = vld [vmem:[%s4133 + $0xb4] sm:$0xf]
      %v4180 = vld [vmem:[%s4133 + $0xb8] sm:$0xf]
      %v4181 = vld [vmem:[%s4133 + $0xbc] sm:$0xf]
      %v4182 = vld [vmem:[%s4133 + $0xc0] sm:$0xf]
      %v4183 = vld [vmem:[%s4133 + $0xc4] sm:$0xf]
      %v4184 = vld [vmem:[%s4133 + $0xc8] sm:$0xf]
      %v4185 = vld [vmem:[%s4133 + $0xcc] sm:$0xf]
      %v4186 = vld [vmem:[%s4133 + $0xd0] sm:$0xf]
      %v4187 = vld [vmem:[%s4133 + $0xd4] sm:$0xf]
      %v4188 = vld [vmem:[%s4133 + $0xd8] sm:$0xf]
      %v4189 = vld [vmem:[%s4133 + $0xdc] sm:$0xf]
      %v4190 = vld [vmem:[%s4133 + $0xe0] sm:$0xf]
      %v4191 = vld [vmem:[%s4133 + $0xe4] sm:$0xf]
      %v4192 = vld [vmem:[%s4133 + $0xe8] sm:$0xf]
      %v4193 = vld [vmem:[%s4133 + $0xec] sm:$0xf]
      %v4194 = vld [vmem:[%s4133 + $0xf0] sm:$0xf]
      %v4195 = vld [vmem:[%s4133 + $0xf4] sm:$0xf]
      %v4196 = vld [vmem:[%s4133 + $0xf8] sm:$0xf]
      %v4197 = vld [vmem:[%s4133 + $0xfc] sm:$0xf]
      %v4198 = vunpack.c.l.bf16 %v4134
      %v4199 = vunpack.c.l.bf16 %v4135
      %v4200 = vunpack.c.l.bf16 %v4136
      %v4201 = vunpack.c.l.bf16 %v4137
      %v4202 = vunpack.c.l.bf16 %v4138
      %v4203 = vunpack.c.l.bf16 %v4139
      %v4204 = vunpack.c.l.bf16 %v4140
      %v4205 = vunpack.c.l.bf16 %v4141
      %v4206 = vunpack.c.l.bf16 %v4142
      %v4207 = vunpack.c.l.bf16 %v4143
      %v4208 = vunpack.c.l.bf16 %v4144
      %v4209 = vunpack.c.l.bf16 %v4145
      %v4210 = vunpack.c.l.bf16 %v4146
      %v4211 = vunpack.c.l.bf16 %v4147
      %v4212 = vunpack.c.l.bf16 %v4148
      %v4213 = vunpack.c.l.bf16 %v4149
      %v4214 = vunpack.c.l.bf16 %v4150
      %v4215 = vunpack.c.l.bf16 %v4151
      %v4216 = vunpack.c.l.bf16 %v4152
      %v4217 = vunpack.c.l.bf16 %v4153
      %v4218 = vunpack.c.l.bf16 %v4154
      %v4219 = vunpack.c.l.bf16 %v4155
      %v4220 = vunpack.c.l.bf16 %v4156
      %v4221 = vunpack.c.l.bf16 %v4157
      %v4222 = vunpack.c.l.bf16 %v4158
      %v4223 = vunpack.c.l.bf16 %v4159
      %v4224 = vunpack.c.l.bf16 %v4160
      %v4225 = vunpack.c.l.bf16 %v4161
      %v4226 = vunpack.c.l.bf16 %v4162
      %v4227 = vunpack.c.l.bf16 %v4163
      %v4228 = vunpack.c.l.bf16 %v4164
      %v4229 = vunpack.c.l.bf16 %v4165
      %v4230 = vunpack.c.l.bf16 %v4166
      %v4231 = vunpack.c.l.bf16 %v4167
      %v4232 = vunpack.c.l.bf16 %v4168
      %v4233 = vunpack.c.l.bf16 %v4169
      %v4234 = vunpack.c.l.bf16 %v4170
      %v4235 = vunpack.c.l.bf16 %v4171
      %v4236 = vunpack.c.l.bf16 %v4172
      %v4237 = vunpack.c.l.bf16 %v4173
      %v4238 = vunpack.c.l.bf16 %v4174
      %v4239 = vunpack.c.l.bf16 %v4175
      %v4240 = vunpack.c.l.bf16 %v4176
      %v4241 = vunpack.c.l.bf16 %v4177
      %v4242 = vunpack.c.l.bf16 %v4178
      %v4243 = vunpack.c.l.bf16 %v4179
      %v4244 = vunpack.c.l.bf16 %v4180
      %v4245 = vunpack.c.l.bf16 %v4181
      %v4246 = vunpack.c.l.bf16 %v4182
      %v4247 = vunpack.c.l.bf16 %v4183
      %v4248 = vunpack.c.l.bf16 %v4184
      %v4249 = vunpack.c.l.bf16 %v4185
      %v4250 = vunpack.c.l.bf16 %v4186
      %v4251 = vunpack.c.l.bf16 %v4187
      %v4252 = vunpack.c.l.bf16 %v4188
      %v4253 = vunpack.c.l.bf16 %v4189
      %v4254 = vunpack.c.l.bf16 %v4190
      %v4255 = vunpack.c.l.bf16 %v4191
      %v4256 = vunpack.c.l.bf16 %v4192
      %v4257 = vunpack.c.l.bf16 %v4193
      %v4258 = vunpack.c.l.bf16 %v4194
      %v4259 = vunpack.c.l.bf16 %v4195
      %v4260 = vunpack.c.l.bf16 %v4196
      %v4261 = vunpack.c.l.bf16 %v4197
      %v4262 = vrot.slane %v4198, 7
      %v4263 = vrot.slane %v4199, 7
      %v4264 = vrot.slane %v4200, 7
      %v4265 = vrot.slane %v4201, 7
      %v4266 = vrot.slane %v4202, 7
      %v4267 = vrot.slane %v4203, 7
      %v4268 = vrot.slane %v4204, 7
      %v4269 = vrot.slane %v4205, 7
      %v4270 = vrot.slane %v4206, 7
      %v4271 = vrot.slane %v4207, 7
      %v4272 = vrot.slane %v4208, 7
      %v4273 = vrot.slane %v4209, 7
      %v4274 = vrot.slane %v4210, 7
      %v4275 = vrot.slane %v4211, 7
      %v4276 = vrot.slane %v4212, 7
      %v4277 = vrot.slane %v4213, 7
      %v4278 = vrot.slane %v4214, 7
      %v4279 = vrot.slane %v4215, 7
      %v4280 = vrot.slane %v4216, 7
      %v4281 = vrot.slane %v4217, 7
      %v4282 = vrot.slane %v4218, 7
      %v4283 = vrot.slane %v4219, 7
      %v4284 = vrot.slane %v4220, 7
      %v4285 = vrot.slane %v4221, 7
      %v4286 = vrot.slane %v4222, 7
      %v4287 = vrot.slane %v4223, 7
      %v4288 = vrot.slane %v4224, 7
      %v4289 = vrot.slane %v4225, 7
      %v4290 = vrot.slane %v4226, 7
      %v4291 = vrot.slane %v4227, 7
      %v4292 = vrot.slane %v4228, 7
      %v4293 = vrot.slane %v4229, 7
      %v4294 = vrot.slane %v4230, 7
      %v4295 = vrot.slane %v4231, 7
      %v4296 = vrot.slane %v4232, 7
      %v4297 = vrot.slane %v4233, 7
      %v4298 = vrot.slane %v4234, 7
      %v4299 = vrot.slane %v4235, 7
      %v4300 = vrot.slane %v4236, 7
      %v4301 = vrot.slane %v4237, 7
      %v4302 = vrot.slane %v4238, 7
      %v4303 = vrot.slane %v4239, 7
      %v4304 = vrot.slane %v4240, 7
      %v4305 = vrot.slane %v4241, 7
      %v4306 = vrot.slane %v4242, 7
      %v4307 = vrot.slane %v4243, 7
      %v4308 = vrot.slane %v4244, 7
      %v4309 = vrot.slane %v4245, 7
      %v4310 = vrot.slane %v4246, 7
      %v4311 = vrot.slane %v4247, 7
      %v4312 = vrot.slane %v4248, 7
      %v4313 = vrot.slane %v4249, 7
      %v4314 = vrot.slane %v4250, 7
      %v4315 = vrot.slane %v4251, 7
      %v4316 = vrot.slane %v4252, 7
      %v4317 = vrot.slane %v4253, 7
      %v4318 = vrot.slane %v4254, 7
      %v4319 = vrot.slane %v4255, 7
      %v4320 = vrot.slane %v4256, 7
      %v4321 = vrot.slane %v4257, 7
      %v4322 = vrot.slane %v4258, 7
      %v4323 = vrot.slane %v4259, 7
      %v4324 = vrot.slane %v4260, 7
      %v4325 = vrot.slane %v4261, 7
      %v4326 = vsel %vm1481, %v4324, %v4325
      %v4327 = vsel %vm1481, %v4323, %v4324
      %v4328 = vsel %vm1481, %v4322, %v4323
      %v4329 = vsel %vm1481, %v4321, %v4322
      %v4330 = vsel %vm1481, %v4320, %v4321
      %v4331 = vsel %vm1481, %v4319, %v4320
      %v4332 = vsel %vm1481, %v4318, %v4319
      %v4333 = vsel %vm1481, %v4317, %v4318
      %v4334 = vsel %vm1481, %v4316, %v4317
      %v4335 = vsel %vm1481, %v4315, %v4316
      %v4336 = vsel %vm1481, %v4314, %v4315
      %v4337 = vsel %vm1481, %v4313, %v4314
      %v4338 = vsel %vm1481, %v4312, %v4313
      %v4339 = vsel %vm1481, %v4311, %v4312
      %v4340 = vsel %vm1481, %v4310, %v4311
      %v4341 = vsel %vm1481, %v4309, %v4310
      %v4342 = vsel %vm1481, %v4308, %v4309
      %v4343 = vsel %vm1481, %v4307, %v4308
      %v4344 = vsel %vm1481, %v4306, %v4307
      %v4345 = vsel %vm1481, %v4305, %v4306
      %v4346 = vsel %vm1481, %v4304, %v4305
      %v4347 = vsel %vm1481, %v4303, %v4304
      %v4348 = vsel %vm1481, %v4302, %v4303
      %v4349 = vsel %vm1481, %v4301, %v4302
      %v4350 = vsel %vm1481, %v4300, %v4301
      %v4351 = vsel %vm1481, %v4299, %v4300
      %v4352 = vsel %vm1481, %v4298, %v4299
      %v4353 = vsel %vm1481, %v4297, %v4298
      %v4354 = vsel %vm1481, %v4296, %v4297
      %v4355 = vsel %vm1481, %v4295, %v4296
      %v4356 = vsel %vm1481, %v4294, %v4295
      %v4357 = vsel %vm1481, %v4293, %v4294
      %v4358 = vsel %vm1481, %v4292, %v4293
      %v4359 = vsel %vm1481, %v4291, %v4292
      %v4360 = vsel %vm1481, %v4290, %v4291
      %v4361 = vsel %vm1481, %v4289, %v4290
      %v4362 = vsel %vm1481, %v4288, %v4289
      %v4363 = vsel %vm1481, %v4287, %v4288
      %v4364 = vsel %vm1481, %v4286, %v4287
      %v4365 = vsel %vm1481, %v4285, %v4286
      %v4366 = vsel %vm1481, %v4284, %v4285
      %v4367 = vsel %vm1481, %v4283, %v4284
      %v4368 = vsel %vm1481, %v4282, %v4283
      %v4369 = vsel %vm1481, %v4281, %v4282
      %v4370 = vsel %vm1481, %v4280, %v4281
      %v4371 = vsel %vm1481, %v4279, %v4280
      %v4372 = vsel %vm1481, %v4278, %v4279
      %v4373 = vsel %vm1481, %v4277, %v4278
      %v4374 = vsel %vm1481, %v4276, %v4277
      %v4375 = vsel %vm1481, %v4275, %v4276
      %v4376 = vsel %vm1481, %v4274, %v4275
      %v4377 = vsel %vm1481, %v4273, %v4274
      %v4378 = vsel %vm1481, %v4272, %v4273
      %v4379 = vsel %vm1481, %v4271, %v4272
      %v4380 = vsel %vm1481, %v4270, %v4271
      %v4381 = vsel %vm1481, %v4269, %v4270
      %v4382 = vsel %vm1481, %v4268, %v4269
      %v4383 = vsel %vm1481, %v4267, %v4268
      %v4384 = vsel %vm1481, %v4266, %v4267
      %v4385 = vsel %vm1481, %v4265, %v4266
      %v4386 = vsel %vm1481, %v4264, %v4265
      %v4387 = vsel %vm1481, %v4263, %v4264
      %v4388 = vsel %vm1481, %v4262, %v4263
      %v4389 = vsel %vm1481, %v4325, %v4262
      %v4390 = vrot.slane %v4198, 1
      %v4391 = vrot.slane %v4199, 1
      %v4392 = vrot.slane %v4200, 1
      %v4393 = vrot.slane %v4201, 1
      %v4394 = vrot.slane %v4202, 1
      %v4395 = vrot.slane %v4203, 1
      %v4396 = vrot.slane %v4204, 1
      %v4397 = vrot.slane %v4205, 1
      %v4398 = vrot.slane %v4206, 1
      %v4399 = vrot.slane %v4207, 1
      %v4400 = vrot.slane %v4208, 1
      %v4401 = vrot.slane %v4209, 1
      %v4402 = vrot.slane %v4210, 1
      %v4403 = vrot.slane %v4211, 1
      %v4404 = vrot.slane %v4212, 1
      %v4405 = vrot.slane %v4213, 1
      %v4406 = vrot.slane %v4214, 1
      %v4407 = vrot.slane %v4215, 1
      %v4408 = vrot.slane %v4216, 1
      %v4409 = vrot.slane %v4217, 1
      %v4410 = vrot.slane %v4218, 1
      %v4411 = vrot.slane %v4219, 1
      %v4412 = vrot.slane %v4220, 1
      %v4413 = vrot.slane %v4221, 1
      %v4414 = vrot.slane %v4222, 1
      %v4415 = vrot.slane %v4223, 1
      %v4416 = vrot.slane %v4224, 1
      %v4417 = vrot.slane %v4225, 1
      %v4418 = vrot.slane %v4226, 1
      %v4419 = vrot.slane %v4227, 1
      %v4420 = vrot.slane %v4228, 1
      %v4421 = vrot.slane %v4229, 1
      %v4422 = vrot.slane %v4230, 1
      %v4423 = vrot.slane %v4231, 1
      %v4424 = vrot.slane %v4232, 1
      %v4425 = vrot.slane %v4233, 1
      %v4426 = vrot.slane %v4234, 1
      %v4427 = vrot.slane %v4235, 1
      %v4428 = vrot.slane %v4236, 1
      %v4429 = vrot.slane %v4237, 1
      %v4430 = vrot.slane %v4238, 1
      %v4431 = vrot.slane %v4239, 1
      %v4432 = vrot.slane %v4240, 1
      %v4433 = vrot.slane %v4241, 1
      %v4434 = vrot.slane %v4242, 1
      %v4435 = vrot.slane %v4243, 1
      %v4436 = vrot.slane %v4244, 1
      %v4437 = vrot.slane %v4245, 1
      %v4438 = vrot.slane %v4246, 1
      %v4439 = vrot.slane %v4247, 1
      %v4440 = vrot.slane %v4248, 1
      %v4441 = vrot.slane %v4249, 1
      %v4442 = vrot.slane %v4250, 1
      %v4443 = vrot.slane %v4251, 1
      %v4444 = vrot.slane %v4252, 1
      %v4445 = vrot.slane %v4253, 1
      %v4446 = vrot.slane %v4254, 1
      %v4447 = vrot.slane %v4255, 1
      %v4448 = vrot.slane %v4256, 1
      %v4449 = vrot.slane %v4257, 1
      %v4450 = vrot.slane %v4258, 1
      %v4451 = vrot.slane %v4259, 1
      %v4452 = vrot.slane %v4260, 1
      %v4453 = vrot.slane %v4261, 1
      %v4454 = vsel %vm1610, %v4452, %v4453
      %v4455 = vsel %vm1610, %v4451, %v4452
      %v4456 = vsel %vm1610, %v4450, %v4451
      %v4457 = vsel %vm1610, %v4449, %v4450
      %v4458 = vsel %vm1610, %v4448, %v4449
      %v4459 = vsel %vm1610, %v4447, %v4448
      %v4460 = vsel %vm1610, %v4446, %v4447
      %v4461 = vsel %vm1610, %v4445, %v4446
      %v4462 = vsel %vm1610, %v4444, %v4445
      %v4463 = vsel %vm1610, %v4443, %v4444
      %v4464 = vsel %vm1610, %v4442, %v4443
      %v4465 = vsel %vm1610, %v4441, %v4442
      %v4466 = vsel %vm1610, %v4440, %v4441
      %v4467 = vsel %vm1610, %v4439, %v4440
      %v4468 = vsel %vm1610, %v4438, %v4439
      %v4469 = vsel %vm1610, %v4437, %v4438
      %v4470 = vsel %vm1610, %v4436, %v4437
      %v4471 = vsel %vm1610, %v4435, %v4436
      %v4472 = vsel %vm1610, %v4434, %v4435
      %v4473 = vsel %vm1610, %v4433, %v4434
      %v4474 = vsel %vm1610, %v4432, %v4433
      %v4475 = vsel %vm1610, %v4431, %v4432
      %v4476 = vsel %vm1610, %v4430, %v4431
      %v4477 = vsel %vm1610, %v4429, %v4430
      %v4478 = vsel %vm1610, %v4428, %v4429
      %v4479 = vsel %vm1610, %v4427, %v4428
      %v4480 = vsel %vm1610, %v4426, %v4427
      %v4481 = vsel %vm1610, %v4425, %v4426
      %v4482 = vsel %vm1610, %v4424, %v4425
      %v4483 = vsel %vm1610, %v4423, %v4424
      %v4484 = vsel %vm1610, %v4422, %v4423
      %v4485 = vsel %vm1610, %v4421, %v4422
      %v4486 = vsel %vm1610, %v4420, %v4421
      %v4487 = vsel %vm1610, %v4419, %v4420
      %v4488 = vsel %vm1610, %v4418, %v4419
      %v4489 = vsel %vm1610, %v4417, %v4418
      %v4490 = vsel %vm1610, %v4416, %v4417
      %v4491 = vsel %vm1610, %v4415, %v4416
      %v4492 = vsel %vm1610, %v4414, %v4415
      %v4493 = vsel %vm1610, %v4413, %v4414
      %v4494 = vsel %vm1610, %v4412, %v4413
      %v4495 = vsel %vm1610, %v4411, %v4412
      %v4496 = vsel %vm1610, %v4410, %v4411
      %v4497 = vsel %vm1610, %v4409, %v4410
      %v4498 = vsel %vm1610, %v4408, %v4409
      %v4499 = vsel %vm1610, %v4407, %v4408
      %v4500 = vsel %vm1610, %v4406, %v4407
      %v4501 = vsel %vm1610, %v4405, %v4406
      %v4502 = vsel %vm1610, %v4404, %v4405
      %v4503 = vsel %vm1610, %v4403, %v4404
      %v4504 = vsel %vm1610, %v4402, %v4403
      %v4505 = vsel %vm1610, %v4401, %v4402
      %v4506 = vsel %vm1610, %v4400, %v4401
      %v4507 = vsel %vm1610, %v4399, %v4400
      %v4508 = vsel %vm1610, %v4398, %v4399
      %v4509 = vsel %vm1610, %v4397, %v4398
      %v4510 = vsel %vm1610, %v4396, %v4397
      %v4511 = vsel %vm1610, %v4395, %v4396
      %v4512 = vsel %vm1610, %v4394, %v4395
      %v4513 = vsel %vm1610, %v4393, %v4394
      %v4514 = vsel %vm1610, %v4392, %v4393
      %v4515 = vsel %vm1610, %v4391, %v4392
      %v4516 = vsel %vm1610, %v4390, %v4391
      %v4517 = vsel %vm1610, %v4453, %v4390
      %4582 = vrot.lane.b32.xlu0 %v4198, 4
      %v4583 = vpop.permute.xlu0 %4582
      %4584 = vrot.lane.b32.xlu0 %v4199, 4
      %v4585 = vpop.permute.xlu0 %4584
      %4586 = vrot.lane.b32.xlu0 %v4200, 4
      %v4587 = vpop.permute.xlu0 %4586
      %4588 = vrot.lane.b32.xlu0 %v4201, 4
      %v4589 = vpop.permute.xlu0 %4588
      %4590 = vrot.lane.b32.xlu0 %v4202, 4
      %v4591 = vpop.permute.xlu0 %4590
      %4592 = vrot.lane.b32.xlu0 %v4203, 4
      %v4593 = vpop.permute.xlu0 %4592
      %4594 = vrot.lane.b32.xlu0 %v4204, 4
      %v4595 = vpop.permute.xlu0 %4594
      %4596 = vrot.lane.b32.xlu0 %v4205, 4
      %v4597 = vpop.permute.xlu0 %4596
      %4598 = vrot.lane.b32.xlu0 %v4206, 4
      %v4599 = vpop.permute.xlu0 %4598
      %4600 = vrot.lane.b32.xlu0 %v4207, 4
      %v4601 = vpop.permute.xlu0 %4600
      %4602 = vrot.lane.b32.xlu0 %v4208, 4
      %v4603 = vpop.permute.xlu0 %4602
      %4604 = vrot.lane.b32.xlu0 %v4209, 4
      %v4605 = vpop.permute.xlu0 %4604
      %4606 = vrot.lane.b32.xlu0 %v4210, 4
      %v4607 = vpop.permute.xlu0 %4606
      %4608 = vrot.lane.b32.xlu0 %v4211, 4
      %v4609 = vpop.permute.xlu0 %4608
      %4610 = vrot.lane.b32.xlu0 %v4212, 4
      %v4611 = vpop.permute.xlu0 %4610
      %4612 = vrot.lane.b32.xlu0 %v4213, 4
      %v4613 = vpop.permute.xlu0 %4612
      %4614 = vrot.lane.b32.xlu0 %v4214, 4
      %v4615 = vpop.permute.xlu0 %4614
      %4616 = vrot.lane.b32.xlu0 %v4215, 4
      %v4617 = vpop.permute.xlu0 %4616
      %4618 = vrot.lane.b32.xlu0 %v4216, 4
      %v4619 = vpop.permute.xlu0 %4618
      %4620 = vrot.lane.b32.xlu0 %v4217, 4
      %v4621 = vpop.permute.xlu0 %4620
      %4622 = vrot.lane.b32.xlu0 %v4218, 4
      %v4623 = vpop.permute.xlu0 %4622
      %4624 = vrot.lane.b32.xlu0 %v4219, 4
      %v4625 = vpop.permute.xlu0 %4624
      %4626 = vrot.lane.b32.xlu0 %v4220, 4
      %v4627 = vpop.permute.xlu0 %4626
      %4628 = vrot.lane.b32.xlu0 %v4221, 4
      %v4629 = vpop.permute.xlu0 %4628
      %4630 = vrot.lane.b32.xlu0 %v4222, 4
      %v4631 = vpop.permute.xlu0 %4630
      %4632 = vrot.lane.b32.xlu0 %v4223, 4
      %v4633 = vpop.permute.xlu0 %4632
      %4634 = vrot.lane.b32.xlu0 %v4224, 4
      %v4635 = vpop.permute.xlu0 %4634
      %4636 = vrot.lane.b32.xlu0 %v4225, 4
      %v4637 = vpop.permute.xlu0 %4636
      %4638 = vrot.lane.b32.xlu0 %v4226, 4
      %v4639 = vpop.permute.xlu0 %4638
      %4640 = vrot.lane.b32.xlu0 %v4227, 4
      %v4641 = vpop.permute.xlu0 %4640
      %4642 = vrot.lane.b32.xlu0 %v4228, 4
      %v4643 = vpop.permute.xlu0 %4642
      %4644 = vrot.lane.b32.xlu0 %v4229, 4
      %v4645 = vpop.permute.xlu0 %4644
      %4646 = vrot.lane.b32.xlu0 %v4230, 4
      %v4647 = vpop.permute.xlu0 %4646
      %4648 = vrot.lane.b32.xlu0 %v4231, 4
      %v4649 = vpop.permute.xlu0 %4648
      %4650 = vrot.lane.b32.xlu0 %v4232, 4
      %v4651 = vpop.permute.xlu0 %4650
      %4652 = vrot.lane.b32.xlu0 %v4233, 4
      %v4653 = vpop.permute.xlu0 %4652
      %4654 = vrot.lane.b32.xlu0 %v4234, 4
      %v4655 = vpop.permute.xlu0 %4654
      %4656 = vrot.lane.b32.xlu0 %v4235, 4
      %v4657 = vpop.permute.xlu0 %4656
      %4658 = vrot.lane.b32.xlu0 %v4236, 4
      %v4659 = vpop.permute.xlu0 %4658
      %4660 = vrot.lane.b32.xlu0 %v4237, 4
      %v4661 = vpop.permute.xlu0 %4660
      %4662 = vrot.lane.b32.xlu0 %v4238, 4
      %v4663 = vpop.permute.xlu0 %4662
      %4664 = vrot.lane.b32.xlu0 %v4239, 4
      %v4665 = vpop.permute.xlu0 %4664
      %4666 = vrot.lane.b32.xlu0 %v4240, 4
      %v4667 = vpop.permute.xlu0 %4666
      %4668 = vrot.lane.b32.xlu0 %v4241, 4
      %v4669 = vpop.permute.xlu0 %4668
      %4670 = vrot.lane.b32.xlu0 %v4242, 4
      %v4671 = vpop.permute.xlu0 %4670
      %4672 = vrot.lane.b32.xlu0 %v4243, 4
      %v4673 = vpop.permute.xlu0 %4672
      %4674 = vrot.lane.b32.xlu0 %v4244, 4
      %v4675 = vpop.permute.xlu0 %4674
      %4676 = vrot.lane.b32.xlu0 %v4245, 4
      %v4677 = vpop.permute.xlu0 %4676
      %4678 = vrot.lane.b32.xlu0 %v4246, 4
      %v4679 = vpop.permute.xlu0 %4678
      %4680 = vrot.lane.b32.xlu0 %v4247, 4
      %v4681 = vpop.permute.xlu0 %4680
      %4682 = vrot.lane.b32.xlu0 %v4248, 4
      %v4683 = vpop.permute.xlu0 %4682
      %4684 = vrot.lane.b32.xlu0 %v4249, 4
      %v4685 = vpop.permute.xlu0 %4684
      %4686 = vrot.lane.b32.xlu0 %v4250, 4
      %v4687 = vpop.permute.xlu0 %4686
      %4688 = vrot.lane.b32.xlu0 %v4251, 4
      %v4689 = vpop.permute.xlu0 %4688
      %4690 = vrot.lane.b32.xlu0 %v4252, 4
      %v4691 = vpop.permute.xlu0 %4690
      %4692 = vrot.lane.b32.xlu0 %v4253, 4
      %v4693 = vpop.permute.xlu0 %4692
      %4694 = vrot.lane.b32.xlu0 %v4254, 4
      %v4695 = vpop.permute.xlu0 %4694
      %4696 = vrot.lane.b32.xlu0 %v4255, 4
      %v4697 = vpop.permute.xlu0 %4696
      %4698 = vrot.lane.b32.xlu0 %v4256, 4
      %v4699 = vpop.permute.xlu0 %4698
      %4700 = vrot.lane.b32.xlu0 %v4257, 4
      %v4701 = vpop.permute.xlu0 %4700
      %4702 = vrot.lane.b32.xlu0 %v4258, 4
      %v4703 = vpop.permute.xlu0 %4702
      %4704 = vrot.lane.b32.xlu0 %v4259, 4
      %v4705 = vpop.permute.xlu0 %4704
      %4706 = vrot.lane.b32.xlu0 %v4260, 4
      %v4707 = vpop.permute.xlu0 %4706
      %4708 = vrot.lane.b32.xlu0 %v4261, 4
      %v4709 = vpop.permute.xlu0 %4708
      %4838 = vrot.lane.b32.xlu0 %v4516, 8
      %v4839 = vpop.permute.xlu0 %4838
      %4840 = vrot.lane.b32.xlu0 %v4515, 8
      %v4841 = vpop.permute.xlu0 %4840
      %4842 = vrot.lane.b32.xlu0 %v4514, 8
      %v4843 = vpop.permute.xlu0 %4842
      %4844 = vrot.lane.b32.xlu0 %v4513, 8
      %v4845 = vpop.permute.xlu0 %4844
      %4846 = vrot.lane.b32.xlu0 %v4512, 8
      %v4847 = vpop.permute.xlu0 %4846
      %4848 = vrot.lane.b32.xlu0 %v4511, 8
      %v4849 = vpop.permute.xlu0 %4848
      %4850 = vrot.lane.b32.xlu0 %v4510, 8
      %v4851 = vpop.permute.xlu0 %4850
      %4852 = vrot.lane.b32.xlu0 %v4509, 8
      %v4853 = vpop.permute.xlu0 %4852
      %4854 = vrot.lane.b32.xlu0 %v4508, 8
      %v4855 = vpop.permute.xlu0 %4854
      %4856 = vrot.lane.b32.xlu0 %v4507, 8
      %v4857 = vpop.permute.xlu0 %4856
      %4858 = vrot.lane.b32.xlu0 %v4506, 8
      %v4859 = vpop.permute.xlu0 %4858
      %4860 = vrot.lane.b32.xlu0 %v4505, 8
      %v4861 = vpop.permute.xlu0 %4860
      %4862 = vrot.lane.b32.xlu0 %v4504, 8
      %v4863 = vpop.permute.xlu0 %4862
      %4864 = vrot.lane.b32.xlu0 %v4503, 8
      %v4865 = vpop.permute.xlu0 %4864
      %4866 = vrot.lane.b32.xlu0 %v4502, 8
      %v4867 = vpop.permute.xlu0 %4866
      %4868 = vrot.lane.b32.xlu0 %v4501, 8
      %v4869 = vpop.permute.xlu0 %4868
      %4870 = vrot.lane.b32.xlu0 %v4500, 8
      %v4871 = vpop.permute.xlu0 %4870
      %4872 = vrot.lane.b32.xlu0 %v4499, 8
      %v4873 = vpop.permute.xlu0 %4872
      %4874 = vrot.lane.b32.xlu0 %v4498, 8
      %v4875 = vpop.permute.xlu0 %4874
      %4876 = vrot.lane.b32.xlu0 %v4497, 8
      %v4877 = vpop.permute.xlu0 %4876
      %4878 = vrot.lane.b32.xlu0 %v4496, 8
      %v4879 = vpop.permute.xlu0 %4878
      %4880 = vrot.lane.b32.xlu0 %v4495, 8
      %v4881 = vpop.permute.xlu0 %4880
      %4882 = vrot.lane.b32.xlu0 %v4494, 8
      %v4883 = vpop.permute.xlu0 %4882
      %4884 = vrot.lane.b32.xlu0 %v4493, 8
      %v4885 = vpop.permute.xlu0 %4884
      %4886 = vrot.lane.b32.xlu0 %v4492, 8
      %v4887 = vpop.permute.xlu0 %4886
      %4888 = vrot.lane.b32.xlu0 %v4491, 8
      %v4889 = vpop.permute.xlu0 %4888
      %4890 = vrot.lane.b32.xlu0 %v4490, 8
      %v4891 = vpop.permute.xlu0 %4890
      %4892 = vrot.lane.b32.xlu0 %v4489, 8
      %v4893 = vpop.permute.xlu0 %4892
      %4894 = vrot.lane.b32.xlu0 %v4488, 8
      %v4895 = vpop.permute.xlu0 %4894
      %4896 = vrot.lane.b32.xlu0 %v4487, 8
      %v4897 = vpop.permute.xlu0 %4896
      %4898 = vrot.lane.b32.xlu0 %v4486, 8
      %v4899 = vpop.permute.xlu0 %4898
      %4900 = vrot.lane.b32.xlu0 %v4485, 8
      %v4901 = vpop.permute.xlu0 %4900
      %4902 = vrot.lane.b32.xlu0 %v4484, 8
      %v4903 = vpop.permute.xlu0 %4902
      %4904 = vrot.lane.b32.xlu0 %v4483, 8
      %v4905 = vpop.permute.xlu0 %4904
      %4906 = vrot.lane.b32.xlu0 %v4482, 8
      %v4907 = vpop.permute.xlu0 %4906
      %4908 = vrot.lane.b32.xlu0 %v4481, 8
      %v4909 = vpop.permute.xlu0 %4908
      %4910 = vrot.lane.b32.xlu0 %v4480, 8
      %v4911 = vpop.permute.xlu0 %4910
      %4912 = vrot.lane.b32.xlu0 %v4479, 8
      %v4913 = vpop.permute.xlu0 %4912
      %4914 = vrot.lane.b32.xlu0 %v4478, 8
      %v4915 = vpop.permute.xlu0 %4914
      %4916 = vrot.lane.b32.xlu0 %v4477, 8
      %v4917 = vpop.permute.xlu0 %4916
      %4918 = vrot.lane.b32.xlu0 %v4476, 8
      %v4919 = vpop.permute.xlu0 %4918
      %4920 = vrot.lane.b32.xlu0 %v4475, 8
      %v4921 = vpop.permute.xlu0 %4920
      %4922 = vrot.lane.b32.xlu0 %v4474, 8
      %v4923 = vpop.permute.xlu0 %4922
      %4924 = vrot.lane.b32.xlu0 %v4473, 8
      %v4925 = vpop.permute.xlu0 %4924
      %4926 = vrot.lane.b32.xlu0 %v4472, 8
      %v4927 = vpop.permute.xlu0 %4926
      %4928 = vrot.lane.b32.xlu0 %v4471, 8
      %v4929 = vpop.permute.xlu0 %4928
      %4930 = vrot.lane.b32.xlu0 %v4470, 8
      %v4931 = vpop.permute.xlu0 %4930
      %4932 = vrot.lane.b32.xlu0 %v4469, 8
      %v4933 = vpop.permute.xlu0 %4932
      %4934 = vrot.lane.b32.xlu0 %v4468, 8
      %v4935 = vpop.permute.xlu0 %4934
      %4936 = vrot.lane.b32.xlu0 %v4467, 8
      %v4937 = vpop.permute.xlu0 %4936
      %4938 = vrot.lane.b32.xlu0 %v4466, 8
      %v4939 = vpop.permute.xlu0 %4938
      %4940 = vrot.lane.b32.xlu0 %v4465, 8
      %v4941 = vpop.permute.xlu0 %4940
      %4942 = vrot.lane.b32.xlu0 %v4464, 8
      %v4943 = vpop.permute.xlu0 %4942
      %4944 = vrot.lane.b32.xlu0 %v4463, 8
      %v4945 = vpop.permute.xlu0 %4944
      %4946 = vrot.lane.b32.xlu0 %v4462, 8
      %v4947 = vpop.permute.xlu0 %4946
      %4948 = vrot.lane.b32.xlu0 %v4461, 8
      %v4949 = vpop.permute.xlu0 %4948
      %4950 = vrot.lane.b32.xlu0 %v4460, 8
      %v4951 = vpop.permute.xlu0 %4950
      %4952 = vrot.lane.b32.xlu0 %v4459, 8
      %v4953 = vpop.permute.xlu0 %4952
      %4954 = vrot.lane.b32.xlu0 %v4458, 8
      %v4955 = vpop.permute.xlu0 %4954
      %4956 = vrot.lane.b32.xlu0 %v4457, 8
      %v4957 = vpop.permute.xlu0 %4956
      %4958 = vrot.lane.b32.xlu0 %v4456, 8
      %v4959 = vpop.permute.xlu0 %4958
      %4960 = vrot.lane.b32.xlu0 %v4455, 8
      %v4961 = vpop.permute.xlu0 %4960
      %4962 = vrot.lane.b32.xlu0 %v4454, 8
      %v4963 = vpop.permute.xlu0 %4962
      %4964 = vrot.lane.b32.xlu0 %v4517, 8
      %v4965 = vpop.permute.xlu0 %4964
      %v5030 = vsel %vm2187, %v4389, %v4583
      %v5031 = vsel %vm2187, %v4388, %v4585
      %v5032 = vsel %vm2187, %v4387, %v4587
      %v5033 = vsel %vm2187, %v4386, %v4589
      %v5034 = vsel %vm2187, %v4385, %v4591
      %v5035 = vsel %vm2187, %v4384, %v4593
      %v5036 = vsel %vm2187, %v4383, %v4595
      %v5037 = vsel %vm2187, %v4382, %v4597
      %v5038 = vsel %vm2187, %v4381, %v4599
      %v5039 = vsel %vm2187, %v4380, %v4601
      %v5040 = vsel %vm2187, %v4379, %v4603
      %v5041 = vsel %vm2187, %v4378, %v4605
      %v5042 = vsel %vm2187, %v4377, %v4607
      %v5043 = vsel %vm2187, %v4376, %v4609
      %v5044 = vsel %vm2187, %v4375, %v4611
      %v5045 = vsel %vm2187, %v4374, %v4613
      %v5046 = vsel %vm2187, %v4373, %v4615
      %v5047 = vsel %vm2187, %v4372, %v4617
      %v5048 = vsel %vm2187, %v4371, %v4619
      %v5049 = vsel %vm2187, %v4370, %v4621
      %v5050 = vsel %vm2187, %v4369, %v4623
      %v5051 = vsel %vm2187, %v4368, %v4625
      %v5052 = vsel %vm2187, %v4367, %v4627
      %v5053 = vsel %vm2187, %v4366, %v4629
      %v5054 = vsel %vm2187, %v4365, %v4631
      %v5055 = vsel %vm2187, %v4364, %v4633
      %v5056 = vsel %vm2187, %v4363, %v4635
      %v5057 = vsel %vm2187, %v4362, %v4637
      %v5058 = vsel %vm2187, %v4361, %v4639
      %v5059 = vsel %vm2187, %v4360, %v4641
      %v5060 = vsel %vm2187, %v4359, %v4643
      %v5061 = vsel %vm2187, %v4358, %v4645
      %v5062 = vsel %vm2187, %v4357, %v4647
      %v5063 = vsel %vm2187, %v4356, %v4649
      %v5064 = vsel %vm2187, %v4355, %v4651
      %v5065 = vsel %vm2187, %v4354, %v4653
      %v5066 = vsel %vm2187, %v4353, %v4655
      %v5067 = vsel %vm2187, %v4352, %v4657
      %v5068 = vsel %vm2187, %v4351, %v4659
      %v5069 = vsel %vm2187, %v4350, %v4661
      %v5070 = vsel %vm2187, %v4349, %v4663
      %v5071 = vsel %vm2187, %v4348, %v4665
      %v5072 = vsel %vm2187, %v4347, %v4667
      %v5073 = vsel %vm2187, %v4346, %v4669
      %v5074 = vsel %vm2187, %v4345, %v4671
      %v5075 = vsel %vm2187, %v4344, %v4673
      %v5076 = vsel %vm2187, %v4343, %v4675
      %v5077 = vsel %vm2187, %v4342, %v4677
      %v5078 = vsel %vm2187, %v4341, %v4679
      %v5079 = vsel %vm2187, %v4340, %v4681
      %v5080 = vsel %vm2187, %v4339, %v4683
      %v5081 = vsel %vm2187, %v4338, %v4685
      %v5082 = vsel %vm2187, %v4337, %v4687
      %v5083 = vsel %vm2187, %v4336, %v4689
      %v5084 = vsel %vm2187, %v4335, %v4691
      %v5085 = vsel %vm2187, %v4334, %v4693
      %v5086 = vsel %vm2187, %v4333, %v4695
      %v5087 = vsel %vm2187, %v4332, %v4697
      %v5088 = vsel %vm2187, %v4331, %v4699
      %v5089 = vsel %vm2187, %v4330, %v4701
      %v5090 = vsel %vm2187, %v4329, %v4703
      %v5091 = vsel %vm2187, %v4328, %v4705
      %v5092 = vsel %vm2187, %v4327, %v4707
      %v5093 = vsel %vm2187, %v4326, %v4709
      %v5094 = vsel %vm497, %v5030, %v4839
      %v5095 = vsel %vm497, %v5031, %v4841
      %v5096 = vsel %vm497, %v5032, %v4843
      %v5097 = vsel %vm497, %v5033, %v4845
      %v5098 = vsel %vm497, %v5034, %v4847
      %v5099 = vsel %vm497, %v5035, %v4849
      %v5100 = vsel %vm497, %v5036, %v4851
      %v5101 = vsel %vm497, %v5037, %v4853
      %v5102 = vsel %vm497, %v5038, %v4855
      %v5103 = vsel %vm497, %v5039, %v4857
      %v5104 = vsel %vm497, %v5040, %v4859
      %v5105 = vsel %vm497, %v5041, %v4861
      %v5106 = vsel %vm497, %v5042, %v4863
      %v5107 = vsel %vm497, %v5043, %v4865
      %v5108 = vsel %vm497, %v5044, %v4867
      %v5109 = vsel %vm497, %v5045, %v4869
      %v5110 = vsel %vm497, %v5046, %v4871
      %v5111 = vsel %vm497, %v5047, %v4873
      %v5112 = vsel %vm497, %v5048, %v4875
      %v5113 = vsel %vm497, %v5049, %v4877
      %v5114 = vsel %vm497, %v5050, %v4879
      %v5115 = vsel %vm497, %v5051, %v4881
      %v5116 = vsel %vm497, %v5052, %v4883
      %v5117 = vsel %vm497, %v5053, %v4885
      %v5118 = vsel %vm497, %v5054, %v4887
      %v5119 = vsel %vm497, %v5055, %v4889
      %v5120 = vsel %vm497, %v5056, %v4891
      %v5121 = vsel %vm497, %v5057, %v4893
      %v5122 = vsel %vm497, %v5058, %v4895
      %v5123 = vsel %vm497, %v5059, %v4897
      %v5124 = vsel %vm497, %v5060, %v4899
      %v5125 = vsel %vm497, %v5061, %v4901
      %v5126 = vsel %vm497, %v5062, %v4903
      %v5127 = vsel %vm497, %v5063, %v4905
      %v5128 = vsel %vm497, %v5064, %v4907
      %v5129 = vsel %vm497, %v5065, %v4909
      %v5130 = vsel %vm497, %v5066, %v4911
      %v5131 = vsel %vm497, %v5067, %v4913
      %v5132 = vsel %vm497, %v5068, %v4915
      %v5133 = vsel %vm497, %v5069, %v4917
      %v5134 = vsel %vm497, %v5070, %v4919
      %v5135 = vsel %vm497, %v5071, %v4921
      %v5136 = vsel %vm497, %v5072, %v4923
      %v5137 = vsel %vm497, %v5073, %v4925
      %v5138 = vsel %vm497, %v5074, %v4927
      %v5139 = vsel %vm497, %v5075, %v4929
      %v5140 = vsel %vm497, %v5076, %v4931
      %v5141 = vsel %vm497, %v5077, %v4933
      %v5142 = vsel %vm497, %v5078, %v4935
      %v5143 = vsel %vm497, %v5079, %v4937
      %v5144 = vsel %vm497, %v5080, %v4939
      %v5145 = vsel %vm497, %v5081, %v4941
      %v5146 = vsel %vm497, %v5082, %v4943
      %v5147 = vsel %vm497, %v5083, %v4945
      %v5148 = vsel %vm497, %v5084, %v4947
      %v5149 = vsel %vm497, %v5085, %v4949
      %v5150 = vsel %vm497, %v5086, %v4951
      %v5151 = vsel %vm497, %v5087, %v4953
      %v5152 = vsel %vm497, %v5088, %v4955
      %v5153 = vsel %vm497, %v5089, %v4957
      %v5154 = vsel %vm497, %v5090, %v4959
      %v5155 = vsel %vm497, %v5091, %v4961
      %v5156 = vsel %vm497, %v5092, %v4963
      %v5157 = vsel %vm497, %v5093, %v4965
      %v5158 = vpack.c.bf16 %v5095, %v5094
      %v5159 = vpack.c.bf16 %v5097, %v5096
      %v5160 = vpack.c.bf16 %v5099, %v5098
      %v5161 = vpack.c.bf16 %v5101, %v5100
      %v5162 = vpack.c.bf16 %v5103, %v5102
      %v5163 = vpack.c.bf16 %v5105, %v5104
      %v5164 = vpack.c.bf16 %v5107, %v5106
      %v5165 = vpack.c.bf16 %v5109, %v5108
      %v5166 = vpack.c.bf16 %v5111, %v5110
      %v5167 = vpack.c.bf16 %v5113, %v5112
      %v5168 = vpack.c.bf16 %v5115, %v5114
      %v5169 = vpack.c.bf16 %v5117, %v5116
      %v5170 = vpack.c.bf16 %v5119, %v5118
      %v5171 = vpack.c.bf16 %v5121, %v5120
      %v5172 = vpack.c.bf16 %v5123, %v5122
      %v5173 = vpack.c.bf16 %v5125, %v5124
      %v5174 = vpack.c.bf16 %v5127, %v5126
      %v5175 = vpack.c.bf16 %v5129, %v5128
      %v5176 = vpack.c.bf16 %v5131, %v5130
      %v5177 = vpack.c.bf16 %v5133, %v5132
      %v5178 = vpack.c.bf16 %v5135, %v5134
      %v5179 = vpack.c.bf16 %v5137, %v5136
      %v5180 = vpack.c.bf16 %v5139, %v5138
      %v5181 = vpack.c.bf16 %v5141, %v5140
      %v5182 = vpack.c.bf16 %v5143, %v5142
      %v5183 = vpack.c.bf16 %v5145, %v5144
      %v5184 = vpack.c.bf16 %v5147, %v5146
      %v5185 = vpack.c.bf16 %v5149, %v5148
      %v5186 = vpack.c.bf16 %v5151, %v5150
      %v5187 = vpack.c.bf16 %v5153, %v5152
      %v5188 = vpack.c.bf16 %v5155, %v5154
      %v5189 = vpack.c.bf16 %v5157, %v5156
      %s5190 = scalar_lea.vmem %s3, 16
      %v5191 = vld [vmem:[%s5190] sm:$0xf]
      %v5192 = vld [vmem:[%s5190 + $0x4] sm:$0x3]
      %v5195 = vunpack.c.l.b16 %v5191
      %v5196 = vunpack.c.l.b16 %v5192
      %v5197 = vpack.c.b16 %v5196, %v5195
      %v5199 = vsel %vm3414, %v5158, 0
      %v5202 = vsel %vm3414, %v5159, 0
      %v5205 = vsel %vm3414, %v5160, 0
      %v5208 = vsel %vm3414, %v5161, 0
      %v5211 = vsel %vm3414, %v5162, 0
      %v5214 = vsel %vm3414, %v5163, 0
      %v5217 = vsel %vm3414, %v5164, 0
      %v5220 = vsel %vm3414, %v5165, 0
      %v5223 = vsel %vm3414, %v5166, 0
      %v5226 = vsel %vm3414, %v5167, 0
      %v5229 = vsel %vm3414, %v5168, 0
      %v5232 = vsel %vm3414, %v5169, 0
      %v5235 = vsel %vm3414, %v5170, 0
      %v5238 = vsel %vm3414, %v5171, 0
      %v5241 = vsel %vm3414, %v5172, 0
      %v5244 = vsel %vm3414, %v5173, 0
      %v5247 = vsel %vm3414, %v5174, 0
      %v5250 = vsel %vm3414, %v5175, 0
      %v5253 = vsel %vm3414, %v5176, 0
      %v5256 = vsel %vm3414, %v5177, 0
      %v5259 = vsel %vm3414, %v5178, 0
      %v5262 = vsel %vm3414, %v5179, 0
      %v5265 = vsel %vm3414, %v5180, 0
      %v5268 = vsel %vm3414, %v5181, 0
      %v5271 = vsel %vm3414, %v5182, 0
      %v5274 = vsel %vm3414, %v5183, 0
      %v5277 = vsel %vm3414, %v5184, 0
      %v5280 = vsel %vm3414, %v5185, 0
      %v5283 = vsel %vm3414, %v5186, 0
      %v5286 = vsel %vm3414, %v5187, 0
      %v5289 = vsel %vm3414, %v5188, 0
      %v5292 = vsel %vm3414, %v5189, 0
      %v5295 = vsel %vm3511, %v5197, 0
      %5297 = vmatprep.subr.bf16.mxu0 0
      %5298 = vmatpush1.bf16.msra.mxu0 0
      %5299 = vmatprep.subr.bf16.mxu0 0
      %5300 = vmatpush1.bf16.msra.mxu0 0
      %5301 = vmatprep.subr.bf16.mxu0 0
      %5302 = vmatpush1.bf16.msra.mxu0 0
      %5303 = vmatprep.subr.bf16.mxu0 0
      %5304 = vmatpush1.bf16.msra.mxu0 0
      %5305 = vmatprep.subr.bf16.mxu0 0
      %5306 = vmatpush1.bf16.msra.mxu0 0
      %5307 = vmatprep.subr.bf16.mxu0 0
      %5308 = vmatpush1.bf16.msra.mxu0 0
      %5309 = vmatprep.subr.bf16.mxu0 0
      %5310 = vmatpush1.bf16.msra.mxu0 0
      %5311 = vmatprep.subr.bf16.mxu0 0
      %5312 = vmatpush1.bf16.msra.mxu0 %v5295
      %5313 = vmatprep.subr.bf16.mxu0 0
      %5314 = vmatpush2.bf16.msra.mxu0 0
      %5315 = vmatprep.subr.bf16.mxu0 0
      %5316 = vmatpush2.bf16.msra.mxu0 0
      %5317 = vmatprep.subr.bf16.mxu0 0
      %5318 = vmatpush2.bf16.msra.mxu0 0
      %5319 = vmatprep.subr.bf16.mxu0 0
      %5320 = vmatpush2.bf16.msra.mxu0 0
      %5321 = vmatprep.subr.bf16.mxu0 0
      %5322 = vmatpush2.bf16.msra.mxu0 0
      %5323 = vmatprep.subr.bf16.mxu0 0
      %5324 = vmatpush2.bf16.msra.mxu0 0
      %5325 = vmatprep.subr.bf16.mxu0 0
      %5326 = vmatpush2.bf16.msra.mxu0 0
      %5327 = vmatprep.subr.bf16.mxu0 0
      %5328 = vmatpush2.bf16.msra.mxu0 0
      %5329 = vmatprep.mubr.bf16.mxu0 0
      %5330 = vmatmul.mubr.bf16.gmra.mxu0 %v5199
      %v5331 = vpop.f32.mrf.mxu0
      %v5332 = vadd.f32 0.0, %v5331
      %v5333 = vpop.f32.mrf.mxu0
      %v5334 = vpop.f32.mrf.mxu0
      %v5335 = vadd.f32 0.0, %v5334
      %v5336 = vpop.f32.mrf.mxu0
      %5337 = vmatprep.mubr.bf16.mxu0 0
      %5338 = vmatmul.mubr.bf16.gmra.mxu0 %v5202
      %v5339 = vpop.f32.mrf.mxu0
      %v5340 = vpop.f32.mrf.mxu0
      %v5341 = vpop.f32.mrf.mxu0
      %v5342 = vpop.f32.mrf.mxu0
      %5343 = vmatprep.mubr.bf16.mxu0 0
      %5344 = vmatmul.mubr.bf16.gmra.mxu0 %v5205
      %v5345 = vpop.f32.mrf.mxu0
      %v5346 = vadd.f32 0.0, %v5345
      %v5347 = vpop.f32.mrf.mxu0
      %v5348 = vpop.f32.mrf.mxu0
      %v5349 = vadd.f32 0.0, %v5348
      %v5350 = vpop.f32.mrf.mxu0
      %5351 = vmatprep.mubr.bf16.mxu0 0
      %5352 = vmatmul.mubr.bf16.gmra.mxu0 %v5208
      %v5353 = vpop.f32.mrf.mxu0
      %v5354 = vpop.f32.mrf.mxu0
      %v5355 = vpop.f32.mrf.mxu0
      %v5356 = vpop.f32.mrf.mxu0
      %5357 = vmatprep.mubr.bf16.mxu0 0
      %5358 = vmatmul.mubr.bf16.gmra.mxu0 %v5211
      %v5359 = vpop.f32.mrf.mxu0
      %v5360 = vadd.f32 0.0, %v5359
      %v5361 = vpop.f32.mrf.mxu0
      %v5362 = vpop.f32.mrf.mxu0
      %v5363 = vadd.f32 0.0, %v5362
      %v5364 = vpop.f32.mrf.mxu0
      %5365 = vmatprep.mubr.bf16.mxu0 0
      %5366 = vmatmul.mubr.bf16.gmra.mxu0 %v5214
      %v5367 = vpop.f32.mrf.mxu0
      %v5368 = vpop.f32.mrf.mxu0
      %v5369 = vpop.f32.mrf.mxu0
      %v5370 = vpop.f32.mrf.mxu0
      %5371 = vmatprep.mubr.bf16.mxu0 0
      %5372 = vmatmul.mubr.bf16.gmra.mxu0 %v5217
      %v5373 = vpop.f32.mrf.mxu0
      %v5374 = vadd.f32 0.0, %v5373
      %v5375 = vpop.f32.mrf.mxu0
      %v5376 = vpop.f32.mrf.mxu0
      %v5377 = vadd.f32 0.0, %v5376
      %v5378 = vpop.f32.mrf.mxu0
      %5379 = vmatprep.mubr.bf16.mxu0 0
      %5380 = vmatmul.mubr.bf16.gmra.mxu0 %v5220
      %v5381 = vpop.f32.mrf.mxu0
      %v5382 = vpop.f32.mrf.mxu0
      %v5383 = vpop.f32.mrf.mxu0
      %v5384 = vpop.f32.mrf.mxu0
      %5385 = vmatprep.mubr.bf16.mxu0 0
      %5386 = vmatmul.mubr.bf16.gmra.mxu0 %v5223
      %v5387 = vpop.f32.mrf.mxu0
      %v5388 = vadd.f32 0.0, %v5387
      %v5389 = vpop.f32.mrf.mxu0
      %v5390 = vpop.f32.mrf.mxu0
      %v5391 = vadd.f32 0.0, %v5390
      %v5392 = vpop.f32.mrf.mxu0
      %5393 = vmatprep.mubr.bf16.mxu0 0
      %5394 = vmatmul.mubr.bf16.gmra.mxu0 %v5226
      %v5395 = vpop.f32.mrf.mxu0
      %v5396 = vpop.f32.mrf.mxu0
      %v5397 = vpop.f32.mrf.mxu0
      %v5398 = vpop.f32.mrf.mxu0
      %5399 = vmatprep.mubr.bf16.mxu0 0
      %5400 = vmatmul.mubr.bf16.gmra.mxu0 %v5229
      %v5401 = vpop.f32.mrf.mxu0
      %v5402 = vadd.f32 0.0, %v5401
      %v5403 = vpop.f32.mrf.mxu0
      %v5404 = vpop.f32.mrf.mxu0
      %v5405 = vadd.f32 0.0, %v5404
      %v5406 = vpop.f32.mrf.mxu0
      %5407 = vmatprep.mubr.bf16.mxu0 0
      %5408 = vmatmul.mubr.bf16.gmra.mxu0 %v5232
      %v5409 = vpop.f32.mrf.mxu0
      %v5410 = vpop.f32.mrf.mxu0
      %v5411 = vpop.f32.mrf.mxu0
      %v5412 = vpop.f32.mrf.mxu0
      %5413 = vmatprep.mubr.bf16.mxu0 0
      %5414 = vmatmul.mubr.bf16.gmra.mxu0 %v5235
      %v5415 = vpop.f32.mrf.mxu0
      %v5416 = vadd.f32 0.0, %v5415
      %v5417 = vpop.f32.mrf.mxu0
      %v5418 = vpop.f32.mrf.mxu0
      %v5419 = vadd.f32 0.0, %v5418
      %v5420 = vpop.f32.mrf.mxu0
      %5421 = vmatprep.mubr.bf16.mxu0 0
      %5422 = vmatmul.mubr.bf16.gmra.mxu0 %v5238
      %v5423 = vpop.f32.mrf.mxu0
      %v5424 = vpop.f32.mrf.mxu0
      %v5425 = vpop.f32.mrf.mxu0
      %v5426 = vpop.f32.mrf.mxu0
      %5427 = vmatprep.mubr.bf16.mxu0 0
      %5428 = vmatmul.mubr.bf16.gmra.mxu0 %v5241
      %v5429 = vpop.f32.mrf.mxu0
      %v5430 = vadd.f32 0.0, %v5429
      %v5431 = vpop.f32.mrf.mxu0
      %v5432 = vpop.f32.mrf.mxu0
      %v5433 = vadd.f32 0.0, %v5432
      %v5434 = vpop.f32.mrf.mxu0
      %5435 = vmatprep.mubr.bf16.mxu0 0
      %5436 = vmatmul.mubr.bf16.gmra.mxu0 %v5244
      %v5437 = vpop.f32.mrf.mxu0
      %v5438 = vpop.f32.mrf.mxu0
      %v5439 = vpop.f32.mrf.mxu0
      %v5440 = vpop.f32.mrf.mxu0
      %5441 = vmatprep.mubr.bf16.mxu0 0
      %5442 = vmatmul.mubr.bf16.gmra.mxu0 %v5247
      %v5443 = vpop.f32.mrf.mxu0
      %v5444 = vadd.f32 0.0, %v5443
      %v5445 = vpop.f32.mrf.mxu0
      %v5446 = vpop.f32.mrf.mxu0
      %v5447 = vadd.f32 0.0, %v5446
      %v5448 = vpop.f32.mrf.mxu0
      %5449 = vmatprep.mubr.bf16.mxu0 0
      %5450 = vmatmul.mubr.bf16.gmra.mxu0 %v5250
      %v5451 = vpop.f32.mrf.mxu0
      %v5452 = vpop.f32.mrf.mxu0
      %v5453 = vpop.f32.mrf.mxu0
      %v5454 = vpop.f32.mrf.mxu0
      %5455 = vmatprep.mubr.bf16.mxu0 0
      %5456 = vmatmul.mubr.bf16.gmra.mxu0 %v5253
      %v5457 = vpop.f32.mrf.mxu0
      %v5458 = vadd.f32 0.0, %v5457
      %v5459 = vpop.f32.mrf.mxu0
      %v5460 = vpop.f32.mrf.mxu0
      %v5461 = vadd.f32 0.0, %v5460
      %v5462 = vpop.f32.mrf.mxu0
      %5463 = vmatprep.mubr.bf16.mxu0 0
      %5464 = vmatmul.mubr.bf16.gmra.mxu0 %v5256
      %v5465 = vpop.f32.mrf.mxu0
      %v5466 = vpop.f32.mrf.mxu0
      %v5467 = vpop.f32.mrf.mxu0
      %v5468 = vpop.f32.mrf.mxu0
      %5469 = vmatprep.mubr.bf16.mxu0 0
      %5470 = vmatmul.mubr.bf16.gmra.mxu0 %v5259
      %v5471 = vpop.f32.mrf.mxu0
      %v5472 = vadd.f32 0.0, %v5471
      %v5473 = vpop.f32.mrf.mxu0
      %v5474 = vpop.f32.mrf.mxu0
      %v5475 = vadd.f32 0.0, %v5474
      %v5476 = vpop.f32.mrf.mxu0
      %5477 = vmatprep.mubr.bf16.mxu0 0
      %5478 = vmatmul.mubr.bf16.gmra.mxu0 %v5262
      %v5479 = vpop.f32.mrf.mxu0
      %v5480 = vpop.f32.mrf.mxu0
      %v5481 = vpop.f32.mrf.mxu0
      %v5482 = vpop.f32.mrf.mxu0
      %5483 = vmatprep.mubr.bf16.mxu0 0
      %5484 = vmatmul.mubr.bf16.gmra.mxu0 %v5265
      %v5485 = vpop.f32.mrf.mxu0
      %v5486 = vadd.f32 0.0, %v5485
      %v5487 = vpop.f32.mrf.mxu0
      %v5488 = vpop.f32.mrf.mxu0
      %v5489 = vadd.f32 0.0, %v5488
      %v5490 = vpop.f32.mrf.mxu0
      %5491 = vmatprep.mubr.bf16.mxu0 0
      %5492 = vmatmul.mubr.bf16.gmra.mxu0 %v5268
      %v5493 = vpop.f32.mrf.mxu0
      %v5494 = vpop.f32.mrf.mxu0
      %v5495 = vpop.f32.mrf.mxu0
      %v5496 = vpop.f32.mrf.mxu0
      %5497 = vmatprep.mubr.bf16.mxu0 0
      %5498 = vmatmul.mubr.bf16.gmra.mxu0 %v5271
      %v5499 = vpop.f32.mrf.mxu0
      %v5500 = vadd.f32 0.0, %v5499
      %v5501 = vpop.f32.mrf.mxu0
      %v5502 = vpop.f32.mrf.mxu0
      %v5503 = vadd.f32 0.0, %v5502
      %v5504 = vpop.f32.mrf.mxu0
      %5505 = vmatprep.mubr.bf16.mxu0 0
      %5506 = vmatmul.mubr.bf16.gmra.mxu0 %v5274
      %v5507 = vpop.f32.mrf.mxu0
      %v5508 = vpop.f32.mrf.mxu0
      %v5509 = vpop.f32.mrf.mxu0
      %v5510 = vpop.f32.mrf.mxu0
      %5511 = vmatprep.mubr.bf16.mxu0 0
      %5512 = vmatmul.mubr.bf16.gmra.mxu0 %v5277
      %v5513 = vpop.f32.mrf.mxu0
      %v5514 = vadd.f32 0.0, %v5513
      %v5515 = vpop.f32.mrf.mxu0
      %v5516 = vpop.f32.mrf.mxu0
      %v5517 = vadd.f32 0.0, %v5516
      %v5518 = vpop.f32.mrf.mxu0
      %5519 = vmatprep.mubr.bf16.mxu0 0
      %5520 = vmatmul.mubr.bf16.gmra.mxu0 %v5280
      %v5521 = vpop.f32.mrf.mxu0
      %v5522 = vpop.f32.mrf.mxu0
      %v5523 = vpop.f32.mrf.mxu0
      %v5524 = vpop.f32.mrf.mxu0
      %5525 = vmatprep.mubr.bf16.mxu0 0
      %5526 = vmatmul.mubr.bf16.gmra.mxu0 %v5283
      %v5527 = vpop.f32.mrf.mxu0
      %v5528 = vadd.f32 0.0, %v5527
      %v5529 = vpop.f32.mrf.mxu0
      %v5530 = vpop.f32.mrf.mxu0
      %v5531 = vadd.f32 0.0, %v5530
      %v5532 = vpop.f32.mrf.mxu0
      %5533 = vmatprep.mubr.bf16.mxu0 0
      %5534 = vmatmul.mubr.bf16.gmra.mxu0 %v5286
      %v5535 = vpop.f32.mrf.mxu0
      %v5536 = vpop.f32.mrf.mxu0
      %v5537 = vpop.f32.mrf.mxu0
      %v5538 = vpop.f32.mrf.mxu0
      %5539 = vmatprep.mubr.bf16.mxu0 0
      %5540 = vmatmul.mubr.bf16.gmra.mxu0 %v5289
      %v5541 = vpop.f32.mrf.mxu0
      %v5542 = vadd.f32 0.0, %v5541
      %v5543 = vpop.f32.mrf.mxu0
      %v5544 = vpop.f32.mrf.mxu0
      %v5545 = vadd.f32 0.0, %v5544
      %v5546 = vpop.f32.mrf.mxu0
      %5547 = vmatprep.mubr.bf16.mxu0 0
      %5548 = vmatmul.mubr.bf16.gmra.mxu0 %v5292
      %v5549 = vpop.f32.mrf.mxu0
      %v5550 = vpop.f32.mrf.mxu0
      %v5551 = vpop.f32.mrf.mxu0
      %v5552 = vpop.f32.mrf.mxu0
      %5553 = vdwg.mxu0
      %v5554 = vadd.f32 %v3911, %v5332
      %v5555 = vadd.f32 %v3914, %v5335
      %v5556 = vadd.f32 %v3925, %v5346
      %v5557 = vadd.f32 %v3928, %v5349
      %v5558 = vadd.f32 %v3939, %v5360
      %v5559 = vadd.f32 %v3942, %v5363
      %v5560 = vadd.f32 %v3953, %v5374
      %v5561 = vadd.f32 %v3956, %v5377
      %v5562 = vadd.f32 %v3967, %v5388
      %v5563 = vadd.f32 %v3970, %v5391
      %v5564 = vadd.f32 %v3981, %v5402
      %v5565 = vadd.f32 %v3984, %v5405
      %v5566 = vadd.f32 %v3995, %v5416
      %v5567 = vadd.f32 %v3998, %v5419
      %v5568 = vadd.f32 %v4009, %v5430
      %v5569 = vadd.f32 %v4012, %v5433
      %v5570 = vadd.f32 %v4023, %v5444
      %v5571 = vadd.f32 %v4026, %v5447
      %v5572 = vadd.f32 %v4037, %v5458
      %v5573 = vadd.f32 %v4040, %v5461
      %v5574 = vadd.f32 %v4051, %v5472
      %v5575 = vadd.f32 %v4054, %v5475
      %v5576 = vadd.f32 %v4065, %v5486
      %v5577 = vadd.f32 %v4068, %v5489
      %v5578 = vadd.f32 %v4079, %v5500
      %v5579 = vadd.f32 %v4082, %v5503
      %v5580 = vadd.f32 %v4093, %v5514
      %v5581 = vadd.f32 %v4096, %v5517
      %v5582 = vadd.f32 %v4107, %v5528
      %v5583 = vadd.f32 %v4110, %v5531
      %v5584 = vadd.f32 %v4121, %v5542
      %v5585 = vadd.f32 %v4124, %v5545
      %v5586 = vld [vmem:[%s4] sm:$0x1]
      %v5588 = vlaneseq
      %v5589 = vshrl.u32 %v5588, 7
      %v5590 = vsub.s32 0, %v5589
      %v5591 = vrot.slane %v5586, %v5590
      %v5593 = vadd.f32 %v5554, %v5591
      %v5594 = vadd.f32 %v5555, %v5591
      %v5595 = vadd.f32 %v5556, %v5591
      %v5596 = vadd.f32 %v5557, %v5591
      %v5597 = vadd.f32 %v5558, %v5591
      %v5598 = vadd.f32 %v5559, %v5591
      %v5599 = vadd.f32 %v5560, %v5591
      %v5600 = vadd.f32 %v5561, %v5591
      %v5601 = vadd.f32 %v5562, %v5591
      %v5602 = vadd.f32 %v5563, %v5591
      %v5603 = vadd.f32 %v5564, %v5591
      %v5604 = vadd.f32 %v5565, %v5591
      %v5605 = vadd.f32 %v5566, %v5591
      %v5606 = vadd.f32 %v5567, %v5591
      %v5607 = vadd.f32 %v5568, %v5591
      %v5608 = vadd.f32 %v5569, %v5591
      %v5609 = vadd.f32 %v5570, %v5591
      %v5610 = vadd.f32 %v5571, %v5591
      %v5611 = vadd.f32 %v5572, %v5591
      %v5612 = vadd.f32 %v5573, %v5591
      %v5613 = vadd.f32 %v5574, %v5591
      %v5614 = vadd.f32 %v5575, %v5591
      %v5615 = vadd.f32 %v5576, %v5591
      %v5616 = vadd.f32 %v5577, %v5591
      %v5617 = vadd.f32 %v5578, %v5591
      %v5618 = vadd.f32 %v5579, %v5591
      %v5619 = vadd.f32 %v5580, %v5591
      %v5620 = vadd.f32 %v5581, %v5591
      %v5621 = vadd.f32 %v5582, %v5591
      %v5622 = vadd.f32 %v5583, %v5591
      %v5623 = vadd.f32 %v5584, %v5591
      %v5624 = vadd.f32 %v5585, %v5591
      %v5625 = vxor.u32 %v5593, 2147483648
      %v5626 = vxor.u32 %v5594, 2147483648
      %v5627 = vxor.u32 %v5595, 2147483648
      %v5628 = vxor.u32 %v5596, 2147483648
      %v5629 = vxor.u32 %v5597, 2147483648
      %v5630 = vxor.u32 %v5598, 2147483648
      %v5631 = vxor.u32 %v5599, 2147483648
      %v5632 = vxor.u32 %v5600, 2147483648
      %v5633 = vxor.u32 %v5601, 2147483648
      %v5634 = vxor.u32 %v5602, 2147483648
      %v5635 = vxor.u32 %v5603, 2147483648
      %v5636 = vxor.u32 %v5604, 2147483648
      %v5637 = vxor.u32 %v5605, 2147483648
      %v5638 = vxor.u32 %v5606, 2147483648
      %v5639 = vxor.u32 %v5607, 2147483648
      %v5640 = vxor.u32 %v5608, 2147483648
      %v5641 = vxor.u32 %v5609, 2147483648
      %v5642 = vxor.u32 %v5610, 2147483648
      %v5643 = vxor.u32 %v5611, 2147483648
      %v5644 = vxor.u32 %v5612, 2147483648
      %v5645 = vxor.u32 %v5613, 2147483648
      %v5646 = vxor.u32 %v5614, 2147483648
      %v5647 = vxor.u32 %v5615, 2147483648
      %v5648 = vxor.u32 %v5616, 2147483648
      %v5649 = vxor.u32 %v5617, 2147483648
      %v5650 = vxor.u32 %v5618, 2147483648
      %v5651 = vxor.u32 %v5619, 2147483648
      %v5652 = vxor.u32 %v5620, 2147483648
      %v5653 = vxor.u32 %v5621, 2147483648
      %v5654 = vxor.u32 %v5622, 2147483648
      %v5655 = vxor.u32 %v5623, 2147483648
      %v5656 = vxor.u32 %v5624, 2147483648
      %v5657 = vmul.f32 %v5625, 1.442695
      %v5658 = vpow.pop %v5657
      %v5659 = vmul.f32 %v5626, 1.442695
      %v5660 = vpow.pop %v5659
      %v5661 = vmul.f32 %v5627, 1.442695
      %v5662 = vpow.pop %v5661
      %v5663 = vmul.f32 %v5628, 1.442695
      %v5664 = vpow.pop %v5663
      %v5665 = vmul.f32 %v5629, 1.442695
      %v5666 = vpow.pop %v5665
      %v5667 = vmul.f32 %v5630, 1.442695
      %v5668 = vpow.pop %v5667
      %v5669 = vmul.f32 %v5631, 1.442695
      %v5670 = vpow.pop %v5669
      %v5671 = vmul.f32 %v5632, 1.442695
      %v5672 = vpow.pop %v5671
      %v5673 = vmul.f32 %v5633, 1.442695
      %v5674 = vpow.pop %v5673
      %v5675 = vmul.f32 %v5634, 1.442695
      %v5676 = vpow.pop %v5675
      %v5677 = vmul.f32 %v5635, 1.442695
      %v5678 = vpow.pop %v5677
      %v5679 = vmul.f32 %v5636, 1.442695
      %v5680 = vpow.pop %v5679
      %v5681 = vmul.f32 %v5637, 1.442695
      %v5682 = vpow.pop %v5681
      %v5683 = vmul.f32 %v5638, 1.442695
      %v5684 = vpow.pop %v5683
      %v5685 = vmul.f32 %v5639, 1.442695
      %v5686 = vpow.pop %v5685
      %v5687 = vmul.f32 %v5640, 1.442695
      %v5688 = vpow.pop %v5687
      %v5689 = vmul.f32 %v5641, 1.442695
      %v5690 = vpow.pop %v5689
      %v5691 = vmul.f32 %v5642, 1.442695
      %v5692 = vpow.pop %v5691
      %v5693 = vmul.f32 %v5643, 1.442695
      %v5694 = vpow.pop %v5693
      %v5695 = vmul.f32 %v5644, 1.442695
      %v5696 = vpow.pop %v5695
      %v5697 = vmul.f32 %v5645, 1.442695
      %v5698 = vpow.pop %v5697
      %v5699 = vmul.f32 %v5646, 1.442695
      %v5700 = vpow.pop %v5699
      %v5701 = vmul.f32 %v5647, 1.442695
      %v5702 = vpow.pop %v5701
      %v5703 = vmul.f32 %v5648, 1.442695
      %v5704 = vpow.pop %v5703
      %v5705 = vmul.f32 %v5649, 1.442695
      %v5706 = vpow.pop %v5705
      %v5707 = vmul.f32 %v5650, 1.442695
      %v5708 = vpow.pop %v5707
      %v5709 = vmul.f32 %v5651, 1.442695
      %v5710 = vpow.pop %v5709
      %v5711 = vmul.f32 %v5652, 1.442695
      %v5712 = vpow.pop %v5711
      %v5713 = vmul.f32 %v5653, 1.442695
      %v5714 = vpow.pop %v5713
      %v5715 = vmul.f32 %v5654, 1.442695
      %v5716 = vpow.pop %v5715
      %v5717 = vmul.f32 %v5655, 1.442695
      %v5718 = vpow.pop %v5717
      %v5719 = vmul.f32 %v5656, 1.442695
      %v5720 = vpow.pop %v5719
      %v5721 = vadd.f32 %v5658, 1.0
      %v5722 = vadd.f32 %v5660, 1.0
      %v5723 = vadd.f32 %v5662, 1.0
      %v5724 = vadd.f32 %v5664, 1.0
      %v5725 = vadd.f32 %v5666, 1.0
      %v5726 = vadd.f32 %v5668, 1.0
      %v5727 = vadd.f32 %v5670, 1.0
      %v5728 = vadd.f32 %v5672, 1.0
      %v5729 = vadd.f32 %v5674, 1.0
      %v5730 = vadd.f32 %v5676, 1.0
      %v5731 = vadd.f32 %v5678, 1.0
      %v5732 = vadd.f32 %v5680, 1.0
      %v5733 = vadd.f32 %v5682, 1.0
      %v5734 = vadd.f32 %v5684, 1.0
      %v5735 = vadd.f32 %v5686, 1.0
      %v5736 = vadd.f32 %v5688, 1.0
      %v5737 = vadd.f32 %v5690, 1.0
      %v5738 = vadd.f32 %v5692, 1.0
      %v5739 = vadd.f32 %v5694, 1.0
      %v5740 = vadd.f32 %v5696, 1.0
      %v5741 = vadd.f32 %v5698, 1.0
      %v5742 = vadd.f32 %v5700, 1.0
      %v5743 = vadd.f32 %v5702, 1.0
      %v5744 = vadd.f32 %v5704, 1.0
      %v5745 = vadd.f32 %v5706, 1.0
      %v5746 = vadd.f32 %v5708, 1.0
      %v5747 = vadd.f32 %v5710, 1.0
      %v5748 = vadd.f32 %v5712, 1.0
      %v5749 = vadd.f32 %v5714, 1.0
      %v5750 = vadd.f32 %v5716, 1.0
      %v5751 = vadd.f32 %v5718, 1.0
      %v5752 = vadd.f32 %v5720, 1.0
      %v5753 = vrcp.pop %v5721
      %v5754 = vmul.f32 1.0, %v5753
      %v5755 = vrcp.pop %v5722
      %v5756 = vmul.f32 1.0, %v5755
      %v5757 = vrcp.pop %v5723
      %v5758 = vmul.f32 1.0, %v5757
      %v5759 = vrcp.pop %v5724
      %v5760 = vmul.f32 1.0, %v5759
      %v5761 = vrcp.pop %v5725
      %v5762 = vmul.f32 1.0, %v5761
      %v5763 = vrcp.pop %v5726
      %v5764 = vmul.f32 1.0, %v5763
      %v5765 = vrcp.pop %v5727
      %v5766 = vmul.f32 1.0, %v5765
      %v5767 = vrcp.pop %v5728
      %v5768 = vmul.f32 1.0, %v5767
      %v5769 = vrcp.pop %v5729
      %v5770 = vmul.f32 1.0, %v5769
      %v5771 = vrcp.pop %v5730
      %v5772 = vmul.f32 1.0, %v5771
      %v5773 = vrcp.pop %v5731
      %v5774 = vmul.f32 1.0, %v5773
      %v5775 = vrcp.pop %v5732
      %v5776 = vmul.f32 1.0, %v5775
      %v5777 = vrcp.pop %v5733
      %v5778 = vmul.f32 1.0, %v5777
      %v5779 = vrcp.pop %v5734
      %v5780 = vmul.f32 1.0, %v5779
      %v5781 = vrcp.pop %v5735
      %v5782 = vmul.f32 1.0, %v5781
      %v5783 = vrcp.pop %v5736
      %v5784 = vmul.f32 1.0, %v5783
      %v5785 = vrcp.pop %v5737
      %v5786 = vmul.f32 1.0, %v5785
      %v5787 = vrcp.pop %v5738
      %v5788 = vmul.f32 1.0, %v5787
      %v5789 = vrcp.pop %v5739
      %v5790 = vmul.f32 1.0, %v5789
      %v5791 = vrcp.pop %v5740
      %v5792 = vmul.f32 1.0, %v5791
      %v5793 = vrcp.pop %v5741
      %v5794 = vmul.f32 1.0, %v5793
      %v5795 = vrcp.pop %v5742
      %v5796 = vmul.f32 1.0, %v5795
      %v5797 = vrcp.pop %v5743
      %v5798 = vmul.f32 1.0, %v5797
      %v5799 = vrcp.pop %v5744
      %v5800 = vmul.f32 1.0, %v5799
      %v5801 = vrcp.pop %v5745
      %v5802 = vmul.f32 1.0, %v5801
      %v5803 = vrcp.pop %v5746
      %v5804 = vmul.f32 1.0, %v5803
      %v5805 = vrcp.pop %v5747
      %v5806 = vmul.f32 1.0, %v5805
      %v5807 = vrcp.pop %v5748
      %v5808 = vmul.f32 1.0, %v5807
      %v5809 = vrcp.pop %v5749
      %v5810 = vmul.f32 1.0, %v5809
      %v5811 = vrcp.pop %v5750
      %v5812 = vmul.f32 1.0, %v5811
      %v5813 = vrcp.pop %v5751
      %v5814 = vmul.f32 1.0, %v5813
      %v5815 = vrcp.pop %v5752
      %v5816 = vmul.f32 1.0, %v5815
      %v5817 = vmul.f32 %v5593, %v5754
      %v5818 = vmul.f32 %v5594, %v5756
      %v5819 = vmul.f32 %v5595, %v5758
      %v5820 = vmul.f32 %v5596, %v5760
      %v5821 = vmul.f32 %v5597, %v5762
      %v5822 = vmul.f32 %v5598, %v5764
      %v5823 = vmul.f32 %v5599, %v5766
      %v5824 = vmul.f32 %v5600, %v5768
      %v5825 = vmul.f32 %v5601, %v5770
      %v5826 = vmul.f32 %v5602, %v5772
      %v5827 = vmul.f32 %v5603, %v5774
      %v5828 = vmul.f32 %v5604, %v5776
      %v5829 = vmul.f32 %v5605, %v5778
      %v5830 = vmul.f32 %v5606, %v5780
      %v5831 = vmul.f32 %v5607, %v5782
      %v5832 = vmul.f32 %v5608, %v5784
      %v5833 = vmul.f32 %v5609, %v5786
      %v5834 = vmul.f32 %v5610, %v5788
      %v5835 = vmul.f32 %v5611, %v5790
      %v5836 = vmul.f32 %v5612, %v5792
      %v5837 = vmul.f32 %v5613, %v5794
      %v5838 = vmul.f32 %v5614, %v5796
      %v5839 = vmul.f32 %v5615, %v5798
      %v5840 = vmul.f32 %v5616, %v5800
      %v5841 = vmul.f32 %v5617, %v5802
      %v5842 = vmul.f32 %v5618, %v5804
      %v5843 = vmul.f32 %v5619, %v5806
      %v5844 = vmul.f32 %v5620, %v5808
      %v5845 = vmul.f32 %v5621, %v5810
      %v5846 = vmul.f32 %v5622, %v5812
      %v5847 = vmul.f32 %v5623, %v5814
      %v5848 = vmul.f32 %v5624, %v5816
      %v5849 = vpack.c.bf16 %v5818, %v5817
      %v5850 = vpack.c.bf16 %v5820, %v5819
      %v5851 = vpack.c.bf16 %v5822, %v5821
      %v5852 = vpack.c.bf16 %v5824, %v5823
      %v5853 = vpack.c.bf16 %v5826, %v5825
      %v5854 = vpack.c.bf16 %v5828, %v5827
      %v5855 = vpack.c.bf16 %v5830, %v5829
      %v5856 = vpack.c.bf16 %v5832, %v5831
      %v5857 = vpack.c.bf16 %v5834, %v5833
      %v5858 = vpack.c.bf16 %v5836, %v5835
      %v5859 = vpack.c.bf16 %v5838, %v5837
      %v5860 = vpack.c.bf16 %v5840, %v5839
      %v5861 = vpack.c.bf16 %v5842, %v5841
      %v5862 = vpack.c.bf16 %v5844, %v5843
      %v5863 = vpack.c.bf16 %v5846, %v5845
      %v5864 = vpack.c.bf16 %v5848, %v5847
      %v5881 = vunpack.c.l.b16 %v5849
      %v5882 = vunpack.c.h.b16 %v5849
      %v5883 = vunpack.c.l.b16 %v5850
      %v5884 = vunpack.c.h.b16 %v5850
      %v5885 = vunpack.c.l.b16 %v5851
      %v5886 = vunpack.c.h.b16 %v5851
      %v5887 = vunpack.c.l.b16 %v5852
      %v5888 = vunpack.c.h.b16 %v5852
      %v5889 = vunpack.c.l.b16 %v5853
      %v5890 = vunpack.c.h.b16 %v5853
      %v5891 = vunpack.c.l.b16 %v5854
      %v5892 = vunpack.c.h.b16 %v5854
      %v5893 = vunpack.c.l.b16 %v5855
      %v5894 = vunpack.c.h.b16 %v5855
      %v5895 = vunpack.c.l.b16 %v5856
      %v5896 = vunpack.c.h.b16 %v5856
      %v5897 = vunpack.c.l.b16 %v5857
      %v5898 = vunpack.c.h.b16 %v5857
      %v5899 = vunpack.c.l.b16 %v5858
      %v5900 = vunpack.c.h.b16 %v5858
      %v5901 = vunpack.c.l.b16 %v5859
      %v5902 = vunpack.c.h.b16 %v5859
      %v5903 = vunpack.c.l.b16 %v5860
      %v5904 = vunpack.c.h.b16 %v5860
      %v5905 = vunpack.c.l.b16 %v5861
      %v5906 = vunpack.c.h.b16 %v5861
      %v5907 = vunpack.c.l.b16 %v5862
      %v5908 = vunpack.c.h.b16 %v5862
      %v5909 = vunpack.c.l.b16 %v5863
      %v5910 = vunpack.c.h.b16 %v5863
      %v5911 = vunpack.c.l.b16 %v5864
      %v5912 = vunpack.c.h.b16 %v5864
      %v5913 = vpack.c.b16 %v5881, %v5881
      %v5914 = vpack.c.b16 %v5882, %v5882
      %v5915 = vpack.c.b16 %v5883, %v5883
      %v5916 = vpack.c.b16 %v5884, %v5884
      %v5917 = vpack.c.b16 %v5885, %v5885
      %v5918 = vpack.c.b16 %v5886, %v5886
      %v5919 = vpack.c.b16 %v5887, %v5887
      %v5920 = vpack.c.b16 %v5888, %v5888
      %v5921 = vpack.c.b16 %v5889, %v5889
      %v5922 = vpack.c.b16 %v5890, %v5890
      %v5923 = vpack.c.b16 %v5891, %v5891
      %v5924 = vpack.c.b16 %v5892, %v5892
      %v5925 = vpack.c.b16 %v5893, %v5893
      %v5926 = vpack.c.b16 %v5894, %v5894
      %v5927 = vpack.c.b16 %v5895, %v5895
      %v5928 = vpack.c.b16 %v5896, %v5896
      %v5929 = vpack.c.b16 %v5897, %v5897
      %v5930 = vpack.c.b16 %v5898, %v5898
      %v5931 = vpack.c.b16 %v5899, %v5899
      %v5932 = vpack.c.b16 %v5900, %v5900
      %v5933 = vpack.c.b16 %v5901, %v5901
      %v5934 = vpack.c.b16 %v5902, %v5902
      %v5935 = vpack.c.b16 %v5903, %v5903
      %v5936 = vpack.c.b16 %v5904, %v5904
      %v5937 = vpack.c.b16 %v5905, %v5905
      %v5938 = vpack.c.b16 %v5906, %v5906
      %v5939 = vpack.c.b16 %v5907, %v5907
      %v5940 = vpack.c.b16 %v5908, %v5908
      %v5941 = vpack.c.b16 %v5909, %v5909
      %v5942 = vpack.c.b16 %v5910, %v5910
      %v5943 = vpack.c.b16 %v5911, %v5911
      %v5944 = vpack.c.b16 %v5912, %v5912
      %5977 = vst.msk [vmem:[%s344] sm:$0xf] %vm334, %v5913
      %5978 = vst.msk [vmem:[%s344 + $0x4] sm:$0xf] %vm334, %v5914
      %5979 = vst.msk [vmem:[%s344 + $0x10] sm:$0xf] %vm334, %v5915
      %5980 = vst.msk [vmem:[%s344 + $0x14] sm:$0xf] %vm334, %v5916
      %5981 = vst.msk [vmem:[%s344 + $0x20] sm:$0xf] %vm334, %v5917
      %5982 = vst.msk [vmem:[%s344 + $0x24] sm:$0xf] %vm334, %v5918
      %5983 = vst.msk [vmem:[%s344 + $0x30] sm:$0xf] %vm334, %v5919
      %5984 = vst.msk [vmem:[%s344 + $0x34] sm:$0xf] %vm334, %v5920
      %5985 = vst.msk [vmem:[%s344 + $0x40] sm:$0xf] %vm334, %v5921
      %5986 = vst.msk [vmem:[%s344 + $0x44] sm:$0xf] %vm334, %v5922
      %5987 = vst.msk [vmem:[%s344 + $0x50] sm:$0xf] %vm334, %v5923
      %5988 = vst.msk [vmem:[%s344 + $0x54] sm:$0xf] %vm334, %v5924
      %5989 = vst.msk [vmem:[%s344 + $0x60] sm:$0xf] %vm334, %v5925
      %5990 = vst.msk [vmem:[%s344 + $0x64] sm:$0xf] %vm334, %v5926
      %5991 = vst.msk [vmem:[%s344 + $0x70] sm:$0xf] %vm334, %v5927
      %5992 = vst.msk [vmem:[%s344 + $0x74] sm:$0xf] %vm334, %v5928
      %5993 = vst.msk [vmem:[%s344 + $0x80] sm:$0xf] %vm334, %v5929
      %5994 = vst.msk [vmem:[%s344 + $0x84] sm:$0xf] %vm334, %v5930
      %5995 = vst.msk [vmem:[%s344 + $0x90] sm:$0xf] %vm334, %v5931
      %5996 = vst.msk [vmem:[%s344 + $0x94] sm:$0xf] %vm334, %v5932
      %5997 = vst.msk [vmem:[%s344 + $0xa0] sm:$0xf] %vm334, %v5933
      %5998 = vst.msk [vmem:[%s344 + $0xa4] sm:$0xf] %vm334, %v5934
      %5999 = vst.msk [vmem:[%s344 + $0xb0] sm:$0xf] %vm334, %v5935
      %6000 = vst.msk [vmem:[%s344 + $0xb4] sm:$0xf] %vm334, %v5936
      %6001 = vst.msk [vmem:[%s344 + $0xc0] sm:$0xf] %vm334, %v5937
      %6002 = vst.msk [vmem:[%s344 + $0xc4] sm:$0xf] %vm334, %v5938
      %6003 = vst.msk [vmem:[%s344 + $0xd0] sm:$0xf] %vm334, %v5939
      %6004 = vst.msk [vmem:[%s344 + $0xd4] sm:$0xf] %vm334, %v5940
      %6005 = vst.msk [vmem:[%s344 + $0xe0] sm:$0xf] %vm334, %v5941
      %6006 = vst.msk [vmem:[%s344 + $0xe4] sm:$0xf] %vm334, %v5942
      %6007 = vst.msk [vmem:[%s344 + $0xf0] sm:$0xf] %vm334, %v5943
      %6008 = vst.msk [vmem:[%s344 + $0xf4] sm:$0xf] %vm334, %v5944
      %v6009 = vld [vmem:[#allocation2] sm:$0xf]
      %v6010 = vld [vmem:[#allocation2 + $0x4] sm:$0xf]
      %v6011 = vld [vmem:[#allocation2 + $0x8] sm:$0xf]
      %v6012 = vld [vmem:[#allocation2 + $0xc] sm:$0xf]
      %v6013 = vld [vmem:[#allocation2 + $0x10] sm:$0xf]
      %v6014 = vld [vmem:[#allocation2 + $0x14] sm:$0xf]
      %v6015 = vld [vmem:[#allocation2 + $0x18] sm:$0xf]
      %v6016 = vld [vmem:[#allocation2 + $0x1c] sm:$0xf]
      %v6017 = vld [vmem:[#allocation2 + $0x20] sm:$0xf]
      %v6018 = vld [vmem:[#allocation2 + $0x24] sm:$0xf]
      %v6019 = vld [vmem:[#allocation2 + $0x28] sm:$0xf]
      %v6020 = vld [vmem:[#allocation2 + $0x2c] sm:$0xf]
      %v6021 = vld [vmem:[#allocation2 + $0x30] sm:$0xf]
      %v6022 = vld [vmem:[#allocation2 + $0x34] sm:$0xf]
      %v6023 = vld [vmem:[#allocation2 + $0x38] sm:$0xf]
      %v6024 = vld [vmem:[#allocation2 + $0x3c] sm:$0xf]
      %v6025 = vld [vmem:[#allocation2 + $0x40] sm:$0xf]
      %v6026 = vld [vmem:[#allocation2 + $0x44] sm:$0xf]
      %v6027 = vld [vmem:[#allocation2 + $0x48] sm:$0xf]
      %v6028 = vld [vmem:[#allocation2 + $0x4c] sm:$0xf]
      %v6029 = vld [vmem:[#allocation2 + $0x50] sm:$0xf]
      %v6030 = vld [vmem:[#allocation2 + $0x54] sm:$0xf]
      %v6031 = vld [vmem:[#allocation2 + $0x58] sm:$0xf]
      %v6032 = vld [vmem:[#allocation2 + $0x5c] sm:$0xf]
      %v6033 = vld [vmem:[#allocation2 + $0x60] sm:$0xf]
      %v6034 = vld [vmem:[#allocation2 + $0x64] sm:$0xf]
      %v6035 = vld [vmem:[#allocation2 + $0x68] sm:$0xf]
      %v6036 = vld [vmem:[#allocation2 + $0x6c] sm:$0xf]
      %v6037 = vld [vmem:[#allocation2 + $0x70] sm:$0xf]
      %v6038 = vld [vmem:[#allocation2 + $0x74] sm:$0xf]
      %v6039 = vld [vmem:[#allocation2 + $0x78] sm:$0xf]
      %v6040 = vld [vmem:[#allocation2 + $0x7c] sm:$0xf]
      %v6041 = vld [vmem:[#allocation2 + $0x80] sm:$0xf]
      %v6042 = vld [vmem:[#allocation2 + $0x84] sm:$0xf]
      %v6043 = vld [vmem:[#allocation2 + $0x88] sm:$0xf]
      %v6044 = vld [vmem:[#allocation2 + $0x8c] sm:$0xf]
      %v6045 = vld [vmem:[#allocation2 + $0x90] sm:$0xf]
      %v6046 = vld [vmem:[#allocation2 + $0x94] sm:$0xf]
      %v6047 = vld [vmem:[#allocation2 + $0x98] sm:$0xf]
      %v6048 = vld [vmem:[#allocation2 + $0x9c] sm:$0xf]
      %v6049 = vld [vmem:[#allocation2 + $0xa0] sm:$0xf]
      %v6050 = vld [vmem:[#allocation2 + $0xa4] sm:$0xf]
      %v6051 = vld [vmem:[#allocation2 + $0xa8] sm:$0xf]
      %v6052 = vld [vmem:[#allocation2 + $0xac] sm:$0xf]
      %v6053 = vld [vmem:[#allocation2 + $0xb0] sm:$0xf]
      %v6054 = vld [vmem:[#allocation2 + $0xb4] sm:$0xf]
      %v6055 = vld [vmem:[#allocation2 + $0xb8] sm:$0xf]
      %v6056 = vld [vmem:[#allocation2 + $0xbc] sm:$0xf]
      %v6057 = vld [vmem:[#allocation2 + $0xc0] sm:$0xf]
      %v6058 = vld [vmem:[#allocation2 + $0xc4] sm:$0xf]
      %v6059 = vld [vmem:[#allocation2 + $0xc8] sm:$0xf]
      %v6060 = vld [vmem:[#allocation2 + $0xcc] sm:$0xf]
      %v6061 = vld [vmem:[#allocation2 + $0xd0] sm:$0xf]
      %v6062 = vld [vmem:[#allocation2 + $0xd4] sm:$0xf]
      %v6063 = vld [vmem:[#allocation2 + $0xd8] sm:$0xf]
      %v6064 = vld [vmem:[#allocation2 + $0xdc] sm:$0xf]
      %v6065 = vld [vmem:[#allocation2 + $0xe0] sm:$0xf]
      %v6066 = vld [vmem:[#allocation2 + $0xe4] sm:$0xf]
      %v6067 = vld [vmem:[#allocation2 + $0xe8] sm:$0xf]
      %v6068 = vld [vmem:[#allocation2 + $0xec] sm:$0xf]
      %v6069 = vld [vmem:[#allocation2 + $0xf0] sm:$0xf]
      %v6070 = vld [vmem:[#allocation2 + $0xf4] sm:$0xf]
      %v6071 = vld [vmem:[#allocation2 + $0xf8] sm:$0xf]
      %v6072 = vld [vmem:[#allocation2 + $0xfc] sm:$0xf]
      %v6073 = vunpack.c.l.bf16 %v6009
      %v6074 = vunpack.c.l.bf16 %v6010
      %v6075 = vunpack.c.l.bf16 %v6011
      %v6076 = vunpack.c.l.bf16 %v6012
      %v6077 = vunpack.c.l.bf16 %v6013
      %v6078 = vunpack.c.l.bf16 %v6014
      %v6079 = vunpack.c.l.bf16 %v6015
      %v6080 = vunpack.c.l.bf16 %v6016
      %v6081 = vunpack.c.l.bf16 %v6017
      %v6082 = vunpack.c.l.bf16 %v6018
      %v6083 = vunpack.c.l.bf16 %v6019
      %v6084 = vunpack.c.l.bf16 %v6020
      %v6085 = vunpack.c.l.bf16 %v6021
      %v6086 = vunpack.c.l.bf16 %v6022
      %v6087 = vunpack.c.l.bf16 %v6023
      %v6088 = vunpack.c.l.bf16 %v6024
      %v6089 = vunpack.c.l.bf16 %v6025
      %v6090 = vunpack.c.l.bf16 %v6026
      %v6091 = vunpack.c.l.bf16 %v6027
      %v6092 = vunpack.c.l.bf16 %v6028
      %v6093 = vunpack.c.l.bf16 %v6029
      %v6094 = vunpack.c.l.bf16 %v6030
      %v6095 = vunpack.c.l.bf16 %v6031
      %v6096 = vunpack.c.l.bf16 %v6032
      %v6097 = vunpack.c.l.bf16 %v6033
      %v6098 = vunpack.c.l.bf16 %v6034
      %v6099 = vunpack.c.l.bf16 %v6035
      %v6100 = vunpack.c.l.bf16 %v6036
      %v6101 = vunpack.c.l.bf16 %v6037
      %v6102 = vunpack.c.l.bf16 %v6038
      %v6103 = vunpack.c.l.bf16 %v6039
      %v6104 = vunpack.c.l.bf16 %v6040
      %v6105 = vunpack.c.l.bf16 %v6041
      %v6106 = vunpack.c.l.bf16 %v6042
      %v6107 = vunpack.c.l.bf16 %v6043
      %v6108 = vunpack.c.l.bf16 %v6044
      %v6109 = vunpack.c.l.bf16 %v6045
      %v6110 = vunpack.c.l.bf16 %v6046
      %v6111 = vunpack.c.l.bf16 %v6047
      %v6112 = vunpack.c.l.bf16 %v6048
      %v6113 = vunpack.c.l.bf16 %v6049
      %v6114 = vunpack.c.l.bf16 %v6050
      %v6115 = vunpack.c.l.bf16 %v6051
      %v6116 = vunpack.c.l.bf16 %v6052
      %v6117 = vunpack.c.l.bf16 %v6053
      %v6118 = vunpack.c.l.bf16 %v6054
      %v6119 = vunpack.c.l.bf16 %v6055
      %v6120 = vunpack.c.l.bf16 %v6056
      %v6121 = vunpack.c.l.bf16 %v6057
      %v6122 = vunpack.c.l.bf16 %v6058
      %v6123 = vunpack.c.l.bf16 %v6059
      %v6124 = vunpack.c.l.bf16 %v6060
      %v6125 = vunpack.c.l.bf16 %v6061
      %v6126 = vunpack.c.l.bf16 %v6062
      %v6127 = vunpack.c.l.bf16 %v6063
      %v6128 = vunpack.c.l.bf16 %v6064
      %v6129 = vunpack.c.l.bf16 %v6065
      %v6130 = vunpack.c.l.bf16 %v6066
      %v6131 = vunpack.c.l.bf16 %v6067
      %v6132 = vunpack.c.l.bf16 %v6068
      %v6133 = vunpack.c.l.bf16 %v6069
      %v6134 = vunpack.c.l.bf16 %v6070
      %v6135 = vunpack.c.l.bf16 %v6071
      %v6136 = vunpack.c.l.bf16 %v6072
      %v6137 = vrot.slane %v6073, 7
      %v6138 = vrot.slane %v6074, 7
      %v6139 = vrot.slane %v6075, 7
      %v6140 = vrot.slane %v6076, 7
      %v6141 = vrot.slane %v6077, 7
      %v6142 = vrot.slane %v6078, 7
      %v6143 = vrot.slane %v6079, 7
      %v6144 = vrot.slane %v6080, 7
      %v6145 = vrot.slane %v6081, 7
      %v6146 = vrot.slane %v6082, 7
      %v6147 = vrot.slane %v6083, 7
      %v6148 = vrot.slane %v6084, 7
      %v6149 = vrot.slane %v6085, 7
      %v6150 = vrot.slane %v6086, 7
      %v6151 = vrot.slane %v6087, 7
      %v6152 = vrot.slane %v6088, 7
      %v6153 = vrot.slane %v6089, 7
      %v6154 = vrot.slane %v6090, 7
      %v6155 = vrot.slane %v6091, 7
      %v6156 = vrot.slane %v6092, 7
      %v6157 = vrot.slane %v6093, 7
      %v6158 = vrot.slane %v6094, 7
      %v6159 = vrot.slane %v6095, 7
      %v6160 = vrot.slane %v6096, 7
      %v6161 = vrot.slane %v6097, 7
      %v6162 = vrot.slane %v6098, 7
      %v6163 = vrot.slane %v6099, 7
      %v6164 = vrot.slane %v6100, 7
      %v6165 = vrot.slane %v6101, 7
      %v6166 = vrot.slane %v6102, 7
      %v6167 = vrot.slane %v6103, 7
      %v6168 = vrot.slane %v6104, 7
      %v6169 = vrot.slane %v6105, 7
      %v6170 = vrot.slane %v6106, 7
      %v6171 = vrot.slane %v6107, 7
      %v6172 = vrot.slane %v6108, 7
      %v6173 = vrot.slane %v6109, 7
      %v6174 = vrot.slane %v6110, 7
      %v6175 = vrot.slane %v6111, 7
      %v6176 = vrot.slane %v6112, 7
      %v6177 = vrot.slane %v6113, 7
      %v6178 = vrot.slane %v6114, 7
      %v6179 = vrot.slane %v6115, 7
      %v6180 = vrot.slane %v6116, 7
      %v6181 = vrot.slane %v6117, 7
      %v6182 = vrot.slane %v6118, 7
      %v6183 = vrot.slane %v6119, 7
      %v6184 = vrot.slane %v6120, 7
      %v6185 = vrot.slane %v6121, 7
      %v6186 = vrot.slane %v6122, 7
      %v6187 = vrot.slane %v6123, 7
      %v6188 = vrot.slane %v6124, 7
      %v6189 = vrot.slane %v6125, 7
      %v6190 = vrot.slane %v6126, 7
      %v6191 = vrot.slane %v6127, 7
      %v6192 = vrot.slane %v6128, 7
      %v6193 = vrot.slane %v6129, 7
      %v6194 = vrot.slane %v6130, 7
      %v6195 = vrot.slane %v6131, 7
      %v6196 = vrot.slane %v6132, 7
      %v6197 = vrot.slane %v6133, 7
      %v6198 = vrot.slane %v6134, 7
      %v6199 = vrot.slane %v6135, 7
      %v6200 = vrot.slane %v6136, 7
      %v6201 = vsel %vm1481, %v6199, %v6200
      %v6202 = vsel %vm1481, %v6198, %v6199
      %v6203 = vsel %vm1481, %v6197, %v6198
      %v6204 = vsel %vm1481, %v6196, %v6197
      %v6205 = vsel %vm1481, %v6195, %v6196
      %v6206 = vsel %vm1481, %v6194, %v6195
      %v6207 = vsel %vm1481, %v6193, %v6194
      %v6208 = vsel %vm1481, %v6192, %v6193
      %v6209 = vsel %vm1481, %v6191, %v6192
      %v6210 = vsel %vm1481, %v6190, %v6191
      %v6211 = vsel %vm1481, %v6189, %v6190
      %v6212 = vsel %vm1481, %v6188, %v6189
      %v6213 = vsel %vm1481, %v6187, %v6188
      %v6214 = vsel %vm1481, %v6186, %v6187
      %v6215 = vsel %vm1481, %v6185, %v6186
      %v6216 = vsel %vm1481, %v6184, %v6185
      %v6217 = vsel %vm1481, %v6183, %v6184
      %v6218 = vsel %vm1481, %v6182, %v6183
      %v6219 = vsel %vm1481, %v6181, %v6182
      %v6220 = vsel %vm1481, %v6180, %v6181
      %v6221 = vsel %vm1481, %v6179, %v6180
      %v6222 = vsel %vm1481, %v6178, %v6179
      %v6223 = vsel %vm1481, %v6177, %v6178
      %v6224 = vsel %vm1481, %v6176, %v6177
      %v6225 = vsel %vm1481, %v6175, %v6176
      %v6226 = vsel %vm1481, %v6174, %v6175
      %v6227 = vsel %vm1481, %v6173, %v6174
      %v6228 = vsel %vm1481, %v6172, %v6173
      %v6229 = vsel %vm1481, %v6171, %v6172
      %v6230 = vsel %vm1481, %v6170, %v6171
      %v6231 = vsel %vm1481, %v6169, %v6170
      %v6232 = vsel %vm1481, %v6168, %v6169
      %v6233 = vsel %vm1481, %v6167, %v6168
      %v6234 = vsel %vm1481, %v6166, %v6167
      %v6235 = vsel %vm1481, %v6165, %v6166
      %v6236 = vsel %vm1481, %v6164, %v6165
      %v6237 = vsel %vm1481, %v6163, %v6164
      %v6238 = vsel %vm1481, %v6162, %v6163
      %v6239 = vsel %vm1481, %v6161, %v6162
      %v6240 = vsel %vm1481, %v6160, %v6161
      %v6241 = vsel %vm1481, %v6159, %v6160
      %v6242 = vsel %vm1481, %v6158, %v6159
      %v6243 = vsel %vm1481, %v6157, %v6158
      %v6244 = vsel %vm1481, %v6156, %v6157
      %v6245 = vsel %vm1481, %v6155, %v6156
      %v6246 = vsel %vm1481, %v6154, %v6155
      %v6247 = vsel %vm1481, %v6153, %v6154
      %v6248 = vsel %vm1481, %v6152, %v6153
      %v6249 = vsel %vm1481, %v6151, %v6152
      %v6250 = vsel %vm1481, %v6150, %v6151
      %v6251 = vsel %vm1481, %v6149, %v6150
      %v6252 = vsel %vm1481, %v6148, %v6149
      %v6253 = vsel %vm1481, %v6147, %v6148
      %v6254 = vsel %vm1481, %v6146, %v6147
      %v6255 = vsel %vm1481, %v6145, %v6146
      %v6256 = vsel %vm1481, %v6144, %v6145
      %v6257 = vsel %vm1481, %v6143, %v6144
      %v6258 = vsel %vm1481, %v6142, %v6143
      %v6259 = vsel %vm1481, %v6141, %v6142
      %v6260 = vsel %vm1481, %v6140, %v6141
      %v6261 = vsel %vm1481, %v6139, %v6140
      %v6262 = vsel %vm1481, %v6138, %v6139
      %v6263 = vsel %vm1481, %v6137, %v6138
      %v6264 = vsel %vm1481, %v6200, %v6137
      %v6265 = vrot.slane %v6073, 1
      %v6266 = vrot.slane %v6074, 1
      %v6267 = vrot.slane %v6075, 1
      %v6268 = vrot.slane %v6076, 1
      %v6269 = vrot.slane %v6077, 1
      %v6270 = vrot.slane %v6078, 1
      %v6271 = vrot.slane %v6079, 1
      %v6272 = vrot.slane %v6080, 1
      %v6273 = vrot.slane %v6081, 1
      %v6274 = vrot.slane %v6082, 1
      %v6275 = vrot.slane %v6083, 1
      %v6276 = vrot.slane %v6084, 1
      %v6277 = vrot.slane %v6085, 1
      %v6278 = vrot.slane %v6086, 1
      %v6279 = vrot.slane %v6087, 1
      %v6280 = vrot.slane %v6088, 1
      %v6281 = vrot.slane %v6089, 1
      %v6282 = vrot.slane %v6090, 1
      %v6283 = vrot.slane %v6091, 1
      %v6284 = vrot.slane %v6092, 1
      %v6285 = vrot.slane %v6093, 1
      %v6286 = vrot.slane %v6094, 1
      %v6287 = vrot.slane %v6095, 1
      %v6288 = vrot.slane %v6096, 1
      %v6289 = vrot.slane %v6097, 1
      %v6290 = vrot.slane %v6098, 1
      %v6291 = vrot.slane %v6099, 1
      %v6292 = vrot.slane %v6100, 1
      %v6293 = vrot.slane %v6101, 1
      %v6294 = vrot.slane %v6102, 1
      %v6295 = vrot.slane %v6103, 1
      %v6296 = vrot.slane %v6104, 1
      %v6297 = vrot.slane %v6105, 1
      %v6298 = vrot.slane %v6106, 1
      %v6299 = vrot.slane %v6107, 1
      %v6300 = vrot.slane %v6108, 1
      %v6301 = vrot.slane %v6109, 1
      %v6302 = vrot.slane %v6110, 1
      %v6303 = vrot.slane %v6111, 1
      %v6304 = vrot.slane %v6112, 1
      %v6305 = vrot.slane %v6113, 1
      %v6306 = vrot.slane %v6114, 1
      %v6307 = vrot.slane %v6115, 1
      %v6308 = vrot.slane %v6116, 1
      %v6309 = vrot.slane %v6117, 1
      %v6310 = vrot.slane %v6118, 1
      %v6311 = vrot.slane %v6119, 1
      %v6312 = vrot.slane %v6120, 1
      %v6313 = vrot.slane %v6121, 1
      %v6314 = vrot.slane %v6122, 1
      %v6315 = vrot.slane %v6123, 1
      %v6316 = vrot.slane %v6124, 1
      %v6317 = vrot.slane %v6125, 1
      %v6318 = vrot.slane %v6126, 1
      %v6319 = vrot.slane %v6127, 1
      %v6320 = vrot.slane %v6128, 1
      %v6321 = vrot.slane %v6129, 1
      %v6322 = vrot.slane %v6130, 1
      %v6323 = vrot.slane %v6131, 1
      %v6324 = vrot.slane %v6132, 1
      %v6325 = vrot.slane %v6133, 1
      %v6326 = vrot.slane %v6134, 1
      %v6327 = vrot.slane %v6135, 1
      %v6328 = vrot.slane %v6136, 1
      %v6329 = vsel %vm1610, %v6327, %v6328
      %v6330 = vsel %vm1610, %v6326, %v6327
      %v6331 = vsel %vm1610, %v6325, %v6326
      %v6332 = vsel %vm1610, %v6324, %v6325
      %v6333 = vsel %vm1610, %v6323, %v6324
      %v6334 = vsel %vm1610, %v6322, %v6323
      %v6335 = vsel %vm1610, %v6321, %v6322
      %v6336 = vsel %vm1610, %v6320, %v6321
      %v6337 = vsel %vm1610, %v6319, %v6320
      %v6338 = vsel %vm1610, %v6318, %v6319
      %v6339 = vsel %vm1610, %v6317, %v6318
      %v6340 = vsel %vm1610, %v6316, %v6317
      %v6341 = vsel %vm1610, %v6315, %v6316
      %v6342 = vsel %vm1610, %v6314, %v6315
      %v6343 = vsel %vm1610, %v6313, %v6314
      %v6344 = vsel %vm1610, %v6312, %v6313
      %v6345 = vsel %vm1610, %v6311, %v6312
      %v6346 = vsel %vm1610, %v6310, %v6311
      %v6347 = vsel %vm1610, %v6309, %v6310
      %v6348 = vsel %vm1610, %v6308, %v6309
      %v6349 = vsel %vm1610, %v6307, %v6308
      %v6350 = vsel %vm1610, %v6306, %v6307
      %v6351 = vsel %vm1610, %v6305, %v6306
      %v6352 = vsel %vm1610, %v6304, %v6305
      %v6353 = vsel %vm1610, %v6303, %v6304
      %v6354 = vsel %vm1610, %v6302, %v6303
      %v6355 = vsel %vm1610, %v6301, %v6302
      %v6356 = vsel %vm1610, %v6300, %v6301
      %v6357 = vsel %vm1610, %v6299, %v6300
      %v6358 = vsel %vm1610, %v6298, %v6299
      %v6359 = vsel %vm1610, %v6297, %v6298
      %v6360 = vsel %vm1610, %v6296, %v6297
      %v6361 = vsel %vm1610, %v6295, %v6296
      %v6362 = vsel %vm1610, %v6294, %v6295
      %v6363 = vsel %vm1610, %v6293, %v6294
      %v6364 = vsel %vm1610, %v6292, %v6293
      %v6365 = vsel %vm1610, %v6291, %v6292
      %v6366 = vsel %vm1610, %v6290, %v6291
      %v6367 = vsel %vm1610, %v6289, %v6290
      %v6368 = vsel %vm1610, %v6288, %v6289
      %v6369 = vsel %vm1610, %v6287, %v6288
      %v6370 = vsel %vm1610, %v6286, %v6287
      %v6371 = vsel %vm1610, %v6285, %v6286
      %v6372 = vsel %vm1610, %v6284, %v6285
      %v6373 = vsel %vm1610, %v6283, %v6284
      %v6374 = vsel %vm1610, %v6282, %v6283
      %v6375 = vsel %vm1610, %v6281, %v6282
      %v6376 = vsel %vm1610, %v6280, %v6281
      %v6377 = vsel %vm1610, %v6279, %v6280
      %v6378 = vsel %vm1610, %v6278, %v6279
      %v6379 = vsel %vm1610, %v6277, %v6278
      %v6380 = vsel %vm1610, %v6276, %v6277
      %v6381 = vsel %vm1610, %v6275, %v6276
      %v6382 = vsel %vm1610, %v6274, %v6275
      %v6383 = vsel %vm1610, %v6273, %v6274
      %v6384 = vsel %vm1610, %v6272, %v6273
      %v6385 = vsel %vm1610, %v6271, %v6272
      %v6386 = vsel %vm1610, %v6270, %v6271
      %v6387 = vsel %vm1610, %v6269, %v6270
      %v6388 = vsel %vm1610, %v6268, %v6269
      %v6389 = vsel %vm1610, %v6267, %v6268
      %v6390 = vsel %vm1610, %v6266, %v6267
      %v6391 = vsel %vm1610, %v6265, %v6266
      %v6392 = vsel %vm1610, %v6328, %v6265
      %6457 = vrot.lane.b32.xlu0 %v6073, 4
      %v6458 = vpop.permute.xlu0 %6457
      %6459 = vrot.lane.b32.xlu0 %v6074, 4
      %v6460 = vpop.permute.xlu0 %6459
      %6461 = vrot.lane.b32.xlu0 %v6075, 4
      %v6462 = vpop.permute.xlu0 %6461
      %6463 = vrot.lane.b32.xlu0 %v6076, 4
      %v6464 = vpop.permute.xlu0 %6463
      %6465 = vrot.lane.b32.xlu0 %v6077, 4
      %v6466 = vpop.permute.xlu0 %6465
      %6467 = vrot.lane.b32.xlu0 %v6078, 4
      %v6468 = vpop.permute.xlu0 %6467
      %6469 = vrot.lane.b32.xlu0 %v6079, 4
      %v6470 = vpop.permute.xlu0 %6469
      %6471 = vrot.lane.b32.xlu0 %v6080, 4
      %v6472 = vpop.permute.xlu0 %6471
      %6473 = vrot.lane.b32.xlu0 %v6081, 4
      %v6474 = vpop.permute.xlu0 %6473
      %6475 = vrot.lane.b32.xlu0 %v6082, 4
      %v6476 = vpop.permute.xlu0 %6475
      %6477 = vrot.lane.b32.xlu0 %v6083, 4
      %v6478 = vpop.permute.xlu0 %6477
      %6479 = vrot.lane.b32.xlu0 %v6084, 4
      %v6480 = vpop.permute.xlu0 %6479
      %6481 = vrot.lane.b32.xlu0 %v6085, 4
      %v6482 = vpop.permute.xlu0 %6481
      %6483 = vrot.lane.b32.xlu0 %v6086, 4
      %v6484 = vpop.permute.xlu0 %6483
      %6485 = vrot.lane.b32.xlu0 %v6087, 4
      %v6486 = vpop.permute.xlu0 %6485
      %6487 = vrot.lane.b32.xlu0 %v6088, 4
      %v6488 = vpop.permute.xlu0 %6487
      %6489 = vrot.lane.b32.xlu0 %v6089, 4
      %v6490 = vpop.permute.xlu0 %6489
      %6491 = vrot.lane.b32.xlu0 %v6090, 4
      %v6492 = vpop.permute.xlu0 %6491
      %6493 = vrot.lane.b32.xlu0 %v6091, 4
      %v6494 = vpop.permute.xlu0 %6493
      %6495 = vrot.lane.b32.xlu0 %v6092, 4
      %v6496 = vpop.permute.xlu0 %6495
      %6497 = vrot.lane.b32.xlu0 %v6093, 4
      %v6498 = vpop.permute.xlu0 %6497
      %6499 = vrot.lane.b32.xlu0 %v6094, 4
      %v6500 = vpop.permute.xlu0 %6499
      %6501 = vrot.lane.b32.xlu0 %v6095, 4
      %v6502 = vpop.permute.xlu0 %6501
      %6503 = vrot.lane.b32.xlu0 %v6096, 4
      %v6504 = vpop.permute.xlu0 %6503
      %6505 = vrot.lane.b32.xlu0 %v6097, 4
      %v6506 = vpop.permute.xlu0 %6505
      %6507 = vrot.lane.b32.xlu0 %v6098, 4
      %v6508 = vpop.permute.xlu0 %6507
      %6509 = vrot.lane.b32.xlu0 %v6099, 4
      %v6510 = vpop.permute.xlu0 %6509
      %6511 = vrot.lane.b32.xlu0 %v6100, 4
      %v6512 = vpop.permute.xlu0 %6511
      %6513 = vrot.lane.b32.xlu0 %v6101, 4
      %v6514 = vpop.permute.xlu0 %6513
      %6515 = vrot.lane.b32.xlu0 %v6102, 4
      %v6516 = vpop.permute.xlu0 %6515
      %6517 = vrot.lane.b32.xlu0 %v6103, 4
      %v6518 = vpop.permute.xlu0 %6517
      %6519 = vrot.lane.b32.xlu0 %v6104, 4
      %v6520 = vpop.permute.xlu0 %6519
      %6521 = vrot.lane.b32.xlu0 %v6105, 4
      %v6522 = vpop.permute.xlu0 %6521
      %6523 = vrot.lane.b32.xlu0 %v6106, 4
      %v6524 = vpop.permute.xlu0 %6523
      %6525 = vrot.lane.b32.xlu0 %v6107, 4
      %v6526 = vpop.permute.xlu0 %6525
      %6527 = vrot.lane.b32.xlu0 %v6108, 4
      %v6528 = vpop.permute.xlu0 %6527
      %6529 = vrot.lane.b32.xlu0 %v6109, 4
      %v6530 = vpop.permute.xlu0 %6529
      %6531 = vrot.lane.b32.xlu0 %v6110, 4
      %v6532 = vpop.permute.xlu0 %6531
      %6533 = vrot.lane.b32.xlu0 %v6111, 4
      %v6534 = vpop.permute.xlu0 %6533
      %6535 = vrot.lane.b32.xlu0 %v6112, 4
      %v6536 = vpop.permute.xlu0 %6535
      %6537 = vrot.lane.b32.xlu0 %v6113, 4
      %v6538 = vpop.permute.xlu0 %6537
      %6539 = vrot.lane.b32.xlu0 %v6114, 4
      %v6540 = vpop.permute.xlu0 %6539
      %6541 = vrot.lane.b32.xlu0 %v6115, 4
      %v6542 = vpop.permute.xlu0 %6541
      %6543 = vrot.lane.b32.xlu0 %v6116, 4
      %v6544 = vpop.permute.xlu0 %6543
      %6545 = vrot.lane.b32.xlu0 %v6117, 4
      %v6546 = vpop.permute.xlu0 %6545
      %6547 = vrot.lane.b32.xlu0 %v6118, 4
      %v6548 = vpop.permute.xlu0 %6547
      %6549 = vrot.lane.b32.xlu0 %v6119, 4
      %v6550 = vpop.permute.xlu0 %6549
      %6551 = vrot.lane.b32.xlu0 %v6120, 4
      %v6552 = vpop.permute.xlu0 %6551
      %6553 = vrot.lane.b32.xlu0 %v6121, 4
      %v6554 = vpop.permute.xlu0 %6553
      %6555 = vrot.lane.b32.xlu0 %v6122, 4
      %v6556 = vpop.permute.xlu0 %6555
      %6557 = vrot.lane.b32.xlu0 %v6123, 4
      %v6558 = vpop.permute.xlu0 %6557
      %6559 = vrot.lane.b32.xlu0 %v6124, 4
      %v6560 = vpop.permute.xlu0 %6559
      %6561 = vrot.lane.b32.xlu0 %v6125, 4
      %v6562 = vpop.permute.xlu0 %6561
      %6563 = vrot.lane.b32.xlu0 %v6126, 4
      %v6564 = vpop.permute.xlu0 %6563
      %6565 = vrot.lane.b32.xlu0 %v6127, 4
      %v6566 = vpop.permute.xlu0 %6565
      %6567 = vrot.lane.b32.xlu0 %v6128, 4
      %v6568 = vpop.permute.xlu0 %6567
      %6569 = vrot.lane.b32.xlu0 %v6129, 4
      %v6570 = vpop.permute.xlu0 %6569
      %6571 = vrot.lane.b32.xlu0 %v6130, 4
      %v6572 = vpop.permute.xlu0 %6571
      %6573 = vrot.lane.b32.xlu0 %v6131, 4
      %v6574 = vpop.permute.xlu0 %6573
      %6575 = vrot.lane.b32.xlu0 %v6132, 4
      %v6576 = vpop.permute.xlu0 %6575
      %6577 = vrot.lane.b32.xlu0 %v6133, 4
      %v6578 = vpop.permute.xlu0 %6577
      %6579 = vrot.lane.b32.xlu0 %v6134, 4
      %v6580 = vpop.permute.xlu0 %6579
      %6581 = vrot.lane.b32.xlu0 %v6135, 4
      %v6582 = vpop.permute.xlu0 %6581
      %6583 = vrot.lane.b32.xlu0 %v6136, 4
      %v6584 = vpop.permute.xlu0 %6583
      %6713 = vrot.lane.b32.xlu0 %v6391, 8
      %v6714 = vpop.permute.xlu0 %6713
      %6715 = vrot.lane.b32.xlu0 %v6390, 8
      %v6716 = vpop.permute.xlu0 %6715
      %6717 = vrot.lane.b32.xlu0 %v6389, 8
      %v6718 = vpop.permute.xlu0 %6717
      %6719 = vrot.lane.b32.xlu0 %v6388, 8
      %v6720 = vpop.permute.xlu0 %6719
      %6721 = vrot.lane.b32.xlu0 %v6387, 8
      %v6722 = vpop.permute.xlu0 %6721
      %6723 = vrot.lane.b32.xlu0 %v6386, 8
      %v6724 = vpop.permute.xlu0 %6723
      %6725 = vrot.lane.b32.xlu0 %v6385, 8
      %v6726 = vpop.permute.xlu0 %6725
      %6727 = vrot.lane.b32.xlu0 %v6384, 8
      %v6728 = vpop.permute.xlu0 %6727
      %6729 = vrot.lane.b32.xlu0 %v6383, 8
      %v6730 = vpop.permute.xlu0 %6729
      %6731 = vrot.lane.b32.xlu0 %v6382, 8
      %v6732 = vpop.permute.xlu0 %6731
      %6733 = vrot.lane.b32.xlu0 %v6381, 8
      %v6734 = vpop.permute.xlu0 %6733
      %6735 = vrot.lane.b32.xlu0 %v6380, 8
      %v6736 = vpop.permute.xlu0 %6735
      %6737 = vrot.lane.b32.xlu0 %v6379, 8
      %v6738 = vpop.permute.xlu0 %6737
      %6739 = vrot.lane.b32.xlu0 %v6378, 8
      %v6740 = vpop.permute.xlu0 %6739
      %6741 = vrot.lane.b32.xlu0 %v6377, 8
      %v6742 = vpop.permute.xlu0 %6741
      %6743 = vrot.lane.b32.xlu0 %v6376, 8
      %v6744 = vpop.permute.xlu0 %6743
      %6745 = vrot.lane.b32.xlu0 %v6375, 8
      %v6746 = vpop.permute.xlu0 %6745
      %6747 = vrot.lane.b32.xlu0 %v6374, 8
      %v6748 = vpop.permute.xlu0 %6747
      %6749 = vrot.lane.b32.xlu0 %v6373, 8
      %v6750 = vpop.permute.xlu0 %6749
      %6751 = vrot.lane.b32.xlu0 %v6372, 8
      %v6752 = vpop.permute.xlu0 %6751
      %6753 = vrot.lane.b32.xlu0 %v6371, 8
      %v6754 = vpop.permute.xlu0 %6753
      %6755 = vrot.lane.b32.xlu0 %v6370, 8
      %v6756 = vpop.permute.xlu0 %6755
      %6757 = vrot.lane.b32.xlu0 %v6369, 8
      %v6758 = vpop.permute.xlu0 %6757
      %6759 = vrot.lane.b32.xlu0 %v6368, 8
      %v6760 = vpop.permute.xlu0 %6759
      %6761 = vrot.lane.b32.xlu0 %v6367, 8
      %v6762 = vpop.permute.xlu0 %6761
      %6763 = vrot.lane.b32.xlu0 %v6366, 8
      %v6764 = vpop.permute.xlu0 %6763
      %6765 = vrot.lane.b32.xlu0 %v6365, 8
      %v6766 = vpop.permute.xlu0 %6765
      %6767 = vrot.lane.b32.xlu0 %v6364, 8
      %v6768 = vpop.permute.xlu0 %6767
      %6769 = vrot.lane.b32.xlu0 %v6363, 8
      %v6770 = vpop.permute.xlu0 %6769
      %6771 = vrot.lane.b32.xlu0 %v6362, 8
      %v6772 = vpop.permute.xlu0 %6771
      %6773 = vrot.lane.b32.xlu0 %v6361, 8
      %v6774 = vpop.permute.xlu0 %6773
      %6775 = vrot.lane.b32.xlu0 %v6360, 8
      %v6776 = vpop.permute.xlu0 %6775
      %6777 = vrot.lane.b32.xlu0 %v6359, 8
      %v6778 = vpop.permute.xlu0 %6777
      %6779 = vrot.lane.b32.xlu0 %v6358, 8
      %v6780 = vpop.permute.xlu0 %6779
      %6781 = vrot.lane.b32.xlu0 %v6357, 8
      %v6782 = vpop.permute.xlu0 %6781
      %6783 = vrot.lane.b32.xlu0 %v6356, 8
      %v6784 = vpop.permute.xlu0 %6783
      %6785 = vrot.lane.b32.xlu0 %v6355, 8
      %v6786 = vpop.permute.xlu0 %6785
      %6787 = vrot.lane.b32.xlu0 %v6354, 8
      %v6788 = vpop.permute.xlu0 %6787
      %6789 = vrot.lane.b32.xlu0 %v6353, 8
      %v6790 = vpop.permute.xlu0 %6789
      %6791 = vrot.lane.b32.xlu0 %v6352, 8
      %v6792 = vpop.permute.xlu0 %6791
      %6793 = vrot.lane.b32.xlu0 %v6351, 8
      %v6794 = vpop.permute.xlu0 %6793
      %6795 = vrot.lane.b32.xlu0 %v6350, 8
      %v6796 = vpop.permute.xlu0 %6795
      %6797 = vrot.lane.b32.xlu0 %v6349, 8
      %v6798 = vpop.permute.xlu0 %6797
      %6799 = vrot.lane.b32.xlu0 %v6348, 8
      %v6800 = vpop.permute.xlu0 %6799
      %6801 = vrot.lane.b32.xlu0 %v6347, 8
      %v6802 = vpop.permute.xlu0 %6801
      %6803 = vrot.lane.b32.xlu0 %v6346, 8
      %v6804 = vpop.permute.xlu0 %6803
      %6805 = vrot.lane.b32.xlu0 %v6345, 8
      %v6806 = vpop.permute.xlu0 %6805
      %6807 = vrot.lane.b32.xlu0 %v6344, 8
      %v6808 = vpop.permute.xlu0 %6807
      %6809 = vrot.lane.b32.xlu0 %v6343, 8
      %v6810 = vpop.permute.xlu0 %6809
      %6811 = vrot.lane.b32.xlu0 %v6342, 8
      %v6812 = vpop.permute.xlu0 %6811
      %6813 = vrot.lane.b32.xlu0 %v6341, 8
      %v6814 = vpop.permute.xlu0 %6813
      %6815 = vrot.lane.b32.xlu0 %v6340, 8
      %v6816 = vpop.permute.xlu0 %6815
      %6817 = vrot.lane.b32.xlu0 %v6339, 8
      %v6818 = vpop.permute.xlu0 %6817
      %6819 = vrot.lane.b32.xlu0 %v6338, 8
      %v6820 = vpop.permute.xlu0 %6819
      %6821 = vrot.lane.b32.xlu0 %v6337, 8
      %v6822 = vpop.permute.xlu0 %6821
      %6823 = vrot.lane.b32.xlu0 %v6336, 8
      %v6824 = vpop.permute.xlu0 %6823
      %6825 = vrot.lane.b32.xlu0 %v6335, 8
      %v6826 = vpop.permute.xlu0 %6825
      %6827 = vrot.lane.b32.xlu0 %v6334, 8
      %v6828 = vpop.permute.xlu0 %6827
      %6829 = vrot.lane.b32.xlu0 %v6333, 8
      %v6830 = vpop.permute.xlu0 %6829
      %6831 = vrot.lane.b32.xlu0 %v6332, 8
      %v6832 = vpop.permute.xlu0 %6831
      %6833 = vrot.lane.b32.xlu0 %v6331, 8
      %v6834 = vpop.permute.xlu0 %6833
      %6835 = vrot.lane.b32.xlu0 %v6330, 8
      %v6836 = vpop.permute.xlu0 %6835
      %6837 = vrot.lane.b32.xlu0 %v6329, 8
      %v6838 = vpop.permute.xlu0 %6837
      %6839 = vrot.lane.b32.xlu0 %v6392, 8
      %v6840 = vpop.permute.xlu0 %6839
      %v6905 = vsel %vm2187, %v6264, %v6458
      %v6906 = vsel %vm2187, %v6263, %v6460
      %v6907 = vsel %vm2187, %v6262, %v6462
      %v6908 = vsel %vm2187, %v6261, %v6464
      %v6909 = vsel %vm2187, %v6260, %v6466
      %v6910 = vsel %vm2187, %v6259, %v6468
      %v6911 = vsel %vm2187, %v6258, %v6470
      %v6912 = vsel %vm2187, %v6257, %v6472
      %v6913 = vsel %vm2187, %v6256, %v6474
      %v6914 = vsel %vm2187, %v6255, %v6476
      %v6915 = vsel %vm2187, %v6254, %v6478
      %v6916 = vsel %vm2187, %v6253, %v6480
      %v6917 = vsel %vm2187, %v6252, %v6482
      %v6918 = vsel %vm2187, %v6251, %v6484
      %v6919 = vsel %vm2187, %v6250, %v6486
      %v6920 = vsel %vm2187, %v6249, %v6488
      %v6921 = vsel %vm2187, %v6248, %v6490
      %v6922 = vsel %vm2187, %v6247, %v6492
      %v6923 = vsel %vm2187, %v6246, %v6494
      %v6924 = vsel %vm2187, %v6245, %v6496
      %v6925 = vsel %vm2187, %v6244, %v6498
      %v6926 = vsel %vm2187, %v6243, %v6500
      %v6927 = vsel %vm2187, %v6242, %v6502
      %v6928 = vsel %vm2187, %v6241, %v6504
      %v6929 = vsel %vm2187, %v6240, %v6506
      %v6930 = vsel %vm2187, %v6239, %v6508
      %v6931 = vsel %vm2187, %v6238, %v6510
      %v6932 = vsel %vm2187, %v6237, %v6512
      %v6933 = vsel %vm2187, %v6236, %v6514
      %v6934 = vsel %vm2187, %v6235, %v6516
      %v6935 = vsel %vm2187, %v6234, %v6518
      %v6936 = vsel %vm2187, %v6233, %v6520
      %v6937 = vsel %vm2187, %v6232, %v6522
      %v6938 = vsel %vm2187, %v6231, %v6524
      %v6939 = vsel %vm2187, %v6230, %v6526
      %v6940 = vsel %vm2187, %v6229, %v6528
      %v6941 = vsel %vm2187, %v6228, %v6530
      %v6942 = vsel %vm2187, %v6227, %v6532
      %v6943 = vsel %vm2187, %v6226, %v6534
      %v6944 = vsel %vm2187, %v6225, %v6536
      %v6945 = vsel %vm2187, %v6224, %v6538
      %v6946 = vsel %vm2187, %v6223, %v6540
      %v6947 = vsel %vm2187, %v6222, %v6542
      %v6948 = vsel %vm2187, %v6221, %v6544
      %v6949 = vsel %vm2187, %v6220, %v6546
      %v6950 = vsel %vm2187, %v6219, %v6548
      %v6951 = vsel %vm2187, %v6218, %v6550
      %v6952 = vsel %vm2187, %v6217, %v6552
      %v6953 = vsel %vm2187, %v6216, %v6554
      %v6954 = vsel %vm2187, %v6215, %v6556
      %v6955 = vsel %vm2187, %v6214, %v6558
      %v6956 = vsel %vm2187, %v6213, %v6560
      %v6957 = vsel %vm2187, %v6212, %v6562
      %v6958 = vsel %vm2187, %v6211, %v6564
      %v6959 = vsel %vm2187, %v6210, %v6566
      %v6960 = vsel %vm2187, %v6209, %v6568
      %v6961 = vsel %vm2187, %v6208, %v6570
      %v6962 = vsel %vm2187, %v6207, %v6572
      %v6963 = vsel %vm2187, %v6206, %v6574
      %v6964 = vsel %vm2187, %v6205, %v6576
      %v6965 = vsel %vm2187, %v6204, %v6578
      %v6966 = vsel %vm2187, %v6203, %v6580
      %v6967 = vsel %vm2187, %v6202, %v6582
      %v6968 = vsel %vm2187, %v6201, %v6584
      %v6969 = vsel %vm497, %v6905, %v6714
      %v6970 = vsel %vm497, %v6906, %v6716
      %v6971 = vsel %vm497, %v6907, %v6718
      %v6972 = vsel %vm497, %v6908, %v6720
      %v6973 = vsel %vm497, %v6909, %v6722
      %v6974 = vsel %vm497, %v6910, %v6724
      %v6975 = vsel %vm497, %v6911, %v6726
      %v6976 = vsel %vm497, %v6912, %v6728
      %v6977 = vsel %vm497, %v6913, %v6730
      %v6978 = vsel %vm497, %v6914, %v6732
      %v6979 = vsel %vm497, %v6915, %v6734
      %v6980 = vsel %vm497, %v6916, %v6736
      %v6981 = vsel %vm497, %v6917, %v6738
      %v6982 = vsel %vm497, %v6918, %v6740
      %v6983 = vsel %vm497, %v6919, %v6742
      %v6984 = vsel %vm497, %v6920, %v6744
      %v6985 = vsel %vm497, %v6921, %v6746
      %v6986 = vsel %vm497, %v6922, %v6748
      %v6987 = vsel %vm497, %v6923, %v6750
      %v6988 = vsel %vm497, %v6924, %v6752
      %v6989 = vsel %vm497, %v6925, %v6754
      %v6990 = vsel %vm497, %v6926, %v6756
      %v6991 = vsel %vm497, %v6927, %v6758
      %v6992 = vsel %vm497, %v6928, %v6760
      %v6993 = vsel %vm497, %v6929, %v6762
      %v6994 = vsel %vm497, %v6930, %v6764
      %v6995 = vsel %vm497, %v6931, %v6766
      %v6996 = vsel %vm497, %v6932, %v6768
      %v6997 = vsel %vm497, %v6933, %v6770
      %v6998 = vsel %vm497, %v6934, %v6772
      %v6999 = vsel %vm497, %v6935, %v6774
      %v7000 = vsel %vm497, %v6936, %v6776
      %v7001 = vsel %vm497, %v6937, %v6778
      %v7002 = vsel %vm497, %v6938, %v6780
      %v7003 = vsel %vm497, %v6939, %v6782
      %v7004 = vsel %vm497, %v6940, %v6784
      %v7005 = vsel %vm497, %v6941, %v6786
      %v7006 = vsel %vm497, %v6942, %v6788
      %v7007 = vsel %vm497, %v6943, %v6790
      %v7008 = vsel %vm497, %v6944, %v6792
      %v7009 = vsel %vm497, %v6945, %v6794
      %v7010 = vsel %vm497, %v6946, %v6796
      %v7011 = vsel %vm497, %v6947, %v6798
      %v7012 = vsel %vm497, %v6948, %v6800
      %v7013 = vsel %vm497, %v6949, %v6802
      %v7014 = vsel %vm497, %v6950, %v6804
      %v7015 = vsel %vm497, %v6951, %v6806
      %v7016 = vsel %vm497, %v6952, %v6808
      %v7017 = vsel %vm497, %v6953, %v6810
      %v7018 = vsel %vm497, %v6954, %v6812
      %v7019 = vsel %vm497, %v6955, %v6814
      %v7020 = vsel %vm497, %v6956, %v6816
      %v7021 = vsel %vm497, %v6957, %v6818
      %v7022 = vsel %vm497, %v6958, %v6820
      %v7023 = vsel %vm497, %v6959, %v6822
      %v7024 = vsel %vm497, %v6960, %v6824
      %v7025 = vsel %vm497, %v6961, %v6826
      %v7026 = vsel %vm497, %v6962, %v6828
      %v7027 = vsel %vm497, %v6963, %v6830
      %v7028 = vsel %vm497, %v6964, %v6832
      %v7029 = vsel %vm497, %v6965, %v6834
      %v7030 = vsel %vm497, %v6966, %v6836
      %v7031 = vsel %vm497, %v6967, %v6838
      %v7032 = vsel %vm497, %v6968, %v6840
      %v7033 = vpack.c.bf16 %v6970, %v6969
      %v7034 = vpack.c.bf16 %v6972, %v6971
      %v7035 = vpack.c.bf16 %v6974, %v6973
      %v7036 = vpack.c.bf16 %v6976, %v6975
      %v7037 = vpack.c.bf16 %v6978, %v6977
      %v7038 = vpack.c.bf16 %v6980, %v6979
      %v7039 = vpack.c.bf16 %v6982, %v6981
      %v7040 = vpack.c.bf16 %v6984, %v6983
      %v7041 = vpack.c.bf16 %v6986, %v6985
      %v7042 = vpack.c.bf16 %v6988, %v6987
      %v7043 = vpack.c.bf16 %v6990, %v6989
      %v7044 = vpack.c.bf16 %v6992, %v6991
      %v7045 = vpack.c.bf16 %v6994, %v6993
      %v7046 = vpack.c.bf16 %v6996, %v6995
      %v7047 = vpack.c.bf16 %v6998, %v6997
      %v7048 = vpack.c.bf16 %v7000, %v6999
      %v7049 = vpack.c.bf16 %v7002, %v7001
      %v7050 = vpack.c.bf16 %v7004, %v7003
      %v7051 = vpack.c.bf16 %v7006, %v7005
      %v7052 = vpack.c.bf16 %v7008, %v7007
      %v7053 = vpack.c.bf16 %v7010, %v7009
      %v7054 = vpack.c.bf16 %v7012, %v7011
      %v7055 = vpack.c.bf16 %v7014, %v7013
      %v7056 = vpack.c.bf16 %v7016, %v7015
      %v7057 = vpack.c.bf16 %v7018, %v7017
      %v7058 = vpack.c.bf16 %v7020, %v7019
      %v7059 = vpack.c.bf16 %v7022, %v7021
      %v7060 = vpack.c.bf16 %v7024, %v7023
      %v7061 = vpack.c.bf16 %v7026, %v7025
      %v7062 = vpack.c.bf16 %v7028, %v7027
      %v7063 = vpack.c.bf16 %v7030, %v7029
      %v7064 = vpack.c.bf16 %v7032, %v7031
      %v7065 = vld [vmem:[%s5] sm:$0xf]
      %v7066 = vld [vmem:[%s5 + $0x4] sm:$0x3]
      %v7067 = vld [vmem:[%s344] sm:$0xf]
      %v7068 = vld [vmem:[%s344 + $0x4] sm:$0xf]
      %v7069 = vld [vmem:[%s344 + $0x8] sm:$0xf]
      %v7070 = vld [vmem:[%s344 + $0xc] sm:$0xf]
      %v7071 = vld [vmem:[%s344 + $0x10] sm:$0xf]
      %v7072 = vld [vmem:[%s344 + $0x14] sm:$0xf]
      %v7073 = vld [vmem:[%s344 + $0x18] sm:$0xf]
      %v7074 = vld [vmem:[%s344 + $0x1c] sm:$0xf]
      %v7075 = vld [vmem:[%s344 + $0x20] sm:$0xf]
      %v7076 = vld [vmem:[%s344 + $0x24] sm:$0xf]
      %v7077 = vld [vmem:[%s344 + $0x28] sm:$0xf]
      %v7078 = vld [vmem:[%s344 + $0x2c] sm:$0xf]
      %v7079 = vld [vmem:[%s344 + $0x30] sm:$0xf]
      %v7080 = vld [vmem:[%s344 + $0x34] sm:$0xf]
      %v7081 = vld [vmem:[%s344 + $0x38] sm:$0xf]
      %v7082 = vld [vmem:[%s344 + $0x3c] sm:$0xf]
      %v7083 = vld [vmem:[%s344 + $0x40] sm:$0xf]
      %v7084 = vld [vmem:[%s344 + $0x44] sm:$0xf]
      %v7085 = vld [vmem:[%s344 + $0x48] sm:$0xf]
      %v7086 = vld [vmem:[%s344 + $0x4c] sm:$0xf]
      %v7087 = vld [vmem:[%s344 + $0x50] sm:$0xf]
      %v7088 = vld [vmem:[%s344 + $0x54] sm:$0xf]
      %v7089 = vld [vmem:[%s344 + $0x58] sm:$0xf]
      %v7090 = vld [vmem:[%s344 + $0x5c] sm:$0xf]
      %v7091 = vld [vmem:[%s344 + $0x60] sm:$0xf]
      %v7092 = vld [vmem:[%s344 + $0x64] sm:$0xf]
      %v7093 = vld [vmem:[%s344 + $0x68] sm:$0xf]
      %v7094 = vld [vmem:[%s344 + $0x6c] sm:$0xf]
      %v7095 = vld [vmem:[%s344 + $0x70] sm:$0xf]
      %v7096 = vld [vmem:[%s344 + $0x74] sm:$0xf]
      %v7097 = vld [vmem:[%s344 + $0x78] sm:$0xf]
      %v7098 = vld [vmem:[%s344 + $0x7c] sm:$0xf]
      %v7099 = vld [vmem:[%s344 + $0x80] sm:$0xf]
      %v7100 = vld [vmem:[%s344 + $0x84] sm:$0xf]
      %v7101 = vld [vmem:[%s344 + $0x88] sm:$0xf]
      %v7102 = vld [vmem:[%s344 + $0x8c] sm:$0xf]
      %v7103 = vld [vmem:[%s344 + $0x90] sm:$0xf]
      %v7104 = vld [vmem:[%s344 + $0x94] sm:$0xf]
      %v7105 = vld [vmem:[%s344 + $0x98] sm:$0xf]
      %v7106 = vld [vmem:[%s344 + $0x9c] sm:$0xf]
      %v7107 = vld [vmem:[%s344 + $0xa0] sm:$0xf]
      %v7108 = vld [vmem:[%s344 + $0xa4] sm:$0xf]
      %v7109 = vld [vmem:[%s344 + $0xa8] sm:$0xf]
      %v7110 = vld [vmem:[%s344 + $0xac] sm:$0xf]
      %v7111 = vld [vmem:[%s344 + $0xb0] sm:$0xf]
      %v7112 = vld [vmem:[%s344 + $0xb4] sm:$0xf]
      %v7113 = vld [vmem:[%s344 + $0xb8] sm:$0xf]
      %v7114 = vld [vmem:[%s344 + $0xbc] sm:$0xf]
      %v7115 = vld [vmem:[%s344 + $0xc0] sm:$0xf]
      %v7116 = vld [vmem:[%s344 + $0xc4] sm:$0xf]
      %v7117 = vld [vmem:[%s344 + $0xc8] sm:$0xf]
      %v7118 = vld [vmem:[%s344 + $0xcc] sm:$0xf]
      %v7119 = vld [vmem:[%s344 + $0xd0] sm:$0xf]
      %v7120 = vld [vmem:[%s344 + $0xd4] sm:$0xf]
      %v7121 = vld [vmem:[%s344 + $0xd8] sm:$0xf]
      %v7122 = vld [vmem:[%s344 + $0xdc] sm:$0xf]
      %v7123 = vld [vmem:[%s344 + $0xe0] sm:$0xf]
      %v7124 = vld [vmem:[%s344 + $0xe4] sm:$0xf]
      %v7125 = vld [vmem:[%s344 + $0xe8] sm:$0xf]
      %v7126 = vld [vmem:[%s344 + $0xec] sm:$0xf]
      %v7127 = vld [vmem:[%s344 + $0xf0] sm:$0xf]
      %v7128 = vld [vmem:[%s344 + $0xf4] sm:$0xf]
      %v7129 = vld [vmem:[%s344 + $0xf8] sm:$0xf]
      %v7130 = vld [vmem:[%s344 + $0xfc] sm:$0xf]
      %v7131 = vunpack.c.l.bf16 %v7067
      %v7132 = vunpack.c.l.bf16 %v7068
      %v7133 = vunpack.c.l.bf16 %v7069
      %v7134 = vunpack.c.l.bf16 %v7070
      %v7135 = vunpack.c.l.bf16 %v7071
      %v7136 = vunpack.c.l.bf16 %v7072
      %v7137 = vunpack.c.l.bf16 %v7073
      %v7138 = vunpack.c.l.bf16 %v7074
      %v7139 = vunpack.c.l.bf16 %v7075
      %v7140 = vunpack.c.l.bf16 %v7076
      %v7141 = vunpack.c.l.bf16 %v7077
      %v7142 = vunpack.c.l.bf16 %v7078
      %v7143 = vunpack.c.l.bf16 %v7079
      %v7144 = vunpack.c.l.bf16 %v7080
      %v7145 = vunpack.c.l.bf16 %v7081
      %v7146 = vunpack.c.l.bf16 %v7082
      %v7147 = vunpack.c.l.bf16 %v7083
      %v7148 = vunpack.c.l.bf16 %v7084
      %v7149 = vunpack.c.l.bf16 %v7085
      %v7150 = vunpack.c.l.bf16 %v7086
      %v7151 = vunpack.c.l.bf16 %v7087
      %v7152 = vunpack.c.l.bf16 %v7088
      %v7153 = vunpack.c.l.bf16 %v7089
      %v7154 = vunpack.c.l.bf16 %v7090
      %v7155 = vunpack.c.l.bf16 %v7091
      %v7156 = vunpack.c.l.bf16 %v7092
      %v7157 = vunpack.c.l.bf16 %v7093
      %v7158 = vunpack.c.l.bf16 %v7094
      %v7159 = vunpack.c.l.bf16 %v7095
      %v7160 = vunpack.c.l.bf16 %v7096
      %v7161 = vunpack.c.l.bf16 %v7097
      %v7162 = vunpack.c.l.bf16 %v7098
      %v7163 = vunpack.c.l.bf16 %v7099
      %v7164 = vunpack.c.l.bf16 %v7100
      %v7165 = vunpack.c.l.bf16 %v7101
      %v7166 = vunpack.c.l.bf16 %v7102
      %v7167 = vunpack.c.l.bf16 %v7103
      %v7168 = vunpack.c.l.bf16 %v7104
      %v7169 = vunpack.c.l.bf16 %v7105
      %v7170 = vunpack.c.l.bf16 %v7106
      %v7171 = vunpack.c.l.bf16 %v7107
      %v7172 = vunpack.c.l.bf16 %v7108
      %v7173 = vunpack.c.l.bf16 %v7109
      %v7174 = vunpack.c.l.bf16 %v7110
      %v7175 = vunpack.c.l.bf16 %v7111
      %v7176 = vunpack.c.l.bf16 %v7112
      %v7177 = vunpack.c.l.bf16 %v7113
      %v7178 = vunpack.c.l.bf16 %v7114
      %v7179 = vunpack.c.l.bf16 %v7115
      %v7180 = vunpack.c.l.bf16 %v7116
      %v7181 = vunpack.c.l.bf16 %v7117
      %v7182 = vunpack.c.l.bf16 %v7118
      %v7183 = vunpack.c.l.bf16 %v7119
      %v7184 = vunpack.c.l.bf16 %v7120
      %v7185 = vunpack.c.l.bf16 %v7121
      %v7186 = vunpack.c.l.bf16 %v7122
      %v7187 = vunpack.c.l.bf16 %v7123
      %v7188 = vunpack.c.l.bf16 %v7124
      %v7189 = vunpack.c.l.bf16 %v7125
      %v7190 = vunpack.c.l.bf16 %v7126
      %v7191 = vunpack.c.l.bf16 %v7127
      %v7192 = vunpack.c.l.bf16 %v7128
      %v7193 = vunpack.c.l.bf16 %v7129
      %v7194 = vunpack.c.l.bf16 %v7130
      %v7195 = vrot.slane %v7131, 7
      %v7196 = vrot.slane %v7132, 7
      %v7197 = vrot.slane %v7133, 7
      %v7198 = vrot.slane %v7134, 7
      %v7199 = vrot.slane %v7135, 7
      %v7200 = vrot.slane %v7136, 7
      %v7201 = vrot.slane %v7137, 7
      %v7202 = vrot.slane %v7138, 7
      %v7203 = vrot.slane %v7139, 7
      %v7204 = vrot.slane %v7140, 7
      %v7205 = vrot.slane %v7141, 7
      %v7206 = vrot.slane %v7142, 7
      %v7207 = vrot.slane %v7143, 7
      %v7208 = vrot.slane %v7144, 7
      %v7209 = vrot.slane %v7145, 7
      %v7210 = vrot.slane %v7146, 7
      %v7211 = vrot.slane %v7147, 7
      %v7212 = vrot.slane %v7148, 7
      %v7213 = vrot.slane %v7149, 7
      %v7214 = vrot.slane %v7150, 7
      %v7215 = vrot.slane %v7151, 7
      %v7216 = vrot.slane %v7152, 7
      %v7217 = vrot.slane %v7153, 7
      %v7218 = vrot.slane %v7154, 7
      %v7219 = vrot.slane %v7155, 7
      %v7220 = vrot.slane %v7156, 7
      %v7221 = vrot.slane %v7157, 7
      %v7222 = vrot.slane %v7158, 7
      %v7223 = vrot.slane %v7159, 7
      %v7224 = vrot.slane %v7160, 7
      %v7225 = vrot.slane %v7161, 7
      %v7226 = vrot.slane %v7162, 7
      %v7227 = vrot.slane %v7163, 7
      %v7228 = vrot.slane %v7164, 7
      %v7229 = vrot.slane %v7165, 7
      %v7230 = vrot.slane %v7166, 7
      %v7231 = vrot.slane %v7167, 7
      %v7232 = vrot.slane %v7168, 7
      %v7233 = vrot.slane %v7169, 7
      %v7234 = vrot.slane %v7170, 7
      %v7235 = vrot.slane %v7171, 7
      %v7236 = vrot.slane %v7172, 7
      %v7237 = vrot.slane %v7173, 7
      %v7238 = vrot.slane %v7174, 7
      %v7239 = vrot.slane %v7175, 7
      %v7240 = vrot.slane %v7176, 7
      %v7241 = vrot.slane %v7177, 7
      %v7242 = vrot.slane %v7178, 7
      %v7243 = vrot.slane %v7179, 7
      %v7244 = vrot.slane %v7180, 7
      %v7245 = vrot.slane %v7181, 7
      %v7246 = vrot.slane %v7182, 7
      %v7247 = vrot.slane %v7183, 7
      %v7248 = vrot.slane %v7184, 7
      %v7249 = vrot.slane %v7185, 7
      %v7250 = vrot.slane %v7186, 7
      %v7251 = vrot.slane %v7187, 7
      %v7252 = vrot.slane %v7188, 7
      %v7253 = vrot.slane %v7189, 7
      %v7254 = vrot.slane %v7190, 7
      %v7255 = vrot.slane %v7191, 7
      %v7256 = vrot.slane %v7192, 7
      %v7257 = vrot.slane %v7193, 7
      %v7258 = vrot.slane %v7194, 7
      %v7259 = vsel %vm1481, %v7257, %v7258
      %v7260 = vsel %vm1481, %v7256, %v7257
      %v7261 = vsel %vm1481, %v7255, %v7256
      %v7262 = vsel %vm1481, %v7254, %v7255
      %v7263 = vsel %vm1481, %v7253, %v7254
      %v7264 = vsel %vm1481, %v7252, %v7253
      %v7265 = vsel %vm1481, %v7251, %v7252
      %v7266 = vsel %vm1481, %v7250, %v7251
      %v7267 = vsel %vm1481, %v7249, %v7250
      %v7268 = vsel %vm1481, %v7248, %v7249
      %v7269 = vsel %vm1481, %v7247, %v7248
      %v7270 = vsel %vm1481, %v7246, %v7247
      %v7271 = vsel %vm1481, %v7245, %v7246
      %v7272 = vsel %vm1481, %v7244, %v7245
      %v7273 = vsel %vm1481, %v7243, %v7244
      %v7274 = vsel %vm1481, %v7242, %v7243
      %v7275 = vsel %vm1481, %v7241, %v7242
      %v7276 = vsel %vm1481, %v7240, %v7241
      %v7277 = vsel %vm1481, %v7239, %v7240
      %v7278 = vsel %vm1481, %v7238, %v7239
      %v7279 = vsel %vm1481, %v7237, %v7238
      %v7280 = vsel %vm1481, %v7236, %v7237
      %v7281 = vsel %vm1481, %v7235, %v7236
      %v7282 = vsel %vm1481, %v7234, %v7235
      %v7283 = vsel %vm1481, %v7233, %v7234
      %v7284 = vsel %vm1481, %v7232, %v7233
      %v7285 = vsel %vm1481, %v7231, %v7232
      %v7286 = vsel %vm1481, %v7230, %v7231
      %v7287 = vsel %vm1481, %v7229, %v7230
      %v7288 = vsel %vm1481, %v7228, %v7229
      %v7289 = vsel %vm1481, %v7227, %v7228
      %v7290 = vsel %vm1481, %v7226, %v7227
      %v7291 = vsel %vm1481, %v7225, %v7226
      %v7292 = vsel %vm1481, %v7224, %v7225
      %v7293 = vsel %vm1481, %v7223, %v7224
      %v7294 = vsel %vm1481, %v7222, %v7223
      %v7295 = vsel %vm1481, %v7221, %v7222
      %v7296 = vsel %vm1481, %v7220, %v7221
      %v7297 = vsel %vm1481, %v7219, %v7220
      %v7298 = vsel %vm1481, %v7218, %v7219
      %v7299 = vsel %vm1481, %v7217, %v7218
      %v7300 = vsel %vm1481, %v7216, %v7217
      %v7301 = vsel %vm1481, %v7215, %v7216
      %v7302 = vsel %vm1481, %v7214, %v7215
      %v7303 = vsel %vm1481, %v7213, %v7214
      %v7304 = vsel %vm1481, %v7212, %v7213
      %v7305 = vsel %vm1481, %v7211, %v7212
      %v7306 = vsel %vm1481, %v7210, %v7211
      %v7307 = vsel %vm1481, %v7209, %v7210
      %v7308 = vsel %vm1481, %v7208, %v7209
      %v7309 = vsel %vm1481, %v7207, %v7208
      %v7310 = vsel %vm1481, %v7206, %v7207
      %v7311 = vsel %vm1481, %v7205, %v7206
      %v7312 = vsel %vm1481, %v7204, %v7205
      %v7313 = vsel %vm1481, %v7203, %v7204
      %v7314 = vsel %vm1481, %v7202, %v7203
      %v7315 = vsel %vm1481, %v7201, %v7202
      %v7316 = vsel %vm1481, %v7200, %v7201
      %v7317 = vsel %vm1481, %v7199, %v7200
      %v7318 = vsel %vm1481, %v7198, %v7199
      %v7319 = vsel %vm1481, %v7197, %v7198
      %v7320 = vsel %vm1481, %v7196, %v7197
      %v7321 = vsel %vm1481, %v7195, %v7196
      %v7322 = vsel %vm1481, %v7258, %v7195
      %v7323 = vrot.slane %v7131, 1
      %v7324 = vrot.slane %v7132, 1
      %v7325 = vrot.slane %v7133, 1
      %v7326 = vrot.slane %v7134, 1
      %v7327 = vrot.slane %v7135, 1
      %v7328 = vrot.slane %v7136, 1
      %v7329 = vrot.slane %v7137, 1
      %v7330 = vrot.slane %v7138, 1
      %v7331 = vrot.slane %v7139, 1
      %v7332 = vrot.slane %v7140, 1
      %v7333 = vrot.slane %v7141, 1
      %v7334 = vrot.slane %v7142, 1
      %v7335 = vrot.slane %v7143, 1
      %v7336 = vrot.slane %v7144, 1
      %v7337 = vrot.slane %v7145, 1
      %v7338 = vrot.slane %v7146, 1
      %v7339 = vrot.slane %v7147, 1
      %v7340 = vrot.slane %v7148, 1
      %v7341 = vrot.slane %v7149, 1
      %v7342 = vrot.slane %v7150, 1
      %v7343 = vrot.slane %v7151, 1
      %v7344 = vrot.slane %v7152, 1
      %v7345 = vrot.slane %v7153, 1
      %v7346 = vrot.slane %v7154, 1
      %v7347 = vrot.slane %v7155, 1
      %v7348 = vrot.slane %v7156, 1
      %v7349 = vrot.slane %v7157, 1
      %v7350 = vrot.slane %v7158, 1
      %v7351 = vrot.slane %v7159, 1
      %v7352 = vrot.slane %v7160, 1
      %v7353 = vrot.slane %v7161, 1
      %v7354 = vrot.slane %v7162, 1
      %v7355 = vrot.slane %v7163, 1
      %v7356 = vrot.slane %v7164, 1
      %v7357 = vrot.slane %v7165, 1
      %v7358 = vrot.slane %v7166, 1
      %v7359 = vrot.slane %v7167, 1
      %v7360 = vrot.slane %v7168, 1
      %v7361 = vrot.slane %v7169, 1
      %v7362 = vrot.slane %v7170, 1
      %v7363 = vrot.slane %v7171, 1
      %v7364 = vrot.slane %v7172, 1
      %v7365 = vrot.slane %v7173, 1
      %v7366 = vrot.slane %v7174, 1
      %v7367 = vrot.slane %v7175, 1
      %v7368 = vrot.slane %v7176, 1
      %v7369 = vrot.slane %v7177, 1
      %v7370 = vrot.slane %v7178, 1
      %v7371 = vrot.slane %v7179, 1
      %v7372 = vrot.slane %v7180, 1
      %v7373 = vrot.slane %v7181, 1
      %v7374 = vrot.slane %v7182, 1
      %v7375 = vrot.slane %v7183, 1
      %v7376 = vrot.slane %v7184, 1
      %v7377 = vrot.slane %v7185, 1
      %v7378 = vrot.slane %v7186, 1
      %v7379 = vrot.slane %v7187, 1
      %v7380 = vrot.slane %v7188, 1
      %v7381 = vrot.slane %v7189, 1
      %v7382 = vrot.slane %v7190, 1
      %v7383 = vrot.slane %v7191, 1
      %v7384 = vrot.slane %v7192, 1
      %v7385 = vrot.slane %v7193, 1
      %v7386 = vrot.slane %v7194, 1
      %v7387 = vsel %vm1610, %v7385, %v7386
      %v7388 = vsel %vm1610, %v7384, %v7385
      %v7389 = vsel %vm1610, %v7383, %v7384
      %v7390 = vsel %vm1610, %v7382, %v7383
      %v7391 = vsel %vm1610, %v7381, %v7382
      %v7392 = vsel %vm1610, %v7380, %v7381
      %v7393 = vsel %vm1610, %v7379, %v7380
      %v7394 = vsel %vm1610, %v7378, %v7379
      %v7395 = vsel %vm1610, %v7377, %v7378
      %v7396 = vsel %vm1610, %v7376, %v7377
      %v7397 = vsel %vm1610, %v7375, %v7376
      %v7398 = vsel %vm1610, %v7374, %v7375
      %v7399 = vsel %vm1610, %v7373, %v7374
      %v7400 = vsel %vm1610, %v7372, %v7373
      %v7401 = vsel %vm1610, %v7371, %v7372
      %v7402 = vsel %vm1610, %v7370, %v7371
      %v7403 = vsel %vm1610, %v7369, %v7370
      %v7404 = vsel %vm1610, %v7368, %v7369
      %v7405 = vsel %vm1610, %v7367, %v7368
      %v7406 = vsel %vm1610, %v7366, %v7367
      %v7407 = vsel %vm1610, %v7365, %v7366
      %v7408 = vsel %vm1610, %v7364, %v7365
      %v7409 = vsel %vm1610, %v7363, %v7364
      %v7410 = vsel %vm1610, %v7362, %v7363
      %v7411 = vsel %vm1610, %v7361, %v7362
      %v7412 = vsel %vm1610, %v7360, %v7361
      %v7413 = vsel %vm1610, %v7359, %v7360
      %v7414 = vsel %vm1610, %v7358, %v7359
      %v7415 = vsel %vm1610, %v7357, %v7358
      %v7416 = vsel %vm1610, %v7356, %v7357
      %v7417 = vsel %vm1610, %v7355, %v7356
      %v7418 = vsel %vm1610, %v7354, %v7355
      %v7419 = vsel %vm1610, %v7353, %v7354
      %v7420 = vsel %vm1610, %v7352, %v7353
      %v7421 = vsel %vm1610, %v7351, %v7352
      %v7422 = vsel %vm1610, %v7350, %v7351
      %v7423 = vsel %vm1610, %v7349, %v7350
      %v7424 = vsel %vm1610, %v7348, %v7349
      %v7425 = vsel %vm1610, %v7347, %v7348
      %v7426 = vsel %vm1610, %v7346, %v7347
      %v7427 = vsel %vm1610, %v7345, %v7346
      %v7428 = vsel %vm1610, %v7344, %v7345
      %v7429 = vsel %vm1610, %v7343, %v7344
      %v7430 = vsel %vm1610, %v7342, %v7343
      %v7431 = vsel %vm1610, %v7341, %v7342
      %v7432 = vsel %vm1610, %v7340, %v7341
      %v7433 = vsel %vm1610, %v7339, %v7340
      %v7434 = vsel %vm1610, %v7338, %v7339
      %v7435 = vsel %vm1610, %v7337, %v7338
      %v7436 = vsel %vm1610, %v7336, %v7337
      %v7437 = vsel %vm1610, %v7335, %v7336
      %v7438 = vsel %vm1610, %v7334, %v7335
      %v7439 = vsel %vm1610, %v7333, %v7334
      %v7440 = vsel %vm1610, %v7332, %v7333
      %v7441 = vsel %vm1610, %v7331, %v7332
      %v7442 = vsel %vm1610, %v7330, %v7331
      %v7443 = vsel %vm1610, %v7329, %v7330
      %v7444 = vsel %vm1610, %v7328, %v7329
      %v7445 = vsel %vm1610, %v7327, %v7328
      %v7446 = vsel %vm1610, %v7326, %v7327
      %v7447 = vsel %vm1610, %v7325, %v7326
      %v7448 = vsel %vm1610, %v7324, %v7325
      %v7449 = vsel %vm1610, %v7323, %v7324
      %v7450 = vsel %vm1610, %v7386, %v7323
      %7515 = vrot.lane.b32.xlu0 %v7131, 4
      %v7516 = vpop.permute.xlu0 %7515
      %7517 = vrot.lane.b32.xlu0 %v7132, 4
      %v7518 = vpop.permute.xlu0 %7517
      %7519 = vrot.lane.b32.xlu0 %v7133, 4
      %v7520 = vpop.permute.xlu0 %7519
      %7521 = vrot.lane.b32.xlu0 %v7134, 4
      %v7522 = vpop.permute.xlu0 %7521
      %7523 = vrot.lane.b32.xlu0 %v7135, 4
      %v7524 = vpop.permute.xlu0 %7523
      %7525 = vrot.lane.b32.xlu0 %v7136, 4
      %v7526 = vpop.permute.xlu0 %7525
      %7527 = vrot.lane.b32.xlu0 %v7137, 4
      %v7528 = vpop.permute.xlu0 %7527
      %7529 = vrot.lane.b32.xlu0 %v7138, 4
      %v7530 = vpop.permute.xlu0 %7529
      %7531 = vrot.lane.b32.xlu0 %v7139, 4
      %v7532 = vpop.permute.xlu0 %7531
      %7533 = vrot.lane.b32.xlu0 %v7140, 4
      %v7534 = vpop.permute.xlu0 %7533
      %7535 = vrot.lane.b32.xlu0 %v7141, 4
      %v7536 = vpop.permute.xlu0 %7535
      %7537 = vrot.lane.b32.xlu0 %v7142, 4
      %v7538 = vpop.permute.xlu0 %7537
      %7539 = vrot.lane.b32.xlu0 %v7143, 4
      %v7540 = vpop.permute.xlu0 %7539
      %7541 = vrot.lane.b32.xlu0 %v7144, 4
      %v7542 = vpop.permute.xlu0 %7541
      %7543 = vrot.lane.b32.xlu0 %v7145, 4
      %v7544 = vpop.permute.xlu0 %7543
      %7545 = vrot.lane.b32.xlu0 %v7146, 4
      %v7546 = vpop.permute.xlu0 %7545
      %7547 = vrot.lane.b32.xlu0 %v7147, 4
      %v7548 = vpop.permute.xlu0 %7547
      %7549 = vrot.lane.b32.xlu0 %v7148, 4
      %v7550 = vpop.permute.xlu0 %7549
      %7551 = vrot.lane.b32.xlu0 %v7149, 4
      %v7552 = vpop.permute.xlu0 %7551
      %7553 = vrot.lane.b32.xlu0 %v7150, 4
      %v7554 = vpop.permute.xlu0 %7553
      %7555 = vrot.lane.b32.xlu0 %v7151, 4
      %v7556 = vpop.permute.xlu0 %7555
      %7557 = vrot.lane.b32.xlu0 %v7152, 4
      %v7558 = vpop.permute.xlu0 %7557
      %7559 = vrot.lane.b32.xlu0 %v7153, 4
      %v7560 = vpop.permute.xlu0 %7559
      %7561 = vrot.lane.b32.xlu0 %v7154, 4
      %v7562 = vpop.permute.xlu0 %7561
      %7563 = vrot.lane.b32.xlu0 %v7155, 4
      %v7564 = vpop.permute.xlu0 %7563
      %7565 = vrot.lane.b32.xlu0 %v7156, 4
      %v7566 = vpop.permute.xlu0 %7565
      %7567 = vrot.lane.b32.xlu0 %v7157, 4
      %v7568 = vpop.permute.xlu0 %7567
      %7569 = vrot.lane.b32.xlu0 %v7158, 4
      %v7570 = vpop.permute.xlu0 %7569
      %7571 = vrot.lane.b32.xlu0 %v7159, 4
      %v7572 = vpop.permute.xlu0 %7571
      %7573 = vrot.lane.b32.xlu0 %v7160, 4
      %v7574 = vpop.permute.xlu0 %7573
      %7575 = vrot.lane.b32.xlu0 %v7161, 4
      %v7576 = vpop.permute.xlu0 %7575
      %7577 = vrot.lane.b32.xlu0 %v7162, 4
      %v7578 = vpop.permute.xlu0 %7577
      %7579 = vrot.lane.b32.xlu0 %v7163, 4
      %v7580 = vpop.permute.xlu0 %7579
      %7581 = vrot.lane.b32.xlu0 %v7164, 4
      %v7582 = vpop.permute.xlu0 %7581
      %7583 = vrot.lane.b32.xlu0 %v7165, 4
      %v7584 = vpop.permute.xlu0 %7583
      %7585 = vrot.lane.b32.xlu0 %v7166, 4
      %v7586 = vpop.permute.xlu0 %7585
      %7587 = vrot.lane.b32.xlu0 %v7167, 4
      %v7588 = vpop.permute.xlu0 %7587
      %7589 = vrot.lane.b32.xlu0 %v7168, 4
      %v7590 = vpop.permute.xlu0 %7589
      %7591 = vrot.lane.b32.xlu0 %v7169, 4
      %v7592 = vpop.permute.xlu0 %7591
      %7593 = vrot.lane.b32.xlu0 %v7170, 4
      %v7594 = vpop.permute.xlu0 %7593
      %7595 = vrot.lane.b32.xlu0 %v7171, 4
      %v7596 = vpop.permute.xlu0 %7595
      %7597 = vrot.lane.b32.xlu0 %v7172, 4
      %v7598 = vpop.permute.xlu0 %7597
      %7599 = vrot.lane.b32.xlu0 %v7173, 4
      %v7600 = vpop.permute.xlu0 %7599
      %7601 = vrot.lane.b32.xlu0 %v7174, 4
      %v7602 = vpop.permute.xlu0 %7601
      %7603 = vrot.lane.b32.xlu0 %v7175, 4
      %v7604 = vpop.permute.xlu0 %7603
      %7605 = vrot.lane.b32.xlu0 %v7176, 4
      %v7606 = vpop.permute.xlu0 %7605
      %7607 = vrot.lane.b32.xlu0 %v7177, 4
      %v7608 = vpop.permute.xlu0 %7607
      %7609 = vrot.lane.b32.xlu0 %v7178, 4
      %v7610 = vpop.permute.xlu0 %7609
      %7611 = vrot.lane.b32.xlu0 %v7179, 4
      %v7612 = vpop.permute.xlu0 %7611
      %7613 = vrot.lane.b32.xlu0 %v7180, 4
      %v7614 = vpop.permute.xlu0 %7613
      %7615 = vrot.lane.b32.xlu0 %v7181, 4
      %v7616 = vpop.permute.xlu0 %7615
      %7617 = vrot.lane.b32.xlu0 %v7182, 4
      %v7618 = vpop.permute.xlu0 %7617
      %7619 = vrot.lane.b32.xlu0 %v7183, 4
      %v7620 = vpop.permute.xlu0 %7619
      %7621 = vrot.lane.b32.xlu0 %v7184, 4
      %v7622 = vpop.permute.xlu0 %7621
      %7623 = vrot.lane.b32.xlu0 %v7185, 4
      %v7624 = vpop.permute.xlu0 %7623
      %7625 = vrot.lane.b32.xlu0 %v7186, 4
      %v7626 = vpop.permute.xlu0 %7625
      %7627 = vrot.lane.b32.xlu0 %v7187, 4
      %v7628 = vpop.permute.xlu0 %7627
      %7629 = vrot.lane.b32.xlu0 %v7188, 4
      %v7630 = vpop.permute.xlu0 %7629
      %7631 = vrot.lane.b32.xlu0 %v7189, 4
      %v7632 = vpop.permute.xlu0 %7631
      %7633 = vrot.lane.b32.xlu0 %v7190, 4
      %v7634 = vpop.permute.xlu0 %7633
      %7635 = vrot.lane.b32.xlu0 %v7191, 4
      %v7636 = vpop.permute.xlu0 %7635
      %7637 = vrot.lane.b32.xlu0 %v7192, 4
      %v7638 = vpop.permute.xlu0 %7637
      %7639 = vrot.lane.b32.xlu0 %v7193, 4
      %v7640 = vpop.permute.xlu0 %7639
      %7641 = vrot.lane.b32.xlu0 %v7194, 4
      %v7642 = vpop.permute.xlu0 %7641
      %7771 = vrot.lane.b32.xlu0 %v7449, 8
      %v7772 = vpop.permute.xlu0 %7771
      %7773 = vrot.lane.b32.xlu0 %v7448, 8
      %v7774 = vpop.permute.xlu0 %7773
      %7775 = vrot.lane.b32.xlu0 %v7447, 8
      %v7776 = vpop.permute.xlu0 %7775
      %7777 = vrot.lane.b32.xlu0 %v7446, 8
      %v7778 = vpop.permute.xlu0 %7777
      %7779 = vrot.lane.b32.xlu0 %v7445, 8
      %v7780 = vpop.permute.xlu0 %7779
      %7781 = vrot.lane.b32.xlu0 %v7444, 8
      %v7782 = vpop.permute.xlu0 %7781
      %7783 = vrot.lane.b32.xlu0 %v7443, 8
      %v7784 = vpop.permute.xlu0 %7783
      %7785 = vrot.lane.b32.xlu0 %v7442, 8
      %v7786 = vpop.permute.xlu0 %7785
      %7787 = vrot.lane.b32.xlu0 %v7441, 8
      %v7788 = vpop.permute.xlu0 %7787
      %7789 = vrot.lane.b32.xlu0 %v7440, 8
      %v7790 = vpop.permute.xlu0 %7789
      %7791 = vrot.lane.b32.xlu0 %v7439, 8
      %v7792 = vpop.permute.xlu0 %7791
      %7793 = vrot.lane.b32.xlu0 %v7438, 8
      %v7794 = vpop.permute.xlu0 %7793
      %7795 = vrot.lane.b32.xlu0 %v7437, 8
      %v7796 = vpop.permute.xlu0 %7795
      %7797 = vrot.lane.b32.xlu0 %v7436, 8
      %v7798 = vpop.permute.xlu0 %7797
      %7799 = vrot.lane.b32.xlu0 %v7435, 8
      %v7800 = vpop.permute.xlu0 %7799
      %7801 = vrot.lane.b32.xlu0 %v7434, 8
      %v7802 = vpop.permute.xlu0 %7801
      %7803 = vrot.lane.b32.xlu0 %v7433, 8
      %v7804 = vpop.permute.xlu0 %7803
      %7805 = vrot.lane.b32.xlu0 %v7432, 8
      %v7806 = vpop.permute.xlu0 %7805
      %7807 = vrot.lane.b32.xlu0 %v7431, 8
      %v7808 = vpop.permute.xlu0 %7807
      %7809 = vrot.lane.b32.xlu0 %v7430, 8
      %v7810 = vpop.permute.xlu0 %7809
      %7811 = vrot.lane.b32.xlu0 %v7429, 8
      %v7812 = vpop.permute.xlu0 %7811
      %7813 = vrot.lane.b32.xlu0 %v7428, 8
      %v7814 = vpop.permute.xlu0 %7813
      %7815 = vrot.lane.b32.xlu0 %v7427, 8
      %v7816 = vpop.permute.xlu0 %7815
      %7817 = vrot.lane.b32.xlu0 %v7426, 8
      %v7818 = vpop.permute.xlu0 %7817
      %7819 = vrot.lane.b32.xlu0 %v7425, 8
      %v7820 = vpop.permute.xlu0 %7819
      %7821 = vrot.lane.b32.xlu0 %v7424, 8
      %v7822 = vpop.permute.xlu0 %7821
      %7823 = vrot.lane.b32.xlu0 %v7423, 8
      %v7824 = vpop.permute.xlu0 %7823
      %7825 = vrot.lane.b32.xlu0 %v7422, 8
      %v7826 = vpop.permute.xlu0 %7825
      %7827 = vrot.lane.b32.xlu0 %v7421, 8
      %v7828 = vpop.permute.xlu0 %7827
      %7829 = vrot.lane.b32.xlu0 %v7420, 8
      %v7830 = vpop.permute.xlu0 %7829
      %7831 = vrot.lane.b32.xlu0 %v7419, 8
      %v7832 = vpop.permute.xlu0 %7831
      %7833 = vrot.lane.b32.xlu0 %v7418, 8
      %v7834 = vpop.permute.xlu0 %7833
      %7835 = vrot.lane.b32.xlu0 %v7417, 8
      %v7836 = vpop.permute.xlu0 %7835
      %7837 = vrot.lane.b32.xlu0 %v7416, 8
      %v7838 = vpop.permute.xlu0 %7837
      %7839 = vrot.lane.b32.xlu0 %v7415, 8
      %v7840 = vpop.permute.xlu0 %7839
      %7841 = vrot.lane.b32.xlu0 %v7414, 8
      %v7842 = vpop.permute.xlu0 %7841
      %7843 = vrot.lane.b32.xlu0 %v7413, 8
      %v7844 = vpop.permute.xlu0 %7843
      %7845 = vrot.lane.b32.xlu0 %v7412, 8
      %v7846 = vpop.permute.xlu0 %7845
      %7847 = vrot.lane.b32.xlu0 %v7411, 8
      %v7848 = vpop.permute.xlu0 %7847
      %7849 = vrot.lane.b32.xlu0 %v7410, 8
      %v7850 = vpop.permute.xlu0 %7849
      %7851 = vrot.lane.b32.xlu0 %v7409, 8
      %v7852 = vpop.permute.xlu0 %7851
      %7853 = vrot.lane.b32.xlu0 %v7408, 8
      %v7854 = vpop.permute.xlu0 %7853
      %7855 = vrot.lane.b32.xlu0 %v7407, 8
      %v7856 = vpop.permute.xlu0 %7855
      %7857 = vrot.lane.b32.xlu0 %v7406, 8
      %v7858 = vpop.permute.xlu0 %7857
      %7859 = vrot.lane.b32.xlu0 %v7405, 8
      %v7860 = vpop.permute.xlu0 %7859
      %7861 = vrot.lane.b32.xlu0 %v7404, 8
      %v7862 = vpop.permute.xlu0 %7861
      %7863 = vrot.lane.b32.xlu0 %v7403, 8
      %v7864 = vpop.permute.xlu0 %7863
      %7865 = vrot.lane.b32.xlu0 %v7402, 8
      %v7866 = vpop.permute.xlu0 %7865
      %7867 = vrot.lane.b32.xlu0 %v7401, 8
      %v7868 = vpop.permute.xlu0 %7867
      %7869 = vrot.lane.b32.xlu0 %v7400, 8
      %v7870 = vpop.permute.xlu0 %7869
      %7871 = vrot.lane.b32.xlu0 %v7399, 8
      %v7872 = vpop.permute.xlu0 %7871
      %7873 = vrot.lane.b32.xlu0 %v7398, 8
      %v7874 = vpop.permute.xlu0 %7873
      %7875 = vrot.lane.b32.xlu0 %v7397, 8
      %v7876 = vpop.permute.xlu0 %7875
      %7877 = vrot.lane.b32.xlu0 %v7396, 8
      %v7878 = vpop.permute.xlu0 %7877
      %7879 = vrot.lane.b32.xlu0 %v7395, 8
      %v7880 = vpop.permute.xlu0 %7879
      %7881 = vrot.lane.b32.xlu0 %v7394, 8
      %v7882 = vpop.permute.xlu0 %7881
      %7883 = vrot.lane.b32.xlu0 %v7393, 8
      %v7884 = vpop.permute.xlu0 %7883
      %7885 = vrot.lane.b32.xlu0 %v7392, 8
      %v7886 = vpop.permute.xlu0 %7885
      %7887 = vrot.lane.b32.xlu0 %v7391, 8
      %v7888 = vpop.permute.xlu0 %7887
      %7889 = vrot.lane.b32.xlu0 %v7390, 8
      %v7890 = vpop.permute.xlu0 %7889
      %7891 = vrot.lane.b32.xlu0 %v7389, 8
      %v7892 = vpop.permute.xlu0 %7891
      %7893 = vrot.lane.b32.xlu0 %v7388, 8
      %v7894 = vpop.permute.xlu0 %7893
      %7895 = vrot.lane.b32.xlu0 %v7387, 8
      %v7896 = vpop.permute.xlu0 %7895
      %7897 = vrot.lane.b32.xlu0 %v7450, 8
      %v7898 = vpop.permute.xlu0 %7897
      %v7963 = vsel %vm2187, %v7322, %v7516
      %v7964 = vsel %vm2187, %v7321, %v7518
      %v7965 = vsel %vm2187, %v7320, %v7520
      %v7966 = vsel %vm2187, %v7319, %v7522
      %v7967 = vsel %vm2187, %v7318, %v7524
      %v7968 = vsel %vm2187, %v7317, %v7526
      %v7969 = vsel %vm2187, %v7316, %v7528
      %v7970 = vsel %vm2187, %v7315, %v7530
      %v7971 = vsel %vm2187, %v7314, %v7532
      %v7972 = vsel %vm2187, %v7313, %v7534
      %v7973 = vsel %vm2187, %v7312, %v7536
      %v7974 = vsel %vm2187, %v7311, %v7538
      %v7975 = vsel %vm2187, %v7310, %v7540
      %v7976 = vsel %vm2187, %v7309, %v7542
      %v7977 = vsel %vm2187, %v7308, %v7544
      %v7978 = vsel %vm2187, %v7307, %v7546
      %v7979 = vsel %vm2187, %v7306, %v7548
      %v7980 = vsel %vm2187, %v7305, %v7550
      %v7981 = vsel %vm2187, %v7304, %v7552
      %v7982 = vsel %vm2187, %v7303, %v7554
      %v7983 = vsel %vm2187, %v7302, %v7556
      %v7984 = vsel %vm2187, %v7301, %v7558
      %v7985 = vsel %vm2187, %v7300, %v7560
      %v7986 = vsel %vm2187, %v7299, %v7562
      %v7987 = vsel %vm2187, %v7298, %v7564
      %v7988 = vsel %vm2187, %v7297, %v7566
      %v7989 = vsel %vm2187, %v7296, %v7568
      %v7990 = vsel %vm2187, %v7295, %v7570
      %v7991 = vsel %vm2187, %v7294, %v7572
      %v7992 = vsel %vm2187, %v7293, %v7574
      %v7993 = vsel %vm2187, %v7292, %v7576
      %v7994 = vsel %vm2187, %v7291, %v7578
      %v7995 = vsel %vm2187, %v7290, %v7580
      %v7996 = vsel %vm2187, %v7289, %v7582
      %v7997 = vsel %vm2187, %v7288, %v7584
      %v7998 = vsel %vm2187, %v7287, %v7586
      %v7999 = vsel %vm2187, %v7286, %v7588
      %v8000 = vsel %vm2187, %v7285, %v7590
      %v8001 = vsel %vm2187, %v7284, %v7592
      %v8002 = vsel %vm2187, %v7283, %v7594
      %v8003 = vsel %vm2187, %v7282, %v7596
      %v8004 = vsel %vm2187, %v7281, %v7598
      %v8005 = vsel %vm2187, %v7280, %v7600
      %v8006 = vsel %vm2187, %v7279, %v7602
      %v8007 = vsel %vm2187, %v7278, %v7604
      %v8008 = vsel %vm2187, %v7277, %v7606
      %v8009 = vsel %vm2187, %v7276, %v7608
      %v8010 = vsel %vm2187, %v7275, %v7610
      %v8011 = vsel %vm2187, %v7274, %v7612
      %v8012 = vsel %vm2187, %v7273, %v7614
      %v8013 = vsel %vm2187, %v7272, %v7616
      %v8014 = vsel %vm2187, %v7271, %v7618
      %v8015 = vsel %vm2187, %v7270, %v7620
      %v8016 = vsel %vm2187, %v7269, %v7622
      %v8017 = vsel %vm2187, %v7268, %v7624
      %v8018 = vsel %vm2187, %v7267, %v7626
      %v8019 = vsel %vm2187, %v7266, %v7628
      %v8020 = vsel %vm2187, %v7265, %v7630
      %v8021 = vsel %vm2187, %v7264, %v7632
      %v8022 = vsel %vm2187, %v7263, %v7634
      %v8023 = vsel %vm2187, %v7262, %v7636
      %v8024 = vsel %vm2187, %v7261, %v7638
      %v8025 = vsel %vm2187, %v7260, %v7640
      %v8026 = vsel %vm2187, %v7259, %v7642
      %v8027 = vsel %vm497, %v7963, %v7772
      %v8028 = vsel %vm497, %v7964, %v7774
      %v8029 = vsel %vm497, %v7965, %v7776
      %v8030 = vsel %vm497, %v7966, %v7778
      %v8031 = vsel %vm497, %v7967, %v7780
      %v8032 = vsel %vm497, %v7968, %v7782
      %v8033 = vsel %vm497, %v7969, %v7784
      %v8034 = vsel %vm497, %v7970, %v7786
      %v8035 = vsel %vm497, %v7971, %v7788
      %v8036 = vsel %vm497, %v7972, %v7790
      %v8037 = vsel %vm497, %v7973, %v7792
      %v8038 = vsel %vm497, %v7974, %v7794
      %v8039 = vsel %vm497, %v7975, %v7796
      %v8040 = vsel %vm497, %v7976, %v7798
      %v8041 = vsel %vm497, %v7977, %v7800
      %v8042 = vsel %vm497, %v7978, %v7802
      %v8043 = vsel %vm497, %v7979, %v7804
      %v8044 = vsel %vm497, %v7980, %v7806
      %v8045 = vsel %vm497, %v7981, %v7808
      %v8046 = vsel %vm497, %v7982, %v7810
      %v8047 = vsel %vm497, %v7983, %v7812
      %v8048 = vsel %vm497, %v7984, %v7814
      %v8049 = vsel %vm497, %v7985, %v7816
      %v8050 = vsel %vm497, %v7986, %v7818
      %v8051 = vsel %vm497, %v7987, %v7820
      %v8052 = vsel %vm497, %v7988, %v7822
      %v8053 = vsel %vm497, %v7989, %v7824
      %v8054 = vsel %vm497, %v7990, %v7826
      %v8055 = vsel %vm497, %v7991, %v7828
      %v8056 = vsel %vm497, %v7992, %v7830
      %v8057 = vsel %vm497, %v7993, %v7832
      %v8058 = vsel %vm497, %v7994, %v7834
      %v8059 = vsel %vm497, %v7995, %v7836
      %v8060 = vsel %vm497, %v7996, %v7838
      %v8061 = vsel %vm497, %v7997, %v7840
      %v8062 = vsel %vm497, %v7998, %v7842
      %v8063 = vsel %vm497, %v7999, %v7844
      %v8064 = vsel %vm497, %v8000, %v7846
      %v8065 = vsel %vm497, %v8001, %v7848
      %v8066 = vsel %vm497, %v8002, %v7850
      %v8067 = vsel %vm497, %v8003, %v7852
      %v8068 = vsel %vm497, %v8004, %v7854
      %v8069 = vsel %vm497, %v8005, %v7856
      %v8070 = vsel %vm497, %v8006, %v7858
      %v8071 = vsel %vm497, %v8007, %v7860
      %v8072 = vsel %vm497, %v8008, %v7862
      %v8073 = vsel %vm497, %v8009, %v7864
      %v8074 = vsel %vm497, %v8010, %v7866
      %v8075 = vsel %vm497, %v8011, %v7868
      %v8076 = vsel %vm497, %v8012, %v7870
      %v8077 = vsel %vm497, %v8013, %v7872
      %v8078 = vsel %vm497, %v8014, %v7874
      %v8079 = vsel %vm497, %v8015, %v7876
      %v8080 = vsel %vm497, %v8016, %v7878
      %v8081 = vsel %vm497, %v8017, %v7880
      %v8082 = vsel %vm497, %v8018, %v7882
      %v8083 = vsel %vm497, %v8019, %v7884
      %v8084 = vsel %vm497, %v8020, %v7886
      %v8085 = vsel %vm497, %v8021, %v7888
      %v8086 = vsel %vm497, %v8022, %v7890
      %v8087 = vsel %vm497, %v8023, %v7892
      %v8088 = vsel %vm497, %v8024, %v7894
      %v8089 = vsel %vm497, %v8025, %v7896
      %v8090 = vsel %vm497, %v8026, %v7898
      %v8091 = vpack.c.bf16 %v8028, %v8027
      %v8092 = vpack.c.bf16 %v8030, %v8029
      %v8093 = vpack.c.bf16 %v8032, %v8031
      %v8094 = vpack.c.bf16 %v8034, %v8033
      %v8095 = vpack.c.bf16 %v8036, %v8035
      %v8096 = vpack.c.bf16 %v8038, %v8037
      %v8097 = vpack.c.bf16 %v8040, %v8039
      %v8098 = vpack.c.bf16 %v8042, %v8041
      %v8099 = vpack.c.bf16 %v8044, %v8043
      %v8100 = vpack.c.bf16 %v8046, %v8045
      %v8101 = vpack.c.bf16 %v8048, %v8047
      %v8102 = vpack.c.bf16 %v8050, %v8049
      %v8103 = vpack.c.bf16 %v8052, %v8051
      %v8104 = vpack.c.bf16 %v8054, %v8053
      %v8105 = vpack.c.bf16 %v8056, %v8055
      %v8106 = vpack.c.bf16 %v8058, %v8057
      %v8107 = vpack.c.bf16 %v8060, %v8059
      %v8108 = vpack.c.bf16 %v8062, %v8061
      %v8109 = vpack.c.bf16 %v8064, %v8063
      %v8110 = vpack.c.bf16 %v8066, %v8065
      %v8111 = vpack.c.bf16 %v8068, %v8067
      %v8112 = vpack.c.bf16 %v8070, %v8069
      %v8113 = vpack.c.bf16 %v8072, %v8071
      %v8114 = vpack.c.bf16 %v8074, %v8073
      %v8115 = vpack.c.bf16 %v8076, %v8075
      %v8116 = vpack.c.bf16 %v8078, %v8077
      %v8117 = vpack.c.bf16 %v8080, %v8079
      %v8118 = vpack.c.bf16 %v8082, %v8081
      %v8119 = vpack.c.bf16 %v8084, %v8083
      %v8120 = vpack.c.bf16 %v8086, %v8085
      %v8121 = vpack.c.bf16 %v8088, %v8087
      %v8122 = vpack.c.bf16 %v8090, %v8089
      %s8123 = scalar_lea.vmem %s5, 8
      %v8124 = vld [vmem:[%s8123] sm:$0xf]
      %v8125 = vld [vmem:[%s8123 + $0x4] sm:$0x3]
      %v8128 = vunpack.c.l.b16 %v8124
      %v8129 = vunpack.c.l.b16 %v8125
      %v8130 = vpack.c.b16 %v8129, %v8128
      %v8132 = vsel %vm3414, %v8091, 0
      %v8135 = vsel %vm3414, %v8092, 0
      %v8138 = vsel %vm3414, %v8093, 0
      %v8141 = vsel %vm3414, %v8094, 0
      %v8144 = vsel %vm3414, %v8095, 0
      %v8147 = vsel %vm3414, %v8096, 0
      %v8150 = vsel %vm3414, %v8097, 0
      %v8153 = vsel %vm3414, %v8098, 0
      %v8156 = vsel %vm3414, %v8099, 0
      %v8159 = vsel %vm3414, %v8100, 0
      %v8162 = vsel %vm3414, %v8101, 0
      %v8165 = vsel %vm3414, %v8102, 0
      %v8168 = vsel %vm3414, %v8103, 0
      %v8171 = vsel %vm3414, %v8104, 0
      %v8174 = vsel %vm3414, %v8105, 0
      %v8177 = vsel %vm3414, %v8106, 0
      %v8180 = vsel %vm3414, %v8107, 0
      %v8183 = vsel %vm3414, %v8108, 0
      %v8186 = vsel %vm3414, %v8109, 0
      %v8189 = vsel %vm3414, %v8110, 0
      %v8192 = vsel %vm3414, %v8111, 0
      %v8195 = vsel %vm3414, %v8112, 0
      %v8198 = vsel %vm3414, %v8113, 0
      %v8201 = vsel %vm3414, %v8114, 0
      %v8204 = vsel %vm3414, %v8115, 0
      %v8207 = vsel %vm3414, %v8116, 0
      %v8210 = vsel %vm3414, %v8117, 0
      %v8213 = vsel %vm3414, %v8118, 0
      %v8216 = vsel %vm3414, %v8119, 0
      %v8219 = vsel %vm3414, %v8120, 0
      %v8222 = vsel %vm3414, %v8121, 0
      %v8225 = vsel %vm3414, %v8122, 0
      %v8228 = vsel %vm3511, %v8130, 0
      %8230 = vmatprep.subr.bf16.mxu0 0
      %8231 = vmatpush1.bf16.msra.mxu0 0
      %8232 = vmatprep.subr.bf16.mxu0 0
      %8233 = vmatpush1.bf16.msra.mxu0 0
      %8234 = vmatprep.subr.bf16.mxu0 0
      %8235 = vmatpush1.bf16.msra.mxu0 0
      %8236 = vmatprep.subr.bf16.mxu0 0
      %8237 = vmatpush1.bf16.msra.mxu0 0
      %8238 = vmatprep.subr.bf16.mxu0 0
      %8239 = vmatpush1.bf16.msra.mxu0 0
      %8240 = vmatprep.subr.bf16.mxu0 0
      %8241 = vmatpush1.bf16.msra.mxu0 0
      %8242 = vmatprep.subr.bf16.mxu0 0
      %8243 = vmatpush1.bf16.msra.mxu0 0
      %8244 = vmatprep.subr.bf16.mxu0 0
      %8245 = vmatpush1.bf16.msra.mxu0 %v8228
      %8246 = vmatprep.subr.bf16.mxu0 0
      %8247 = vmatpush2.bf16.msra.mxu0 0
      %8248 = vmatprep.subr.bf16.mxu0 0
      %8249 = vmatpush2.bf16.msra.mxu0 0
      %8250 = vmatprep.subr.bf16.mxu0 0
      %8251 = vmatpush2.bf16.msra.mxu0 0
      %8252 = vmatprep.subr.bf16.mxu0 0
      %8253 = vmatpush2.bf16.msra.mxu0 0
      %8254 = vmatprep.subr.bf16.mxu0 0
      %8255 = vmatpush2.bf16.msra.mxu0 0
      %8256 = vmatprep.subr.bf16.mxu0 0
      %8257 = vmatpush2.bf16.msra.mxu0 0
      %8258 = vmatprep.subr.bf16.mxu0 0
      %8259 = vmatpush2.bf16.msra.mxu0 0
      %8260 = vmatprep.subr.bf16.mxu0 0
      %8261 = vmatpush2.bf16.msra.mxu0 0
      %8262 = vmatprep.mubr.bf16.mxu0 0
      %8263 = vmatmul.mubr.bf16.gmra.mxu0 %v8132
      %v8264 = vpop.f32.mrf.mxu0
      %v8265 = vadd.f32 0.0, %v8264
      %v8266 = vpop.f32.mrf.mxu0
      %v8267 = vpop.f32.mrf.mxu0
      %v8268 = vadd.f32 0.0, %v8267
      %v8269 = vpop.f32.mrf.mxu0
      %8270 = vmatprep.mubr.bf16.mxu0 0
      %8271 = vmatmul.mubr.bf16.gmra.mxu0 %v8135
      %v8272 = vpop.f32.mrf.mxu0
      %v8273 = vpop.f32.mrf.mxu0
      %v8274 = vpop.f32.mrf.mxu0
      %v8275 = vpop.f32.mrf.mxu0
      %8276 = vmatprep.mubr.bf16.mxu0 0
      %8277 = vmatmul.mubr.bf16.gmra.mxu0 %v8138
      %v8278 = vpop.f32.mrf.mxu0
      %v8279 = vadd.f32 0.0, %v8278
      %v8280 = vpop.f32.mrf.mxu0
      %v8281 = vpop.f32.mrf.mxu0
      %v8282 = vadd.f32 0.0, %v8281
      %v8283 = vpop.f32.mrf.mxu0
      %8284 = vmatprep.mubr.bf16.mxu0 0
      %8285 = vmatmul.mubr.bf16.gmra.mxu0 %v8141
      %v8286 = vpop.f32.mrf.mxu0
      %v8287 = vpop.f32.mrf.mxu0
      %v8288 = vpop.f32.mrf.mxu0
      %v8289 = vpop.f32.mrf.mxu0
      %8290 = vmatprep.mubr.bf16.mxu0 0
      %8291 = vmatmul.mubr.bf16.gmra.mxu0 %v8144
      %v8292 = vpop.f32.mrf.mxu0
      %v8293 = vadd.f32 0.0, %v8292
      %v8294 = vpop.f32.mrf.mxu0
      %v8295 = vpop.f32.mrf.mxu0
      %v8296 = vadd.f32 0.0, %v8295
      %v8297 = vpop.f32.mrf.mxu0
      %8298 = vmatprep.mubr.bf16.mxu0 0
      %8299 = vmatmul.mubr.bf16.gmra.mxu0 %v8147
      %v8300 = vpop.f32.mrf.mxu0
      %v8301 = vpop.f32.mrf.mxu0
      %v8302 = vpop.f32.mrf.mxu0
      %v8303 = vpop.f32.mrf.mxu0
      %8304 = vmatprep.mubr.bf16.mxu0 0
      %8305 = vmatmul.mubr.bf16.gmra.mxu0 %v8150
      %v8306 = vpop.f32.mrf.mxu0
      %v8307 = vadd.f32 0.0, %v8306
      %v8308 = vpop.f32.mrf.mxu0
      %v8309 = vpop.f32.mrf.mxu0
      %v8310 = vadd.f32 0.0, %v8309
      %v8311 = vpop.f32.mrf.mxu0
      %8312 = vmatprep.mubr.bf16.mxu0 0
      %8313 = vmatmul.mubr.bf16.gmra.mxu0 %v8153
      %v8314 = vpop.f32.mrf.mxu0
      %v8315 = vpop.f32.mrf.mxu0
      %v8316 = vpop.f32.mrf.mxu0
      %v8317 = vpop.f32.mrf.mxu0
      %8318 = vmatprep.mubr.bf16.mxu0 0
      %8319 = vmatmul.mubr.bf16.gmra.mxu0 %v8156
      %v8320 = vpop.f32.mrf.mxu0
      %v8321 = vadd.f32 0.0, %v8320
      %v8322 = vpop.f32.mrf.mxu0
      %v8323 = vpop.f32.mrf.mxu0
      %v8324 = vadd.f32 0.0, %v8323
      %v8325 = vpop.f32.mrf.mxu0
      %8326 = vmatprep.mubr.bf16.mxu0 0
      %8327 = vmatmul.mubr.bf16.gmra.mxu0 %v8159
      %v8328 = vpop.f32.mrf.mxu0
      %v8329 = vpop.f32.mrf.mxu0
      %v8330 = vpop.f32.mrf.mxu0
      %v8331 = vpop.f32.mrf.mxu0
      %8332 = vmatprep.mubr.bf16.mxu0 0
      %8333 = vmatmul.mubr.bf16.gmra.mxu0 %v8162
      %v8334 = vpop.f32.mrf.mxu0
      %v8335 = vadd.f32 0.0, %v8334
      %v8336 = vpop.f32.mrf.mxu0
      %v8337 = vpop.f32.mrf.mxu0
      %v8338 = vadd.f32 0.0, %v8337
      %v8339 = vpop.f32.mrf.mxu0
      %8340 = vmatprep.mubr.bf16.mxu0 0
      %8341 = vmatmul.mubr.bf16.gmra.mxu0 %v8165
      %v8342 = vpop.f32.mrf.mxu0
      %v8343 = vpop.f32.mrf.mxu0
      %v8344 = vpop.f32.mrf.mxu0
      %v8345 = vpop.f32.mrf.mxu0
      %8346 = vmatprep.mubr.bf16.mxu0 0
      %8347 = vmatmul.mubr.bf16.gmra.mxu0 %v8168
      %v8348 = vpop.f32.mrf.mxu0
      %v8349 = vadd.f32 0.0, %v8348
      %v8350 = vpop.f32.mrf.mxu0
      %v8351 = vpop.f32.mrf.mxu0
      %v8352 = vadd.f32 0.0, %v8351
      %v8353 = vpop.f32.mrf.mxu0
      %8354 = vmatprep.mubr.bf16.mxu0 0
      %8355 = vmatmul.mubr.bf16.gmra.mxu0 %v8171
      %v8356 = vpop.f32.mrf.mxu0
      %v8357 = vpop.f32.mrf.mxu0
      %v8358 = vpop.f32.mrf.mxu0
      %v8359 = vpop.f32.mrf.mxu0
      %8360 = vmatprep.mubr.bf16.mxu0 0
      %8361 = vmatmul.mubr.bf16.gmra.mxu0 %v8174
      %v8362 = vpop.f32.mrf.mxu0
      %v8363 = vadd.f32 0.0, %v8362
      %v8364 = vpop.f32.mrf.mxu0
      %v8365 = vpop.f32.mrf.mxu0
      %v8366 = vadd.f32 0.0, %v8365
      %v8367 = vpop.f32.mrf.mxu0
      %8368 = vmatprep.mubr.bf16.mxu0 0
      %8369 = vmatmul.mubr.bf16.gmra.mxu0 %v8177
      %v8370 = vpop.f32.mrf.mxu0
      %v8371 = vpop.f32.mrf.mxu0
      %v8372 = vpop.f32.mrf.mxu0
      %v8373 = vpop.f32.mrf.mxu0
      %8374 = vmatprep.mubr.bf16.mxu0 0
      %8375 = vmatmul.mubr.bf16.gmra.mxu0 %v8180
      %v8376 = vpop.f32.mrf.mxu0
      %v8377 = vadd.f32 0.0, %v8376
      %v8378 = vpop.f32.mrf.mxu0
      %v8379 = vpop.f32.mrf.mxu0
      %v8380 = vadd.f32 0.0, %v8379
      %v8381 = vpop.f32.mrf.mxu0
      %8382 = vmatprep.mubr.bf16.mxu0 0
      %8383 = vmatmul.mubr.bf16.gmra.mxu0 %v8183
      %v8384 = vpop.f32.mrf.mxu0
      %v8385 = vpop.f32.mrf.mxu0
      %v8386 = vpop.f32.mrf.mxu0
      %v8387 = vpop.f32.mrf.mxu0
      %8388 = vmatprep.mubr.bf16.mxu0 0
      %8389 = vmatmul.mubr.bf16.gmra.mxu0 %v8186
      %v8390 = vpop.f32.mrf.mxu0
      %v8391 = vadd.f32 0.0, %v8390
      %v8392 = vpop.f32.mrf.mxu0
      %v8393 = vpop.f32.mrf.mxu0
      %v8394 = vadd.f32 0.0, %v8393
      %v8395 = vpop.f32.mrf.mxu0
      %8396 = vmatprep.mubr.bf16.mxu0 0
      %8397 = vmatmul.mubr.bf16.gmra.mxu0 %v8189
      %v8398 = vpop.f32.mrf.mxu0
      %v8399 = vpop.f32.mrf.mxu0
      %v8400 = vpop.f32.mrf.mxu0
      %v8401 = vpop.f32.mrf.mxu0
      %8402 = vmatprep.mubr.bf16.mxu0 0
      %8403 = vmatmul.mubr.bf16.gmra.mxu0 %v8192
      %v8404 = vpop.f32.mrf.mxu0
      %v8405 = vadd.f32 0.0, %v8404
      %v8406 = vpop.f32.mrf.mxu0
      %v8407 = vpop.f32.mrf.mxu0
      %v8408 = vadd.f32 0.0, %v8407
      %v8409 = vpop.f32.mrf.mxu0
      %8410 = vmatprep.mubr.bf16.mxu0 0
      %8411 = vmatmul.mubr.bf16.gmra.mxu0 %v8195
      %v8412 = vpop.f32.mrf.mxu0
      %v8413 = vpop.f32.mrf.mxu0
      %v8414 = vpop.f32.mrf.mxu0
      %v8415 = vpop.f32.mrf.mxu0
      %8416 = vmatprep.mubr.bf16.mxu0 0
      %8417 = vmatmul.mubr.bf16.gmra.mxu0 %v8198
      %v8418 = vpop.f32.mrf.mxu0
      %v8419 = vadd.f32 0.0, %v8418
      %v8420 = vpop.f32.mrf.mxu0
      %v8421 = vpop.f32.mrf.mxu0
      %v8422 = vadd.f32 0.0, %v8421
      %v8423 = vpop.f32.mrf.mxu0
      %8424 = vmatprep.mubr.bf16.mxu0 0
      %8425 = vmatmul.mubr.bf16.gmra.mxu0 %v8201
      %v8426 = vpop.f32.mrf.mxu0
      %v8427 = vpop.f32.mrf.mxu0
      %v8428 = vpop.f32.mrf.mxu0
      %v8429 = vpop.f32.mrf.mxu0
      %8430 = vmatprep.mubr.bf16.mxu0 0
      %8431 = vmatmul.mubr.bf16.gmra.mxu0 %v8204
      %v8432 = vpop.f32.mrf.mxu0
      %v8433 = vadd.f32 0.0, %v8432
      %v8434 = vpop.f32.mrf.mxu0
      %v8435 = vpop.f32.mrf.mxu0
      %v8436 = vadd.f32 0.0, %v8435
      %v8437 = vpop.f32.mrf.mxu0
      %8438 = vmatprep.mubr.bf16.mxu0 0
      %8439 = vmatmul.mubr.bf16.gmra.mxu0 %v8207
      %v8440 = vpop.f32.mrf.mxu0
      %v8441 = vpop.f32.mrf.mxu0
      %v8442 = vpop.f32.mrf.mxu0
      %v8443 = vpop.f32.mrf.mxu0
      %8444 = vmatprep.mubr.bf16.mxu0 0
      %8445 = vmatmul.mubr.bf16.gmra.mxu0 %v8210
      %v8446 = vpop.f32.mrf.mxu0
      %v8447 = vadd.f32 0.0, %v8446
      %v8448 = vpop.f32.mrf.mxu0
      %v8449 = vpop.f32.mrf.mxu0
      %v8450 = vadd.f32 0.0, %v8449
      %v8451 = vpop.f32.mrf.mxu0
      %8452 = vmatprep.mubr.bf16.mxu0 0
      %8453 = vmatmul.mubr.bf16.gmra.mxu0 %v8213
      %v8454 = vpop.f32.mrf.mxu0
      %v8455 = vpop.f32.mrf.mxu0
      %v8456 = vpop.f32.mrf.mxu0
      %v8457 = vpop.f32.mrf.mxu0
      %8458 = vmatprep.mubr.bf16.mxu0 0
      %8459 = vmatmul.mubr.bf16.gmra.mxu0 %v8216
      %v8460 = vpop.f32.mrf.mxu0
      %v8461 = vadd.f32 0.0, %v8460
      %v8462 = vpop.f32.mrf.mxu0
      %v8463 = vpop.f32.mrf.mxu0
      %v8464 = vadd.f32 0.0, %v8463
      %v8465 = vpop.f32.mrf.mxu0
      %8466 = vmatprep.mubr.bf16.mxu0 0
      %8467 = vmatmul.mubr.bf16.gmra.mxu0 %v8219
      %v8468 = vpop.f32.mrf.mxu0
      %v8469 = vpop.f32.mrf.mxu0
      %v8470 = vpop.f32.mrf.mxu0
      %v8471 = vpop.f32.mrf.mxu0
      %8472 = vmatprep.mubr.bf16.mxu0 0
      %8473 = vmatmul.mubr.bf16.gmra.mxu0 %v8222
      %v8474 = vpop.f32.mrf.mxu0
      %v8475 = vadd.f32 0.0, %v8474
      %v8476 = vpop.f32.mrf.mxu0
      %v8477 = vpop.f32.mrf.mxu0
      %v8478 = vadd.f32 0.0, %v8477
      %v8479 = vpop.f32.mrf.mxu0
      %8480 = vmatprep.mubr.bf16.mxu0 0
      %8481 = vmatmul.mubr.bf16.gmra.mxu0 %v8225
      %v8482 = vpop.f32.mrf.mxu0
      %v8483 = vpop.f32.mrf.mxu0
      %v8484 = vpop.f32.mrf.mxu0
      %v8485 = vpop.f32.mrf.mxu0
      %8486 = vdwg.mxu0
      %v8489 = vunpack.c.l.b16 %v7065
      %v8490 = vunpack.c.l.b16 %v7066
      %v8491 = vpack.c.b16 %v8490, %v8489
      %v8493 = vsel %vm3414, %v7033, 0
      %v8496 = vsel %vm3414, %v7034, 0
      %v8499 = vsel %vm3414, %v7035, 0
      %v8502 = vsel %vm3414, %v7036, 0
      %v8505 = vsel %vm3414, %v7037, 0
      %v8508 = vsel %vm3414, %v7038, 0
      %v8511 = vsel %vm3414, %v7039, 0
      %v8514 = vsel %vm3414, %v7040, 0
      %v8517 = vsel %vm3414, %v7041, 0
      %v8520 = vsel %vm3414, %v7042, 0
      %v8523 = vsel %vm3414, %v7043, 0
      %v8526 = vsel %vm3414, %v7044, 0
      %v8529 = vsel %vm3414, %v7045, 0
      %v8532 = vsel %vm3414, %v7046, 0
      %v8535 = vsel %vm3414, %v7047, 0
      %v8538 = vsel %vm3414, %v7048, 0
      %v8541 = vsel %vm3414, %v7049, 0
      %v8544 = vsel %vm3414, %v7050, 0
      %v8547 = vsel %vm3414, %v7051, 0
      %v8550 = vsel %vm3414, %v7052, 0
      %v8553 = vsel %vm3414, %v7053, 0
      %v8556 = vsel %vm3414, %v7054, 0
      %v8559 = vsel %vm3414, %v7055, 0
      %v8562 = vsel %vm3414, %v7056, 0
      %v8565 = vsel %vm3414, %v7057, 0
      %v8568 = vsel %vm3414, %v7058, 0
      %v8571 = vsel %vm3414, %v7059, 0
      %v8574 = vsel %vm3414, %v7060, 0
      %v8577 = vsel %vm3414, %v7061, 0
      %v8580 = vsel %vm3414, %v7062, 0
      %v8583 = vsel %vm3414, %v7063, 0
      %v8586 = vsel %vm3414, %v7064, 0
      %v8589 = vsel %vm3511, %v8491, 0
      %8591 = vmatprep.subr.bf16.mxu0 0
      %8592 = vmatpush1.bf16.msra.mxu0 0
      %8593 = vmatprep.subr.bf16.mxu0 0
      %8594 = vmatpush1.bf16.msra.mxu0 0
      %8595 = vmatprep.subr.bf16.mxu0 0
      %8596 = vmatpush1.bf16.msra.mxu0 0
      %8597 = vmatprep.subr.bf16.mxu0 0
      %8598 = vmatpush1.bf16.msra.mxu0 0
      %8599 = vmatprep.subr.bf16.mxu0 0
      %8600 = vmatpush1.bf16.msra.mxu0 0
      %8601 = vmatprep.subr.bf16.mxu0 0
      %8602 = vmatpush1.bf16.msra.mxu0 0
      %8603 = vmatprep.subr.bf16.mxu0 0
      %8604 = vmatpush1.bf16.msra.mxu0 0
      %8605 = vmatprep.subr.bf16.mxu0 0
      %8606 = vmatpush1.bf16.msra.mxu0 %v8589
      %8607 = vmatprep.subr.bf16.mxu0 0
      %8608 = vmatpush2.bf16.msra.mxu0 0
      %8609 = vmatprep.subr.bf16.mxu0 0
      %8610 = vmatpush2.bf16.msra.mxu0 0
      %8611 = vmatprep.subr.bf16.mxu0 0
      %8612 = vmatpush2.bf16.msra.mxu0 0
      %8613 = vmatprep.subr.bf16.mxu0 0
      %8614 = vmatpush2.bf16.msra.mxu0 0
      %8615 = vmatprep.subr.bf16.mxu0 0
      %8616 = vmatpush2.bf16.msra.mxu0 0
      %8617 = vmatprep.subr.bf16.mxu0 0
      %8618 = vmatpush2.bf16.msra.mxu0 0
      %8619 = vmatprep.subr.bf16.mxu0 0
      %8620 = vmatpush2.bf16.msra.mxu0 0
      %8621 = vmatprep.subr.bf16.mxu0 0
      %8622 = vmatpush2.bf16.msra.mxu0 0
      %8623 = vmatprep.mubr.bf16.mxu0 0
      %8624 = vmatmul.mubr.bf16.gmra.mxu0 %v8493
      %v8625 = vpop.f32.mrf.mxu0
      %v8626 = vadd.f32 %v8265, %v8625
      %v8627 = vpop.f32.mrf.mxu0
      %v8628 = vpop.f32.mrf.mxu0
      %v8629 = vadd.f32 %v8268, %v8628
      %v8630 = vpop.f32.mrf.mxu0
      %8631 = vmatprep.mubr.bf16.mxu0 0
      %8632 = vmatmul.mubr.bf16.gmra.mxu0 %v8496
      %v8633 = vpop.f32.mrf.mxu0
      %v8634 = vpop.f32.mrf.mxu0
      %v8635 = vpop.f32.mrf.mxu0
      %v8636 = vpop.f32.mrf.mxu0
      %8637 = vmatprep.mubr.bf16.mxu0 0
      %8638 = vmatmul.mubr.bf16.gmra.mxu0 %v8499
      %v8639 = vpop.f32.mrf.mxu0
      %v8640 = vadd.f32 %v8279, %v8639
      %v8641 = vpop.f32.mrf.mxu0
      %v8642 = vpop.f32.mrf.mxu0
      %v8643 = vadd.f32 %v8282, %v8642
      %v8644 = vpop.f32.mrf.mxu0
      %8645 = vmatprep.mubr.bf16.mxu0 0
      %8646 = vmatmul.mubr.bf16.gmra.mxu0 %v8502
      %v8647 = vpop.f32.mrf.mxu0
      %v8648 = vpop.f32.mrf.mxu0
      %v8649 = vpop.f32.mrf.mxu0
      %v8650 = vpop.f32.mrf.mxu0
      %8651 = vmatprep.mubr.bf16.mxu0 0
      %8652 = vmatmul.mubr.bf16.gmra.mxu0 %v8505
      %v8653 = vpop.f32.mrf.mxu0
      %v8654 = vadd.f32 %v8293, %v8653
      %v8655 = vpop.f32.mrf.mxu0
      %v8656 = vpop.f32.mrf.mxu0
      %v8657 = vadd.f32 %v8296, %v8656
      %v8658 = vpop.f32.mrf.mxu0
      %8659 = vmatprep.mubr.bf16.mxu0 0
      %8660 = vmatmul.mubr.bf16.gmra.mxu0 %v8508
      %v8661 = vpop.f32.mrf.mxu0
      %v8662 = vpop.f32.mrf.mxu0
      %v8663 = vpop.f32.mrf.mxu0
      %v8664 = vpop.f32.mrf.mxu0
      %8665 = vmatprep.mubr.bf16.mxu0 0
      %8666 = vmatmul.mubr.bf16.gmra.mxu0 %v8511
      %v8667 = vpop.f32.mrf.mxu0
      %v8668 = vadd.f32 %v8307, %v8667
      %v8669 = vpop.f32.mrf.mxu0
      %v8670 = vpop.f32.mrf.mxu0
      %v8671 = vadd.f32 %v8310, %v8670
      %v8672 = vpop.f32.mrf.mxu0
      %8673 = vmatprep.mubr.bf16.mxu0 0
      %8674 = vmatmul.mubr.bf16.gmra.mxu0 %v8514
      %v8675 = vpop.f32.mrf.mxu0
      %v8676 = vpop.f32.mrf.mxu0
      %v8677 = vpop.f32.mrf.mxu0
      %v8678 = vpop.f32.mrf.mxu0
      %8679 = vmatprep.mubr.bf16.mxu0 0
      %8680 = vmatmul.mubr.bf16.gmra.mxu0 %v8517
      %v8681 = vpop.f32.mrf.mxu0
      %v8682 = vadd.f32 %v8321, %v8681
      %v8683 = vpop.f32.mrf.mxu0
      %v8684 = vpop.f32.mrf.mxu0
      %v8685 = vadd.f32 %v8324, %v8684
      %v8686 = vpop.f32.mrf.mxu0
      %8687 = vmatprep.mubr.bf16.mxu0 0
      %8688 = vmatmul.mubr.bf16.gmra.mxu0 %v8520
      %v8689 = vpop.f32.mrf.mxu0
      %v8690 = vpop.f32.mrf.mxu0
      %v8691 = vpop.f32.mrf.mxu0
      %v8692 = vpop.f32.mrf.mxu0
      %8693 = vmatprep.mubr.bf16.mxu0 0
      %8694 = vmatmul.mubr.bf16.gmra.mxu0 %v8523
      %v8695 = vpop.f32.mrf.mxu0
      %v8696 = vadd.f32 %v8335, %v8695
      %v8697 = vpop.f32.mrf.mxu0
      %v8698 = vpop.f32.mrf.mxu0
      %v8699 = vadd.f32 %v8338, %v8698
      %v8700 = vpop.f32.mrf.mxu0
      %8701 = vmatprep.mubr.bf16.mxu0 0
      %8702 = vmatmul.mubr.bf16.gmra.mxu0 %v8526
      %v8703 = vpop.f32.mrf.mxu0
      %v8704 = vpop.f32.mrf.mxu0
      %v8705 = vpop.f32.mrf.mxu0
      %v8706 = vpop.f32.mrf.mxu0
      %8707 = vmatprep.mubr.bf16.mxu0 0
      %8708 = vmatmul.mubr.bf16.gmra.mxu0 %v8529
      %v8709 = vpop.f32.mrf.mxu0
      %v8710 = vadd.f32 %v8349, %v8709
      %v8711 = vpop.f32.mrf.mxu0
      %v8712 = vpop.f32.mrf.mxu0
      %v8713 = vadd.f32 %v8352, %v8712
      %v8714 = vpop.f32.mrf.mxu0
      %8715 = vmatprep.mubr.bf16.mxu0 0
      %8716 = vmatmul.mubr.bf16.gmra.mxu0 %v8532
      %v8717 = vpop.f32.mrf.mxu0
      %v8718 = vpop.f32.mrf.mxu0
      %v8719 = vpop.f32.mrf.mxu0
      %v8720 = vpop.f32.mrf.mxu0
      %8721 = vmatprep.mubr.bf16.mxu0 0
      %8722 = vmatmul.mubr.bf16.gmra.mxu0 %v8535
      %v8723 = vpop.f32.mrf.mxu0
      %v8724 = vadd.f32 %v8363, %v8723
      %v8725 = vpop.f32.mrf.mxu0
      %v8726 = vpop.f32.mrf.mxu0
      %v8727 = vadd.f32 %v8366, %v8726
      %v8728 = vpop.f32.mrf.mxu0
      %8729 = vmatprep.mubr.bf16.mxu0 0
      %8730 = vmatmul.mubr.bf16.gmra.mxu0 %v8538
      %v8731 = vpop.f32.mrf.mxu0
      %v8732 = vpop.f32.mrf.mxu0
      %v8733 = vpop.f32.mrf.mxu0
      %v8734 = vpop.f32.mrf.mxu0
      %8735 = vmatprep.mubr.bf16.mxu0 0
      %8736 = vmatmul.mubr.bf16.gmra.mxu0 %v8541
      %v8737 = vpop.f32.mrf.mxu0
      %v8738 = vadd.f32 %v8377, %v8737
      %v8739 = vpop.f32.mrf.mxu0
      %v8740 = vpop.f32.mrf.mxu0
      %v8741 = vadd.f32 %v8380, %v8740
      %v8742 = vpop.f32.mrf.mxu0
      %8743 = vmatprep.mubr.bf16.mxu0 0
      %8744 = vmatmul.mubr.bf16.gmra.mxu0 %v8544
      %v8745 = vpop.f32.mrf.mxu0
      %v8746 = vpop.f32.mrf.mxu0
      %v8747 = vpop.f32.mrf.mxu0
      %v8748 = vpop.f32.mrf.mxu0
      %8749 = vmatprep.mubr.bf16.mxu0 0
      %8750 = vmatmul.mubr.bf16.gmra.mxu0 %v8547
      %v8751 = vpop.f32.mrf.mxu0
      %v8752 = vadd.f32 %v8391, %v8751
      %v8753 = vpop.f32.mrf.mxu0
      %v8754 = vpop.f32.mrf.mxu0
      %v8755 = vadd.f32 %v8394, %v8754
      %v8756 = vpop.f32.mrf.mxu0
      %8757 = vmatprep.mubr.bf16.mxu0 0
      %8758 = vmatmul.mubr.bf16.gmra.mxu0 %v8550
      %v8759 = vpop.f32.mrf.mxu0
      %v8760 = vpop.f32.mrf.mxu0
      %v8761 = vpop.f32.mrf.mxu0
      %v8762 = vpop.f32.mrf.mxu0
      %8763 = vmatprep.mubr.bf16.mxu0 0
      %8764 = vmatmul.mubr.bf16.gmra.mxu0 %v8553
      %v8765 = vpop.f32.mrf.mxu0
      %v8766 = vadd.f32 %v8405, %v8765
      %v8767 = vpop.f32.mrf.mxu0
      %v8768 = vpop.f32.mrf.mxu0
      %v8769 = vadd.f32 %v8408, %v8768
      %v8770 = vpop.f32.mrf.mxu0
      %8771 = vmatprep.mubr.bf16.mxu0 0
      %8772 = vmatmul.mubr.bf16.gmra.mxu0 %v8556
      %v8773 = vpop.f32.mrf.mxu0
      %v8774 = vpop.f32.mrf.mxu0
      %v8775 = vpop.f32.mrf.mxu0
      %v8776 = vpop.f32.mrf.mxu0
      %8777 = vmatprep.mubr.bf16.mxu0 0
      %8778 = vmatmul.mubr.bf16.gmra.mxu0 %v8559
      %v8779 = vpop.f32.mrf.mxu0
      %v8780 = vadd.f32 %v8419, %v8779
      %v8781 = vpop.f32.mrf.mxu0
      %v8782 = vpop.f32.mrf.mxu0
      %v8783 = vadd.f32 %v8422, %v8782
      %v8784 = vpop.f32.mrf.mxu0
      %8785 = vmatprep.mubr.bf16.mxu0 0
      %8786 = vmatmul.mubr.bf16.gmra.mxu0 %v8562
      %v8787 = vpop.f32.mrf.mxu0
      %v8788 = vpop.f32.mrf.mxu0
      %v8789 = vpop.f32.mrf.mxu0
      %v8790 = vpop.f32.mrf.mxu0
      %8791 = vmatprep.mubr.bf16.mxu0 0
      %8792 = vmatmul.mubr.bf16.gmra.mxu0 %v8565
      %v8793 = vpop.f32.mrf.mxu0
      %v8794 = vadd.f32 %v8433, %v8793
      %v8795 = vpop.f32.mrf.mxu0
      %v8796 = vpop.f32.mrf.mxu0
      %v8797 = vadd.f32 %v8436, %v8796
      %v8798 = vpop.f32.mrf.mxu0
      %8799 = vmatprep.mubr.bf16.mxu0 0
      %8800 = vmatmul.mubr.bf16.gmra.mxu0 %v8568
      %v8801 = vpop.f32.mrf.mxu0
      %v8802 = vpop.f32.mrf.mxu0
      %v8803 = vpop.f32.mrf.mxu0
      %v8804 = vpop.f32.mrf.mxu0
      %8805 = vmatprep.mubr.bf16.mxu0 0
      %8806 = vmatmul.mubr.bf16.gmra.mxu0 %v8571
      %v8807 = vpop.f32.mrf.mxu0
      %v8808 = vadd.f32 %v8447, %v8807
      %v8809 = vpop.f32.mrf.mxu0
      %v8810 = vpop.f32.mrf.mxu0
      %v8811 = vadd.f32 %v8450, %v8810
      %v8812 = vpop.f32.mrf.mxu0
      %8813 = vmatprep.mubr.bf16.mxu0 0
      %8814 = vmatmul.mubr.bf16.gmra.mxu0 %v8574
      %v8815 = vpop.f32.mrf.mxu0
      %v8816 = vpop.f32.mrf.mxu0
      %v8817 = vpop.f32.mrf.mxu0
      %v8818 = vpop.f32.mrf.mxu0
      %8819 = vmatprep.mubr.bf16.mxu0 0
      %8820 = vmatmul.mubr.bf16.gmra.mxu0 %v8577
      %v8821 = vpop.f32.mrf.mxu0
      %v8822 = vadd.f32 %v8461, %v8821
      %v8823 = vpop.f32.mrf.mxu0
      %v8824 = vpop.f32.mrf.mxu0
      %v8825 = vadd.f32 %v8464, %v8824
      %v8826 = vpop.f32.mrf.mxu0
      %8827 = vmatprep.mubr.bf16.mxu0 0
      %8828 = vmatmul.mubr.bf16.gmra.mxu0 %v8580
      %v8829 = vpop.f32.mrf.mxu0
      %v8830 = vpop.f32.mrf.mxu0
      %v8831 = vpop.f32.mrf.mxu0
      %v8832 = vpop.f32.mrf.mxu0
      %8833 = vmatprep.mubr.bf16.mxu0 0
      %8834 = vmatmul.mubr.bf16.gmra.mxu0 %v8583
      %v8835 = vpop.f32.mrf.mxu0
      %v8836 = vadd.f32 %v8475, %v8835
      %v8837 = vpop.f32.mrf.mxu0
      %v8838 = vpop.f32.mrf.mxu0
      %v8839 = vadd.f32 %v8478, %v8838
      %v8840 = vpop.f32.mrf.mxu0
      %8841 = vmatprep.mubr.bf16.mxu0 0
      %8842 = vmatmul.mubr.bf16.gmra.mxu0 %v8586
      %v8843 = vpop.f32.mrf.mxu0
      %v8844 = vpop.f32.mrf.mxu0
      %v8845 = vpop.f32.mrf.mxu0
      %v8846 = vpop.f32.mrf.mxu0
      %8847 = vdwg.mxu0
      %v8848 = vld [vmem:[%s4133] sm:$0xf]
      %v8849 = vld [vmem:[%s4133 + $0x4] sm:$0xf]
      %v8850 = vld [vmem:[%s4133 + $0x8] sm:$0xf]
      %v8851 = vld [vmem:[%s4133 + $0xc] sm:$0xf]
      %v8852 = vld [vmem:[%s4133 + $0x10] sm:$0xf]
      %v8853 = vld [vmem:[%s4133 + $0x14] sm:$0xf]
      %v8854 = vld [vmem:[%s4133 + $0x18] sm:$0xf]
      %v8855 = vld [vmem:[%s4133 + $0x1c] sm:$0xf]
      %v8856 = vld [vmem:[%s4133 + $0x20] sm:$0xf]
      %v8857 = vld [vmem:[%s4133 + $0x24] sm:$0xf]
      %v8858 = vld [vmem:[%s4133 + $0x28] sm:$0xf]
      %v8859 = vld [vmem:[%s4133 + $0x2c] sm:$0xf]
      %v8860 = vld [vmem:[%s4133 + $0x30] sm:$0xf]
      %v8861 = vld [vmem:[%s4133 + $0x34] sm:$0xf]
      %v8862 = vld [vmem:[%s4133 + $0x38] sm:$0xf]
      %v8863 = vld [vmem:[%s4133 + $0x3c] sm:$0xf]
      %v8864 = vld [vmem:[%s4133 + $0x40] sm:$0xf]
      %v8865 = vld [vmem:[%s4133 + $0x44] sm:$0xf]
      %v8866 = vld [vmem:[%s4133 + $0x48] sm:$0xf]
      %v8867 = vld [vmem:[%s4133 + $0x4c] sm:$0xf]
      %v8868 = vld [vmem:[%s4133 + $0x50] sm:$0xf]
      %v8869 = vld [vmem:[%s4133 + $0x54] sm:$0xf]
      %v8870 = vld [vmem:[%s4133 + $0x58] sm:$0xf]
      %v8871 = vld [vmem:[%s4133 + $0x5c] sm:$0xf]
      %v8872 = vld [vmem:[%s4133 + $0x60] sm:$0xf]
      %v8873 = vld [vmem:[%s4133 + $0x64] sm:$0xf]
      %v8874 = vld [vmem:[%s4133 + $0x68] sm:$0xf]
      %v8875 = vld [vmem:[%s4133 + $0x6c] sm:$0xf]
      %v8876 = vld [vmem:[%s4133 + $0x70] sm:$0xf]
      %v8877 = vld [vmem:[%s4133 + $0x74] sm:$0xf]
      %v8878 = vld [vmem:[%s4133 + $0x78] sm:$0xf]
      %v8879 = vld [vmem:[%s4133 + $0x7c] sm:$0xf]
      %v8880 = vld [vmem:[%s4133 + $0x80] sm:$0xf]
      %v8881 = vld [vmem:[%s4133 + $0x84] sm:$0xf]
      %v8882 = vld [vmem:[%s4133 + $0x88] sm:$0xf]
      %v8883 = vld [vmem:[%s4133 + $0x8c] sm:$0xf]
      %v8884 = vld [vmem:[%s4133 + $0x90] sm:$0xf]
      %v8885 = vld [vmem:[%s4133 + $0x94] sm:$0xf]
      %v8886 = vld [vmem:[%s4133 + $0x98] sm:$0xf]
      %v8887 = vld [vmem:[%s4133 + $0x9c] sm:$0xf]
      %v8888 = vld [vmem:[%s4133 + $0xa0] sm:$0xf]
      %v8889 = vld [vmem:[%s4133 + $0xa4] sm:$0xf]
      %v8890 = vld [vmem:[%s4133 + $0xa8] sm:$0xf]
      %v8891 = vld [vmem:[%s4133 + $0xac] sm:$0xf]
      %v8892 = vld [vmem:[%s4133 + $0xb0] sm:$0xf]
      %v8893 = vld [vmem:[%s4133 + $0xb4] sm:$0xf]
      %v8894 = vld [vmem:[%s4133 + $0xb8] sm:$0xf]
      %v8895 = vld [vmem:[%s4133 + $0xbc] sm:$0xf]
      %v8896 = vld [vmem:[%s4133 + $0xc0] sm:$0xf]
      %v8897 = vld [vmem:[%s4133 + $0xc4] sm:$0xf]
      %v8898 = vld [vmem:[%s4133 + $0xc8] sm:$0xf]
      %v8899 = vld [vmem:[%s4133 + $0xcc] sm:$0xf]
      %v8900 = vld [vmem:[%s4133 + $0xd0] sm:$0xf]
      %v8901 = vld [vmem:[%s4133 + $0xd4] sm:$0xf]
      %v8902 = vld [vmem:[%s4133 + $0xd8] sm:$0xf]
      %v8903 = vld [vmem:[%s4133 + $0xdc] sm:$0xf]
      %v8904 = vld [vmem:[%s4133 + $0xe0] sm:$0xf]
      %v8905 = vld [vmem:[%s4133 + $0xe4] sm:$0xf]
      %v8906 = vld [vmem:[%s4133 + $0xe8] sm:$0xf]
      %v8907 = vld [vmem:[%s4133 + $0xec] sm:$0xf]
      %v8908 = vld [vmem:[%s4133 + $0xf0] sm:$0xf]
      %v8909 = vld [vmem:[%s4133 + $0xf4] sm:$0xf]
      %v8910 = vld [vmem:[%s4133 + $0xf8] sm:$0xf]
      %v8911 = vld [vmem:[%s4133 + $0xfc] sm:$0xf]
      %v8912 = vunpack.c.l.bf16 %v8848
      %v8913 = vunpack.c.l.bf16 %v8849
      %v8914 = vunpack.c.l.bf16 %v8850
      %v8915 = vunpack.c.l.bf16 %v8851
      %v8916 = vunpack.c.l.bf16 %v8852
      %v8917 = vunpack.c.l.bf16 %v8853
      %v8918 = vunpack.c.l.bf16 %v8854
      %v8919 = vunpack.c.l.bf16 %v8855
      %v8920 = vunpack.c.l.bf16 %v8856
      %v8921 = vunpack.c.l.bf16 %v8857
      %v8922 = vunpack.c.l.bf16 %v8858
      %v8923 = vunpack.c.l.bf16 %v8859
      %v8924 = vunpack.c.l.bf16 %v8860
      %v8925 = vunpack.c.l.bf16 %v8861
      %v8926 = vunpack.c.l.bf16 %v8862
      %v8927 = vunpack.c.l.bf16 %v8863
      %v8928 = vunpack.c.l.bf16 %v8864
      %v8929 = vunpack.c.l.bf16 %v8865
      %v8930 = vunpack.c.l.bf16 %v8866
      %v8931 = vunpack.c.l.bf16 %v8867
      %v8932 = vunpack.c.l.bf16 %v8868
      %v8933 = vunpack.c.l.bf16 %v8869
      %v8934 = vunpack.c.l.bf16 %v8870
      %v8935 = vunpack.c.l.bf16 %v8871
      %v8936 = vunpack.c.l.bf16 %v8872
      %v8937 = vunpack.c.l.bf16 %v8873
      %v8938 = vunpack.c.l.bf16 %v8874
      %v8939 = vunpack.c.l.bf16 %v8875
      %v8940 = vunpack.c.l.bf16 %v8876
      %v8941 = vunpack.c.l.bf16 %v8877
      %v8942 = vunpack.c.l.bf16 %v8878
      %v8943 = vunpack.c.l.bf16 %v8879
      %v8944 = vunpack.c.l.bf16 %v8880
      %v8945 = vunpack.c.l.bf16 %v8881
      %v8946 = vunpack.c.l.bf16 %v8882
      %v8947 = vunpack.c.l.bf16 %v8883
      %v8948 = vunpack.c.l.bf16 %v8884
      %v8949 = vunpack.c.l.bf16 %v8885
      %v8950 = vunpack.c.l.bf16 %v8886
      %v8951 = vunpack.c.l.bf16 %v8887
      %v8952 = vunpack.c.l.bf16 %v8888
      %v8953 = vunpack.c.l.bf16 %v8889
      %v8954 = vunpack.c.l.bf16 %v8890
      %v8955 = vunpack.c.l.bf16 %v8891
      %v8956 = vunpack.c.l.bf16 %v8892
      %v8957 = vunpack.c.l.bf16 %v8893
      %v8958 = vunpack.c.l.bf16 %v8894
      %v8959 = vunpack.c.l.bf16 %v8895
      %v8960 = vunpack.c.l.bf16 %v8896
      %v8961 = vunpack.c.l.bf16 %v8897
      %v8962 = vunpack.c.l.bf16 %v8898
      %v8963 = vunpack.c.l.bf16 %v8899
      %v8964 = vunpack.c.l.bf16 %v8900
      %v8965 = vunpack.c.l.bf16 %v8901
      %v8966 = vunpack.c.l.bf16 %v8902
      %v8967 = vunpack.c.l.bf16 %v8903
      %v8968 = vunpack.c.l.bf16 %v8904
      %v8969 = vunpack.c.l.bf16 %v8905
      %v8970 = vunpack.c.l.bf16 %v8906
      %v8971 = vunpack.c.l.bf16 %v8907
      %v8972 = vunpack.c.l.bf16 %v8908
      %v8973 = vunpack.c.l.bf16 %v8909
      %v8974 = vunpack.c.l.bf16 %v8910
      %v8975 = vunpack.c.l.bf16 %v8911
      %v8976 = vrot.slane %v8912, 7
      %v8977 = vrot.slane %v8913, 7
      %v8978 = vrot.slane %v8914, 7
      %v8979 = vrot.slane %v8915, 7
      %v8980 = vrot.slane %v8916, 7
      %v8981 = vrot.slane %v8917, 7
      %v8982 = vrot.slane %v8918, 7
      %v8983 = vrot.slane %v8919, 7
      %v8984 = vrot.slane %v8920, 7
      %v8985 = vrot.slane %v8921, 7
      %v8986 = vrot.slane %v8922, 7
      %v8987 = vrot.slane %v8923, 7
      %v8988 = vrot.slane %v8924, 7
      %v8989 = vrot.slane %v8925, 7
      %v8990 = vrot.slane %v8926, 7
      %v8991 = vrot.slane %v8927, 7
      %v8992 = vrot.slane %v8928, 7
      %v8993 = vrot.slane %v8929, 7
      %v8994 = vrot.slane %v8930, 7
      %v8995 = vrot.slane %v8931, 7
      %v8996 = vrot.slane %v8932, 7
      %v8997 = vrot.slane %v8933, 7
      %v8998 = vrot.slane %v8934, 7
      %v8999 = vrot.slane %v8935, 7
      %v9000 = vrot.slane %v8936, 7
      %v9001 = vrot.slane %v8937, 7
      %v9002 = vrot.slane %v8938, 7
      %v9003 = vrot.slane %v8939, 7
      %v9004 = vrot.slane %v8940, 7
      %v9005 = vrot.slane %v8941, 7
      %v9006 = vrot.slane %v8942, 7
      %v9007 = vrot.slane %v8943, 7
      %v9008 = vrot.slane %v8944, 7
      %v9009 = vrot.slane %v8945, 7
      %v9010 = vrot.slane %v8946, 7
      %v9011 = vrot.slane %v8947, 7
      %v9012 = vrot.slane %v8948, 7
      %v9013 = vrot.slane %v8949, 7
      %v9014 = vrot.slane %v8950, 7
      %v9015 = vrot.slane %v8951, 7
      %v9016 = vrot.slane %v8952, 7
      %v9017 = vrot.slane %v8953, 7
      %v9018 = vrot.slane %v8954, 7
      %v9019 = vrot.slane %v8955, 7
      %v9020 = vrot.slane %v8956, 7
      %v9021 = vrot.slane %v8957, 7
      %v9022 = vrot.slane %v8958, 7
      %v9023 = vrot.slane %v8959, 7
      %v9024 = vrot.slane %v8960, 7
      %v9025 = vrot.slane %v8961, 7
      %v9026 = vrot.slane %v8962, 7
      %v9027 = vrot.slane %v8963, 7
      %v9028 = vrot.slane %v8964, 7
      %v9029 = vrot.slane %v8965, 7
      %v9030 = vrot.slane %v8966, 7
      %v9031 = vrot.slane %v8967, 7
      %v9032 = vrot.slane %v8968, 7
      %v9033 = vrot.slane %v8969, 7
      %v9034 = vrot.slane %v8970, 7
      %v9035 = vrot.slane %v8971, 7
      %v9036 = vrot.slane %v8972, 7
      %v9037 = vrot.slane %v8973, 7
      %v9038 = vrot.slane %v8974, 7
      %v9039 = vrot.slane %v8975, 7
      %v9040 = vsel %vm1481, %v9038, %v9039
      %v9041 = vsel %vm1481, %v9037, %v9038
      %v9042 = vsel %vm1481, %v9036, %v9037
      %v9043 = vsel %vm1481, %v9035, %v9036
      %v9044 = vsel %vm1481, %v9034, %v9035
      %v9045 = vsel %vm1481, %v9033, %v9034
      %v9046 = vsel %vm1481, %v9032, %v9033
      %v9047 = vsel %vm1481, %v9031, %v9032
      %v9048 = vsel %vm1481, %v9030, %v9031
      %v9049 = vsel %vm1481, %v9029, %v9030
      %v9050 = vsel %vm1481, %v9028, %v9029
      %v9051 = vsel %vm1481, %v9027, %v9028
      %v9052 = vsel %vm1481, %v9026, %v9027
      %v9053 = vsel %vm1481, %v9025, %v9026
      %v9054 = vsel %vm1481, %v9024, %v9025
      %v9055 = vsel %vm1481, %v9023, %v9024
      %v9056 = vsel %vm1481, %v9022, %v9023
      %v9057 = vsel %vm1481, %v9021, %v9022
      %v9058 = vsel %vm1481, %v9020, %v9021
      %v9059 = vsel %vm1481, %v9019, %v9020
      %v9060 = vsel %vm1481, %v9018, %v9019
      %v9061 = vsel %vm1481, %v9017, %v9018
      %v9062 = vsel %vm1481, %v9016, %v9017
      %v9063 = vsel %vm1481, %v9015, %v9016
      %v9064 = vsel %vm1481, %v9014, %v9015
      %v9065 = vsel %vm1481, %v9013, %v9014
      %v9066 = vsel %vm1481, %v9012, %v9013
      %v9067 = vsel %vm1481, %v9011, %v9012
      %v9068 = vsel %vm1481, %v9010, %v9011
      %v9069 = vsel %vm1481, %v9009, %v9010
      %v9070 = vsel %vm1481, %v9008, %v9009
      %v9071 = vsel %vm1481, %v9007, %v9008
      %v9072 = vsel %vm1481, %v9006, %v9007
      %v9073 = vsel %vm1481, %v9005, %v9006
      %v9074 = vsel %vm1481, %v9004, %v9005
      %v9075 = vsel %vm1481, %v9003, %v9004
      %v9076 = vsel %vm1481, %v9002, %v9003
      %v9077 = vsel %vm1481, %v9001, %v9002
      %v9078 = vsel %vm1481, %v9000, %v9001
      %v9079 = vsel %vm1481, %v8999, %v9000
      %v9080 = vsel %vm1481, %v8998, %v8999
      %v9081 = vsel %vm1481, %v8997, %v8998
      %v9082 = vsel %vm1481, %v8996, %v8997
      %v9083 = vsel %vm1481, %v8995, %v8996
      %v9084 = vsel %vm1481, %v8994, %v8995
      %v9085 = vsel %vm1481, %v8993, %v8994
      %v9086 = vsel %vm1481, %v8992, %v8993
      %v9087 = vsel %vm1481, %v8991, %v8992
      %v9088 = vsel %vm1481, %v8990, %v8991
      %v9089 = vsel %vm1481, %v8989, %v8990
      %v9090 = vsel %vm1481, %v8988, %v8989
      %v9091 = vsel %vm1481, %v8987, %v8988
      %v9092 = vsel %vm1481, %v8986, %v8987
      %v9093 = vsel %vm1481, %v8985, %v8986
      %v9094 = vsel %vm1481, %v8984, %v8985
      %v9095 = vsel %vm1481, %v8983, %v8984
      %v9096 = vsel %vm1481, %v8982, %v8983
      %v9097 = vsel %vm1481, %v8981, %v8982
      %v9098 = vsel %vm1481, %v8980, %v8981
      %v9099 = vsel %vm1481, %v8979, %v8980
      %v9100 = vsel %vm1481, %v8978, %v8979
      %v9101 = vsel %vm1481, %v8977, %v8978
      %v9102 = vsel %vm1481, %v8976, %v8977
      %v9103 = vsel %vm1481, %v9039, %v8976
      %v9104 = vrot.slane %v8912, 1
      %v9105 = vrot.slane %v8913, 1
      %v9106 = vrot.slane %v8914, 1
      %v9107 = vrot.slane %v8915, 1
      %v9108 = vrot.slane %v8916, 1
      %v9109 = vrot.slane %v8917, 1
      %v9110 = vrot.slane %v8918, 1
      %v9111 = vrot.slane %v8919, 1
      %v9112 = vrot.slane %v8920, 1
      %v9113 = vrot.slane %v8921, 1
      %v9114 = vrot.slane %v8922, 1
      %v9115 = vrot.slane %v8923, 1
      %v9116 = vrot.slane %v8924, 1
      %v9117 = vrot.slane %v8925, 1
      %v9118 = vrot.slane %v8926, 1
      %v9119 = vrot.slane %v8927, 1
      %v9120 = vrot.slane %v8928, 1
      %v9121 = vrot.slane %v8929, 1
      %v9122 = vrot.slane %v8930, 1
      %v9123 = vrot.slane %v8931, 1
      %v9124 = vrot.slane %v8932, 1
      %v9125 = vrot.slane %v8933, 1
      %v9126 = vrot.slane %v8934, 1
      %v9127 = vrot.slane %v8935, 1
      %v9128 = vrot.slane %v8936, 1
      %v9129 = vrot.slane %v8937, 1
      %v9130 = vrot.slane %v8938, 1
      %v9131 = vrot.slane %v8939, 1
      %v9132 = vrot.slane %v8940, 1
      %v9133 = vrot.slane %v8941, 1
      %v9134 = vrot.slane %v8942, 1
      %v9135 = vrot.slane %v8943, 1
      %v9136 = vrot.slane %v8944, 1
      %v9137 = vrot.slane %v8945, 1
      %v9138 = vrot.slane %v8946, 1
      %v9139 = vrot.slane %v8947, 1
      %v9140 = vrot.slane %v8948, 1
      %v9141 = vrot.slane %v8949, 1
      %v9142 = vrot.slane %v8950, 1
      %v9143 = vrot.slane %v8951, 1
      %v9144 = vrot.slane %v8952, 1
      %v9145 = vrot.slane %v8953, 1
      %v9146 = vrot.slane %v8954, 1
      %v9147 = vrot.slane %v8955, 1
      %v9148 = vrot.slane %v8956, 1
      %v9149 = vrot.slane %v8957, 1
      %v9150 = vrot.slane %v8958, 1
      %v9151 = vrot.slane %v8959, 1
      %v9152 = vrot.slane %v8960, 1
      %v9153 = vrot.slane %v8961, 1
      %v9154 = vrot.slane %v8962, 1
      %v9155 = vrot.slane %v8963, 1
      %v9156 = vrot.slane %v8964, 1
      %v9157 = vrot.slane %v8965, 1
      %v9158 = vrot.slane %v8966, 1
      %v9159 = vrot.slane %v8967, 1
      %v9160 = vrot.slane %v8968, 1
      %v9161 = vrot.slane %v8969, 1
      %v9162 = vrot.slane %v8970, 1
      %v9163 = vrot.slane %v8971, 1
      %v9164 = vrot.slane %v8972, 1
      %v9165 = vrot.slane %v8973, 1
      %v9166 = vrot.slane %v8974, 1
      %v9167 = vrot.slane %v8975, 1
      %v9168 = vsel %vm1610, %v9166, %v9167
      %v9169 = vsel %vm1610, %v9165, %v9166
      %v9170 = vsel %vm1610, %v9164, %v9165
      %v9171 = vsel %vm1610, %v9163, %v9164
      %v9172 = vsel %vm1610, %v9162, %v9163
      %v9173 = vsel %vm1610, %v9161, %v9162
      %v9174 = vsel %vm1610, %v9160, %v9161
      %v9175 = vsel %vm1610, %v9159, %v9160
      %v9176 = vsel %vm1610, %v9158, %v9159
      %v9177 = vsel %vm1610, %v9157, %v9158
      %v9178 = vsel %vm1610, %v9156, %v9157
      %v9179 = vsel %vm1610, %v9155, %v9156
      %v9180 = vsel %vm1610, %v9154, %v9155
      %v9181 = vsel %vm1610, %v9153, %v9154
      %v9182 = vsel %vm1610, %v9152, %v9153
      %v9183 = vsel %vm1610, %v9151, %v9152
      %v9184 = vsel %vm1610, %v9150, %v9151
      %v9185 = vsel %vm1610, %v9149, %v9150
      %v9186 = vsel %vm1610, %v9148, %v9149
      %v9187 = vsel %vm1610, %v9147, %v9148
      %v9188 = vsel %vm1610, %v9146, %v9147
      %v9189 = vsel %vm1610, %v9145, %v9146
      %v9190 = vsel %vm1610, %v9144, %v9145
      %v9191 = vsel %vm1610, %v9143, %v9144
      %v9192 = vsel %vm1610, %v9142, %v9143
      %v9193 = vsel %vm1610, %v9141, %v9142
      %v9194 = vsel %vm1610, %v9140, %v9141
      %v9195 = vsel %vm1610, %v9139, %v9140
      %v9196 = vsel %vm1610, %v9138, %v9139
      %v9197 = vsel %vm1610, %v9137, %v9138
      %v9198 = vsel %vm1610, %v9136, %v9137
      %v9199 = vsel %vm1610, %v9135, %v9136
      %v9200 = vsel %vm1610, %v9134, %v9135
      %v9201 = vsel %vm1610, %v9133, %v9134
      %v9202 = vsel %vm1610, %v9132, %v9133
      %v9203 = vsel %vm1610, %v9131, %v9132
      %v9204 = vsel %vm1610, %v9130, %v9131
      %v9205 = vsel %vm1610, %v9129, %v9130
      %v9206 = vsel %vm1610, %v9128, %v9129
      %v9207 = vsel %vm1610, %v9127, %v9128
      %v9208 = vsel %vm1610, %v9126, %v9127
      %v9209 = vsel %vm1610, %v9125, %v9126
      %v9210 = vsel %vm1610, %v9124, %v9125
      %v9211 = vsel %vm1610, %v9123, %v9124
      %v9212 = vsel %vm1610, %v9122, %v9123
      %v9213 = vsel %vm1610, %v9121, %v9122
      %v9214 = vsel %vm1610, %v9120, %v9121
      %v9215 = vsel %vm1610, %v9119, %v9120
      %v9216 = vsel %vm1610, %v9118, %v9119
      %v9217 = vsel %vm1610, %v9117, %v9118
      %v9218 = vsel %vm1610, %v9116, %v9117
      %v9219 = vsel %vm1610, %v9115, %v9116
      %v9220 = vsel %vm1610, %v9114, %v9115
      %v9221 = vsel %vm1610, %v9113, %v9114
      %v9222 = vsel %vm1610, %v9112, %v9113
      %v9223 = vsel %vm1610, %v9111, %v9112
      %v9224 = vsel %vm1610, %v9110, %v9111
      %v9225 = vsel %vm1610, %v9109, %v9110
      %v9226 = vsel %vm1610, %v9108, %v9109
      %v9227 = vsel %vm1610, %v9107, %v9108
      %v9228 = vsel %vm1610, %v9106, %v9107
      %v9229 = vsel %vm1610, %v9105, %v9106
      %v9230 = vsel %vm1610, %v9104, %v9105
      %v9231 = vsel %vm1610, %v9167, %v9104
      %9296 = vrot.lane.b32.xlu0 %v8912, 4
      %v9297 = vpop.permute.xlu0 %9296
      %9298 = vrot.lane.b32.xlu0 %v8913, 4
      %v9299 = vpop.permute.xlu0 %9298
      %9300 = vrot.lane.b32.xlu0 %v8914, 4
      %v9301 = vpop.permute.xlu0 %9300
      %9302 = vrot.lane.b32.xlu0 %v8915, 4
      %v9303 = vpop.permute.xlu0 %9302
      %9304 = vrot.lane.b32.xlu0 %v8916, 4
      %v9305 = vpop.permute.xlu0 %9304
      %9306 = vrot.lane.b32.xlu0 %v8917, 4
      %v9307 = vpop.permute.xlu0 %9306
      %9308 = vrot.lane.b32.xlu0 %v8918, 4
      %v9309 = vpop.permute.xlu0 %9308
      %9310 = vrot.lane.b32.xlu0 %v8919, 4
      %v9311 = vpop.permute.xlu0 %9310
      %9312 = vrot.lane.b32.xlu0 %v8920, 4
      %v9313 = vpop.permute.xlu0 %9312
      %9314 = vrot.lane.b32.xlu0 %v8921, 4
      %v9315 = vpop.permute.xlu0 %9314
      %9316 = vrot.lane.b32.xlu0 %v8922, 4
      %v9317 = vpop.permute.xlu0 %9316
      %9318 = vrot.lane.b32.xlu0 %v8923, 4
      %v9319 = vpop.permute.xlu0 %9318
      %9320 = vrot.lane.b32.xlu0 %v8924, 4
      %v9321 = vpop.permute.xlu0 %9320
      %9322 = vrot.lane.b32.xlu0 %v8925, 4
      %v9323 = vpop.permute.xlu0 %9322
      %9324 = vrot.lane.b32.xlu0 %v8926, 4
      %v9325 = vpop.permute.xlu0 %9324
      %9326 = vrot.lane.b32.xlu0 %v8927, 4
      %v9327 = vpop.permute.xlu0 %9326
      %9328 = vrot.lane.b32.xlu0 %v8928, 4
      %v9329 = vpop.permute.xlu0 %9328
      %9330 = vrot.lane.b32.xlu0 %v8929, 4
      %v9331 = vpop.permute.xlu0 %9330
      %9332 = vrot.lane.b32.xlu0 %v8930, 4
      %v9333 = vpop.permute.xlu0 %9332
      %9334 = vrot.lane.b32.xlu0 %v8931, 4
      %v9335 = vpop.permute.xlu0 %9334
      %9336 = vrot.lane.b32.xlu0 %v8932, 4
      %v9337 = vpop.permute.xlu0 %9336
      %9338 = vrot.lane.b32.xlu0 %v8933, 4
      %v9339 = vpop.permute.xlu0 %9338
      %9340 = vrot.lane.b32.xlu0 %v8934, 4
      %v9341 = vpop.permute.xlu0 %9340
      %9342 = vrot.lane.b32.xlu0 %v8935, 4
      %v9343 = vpop.permute.xlu0 %9342
      %9344 = vrot.lane.b32.xlu0 %v8936, 4
      %v9345 = vpop.permute.xlu0 %9344
      %9346 = vrot.lane.b32.xlu0 %v8937, 4
      %v9347 = vpop.permute.xlu0 %9346
      %9348 = vrot.lane.b32.xlu0 %v8938, 4
      %v9349 = vpop.permute.xlu0 %9348
      %9350 = vrot.lane.b32.xlu0 %v8939, 4
      %v9351 = vpop.permute.xlu0 %9350
      %9352 = vrot.lane.b32.xlu0 %v8940, 4
      %v9353 = vpop.permute.xlu0 %9352
      %9354 = vrot.lane.b32.xlu0 %v8941, 4
      %v9355 = vpop.permute.xlu0 %9354
      %9356 = vrot.lane.b32.xlu0 %v8942, 4
      %v9357 = vpop.permute.xlu0 %9356
      %9358 = vrot.lane.b32.xlu0 %v8943, 4
      %v9359 = vpop.permute.xlu0 %9358
      %9360 = vrot.lane.b32.xlu0 %v8944, 4
      %v9361 = vpop.permute.xlu0 %9360
      %9362 = vrot.lane.b32.xlu0 %v8945, 4
      %v9363 = vpop.permute.xlu0 %9362
      %9364 = vrot.lane.b32.xlu0 %v8946, 4
      %v9365 = vpop.permute.xlu0 %9364
      %9366 = vrot.lane.b32.xlu0 %v8947, 4
      %v9367 = vpop.permute.xlu0 %9366
      %9368 = vrot.lane.b32.xlu0 %v8948, 4
      %v9369 = vpop.permute.xlu0 %9368
      %9370 = vrot.lane.b32.xlu0 %v8949, 4
      %v9371 = vpop.permute.xlu0 %9370
      %9372 = vrot.lane.b32.xlu0 %v8950, 4
      %v9373 = vpop.permute.xlu0 %9372
      %9374 = vrot.lane.b32.xlu0 %v8951, 4
      %v9375 = vpop.permute.xlu0 %9374
      %9376 = vrot.lane.b32.xlu0 %v8952, 4
      %v9377 = vpop.permute.xlu0 %9376
      %9378 = vrot.lane.b32.xlu0 %v8953, 4
      %v9379 = vpop.permute.xlu0 %9378
      %9380 = vrot.lane.b32.xlu0 %v8954, 4
      %v9381 = vpop.permute.xlu0 %9380
      %9382 = vrot.lane.b32.xlu0 %v8955, 4
      %v9383 = vpop.permute.xlu0 %9382
      %9384 = vrot.lane.b32.xlu0 %v8956, 4
      %v9385 = vpop.permute.xlu0 %9384
      %9386 = vrot.lane.b32.xlu0 %v8957, 4
      %v9387 = vpop.permute.xlu0 %9386
      %9388 = vrot.lane.b32.xlu0 %v8958, 4
      %v9389 = vpop.permute.xlu0 %9388
      %9390 = vrot.lane.b32.xlu0 %v8959, 4
      %v9391 = vpop.permute.xlu0 %9390
      %9392 = vrot.lane.b32.xlu0 %v8960, 4
      %v9393 = vpop.permute.xlu0 %9392
      %9394 = vrot.lane.b32.xlu0 %v8961, 4
      %v9395 = vpop.permute.xlu0 %9394
      %9396 = vrot.lane.b32.xlu0 %v8962, 4
      %v9397 = vpop.permute.xlu0 %9396
      %9398 = vrot.lane.b32.xlu0 %v8963, 4
      %v9399 = vpop.permute.xlu0 %9398
      %9400 = vrot.lane.b32.xlu0 %v8964, 4
      %v9401 = vpop.permute.xlu0 %9400
      %9402 = vrot.lane.b32.xlu0 %v8965, 4
      %v9403 = vpop.permute.xlu0 %9402
      %9404 = vrot.lane.b32.xlu0 %v8966, 4
      %v9405 = vpop.permute.xlu0 %9404
      %9406 = vrot.lane.b32.xlu0 %v8967, 4
      %v9407 = vpop.permute.xlu0 %9406
      %9408 = vrot.lane.b32.xlu0 %v8968, 4
      %v9409 = vpop.permute.xlu0 %9408
      %9410 = vrot.lane.b32.xlu0 %v8969, 4
      %v9411 = vpop.permute.xlu0 %9410
      %9412 = vrot.lane.b32.xlu0 %v8970, 4
      %v9413 = vpop.permute.xlu0 %9412
      %9414 = vrot.lane.b32.xlu0 %v8971, 4
      %v9415 = vpop.permute.xlu0 %9414
      %9416 = vrot.lane.b32.xlu0 %v8972, 4
      %v9417 = vpop.permute.xlu0 %9416
      %9418 = vrot.lane.b32.xlu0 %v8973, 4
      %v9419 = vpop.permute.xlu0 %9418
      %9420 = vrot.lane.b32.xlu0 %v8974, 4
      %v9421 = vpop.permute.xlu0 %9420
      %9422 = vrot.lane.b32.xlu0 %v8975, 4
      %v9423 = vpop.permute.xlu0 %9422
      %9552 = vrot.lane.b32.xlu0 %v9230, 8
      %v9553 = vpop.permute.xlu0 %9552
      %9554 = vrot.lane.b32.xlu0 %v9229, 8
      %v9555 = vpop.permute.xlu0 %9554
      %9556 = vrot.lane.b32.xlu0 %v9228, 8
      %v9557 = vpop.permute.xlu0 %9556
      %9558 = vrot.lane.b32.xlu0 %v9227, 8
      %v9559 = vpop.permute.xlu0 %9558
      %9560 = vrot.lane.b32.xlu0 %v9226, 8
      %v9561 = vpop.permute.xlu0 %9560
      %9562 = vrot.lane.b32.xlu0 %v9225, 8
      %v9563 = vpop.permute.xlu0 %9562
      %9564 = vrot.lane.b32.xlu0 %v9224, 8
      %v9565 = vpop.permute.xlu0 %9564
      %9566 = vrot.lane.b32.xlu0 %v9223, 8
      %v9567 = vpop.permute.xlu0 %9566
      %9568 = vrot.lane.b32.xlu0 %v9222, 8
      %v9569 = vpop.permute.xlu0 %9568
      %9570 = vrot.lane.b32.xlu0 %v9221, 8
      %v9571 = vpop.permute.xlu0 %9570
      %9572 = vrot.lane.b32.xlu0 %v9220, 8
      %v9573 = vpop.permute.xlu0 %9572
      %9574 = vrot.lane.b32.xlu0 %v9219, 8
      %v9575 = vpop.permute.xlu0 %9574
      %9576 = vrot.lane.b32.xlu0 %v9218, 8
      %v9577 = vpop.permute.xlu0 %9576
      %9578 = vrot.lane.b32.xlu0 %v9217, 8
      %v9579 = vpop.permute.xlu0 %9578
      %9580 = vrot.lane.b32.xlu0 %v9216, 8
      %v9581 = vpop.permute.xlu0 %9580
      %9582 = vrot.lane.b32.xlu0 %v9215, 8
      %v9583 = vpop.permute.xlu0 %9582
      %9584 = vrot.lane.b32.xlu0 %v9214, 8
      %v9585 = vpop.permute.xlu0 %9584
      %9586 = vrot.lane.b32.xlu0 %v9213, 8
      %v9587 = vpop.permute.xlu0 %9586
      %9588 = vrot.lane.b32.xlu0 %v9212, 8
      %v9589 = vpop.permute.xlu0 %9588
      %9590 = vrot.lane.b32.xlu0 %v9211, 8
      %v9591 = vpop.permute.xlu0 %9590
      %9592 = vrot.lane.b32.xlu0 %v9210, 8
      %v9593 = vpop.permute.xlu0 %9592
      %9594 = vrot.lane.b32.xlu0 %v9209, 8
      %v9595 = vpop.permute.xlu0 %9594
      %9596 = vrot.lane.b32.xlu0 %v9208, 8
      %v9597 = vpop.permute.xlu0 %9596
      %9598 = vrot.lane.b32.xlu0 %v9207, 8
      %v9599 = vpop.permute.xlu0 %9598
      %9600 = vrot.lane.b32.xlu0 %v9206, 8
      %v9601 = vpop.permute.xlu0 %9600
      %9602 = vrot.lane.b32.xlu0 %v9205, 8
      %v9603 = vpop.permute.xlu0 %9602
      %9604 = vrot.lane.b32.xlu0 %v9204, 8
      %v9605 = vpop.permute.xlu0 %9604
      %9606 = vrot.lane.b32.xlu0 %v9203, 8
      %v9607 = vpop.permute.xlu0 %9606
      %9608 = vrot.lane.b32.xlu0 %v9202, 8
      %v9609 = vpop.permute.xlu0 %9608
      %9610 = vrot.lane.b32.xlu0 %v9201, 8
      %v9611 = vpop.permute.xlu0 %9610
      %9612 = vrot.lane.b32.xlu0 %v9200, 8
      %v9613 = vpop.permute.xlu0 %9612
      %9614 = vrot.lane.b32.xlu0 %v9199, 8
      %v9615 = vpop.permute.xlu0 %9614
      %9616 = vrot.lane.b32.xlu0 %v9198, 8
      %v9617 = vpop.permute.xlu0 %9616
      %9618 = vrot.lane.b32.xlu0 %v9197, 8
      %v9619 = vpop.permute.xlu0 %9618
      %9620 = vrot.lane.b32.xlu0 %v9196, 8
      %v9621 = vpop.permute.xlu0 %9620
      %9622 = vrot.lane.b32.xlu0 %v9195, 8
      %v9623 = vpop.permute.xlu0 %9622
      %9624 = vrot.lane.b32.xlu0 %v9194, 8
      %v9625 = vpop.permute.xlu0 %9624
      %9626 = vrot.lane.b32.xlu0 %v9193, 8
      %v9627 = vpop.permute.xlu0 %9626
      %9628 = vrot.lane.b32.xlu0 %v9192, 8
      %v9629 = vpop.permute.xlu0 %9628
      %9630 = vrot.lane.b32.xlu0 %v9191, 8
      %v9631 = vpop.permute.xlu0 %9630
      %9632 = vrot.lane.b32.xlu0 %v9190, 8
      %v9633 = vpop.permute.xlu0 %9632
      %9634 = vrot.lane.b32.xlu0 %v9189, 8
      %v9635 = vpop.permute.xlu0 %9634
      %9636 = vrot.lane.b32.xlu0 %v9188, 8
      %v9637 = vpop.permute.xlu0 %9636
      %9638 = vrot.lane.b32.xlu0 %v9187, 8
      %v9639 = vpop.permute.xlu0 %9638
      %9640 = vrot.lane.b32.xlu0 %v9186, 8
      %v9641 = vpop.permute.xlu0 %9640
      %9642 = vrot.lane.b32.xlu0 %v9185, 8
      %v9643 = vpop.permute.xlu0 %9642
      %9644 = vrot.lane.b32.xlu0 %v9184, 8
      %v9645 = vpop.permute.xlu0 %9644
      %9646 = vrot.lane.b32.xlu0 %v9183, 8
      %v9647 = vpop.permute.xlu0 %9646
      %9648 = vrot.lane.b32.xlu0 %v9182, 8
      %v9649 = vpop.permute.xlu0 %9648
      %9650 = vrot.lane.b32.xlu0 %v9181, 8
      %v9651 = vpop.permute.xlu0 %9650
      %9652 = vrot.lane.b32.xlu0 %v9180, 8
      %v9653 = vpop.permute.xlu0 %9652
      %9654 = vrot.lane.b32.xlu0 %v9179, 8
      %v9655 = vpop.permute.xlu0 %9654
      %9656 = vrot.lane.b32.xlu0 %v9178, 8
      %v9657 = vpop.permute.xlu0 %9656
      %9658 = vrot.lane.b32.xlu0 %v9177, 8
      %v9659 = vpop.permute.xlu0 %9658
      %9660 = vrot.lane.b32.xlu0 %v9176, 8
      %v9661 = vpop.permute.xlu0 %9660
      %9662 = vrot.lane.b32.xlu0 %v9175, 8
      %v9663 = vpop.permute.xlu0 %9662
      %9664 = vrot.lane.b32.xlu0 %v9174, 8
      %v9665 = vpop.permute.xlu0 %9664
      %9666 = vrot.lane.b32.xlu0 %v9173, 8
      %v9667 = vpop.permute.xlu0 %9666
      %9668 = vrot.lane.b32.xlu0 %v9172, 8
      %v9669 = vpop.permute.xlu0 %9668
      %9670 = vrot.lane.b32.xlu0 %v9171, 8
      %v9671 = vpop.permute.xlu0 %9670
      %9672 = vrot.lane.b32.xlu0 %v9170, 8
      %v9673 = vpop.permute.xlu0 %9672
      %9674 = vrot.lane.b32.xlu0 %v9169, 8
      %v9675 = vpop.permute.xlu0 %9674
      %9676 = vrot.lane.b32.xlu0 %v9168, 8
      %v9677 = vpop.permute.xlu0 %9676
      %9678 = vrot.lane.b32.xlu0 %v9231, 8
      %v9679 = vpop.permute.xlu0 %9678
      %v9744 = vsel %vm2187, %v9103, %v9297
      %v9745 = vsel %vm2187, %v9102, %v9299
      %v9746 = vsel %vm2187, %v9101, %v9301
      %v9747 = vsel %vm2187, %v9100, %v9303
      %v9748 = vsel %vm2187, %v9099, %v9305
      %v9749 = vsel %vm2187, %v9098, %v9307
      %v9750 = vsel %vm2187, %v9097, %v9309
      %v9751 = vsel %vm2187, %v9096, %v9311
      %v9752 = vsel %vm2187, %v9095, %v9313
      %v9753 = vsel %vm2187, %v9094, %v9315
      %v9754 = vsel %vm2187, %v9093, %v9317
      %v9755 = vsel %vm2187, %v9092, %v9319
      %v9756 = vsel %vm2187, %v9091, %v9321
      %v9757 = vsel %vm2187, %v9090, %v9323
      %v9758 = vsel %vm2187, %v9089, %v9325
      %v9759 = vsel %vm2187, %v9088, %v9327
      %v9760 = vsel %vm2187, %v9087, %v9329
      %v9761 = vsel %vm2187, %v9086, %v9331
      %v9762 = vsel %vm2187, %v9085, %v9333
      %v9763 = vsel %vm2187, %v9084, %v9335
      %v9764 = vsel %vm2187, %v9083, %v9337
      %v9765 = vsel %vm2187, %v9082, %v9339
      %v9766 = vsel %vm2187, %v9081, %v9341
      %v9767 = vsel %vm2187, %v9080, %v9343
      %v9768 = vsel %vm2187, %v9079, %v9345
      %v9769 = vsel %vm2187, %v9078, %v9347
      %v9770 = vsel %vm2187, %v9077, %v9349
      %v9771 = vsel %vm2187, %v9076, %v9351
      %v9772 = vsel %vm2187, %v9075, %v9353
      %v9773 = vsel %vm2187, %v9074, %v9355
      %v9774 = vsel %vm2187, %v9073, %v9357
      %v9775 = vsel %vm2187, %v9072, %v9359
      %v9776 = vsel %vm2187, %v9071, %v9361
      %v9777 = vsel %vm2187, %v9070, %v9363
      %v9778 = vsel %vm2187, %v9069, %v9365
      %v9779 = vsel %vm2187, %v9068, %v9367
      %v9780 = vsel %vm2187, %v9067, %v9369
      %v9781 = vsel %vm2187, %v9066, %v9371
      %v9782 = vsel %vm2187, %v9065, %v9373
      %v9783 = vsel %vm2187, %v9064, %v9375
      %v9784 = vsel %vm2187, %v9063, %v9377
      %v9785 = vsel %vm2187, %v9062, %v9379
      %v9786 = vsel %vm2187, %v9061, %v9381
      %v9787 = vsel %vm2187, %v9060, %v9383
      %v9788 = vsel %vm2187, %v9059, %v9385
      %v9789 = vsel %vm2187, %v9058, %v9387
      %v9790 = vsel %vm2187, %v9057, %v9389
      %v9791 = vsel %vm2187, %v9056, %v9391
      %v9792 = vsel %vm2187, %v9055, %v9393
      %v9793 = vsel %vm2187, %v9054, %v9395
      %v9794 = vsel %vm2187, %v9053, %v9397
      %v9795 = vsel %vm2187, %v9052, %v9399
      %v9796 = vsel %vm2187, %v9051, %v9401
      %v9797 = vsel %vm2187, %v9050, %v9403
      %v9798 = vsel %vm2187, %v9049, %v9405
      %v9799 = vsel %vm2187, %v9048, %v9407
      %v9800 = vsel %vm2187, %v9047, %v9409
      %v9801 = vsel %vm2187, %v9046, %v9411
      %v9802 = vsel %vm2187, %v9045, %v9413
      %v9803 = vsel %vm2187, %v9044, %v9415
      %v9804 = vsel %vm2187, %v9043, %v9417
      %v9805 = vsel %vm2187, %v9042, %v9419
      %v9806 = vsel %vm2187, %v9041, %v9421
      %v9807 = vsel %vm2187, %v9040, %v9423
      %v9808 = vsel %vm497, %v9744, %v9553
      %v9809 = vsel %vm497, %v9745, %v9555
      %v9810 = vsel %vm497, %v9746, %v9557
      %v9811 = vsel %vm497, %v9747, %v9559
      %v9812 = vsel %vm497, %v9748, %v9561
      %v9813 = vsel %vm497, %v9749, %v9563
      %v9814 = vsel %vm497, %v9750, %v9565
      %v9815 = vsel %vm497, %v9751, %v9567
      %v9816 = vsel %vm497, %v9752, %v9569
      %v9817 = vsel %vm497, %v9753, %v9571
      %v9818 = vsel %vm497, %v9754, %v9573
      %v9819 = vsel %vm497, %v9755, %v9575
      %v9820 = vsel %vm497, %v9756, %v9577
      %v9821 = vsel %vm497, %v9757, %v9579
      %v9822 = vsel %vm497, %v9758, %v9581
      %v9823 = vsel %vm497, %v9759, %v9583
      %v9824 = vsel %vm497, %v9760, %v9585
      %v9825 = vsel %vm497, %v9761, %v9587
      %v9826 = vsel %vm497, %v9762, %v9589
      %v9827 = vsel %vm497, %v9763, %v9591
      %v9828 = vsel %vm497, %v9764, %v9593
      %v9829 = vsel %vm497, %v9765, %v9595
      %v9830 = vsel %vm497, %v9766, %v9597
      %v9831 = vsel %vm497, %v9767, %v9599
      %v9832 = vsel %vm497, %v9768, %v9601
      %v9833 = vsel %vm497, %v9769, %v9603
      %v9834 = vsel %vm497, %v9770, %v9605
      %v9835 = vsel %vm497, %v9771, %v9607
      %v9836 = vsel %vm497, %v9772, %v9609
      %v9837 = vsel %vm497, %v9773, %v9611
      %v9838 = vsel %vm497, %v9774, %v9613
      %v9839 = vsel %vm497, %v9775, %v9615
      %v9840 = vsel %vm497, %v9776, %v9617
      %v9841 = vsel %vm497, %v9777, %v9619
      %v9842 = vsel %vm497, %v9778, %v9621
      %v9843 = vsel %vm497, %v9779, %v9623
      %v9844 = vsel %vm497, %v9780, %v9625
      %v9845 = vsel %vm497, %v9781, %v9627
      %v9846 = vsel %vm497, %v9782, %v9629
      %v9847 = vsel %vm497, %v9783, %v9631
      %v9848 = vsel %vm497, %v9784, %v9633
      %v9849 = vsel %vm497, %v9785, %v9635
      %v9850 = vsel %vm497, %v9786, %v9637
      %v9851 = vsel %vm497, %v9787, %v9639
      %v9852 = vsel %vm497, %v9788, %v9641
      %v9853 = vsel %vm497, %v9789, %v9643
      %v9854 = vsel %vm497, %v9790, %v9645
      %v9855 = vsel %vm497, %v9791, %v9647
      %v9856 = vsel %vm497, %v9792, %v9649
      %v9857 = vsel %vm497, %v9793, %v9651
      %v9858 = vsel %vm497, %v9794, %v9653
      %v9859 = vsel %vm497, %v9795, %v9655
      %v9860 = vsel %vm497, %v9796, %v9657
      %v9861 = vsel %vm497, %v9797, %v9659
      %v9862 = vsel %vm497, %v9798, %v9661
      %v9863 = vsel %vm497, %v9799, %v9663
      %v9864 = vsel %vm497, %v9800, %v9665
      %v9865 = vsel %vm497, %v9801, %v9667
      %v9866 = vsel %vm497, %v9802, %v9669
      %v9867 = vsel %vm497, %v9803, %v9671
      %v9868 = vsel %vm497, %v9804, %v9673
      %v9869 = vsel %vm497, %v9805, %v9675
      %v9870 = vsel %vm497, %v9806, %v9677
      %v9871 = vsel %vm497, %v9807, %v9679
      %v9872 = vpack.c.bf16 %v9809, %v9808
      %v9873 = vpack.c.bf16 %v9811, %v9810
      %v9874 = vpack.c.bf16 %v9813, %v9812
      %v9875 = vpack.c.bf16 %v9815, %v9814
      %v9876 = vpack.c.bf16 %v9817, %v9816
      %v9877 = vpack.c.bf16 %v9819, %v9818
      %v9878 = vpack.c.bf16 %v9821, %v9820
      %v9879 = vpack.c.bf16 %v9823, %v9822
      %v9880 = vpack.c.bf16 %v9825, %v9824
      %v9881 = vpack.c.bf16 %v9827, %v9826
      %v9882 = vpack.c.bf16 %v9829, %v9828
      %v9883 = vpack.c.bf16 %v9831, %v9830
      %v9884 = vpack.c.bf16 %v9833, %v9832
      %v9885 = vpack.c.bf16 %v9835, %v9834
      %v9886 = vpack.c.bf16 %v9837, %v9836
      %v9887 = vpack.c.bf16 %v9839, %v9838
      %v9888 = vpack.c.bf16 %v9841, %v9840
      %v9889 = vpack.c.bf16 %v9843, %v9842
      %v9890 = vpack.c.bf16 %v9845, %v9844
      %v9891 = vpack.c.bf16 %v9847, %v9846
      %v9892 = vpack.c.bf16 %v9849, %v9848
      %v9893 = vpack.c.bf16 %v9851, %v9850
      %v9894 = vpack.c.bf16 %v9853, %v9852
      %v9895 = vpack.c.bf16 %v9855, %v9854
      %v9896 = vpack.c.bf16 %v9857, %v9856
      %v9897 = vpack.c.bf16 %v9859, %v9858
      %v9898 = vpack.c.bf16 %v9861, %v9860
      %v9899 = vpack.c.bf16 %v9863, %v9862
      %v9900 = vpack.c.bf16 %v9865, %v9864
      %v9901 = vpack.c.bf16 %v9867, %v9866
      %v9902 = vpack.c.bf16 %v9869, %v9868
      %v9903 = vpack.c.bf16 %v9871, %v9870
      %s9904 = scalar_lea.vmem %s5, 16
      %v9905 = vld [vmem:[%s9904] sm:$0xf]
      %v9906 = vld [vmem:[%s9904 + $0x4] sm:$0x3]
      %v9909 = vunpack.c.l.b16 %v9905
      %v9910 = vunpack.c.l.b16 %v9906
      %v9911 = vpack.c.b16 %v9910, %v9909
      %v9913 = vsel %vm3414, %v9872, 0
      %v9916 = vsel %vm3414, %v9873, 0
      %v9919 = vsel %vm3414, %v9874, 0
      %v9922 = vsel %vm3414, %v9875, 0
      %v9925 = vsel %vm3414, %v9876, 0
      %v9928 = vsel %vm3414, %v9877, 0
      %v9931 = vsel %vm3414, %v9878, 0
      %v9934 = vsel %vm3414, %v9879, 0
      %v9937 = vsel %vm3414, %v9880, 0
      %v9940 = vsel %vm3414, %v9881, 0
      %v9943 = vsel %vm3414, %v9882, 0
      %v9946 = vsel %vm3414, %v9883, 0
      %v9949 = vsel %vm3414, %v9884, 0
      %v9952 = vsel %vm3414, %v9885, 0
      %v9955 = vsel %vm3414, %v9886, 0
      %v9958 = vsel %vm3414, %v9887, 0
      %v9961 = vsel %vm3414, %v9888, 0
      %v9964 = vsel %vm3414, %v9889, 0
      %v9967 = vsel %vm3414, %v9890, 0
      %v9970 = vsel %vm3414, %v9891, 0
      %v9973 = vsel %vm3414, %v9892, 0
      %v9976 = vsel %vm3414, %v9893, 0
      %v9979 = vsel %vm3414, %v9894, 0
      %v9982 = vsel %vm3414, %v9895, 0
      %v9985 = vsel %vm3414, %v9896, 0
      %v9988 = vsel %vm3414, %v9897, 0
      %v9991 = vsel %vm3414, %v9898, 0
      %v9994 = vsel %vm3414, %v9899, 0
      %v9997 = vsel %vm3414, %v9900, 0
      %v10000 = vsel %vm3414, %v9901, 0
      %v10003 = vsel %vm3414, %v9902, 0
      %v10006 = vsel %vm3414, %v9903, 0
      %v10009 = vsel %vm3511, %v9911, 0
      %10011 = vmatprep.subr.bf16.mxu0 0
      %10012 = vmatpush1.bf16.msra.mxu0 0
      %10013 = vmatprep.subr.bf16.mxu0 0
      %10014 = vmatpush1.bf16.msra.mxu0 0
      %10015 = vmatprep.subr.bf16.mxu0 0
      %10016 = vmatpush1.bf16.msra.mxu0 0
      %10017 = vmatprep.subr.bf16.mxu0 0
      %10018 = vmatpush1.bf16.msra.mxu0 0
      %10019 = vmatprep.subr.bf16.mxu0 0
      %10020 = vmatpush1.bf16.msra.mxu0 0
      %10021 = vmatprep.subr.bf16.mxu0 0
      %10022 = vmatpush1.bf16.msra.mxu0 0
      %10023 = vmatprep.subr.bf16.mxu0 0
      %10024 = vmatpush1.bf16.msra.mxu0 0
      %10025 = vmatprep.subr.bf16.mxu0 0
      %10026 = vmatpush1.bf16.msra.mxu0 %v10009
      %10027 = vmatprep.subr.bf16.mxu0 0
      %10028 = vmatpush2.bf16.msra.mxu0 0
      %10029 = vmatprep.subr.bf16.mxu0 0
      %10030 = vmatpush2.bf16.msra.mxu0 0
      %10031 = vmatprep.subr.bf16.mxu0 0
      %10032 = vmatpush2.bf16.msra.mxu0 0
      %10033 = vmatprep.subr.bf16.mxu0 0
      %10034 = vmatpush2.bf16.msra.mxu0 0
      %10035 = vmatprep.subr.bf16.mxu0 0
      %10036 = vmatpush2.bf16.msra.mxu0 0
      %10037 = vmatprep.subr.bf16.mxu0 0
      %10038 = vmatpush2.bf16.msra.mxu0 0
      %10039 = vmatprep.subr.bf16.mxu0 0
      %10040 = vmatpush2.bf16.msra.mxu0 0
      %10041 = vmatprep.subr.bf16.mxu0 0
      %10042 = vmatpush2.bf16.msra.mxu0 0
      %10043 = vmatprep.mubr.bf16.mxu0 0
      %10044 = vmatmul.mubr.bf16.gmra.mxu0 %v9913
      %v10045 = vpop.f32.mrf.mxu0
      %v10046 = vadd.f32 0.0, %v10045
      %v10047 = vpop.f32.mrf.mxu0
      %v10048 = vpop.f32.mrf.mxu0
      %v10049 = vadd.f32 0.0, %v10048
      %v10050 = vpop.f32.mrf.mxu0
      %10051 = vmatprep.mubr.bf16.mxu0 0
      %10052 = vmatmul.mubr.bf16.gmra.mxu0 %v9916
      %v10053 = vpop.f32.mrf.mxu0
      %v10054 = vpop.f32.mrf.mxu0
      %v10055 = vpop.f32.mrf.mxu0
      %v10056 = vpop.f32.mrf.mxu0
      %10057 = vmatprep.mubr.bf16.mxu0 0
      %10058 = vmatmul.mubr.bf16.gmra.mxu0 %v9919
      %v10059 = vpop.f32.mrf.mxu0
      %v10060 = vadd.f32 0.0, %v10059
      %v10061 = vpop.f32.mrf.mxu0
      %v10062 = vpop.f32.mrf.mxu0
      %v10063 = vadd.f32 0.0, %v10062
      %v10064 = vpop.f32.mrf.mxu0
      %10065 = vmatprep.mubr.bf16.mxu0 0
      %10066 = vmatmul.mubr.bf16.gmra.mxu0 %v9922
      %v10067 = vpop.f32.mrf.mxu0
      %v10068 = vpop.f32.mrf.mxu0
      %v10069 = vpop.f32.mrf.mxu0
      %v10070 = vpop.f32.mrf.mxu0
      %10071 = vmatprep.mubr.bf16.mxu0 0
      %10072 = vmatmul.mubr.bf16.gmra.mxu0 %v9925
      %v10073 = vpop.f32.mrf.mxu0
      %v10074 = vadd.f32 0.0, %v10073
      %v10075 = vpop.f32.mrf.mxu0
      %v10076 = vpop.f32.mrf.mxu0
      %v10077 = vadd.f32 0.0, %v10076
      %v10078 = vpop.f32.mrf.mxu0
      %10079 = vmatprep.mubr.bf16.mxu0 0
      %10080 = vmatmul.mubr.bf16.gmra.mxu0 %v9928
      %v10081 = vpop.f32.mrf.mxu0
      %v10082 = vpop.f32.mrf.mxu0
      %v10083 = vpop.f32.mrf.mxu0
      %v10084 = vpop.f32.mrf.mxu0
      %10085 = vmatprep.mubr.bf16.mxu0 0
      %10086 = vmatmul.mubr.bf16.gmra.mxu0 %v9931
      %v10087 = vpop.f32.mrf.mxu0
      %v10088 = vadd.f32 0.0, %v10087
      %v10089 = vpop.f32.mrf.mxu0
      %v10090 = vpop.f32.mrf.mxu0
      %v10091 = vadd.f32 0.0, %v10090
      %v10092 = vpop.f32.mrf.mxu0
      %10093 = vmatprep.mubr.bf16.mxu0 0
      %10094 = vmatmul.mubr.bf16.gmra.mxu0 %v9934
      %v10095 = vpop.f32.mrf.mxu0
      %v10096 = vpop.f32.mrf.mxu0
      %v10097 = vpop.f32.mrf.mxu0
      %v10098 = vpop.f32.mrf.mxu0
      %10099 = vmatprep.mubr.bf16.mxu0 0
      %10100 = vmatmul.mubr.bf16.gmra.mxu0 %v9937
      %v10101 = vpop.f32.mrf.mxu0
      %v10102 = vadd.f32 0.0, %v10101
      %v10103 = vpop.f32.mrf.mxu0
      %v10104 = vpop.f32.mrf.mxu0
      %v10105 = vadd.f32 0.0, %v10104
      %v10106 = vpop.f32.mrf.mxu0
      %10107 = vmatprep.mubr.bf16.mxu0 0
      %10108 = vmatmul.mubr.bf16.gmra.mxu0 %v9940
      %v10109 = vpop.f32.mrf.mxu0
      %v10110 = vpop.f32.mrf.mxu0
      %v10111 = vpop.f32.mrf.mxu0
      %v10112 = vpop.f32.mrf.mxu0
      %10113 = vmatprep.mubr.bf16.mxu0 0
      %10114 = vmatmul.mubr.bf16.gmra.mxu0 %v9943
      %v10115 = vpop.f32.mrf.mxu0
      %v10116 = vadd.f32 0.0, %v10115
      %v10117 = vpop.f32.mrf.mxu0
      %v10118 = vpop.f32.mrf.mxu0
      %v10119 = vadd.f32 0.0, %v10118
      %v10120 = vpop.f32.mrf.mxu0
      %10121 = vmatprep.mubr.bf16.mxu0 0
      %10122 = vmatmul.mubr.bf16.gmra.mxu0 %v9946
      %v10123 = vpop.f32.mrf.mxu0
      %v10124 = vpop.f32.mrf.mxu0
      %v10125 = vpop.f32.mrf.mxu0
      %v10126 = vpop.f32.mrf.mxu0
      %10127 = vmatprep.mubr.bf16.mxu0 0
      %10128 = vmatmul.mubr.bf16.gmra.mxu0 %v9949
      %v10129 = vpop.f32.mrf.mxu0
      %v10130 = vadd.f32 0.0, %v10129
      %v10131 = vpop.f32.mrf.mxu0
      %v10132 = vpop.f32.mrf.mxu0
      %v10133 = vadd.f32 0.0, %v10132
      %v10134 = vpop.f32.mrf.mxu0
      %10135 = vmatprep.mubr.bf16.mxu0 0
      %10136 = vmatmul.mubr.bf16.gmra.mxu0 %v9952
      %v10137 = vpop.f32.mrf.mxu0
      %v10138 = vpop.f32.mrf.mxu0
      %v10139 = vpop.f32.mrf.mxu0
      %v10140 = vpop.f32.mrf.mxu0
      %10141 = vmatprep.mubr.bf16.mxu0 0
      %10142 = vmatmul.mubr.bf16.gmra.mxu0 %v9955
      %v10143 = vpop.f32.mrf.mxu0
      %v10144 = vadd.f32 0.0, %v10143
      %v10145 = vpop.f32.mrf.mxu0
      %v10146 = vpop.f32.mrf.mxu0
      %v10147 = vadd.f32 0.0, %v10146
      %v10148 = vpop.f32.mrf.mxu0
      %10149 = vmatprep.mubr.bf16.mxu0 0
      %10150 = vmatmul.mubr.bf16.gmra.mxu0 %v9958
      %v10151 = vpop.f32.mrf.mxu0
      %v10152 = vpop.f32.mrf.mxu0
      %v10153 = vpop.f32.mrf.mxu0
      %v10154 = vpop.f32.mrf.mxu0
      %10155 = vmatprep.mubr.bf16.mxu0 0
      %10156 = vmatmul.mubr.bf16.gmra.mxu0 %v9961
      %v10157 = vpop.f32.mrf.mxu0
      %v10158 = vadd.f32 0.0, %v10157
      %v10159 = vpop.f32.mrf.mxu0
      %v10160 = vpop.f32.mrf.mxu0
      %v10161 = vadd.f32 0.0, %v10160
      %v10162 = vpop.f32.mrf.mxu0
      %10163 = vmatprep.mubr.bf16.mxu0 0
      %10164 = vmatmul.mubr.bf16.gmra.mxu0 %v9964
      %v10165 = vpop.f32.mrf.mxu0
      %v10166 = vpop.f32.mrf.mxu0
      %v10167 = vpop.f32.mrf.mxu0
      %v10168 = vpop.f32.mrf.mxu0
      %10169 = vmatprep.mubr.bf16.mxu0 0
      %10170 = vmatmul.mubr.bf16.gmra.mxu0 %v9967
      %v10171 = vpop.f32.mrf.mxu0
      %v10172 = vadd.f32 0.0, %v10171
      %v10173 = vpop.f32.mrf.mxu0
      %v10174 = vpop.f32.mrf.mxu0
      %v10175 = vadd.f32 0.0, %v10174
      %v10176 = vpop.f32.mrf.mxu0
      %10177 = vmatprep.mubr.bf16.mxu0 0
      %10178 = vmatmul.mubr.bf16.gmra.mxu0 %v9970
      %v10179 = vpop.f32.mrf.mxu0
      %v10180 = vpop.f32.mrf.mxu0
      %v10181 = vpop.f32.mrf.mxu0
      %v10182 = vpop.f32.mrf.mxu0
      %10183 = vmatprep.mubr.bf16.mxu0 0
      %10184 = vmatmul.mubr.bf16.gmra.mxu0 %v9973
      %v10185 = vpop.f32.mrf.mxu0
      %v10186 = vadd.f32 0.0, %v10185
      %v10187 = vpop.f32.mrf.mxu0
      %v10188 = vpop.f32.mrf.mxu0
      %v10189 = vadd.f32 0.0, %v10188
      %v10190 = vpop.f32.mrf.mxu0
      %10191 = vmatprep.mubr.bf16.mxu0 0
      %10192 = vmatmul.mubr.bf16.gmra.mxu0 %v9976
      %v10193 = vpop.f32.mrf.mxu0
      %v10194 = vpop.f32.mrf.mxu0
      %v10195 = vpop.f32.mrf.mxu0
      %v10196 = vpop.f32.mrf.mxu0
      %10197 = vmatprep.mubr.bf16.mxu0 0
      %10198 = vmatmul.mubr.bf16.gmra.mxu0 %v9979
      %v10199 = vpop.f32.mrf.mxu0
      %v10200 = vadd.f32 0.0, %v10199
      %v10201 = vpop.f32.mrf.mxu0
      %v10202 = vpop.f32.mrf.mxu0
      %v10203 = vadd.f32 0.0, %v10202
      %v10204 = vpop.f32.mrf.mxu0
      %10205 = vmatprep.mubr.bf16.mxu0 0
      %10206 = vmatmul.mubr.bf16.gmra.mxu0 %v9982
      %v10207 = vpop.f32.mrf.mxu0
      %v10208 = vpop.f32.mrf.mxu0
      %v10209 = vpop.f32.mrf.mxu0
      %v10210 = vpop.f32.mrf.mxu0
      %10211 = vmatprep.mubr.bf16.mxu0 0
      %10212 = vmatmul.mubr.bf16.gmra.mxu0 %v9985
      %v10213 = vpop.f32.mrf.mxu0
      %v10214 = vadd.f32 0.0, %v10213
      %v10215 = vpop.f32.mrf.mxu0
      %v10216 = vpop.f32.mrf.mxu0
      %v10217 = vadd.f32 0.0, %v10216
      %v10218 = vpop.f32.mrf.mxu0
      %10219 = vmatprep.mubr.bf16.mxu0 0
      %10220 = vmatmul.mubr.bf16.gmra.mxu0 %v9988
      %v10221 = vpop.f32.mrf.mxu0
      %v10222 = vpop.f32.mrf.mxu0
      %v10223 = vpop.f32.mrf.mxu0
      %v10224 = vpop.f32.mrf.mxu0
      %10225 = vmatprep.mubr.bf16.mxu0 0
      %10226 = vmatmul.mubr.bf16.gmra.mxu0 %v9991
      %v10227 = vpop.f32.mrf.mxu0
      %v10228 = vadd.f32 0.0, %v10227
      %v10229 = vpop.f32.mrf.mxu0
      %v10230 = vpop.f32.mrf.mxu0
      %v10231 = vadd.f32 0.0, %v10230
      %v10232 = vpop.f32.mrf.mxu0
      %10233 = vmatprep.mubr.bf16.mxu0 0
      %10234 = vmatmul.mubr.bf16.gmra.mxu0 %v9994
      %v10235 = vpop.f32.mrf.mxu0
      %v10236 = vpop.f32.mrf.mxu0
      %v10237 = vpop.f32.mrf.mxu0
      %v10238 = vpop.f32.mrf.mxu0
      %10239 = vmatprep.mubr.bf16.mxu0 0
      %10240 = vmatmul.mubr.bf16.gmra.mxu0 %v9997
      %v10241 = vpop.f32.mrf.mxu0
      %v10242 = vadd.f32 0.0, %v10241
      %v10243 = vpop.f32.mrf.mxu0
      %v10244 = vpop.f32.mrf.mxu0
      %v10245 = vadd.f32 0.0, %v10244
      %v10246 = vpop.f32.mrf.mxu0
      %10247 = vmatprep.mubr.bf16.mxu0 0
      %10248 = vmatmul.mubr.bf16.gmra.mxu0 %v10000
      %v10249 = vpop.f32.mrf.mxu0
      %v10250 = vpop.f32.mrf.mxu0
      %v10251 = vpop.f32.mrf.mxu0
      %v10252 = vpop.f32.mrf.mxu0
      %10253 = vmatprep.mubr.bf16.mxu0 0
      %10254 = vmatmul.mubr.bf16.gmra.mxu0 %v10003
      %v10255 = vpop.f32.mrf.mxu0
      %v10256 = vadd.f32 0.0, %v10255
      %v10257 = vpop.f32.mrf.mxu0
      %v10258 = vpop.f32.mrf.mxu0
      %v10259 = vadd.f32 0.0, %v10258
      %v10260 = vpop.f32.mrf.mxu0
      %10261 = vmatprep.mubr.bf16.mxu0 0
      %10262 = vmatmul.mubr.bf16.gmra.mxu0 %v10006
      %v10263 = vpop.f32.mrf.mxu0
      %v10264 = vpop.f32.mrf.mxu0
      %v10265 = vpop.f32.mrf.mxu0
      %v10266 = vpop.f32.mrf.mxu0
      %10267 = vdwg.mxu0
      %v10268 = vadd.f32 %v8626, %v10046
      %v10269 = vadd.f32 %v8629, %v10049
      %v10270 = vadd.f32 %v8640, %v10060
      %v10271 = vadd.f32 %v8643, %v10063
      %v10272 = vadd.f32 %v8654, %v10074
      %v10273 = vadd.f32 %v8657, %v10077
      %v10274 = vadd.f32 %v8668, %v10088
      %v10275 = vadd.f32 %v8671, %v10091
      %v10276 = vadd.f32 %v8682, %v10102
      %v10277 = vadd.f32 %v8685, %v10105
      %v10278 = vadd.f32 %v8696, %v10116
      %v10279 = vadd.f32 %v8699, %v10119
      %v10280 = vadd.f32 %v8710, %v10130
      %v10281 = vadd.f32 %v8713, %v10133
      %v10282 = vadd.f32 %v8724, %v10144
      %v10283 = vadd.f32 %v8727, %v10147
      %v10284 = vadd.f32 %v8738, %v10158
      %v10285 = vadd.f32 %v8741, %v10161
      %v10286 = vadd.f32 %v8752, %v10172
      %v10287 = vadd.f32 %v8755, %v10175
      %v10288 = vadd.f32 %v8766, %v10186
      %v10289 = vadd.f32 %v8769, %v10189
      %v10290 = vadd.f32 %v8780, %v10200
      %v10291 = vadd.f32 %v8783, %v10203
      %v10292 = vadd.f32 %v8794, %v10214
      %v10293 = vadd.f32 %v8797, %v10217
      %v10294 = vadd.f32 %v8808, %v10228
      %v10295 = vadd.f32 %v8811, %v10231
      %v10296 = vadd.f32 %v8822, %v10242
      %v10297 = vadd.f32 %v8825, %v10245
      %v10298 = vadd.f32 %v8836, %v10256
      %v10299 = vadd.f32 %v8839, %v10259
      %v10300 = vld [vmem:[%s6] sm:$0x1]
      %v10302 = vlaneseq
      %v10303 = vshrl.u32 %v10302, 7
      %v10304 = vsub.s32 0, %v10303
      %v10305 = vrot.slane %v10300, %v10304
      %v10307 = vadd.f32 %v10268, %v10305
      %v10308 = vadd.f32 %v10269, %v10305
      %v10309 = vadd.f32 %v10270, %v10305
      %v10310 = vadd.f32 %v10271, %v10305
      %v10311 = vadd.f32 %v10272, %v10305
      %v10312 = vadd.f32 %v10273, %v10305
      %v10313 = vadd.f32 %v10274, %v10305
      %v10314 = vadd.f32 %v10275, %v10305
      %v10315 = vadd.f32 %v10276, %v10305
      %v10316 = vadd.f32 %v10277, %v10305
      %v10317 = vadd.f32 %v10278, %v10305
      %v10318 = vadd.f32 %v10279, %v10305
      %v10319 = vadd.f32 %v10280, %v10305
      %v10320 = vadd.f32 %v10281, %v10305
      %v10321 = vadd.f32 %v10282, %v10305
      %v10322 = vadd.f32 %v10283, %v10305
      %v10323 = vadd.f32 %v10284, %v10305
      %v10324 = vadd.f32 %v10285, %v10305
      %v10325 = vadd.f32 %v10286, %v10305
      %v10326 = vadd.f32 %v10287, %v10305
      %v10327 = vadd.f32 %v10288, %v10305
      %v10328 = vadd.f32 %v10289, %v10305
      %v10329 = vadd.f32 %v10290, %v10305
      %v10330 = vadd.f32 %v10291, %v10305
      %v10331 = vadd.f32 %v10292, %v10305
      %v10332 = vadd.f32 %v10293, %v10305
      %v10333 = vadd.f32 %v10294, %v10305
      %v10334 = vadd.f32 %v10295, %v10305
      %v10335 = vadd.f32 %v10296, %v10305
      %v10336 = vadd.f32 %v10297, %v10305
      %v10337 = vadd.f32 %v10298, %v10305
      %v10338 = vadd.f32 %v10299, %v10305
      %v10339 = vxor.u32 %v10307, 2147483648
      %v10340 = vxor.u32 %v10308, 2147483648
      %v10341 = vxor.u32 %v10309, 2147483648
      %v10342 = vxor.u32 %v10310, 2147483648
      %v10343 = vxor.u32 %v10311, 2147483648
      %v10344 = vxor.u32 %v10312, 2147483648
      %v10345 = vxor.u32 %v10313, 2147483648
      %v10346 = vxor.u32 %v10314, 2147483648
      %v10347 = vxor.u32 %v10315, 2147483648
      %v10348 = vxor.u32 %v10316, 2147483648
      %v10349 = vxor.u32 %v10317, 2147483648
      %v10350 = vxor.u32 %v10318, 2147483648
      %v10351 = vxor.u32 %v10319, 2147483648
      %v10352 = vxor.u32 %v10320, 2147483648
      %v10353 = vxor.u32 %v10321, 2147483648
      %v10354 = vxor.u32 %v10322, 2147483648
      %v10355 = vxor.u32 %v10323, 2147483648
      %v10356 = vxor.u32 %v10324, 2147483648
      %v10357 = vxor.u32 %v10325, 2147483648
      %v10358 = vxor.u32 %v10326, 2147483648
      %v10359 = vxor.u32 %v10327, 2147483648
      %v10360 = vxor.u32 %v10328, 2147483648
      %v10361 = vxor.u32 %v10329, 2147483648
      %v10362 = vxor.u32 %v10330, 2147483648
      %v10363 = vxor.u32 %v10331, 2147483648
      %v10364 = vxor.u32 %v10332, 2147483648
      %v10365 = vxor.u32 %v10333, 2147483648
      %v10366 = vxor.u32 %v10334, 2147483648
      %v10367 = vxor.u32 %v10335, 2147483648
      %v10368 = vxor.u32 %v10336, 2147483648
      %v10369 = vxor.u32 %v10337, 2147483648
      %v10370 = vxor.u32 %v10338, 2147483648
      %v10371 = vmul.f32 %v10339, 1.442695
      %v10372 = vpow.pop %v10371
      %v10373 = vmul.f32 %v10340, 1.442695
      %v10374 = vpow.pop %v10373
      %v10375 = vmul.f32 %v10341, 1.442695
      %v10376 = vpow.pop %v10375
      %v10377 = vmul.f32 %v10342, 1.442695
      %v10378 = vpow.pop %v10377
      %v10379 = vmul.f32 %v10343, 1.442695
      %v10380 = vpow.pop %v10379
      %v10381 = vmul.f32 %v10344, 1.442695
      %v10382 = vpow.pop %v10381
      %v10383 = vmul.f32 %v10345, 1.442695
      %v10384 = vpow.pop %v10383
      %v10385 = vmul.f32 %v10346, 1.442695
      %v10386 = vpow.pop %v10385
      %v10387 = vmul.f32 %v10347, 1.442695
      %v10388 = vpow.pop %v10387
      %v10389 = vmul.f32 %v10348, 1.442695
      %v10390 = vpow.pop %v10389
      %v10391 = vmul.f32 %v10349, 1.442695
      %v10392 = vpow.pop %v10391
      %v10393 = vmul.f32 %v10350, 1.442695
      %v10394 = vpow.pop %v10393
      %v10395 = vmul.f32 %v10351, 1.442695
      %v10396 = vpow.pop %v10395
      %v10397 = vmul.f32 %v10352, 1.442695
      %v10398 = vpow.pop %v10397
      %v10399 = vmul.f32 %v10353, 1.442695
      %v10400 = vpow.pop %v10399
      %v10401 = vmul.f32 %v10354, 1.442695
      %v10402 = vpow.pop %v10401
      %v10403 = vmul.f32 %v10355, 1.442695
      %v10404 = vpow.pop %v10403
      %v10405 = vmul.f32 %v10356, 1.442695
      %v10406 = vpow.pop %v10405
      %v10407 = vmul.f32 %v10357, 1.442695
      %v10408 = vpow.pop %v10407
      %v10409 = vmul.f32 %v10358, 1.442695
      %v10410 = vpow.pop %v10409
      %v10411 = vmul.f32 %v10359, 1.442695
      %v10412 = vpow.pop %v10411
      %v10413 = vmul.f32 %v10360, 1.442695
      %v10414 = vpow.pop %v10413
      %v10415 = vmul.f32 %v10361, 1.442695
      %v10416 = vpow.pop %v10415
      %v10417 = vmul.f32 %v10362, 1.442695
      %v10418 = vpow.pop %v10417
      %v10419 = vmul.f32 %v10363, 1.442695
      %v10420 = vpow.pop %v10419
      %v10421 = vmul.f32 %v10364, 1.442695
      %v10422 = vpow.pop %v10421
      %v10423 = vmul.f32 %v10365, 1.442695
      %v10424 = vpow.pop %v10423
      %v10425 = vmul.f32 %v10366, 1.442695
      %v10426 = vpow.pop %v10425
      %v10427 = vmul.f32 %v10367, 1.442695
      %v10428 = vpow.pop %v10427
      %v10429 = vmul.f32 %v10368, 1.442695
      %v10430 = vpow.pop %v10429
      %v10431 = vmul.f32 %v10369, 1.442695
      %v10432 = vpow.pop %v10431
      %v10433 = vmul.f32 %v10370, 1.442695
      %v10434 = vpow.pop %v10433
      %v10435 = vadd.f32 %v10372, 1.0
      %v10436 = vadd.f32 %v10374, 1.0
      %v10437 = vadd.f32 %v10376, 1.0
      %v10438 = vadd.f32 %v10378, 1.0
      %v10439 = vadd.f32 %v10380, 1.0
      %v10440 = vadd.f32 %v10382, 1.0
      %v10441 = vadd.f32 %v10384, 1.0
      %v10442 = vadd.f32 %v10386, 1.0
      %v10443 = vadd.f32 %v10388, 1.0
      %v10444 = vadd.f32 %v10390, 1.0
      %v10445 = vadd.f32 %v10392, 1.0
      %v10446 = vadd.f32 %v10394, 1.0
      %v10447 = vadd.f32 %v10396, 1.0
      %v10448 = vadd.f32 %v10398, 1.0
      %v10449 = vadd.f32 %v10400, 1.0
      %v10450 = vadd.f32 %v10402, 1.0
      %v10451 = vadd.f32 %v10404, 1.0
      %v10452 = vadd.f32 %v10406, 1.0
      %v10453 = vadd.f32 %v10408, 1.0
      %v10454 = vadd.f32 %v10410, 1.0
      %v10455 = vadd.f32 %v10412, 1.0
      %v10456 = vadd.f32 %v10414, 1.0
      %v10457 = vadd.f32 %v10416, 1.0
      %v10458 = vadd.f32 %v10418, 1.0
      %v10459 = vadd.f32 %v10420, 1.0
      %v10460 = vadd.f32 %v10422, 1.0
      %v10461 = vadd.f32 %v10424, 1.0
      %v10462 = vadd.f32 %v10426, 1.0
      %v10463 = vadd.f32 %v10428, 1.0
      %v10464 = vadd.f32 %v10430, 1.0
      %v10465 = vadd.f32 %v10432, 1.0
      %v10466 = vadd.f32 %v10434, 1.0
      %v10467 = vrcp.pop %v10435
      %v10468 = vmul.f32 1.0, %v10467
      %v10469 = vrcp.pop %v10436
      %v10470 = vmul.f32 1.0, %v10469
      %v10471 = vrcp.pop %v10437
      %v10472 = vmul.f32 1.0, %v10471
      %v10473 = vrcp.pop %v10438
      %v10474 = vmul.f32 1.0, %v10473
      %v10475 = vrcp.pop %v10439
      %v10476 = vmul.f32 1.0, %v10475
      %v10477 = vrcp.pop %v10440
      %v10478 = vmul.f32 1.0, %v10477
      %v10479 = vrcp.pop %v10441
      %v10480 = vmul.f32 1.0, %v10479
      %v10481 = vrcp.pop %v10442
      %v10482 = vmul.f32 1.0, %v10481
      %v10483 = vrcp.pop %v10443
      %v10484 = vmul.f32 1.0, %v10483
      %v10485 = vrcp.pop %v10444
      %v10486 = vmul.f32 1.0, %v10485
      %v10487 = vrcp.pop %v10445
      %v10488 = vmul.f32 1.0, %v10487
      %v10489 = vrcp.pop %v10446
      %v10490 = vmul.f32 1.0, %v10489
      %v10491 = vrcp.pop %v10447
      %v10492 = vmul.f32 1.0, %v10491
      %v10493 = vrcp.pop %v10448
      %v10494 = vmul.f32 1.0, %v10493
      %v10495 = vrcp.pop %v10449
      %v10496 = vmul.f32 1.0, %v10495
      %v10497 = vrcp.pop %v10450
      %v10498 = vmul.f32 1.0, %v10497
      %v10499 = vrcp.pop %v10451
      %v10500 = vmul.f32 1.0, %v10499
      %v10501 = vrcp.pop %v10452
      %v10502 = vmul.f32 1.0, %v10501
      %v10503 = vrcp.pop %v10453
      %v10504 = vmul.f32 1.0, %v10503
      %v10505 = vrcp.pop %v10454
      %v10506 = vmul.f32 1.0, %v10505
      %v10507 = vrcp.pop %v10455
      %v10508 = vmul.f32 1.0, %v10507
      %v10509 = vrcp.pop %v10456
      %v10510 = vmul.f32 1.0, %v10509
      %v10511 = vrcp.pop %v10457
      %v10512 = vmul.f32 1.0, %v10511
      %v10513 = vrcp.pop %v10458
      %v10514 = vmul.f32 1.0, %v10513
      %v10515 = vrcp.pop %v10459
      %v10516 = vmul.f32 1.0, %v10515
      %v10517 = vrcp.pop %v10460
      %v10518 = vmul.f32 1.0, %v10517
      %v10519 = vrcp.pop %v10461
      %v10520 = vmul.f32 1.0, %v10519
      %v10521 = vrcp.pop %v10462
      %v10522 = vmul.f32 1.0, %v10521
      %v10523 = vrcp.pop %v10463
      %v10524 = vmul.f32 1.0, %v10523
      %v10525 = vrcp.pop %v10464
      %v10526 = vmul.f32 1.0, %v10525
      %v10527 = vrcp.pop %v10465
      %v10528 = vmul.f32 1.0, %v10527
      %v10529 = vrcp.pop %v10466
      %v10530 = vmul.f32 1.0, %v10529
      %v10531 = vmul.f32 %v10307, %v10468
      %v10532 = vmul.f32 %v10308, %v10470
      %v10533 = vmul.f32 %v10309, %v10472
      %v10534 = vmul.f32 %v10310, %v10474
      %v10535 = vmul.f32 %v10311, %v10476
      %v10536 = vmul.f32 %v10312, %v10478
      %v10537 = vmul.f32 %v10313, %v10480
      %v10538 = vmul.f32 %v10314, %v10482
      %v10539 = vmul.f32 %v10315, %v10484
      %v10540 = vmul.f32 %v10316, %v10486
      %v10541 = vmul.f32 %v10317, %v10488
      %v10542 = vmul.f32 %v10318, %v10490
      %v10543 = vmul.f32 %v10319, %v10492
      %v10544 = vmul.f32 %v10320, %v10494
      %v10545 = vmul.f32 %v10321, %v10496
      %v10546 = vmul.f32 %v10322, %v10498
      %v10547 = vmul.f32 %v10323, %v10500
      %v10548 = vmul.f32 %v10324, %v10502
      %v10549 = vmul.f32 %v10325, %v10504
      %v10550 = vmul.f32 %v10326, %v10506
      %v10551 = vmul.f32 %v10327, %v10508
      %v10552 = vmul.f32 %v10328, %v10510
      %v10553 = vmul.f32 %v10329, %v10512
      %v10554 = vmul.f32 %v10330, %v10514
      %v10555 = vmul.f32 %v10331, %v10516
      %v10556 = vmul.f32 %v10332, %v10518
      %v10557 = vmul.f32 %v10333, %v10520
      %v10558 = vmul.f32 %v10334, %v10522
      %v10559 = vmul.f32 %v10335, %v10524
      %v10560 = vmul.f32 %v10336, %v10526
      %v10561 = vmul.f32 %v10337, %v10528
      %v10562 = vmul.f32 %v10338, %v10530
      %v10563 = vld [vmem:[#allocation4] sm:$0xf]
      %v10564 = vld [vmem:[#allocation4 + $0x4] sm:$0xf]
      %v10565 = vld [vmem:[#allocation4 + $0x8] sm:$0xf]
      %v10566 = vld [vmem:[#allocation4 + $0xc] sm:$0xf]
      %v10567 = vld [vmem:[#allocation4 + $0x10] sm:$0xf]
      %v10568 = vld [vmem:[#allocation4 + $0x14] sm:$0xf]
      %v10569 = vld [vmem:[#allocation4 + $0x18] sm:$0xf]
      %v10570 = vld [vmem:[#allocation4 + $0x1c] sm:$0xf]
      %v10571 = vld [vmem:[#allocation4 + $0x20] sm:$0xf]
      %v10572 = vld [vmem:[#allocation4 + $0x24] sm:$0xf]
      %v10573 = vld [vmem:[#allocation4 + $0x28] sm:$0xf]
      %v10574 = vld [vmem:[#allocation4 + $0x2c] sm:$0xf]
      %v10575 = vld [vmem:[#allocation4 + $0x30] sm:$0xf]
      %v10576 = vld [vmem:[#allocation4 + $0x34] sm:$0xf]
      %v10577 = vld [vmem:[#allocation4 + $0x38] sm:$0xf]
      %v10578 = vld [vmem:[#allocation4 + $0x3c] sm:$0xf]
      %v10579 = vld [vmem:[#allocation4 + $0x40] sm:$0xf]
      %v10580 = vld [vmem:[#allocation4 + $0x44] sm:$0xf]
      %v10581 = vld [vmem:[#allocation4 + $0x48] sm:$0xf]
      %v10582 = vld [vmem:[#allocation4 + $0x4c] sm:$0xf]
      %v10583 = vld [vmem:[#allocation4 + $0x50] sm:$0xf]
      %v10584 = vld [vmem:[#allocation4 + $0x54] sm:$0xf]
      %v10585 = vld [vmem:[#allocation4 + $0x58] sm:$0xf]
      %v10586 = vld [vmem:[#allocation4 + $0x5c] sm:$0xf]
      %v10587 = vld [vmem:[#allocation4 + $0x60] sm:$0xf]
      %v10588 = vld [vmem:[#allocation4 + $0x64] sm:$0xf]
      %v10589 = vld [vmem:[#allocation4 + $0x68] sm:$0xf]
      %v10590 = vld [vmem:[#allocation4 + $0x6c] sm:$0xf]
      %v10591 = vld [vmem:[#allocation4 + $0x70] sm:$0xf]
      %v10592 = vld [vmem:[#allocation4 + $0x74] sm:$0xf]
      %v10593 = vld [vmem:[#allocation4 + $0x78] sm:$0xf]
      %v10594 = vld [vmem:[#allocation4 + $0x7c] sm:$0xf]
      %v10595 = vunpack.c.l.bf16 %v10563
      %v10596 = vunpack.c.l.bf16 %v10564
      %v10597 = vunpack.c.l.bf16 %v10565
      %v10598 = vunpack.c.l.bf16 %v10566
      %v10599 = vunpack.c.l.bf16 %v10567
      %v10600 = vunpack.c.l.bf16 %v10568
      %v10601 = vunpack.c.l.bf16 %v10569
      %v10602 = vunpack.c.l.bf16 %v10570
      %v10603 = vunpack.c.l.bf16 %v10571
      %v10604 = vunpack.c.l.bf16 %v10572
      %v10605 = vunpack.c.l.bf16 %v10573
      %v10606 = vunpack.c.l.bf16 %v10574
      %v10607 = vunpack.c.l.bf16 %v10575
      %v10608 = vunpack.c.l.bf16 %v10576
      %v10609 = vunpack.c.l.bf16 %v10577
      %v10610 = vunpack.c.l.bf16 %v10578
      %v10611 = vunpack.c.l.bf16 %v10579
      %v10612 = vunpack.c.l.bf16 %v10580
      %v10613 = vunpack.c.l.bf16 %v10581
      %v10614 = vunpack.c.l.bf16 %v10582
      %v10615 = vunpack.c.l.bf16 %v10583
      %v10616 = vunpack.c.l.bf16 %v10584
      %v10617 = vunpack.c.l.bf16 %v10585
      %v10618 = vunpack.c.l.bf16 %v10586
      %v10619 = vunpack.c.l.bf16 %v10587
      %v10620 = vunpack.c.l.bf16 %v10588
      %v10621 = vunpack.c.l.bf16 %v10589
      %v10622 = vunpack.c.l.bf16 %v10590
      %v10623 = vunpack.c.l.bf16 %v10591
      %v10624 = vunpack.c.l.bf16 %v10592
      %v10625 = vunpack.c.l.bf16 %v10593
      %v10626 = vunpack.c.l.bf16 %v10594
      %v10627 = vadd.f32 %v10531, %v10595
      %v10628 = vadd.f32 %v10532, %v10596
      %v10629 = vadd.f32 %v10533, %v10597
      %v10630 = vadd.f32 %v10534, %v10598
      %v10631 = vadd.f32 %v10535, %v10599
      %v10632 = vadd.f32 %v10536, %v10600
      %v10633 = vadd.f32 %v10537, %v10601
      %v10634 = vadd.f32 %v10538, %v10602
      %v10635 = vadd.f32 %v10539, %v10603
      %v10636 = vadd.f32 %v10540, %v10604
      %v10637 = vadd.f32 %v10541, %v10605
      %v10638 = vadd.f32 %v10542, %v10606
      %v10639 = vadd.f32 %v10543, %v10607
      %v10640 = vadd.f32 %v10544, %v10608
      %v10641 = vadd.f32 %v10545, %v10609
      %v10642 = vadd.f32 %v10546, %v10610
      %v10643 = vadd.f32 %v10547, %v10611
      %v10644 = vadd.f32 %v10548, %v10612
      %v10645 = vadd.f32 %v10549, %v10613
      %v10646 = vadd.f32 %v10550, %v10614
      %v10647 = vadd.f32 %v10551, %v10615
      %v10648 = vadd.f32 %v10552, %v10616
      %v10649 = vadd.f32 %v10553, %v10617
      %v10650 = vadd.f32 %v10554, %v10618
      %v10651 = vadd.f32 %v10555, %v10619
      %v10652 = vadd.f32 %v10556, %v10620
      %v10653 = vadd.f32 %v10557, %v10621
      %v10654 = vadd.f32 %v10558, %v10622
      %v10655 = vadd.f32 %v10559, %v10623
      %v10656 = vadd.f32 %v10560, %v10624
      %v10657 = vadd.f32 %v10561, %v10625
      %v10658 = vadd.f32 %v10562, %v10626
      %v10659 = vpack.c.bf16 %v10628, %v10627
      %v10660 = vpack.c.bf16 %v10630, %v10629
      %v10661 = vpack.c.bf16 %v10632, %v10631
      %v10662 = vpack.c.bf16 %v10634, %v10633
      %v10663 = vpack.c.bf16 %v10636, %v10635
      %v10664 = vpack.c.bf16 %v10638, %v10637
      %v10665 = vpack.c.bf16 %v10640, %v10639
      %v10666 = vpack.c.bf16 %v10642, %v10641
      %v10667 = vpack.c.bf16 %v10644, %v10643
      %v10668 = vpack.c.bf16 %v10646, %v10645
      %v10669 = vpack.c.bf16 %v10648, %v10647
      %v10670 = vpack.c.bf16 %v10650, %v10649
      %v10671 = vpack.c.bf16 %v10652, %v10651
      %v10672 = vpack.c.bf16 %v10654, %v10653
      %v10673 = vpack.c.bf16 %v10656, %v10655
      %v10674 = vpack.c.bf16 %v10658, %v10657
      %v10691 = vunpack.c.l.b16 %v10659
      %v10692 = vunpack.c.h.b16 %v10659
      %v10693 = vunpack.c.l.b16 %v10660
      %v10694 = vunpack.c.h.b16 %v10660
      %v10695 = vunpack.c.l.b16 %v10661
      %v10696 = vunpack.c.h.b16 %v10661
      %v10697 = vunpack.c.l.b16 %v10662
      %v10698 = vunpack.c.h.b16 %v10662
      %v10699 = vunpack.c.l.b16 %v10663
      %v10700 = vunpack.c.h.b16 %v10663
      %v10701 = vunpack.c.l.b16 %v10664
      %v10702 = vunpack.c.h.b16 %v10664
      %v10703 = vunpack.c.l.b16 %v10665
      %v10704 = vunpack.c.h.b16 %v10665
      %v10705 = vunpack.c.l.b16 %v10666
      %v10706 = vunpack.c.h.b16 %v10666
      %v10707 = vunpack.c.l.b16 %v10667
      %v10708 = vunpack.c.h.b16 %v10667
      %v10709 = vunpack.c.l.b16 %v10668
      %v10710 = vunpack.c.h.b16 %v10668
      %v10711 = vunpack.c.l.b16 %v10669
      %v10712 = vunpack.c.h.b16 %v10669
      %v10713 = vunpack.c.l.b16 %v10670
      %v10714 = vunpack.c.h.b16 %v10670
      %v10715 = vunpack.c.l.b16 %v10671
      %v10716 = vunpack.c.h.b16 %v10671
      %v10717 = vunpack.c.l.b16 %v10672
      %v10718 = vunpack.c.h.b16 %v10672
      %v10719 = vunpack.c.l.b16 %v10673
      %v10720 = vunpack.c.h.b16 %v10673
      %v10721 = vunpack.c.l.b16 %v10674
      %v10722 = vunpack.c.h.b16 %v10674
      %v10723 = vpack.c.b16 %v10691, %v10691
      %v10724 = vpack.c.b16 %v10692, %v10692
      %v10725 = vpack.c.b16 %v10693, %v10693
      %v10726 = vpack.c.b16 %v10694, %v10694
      %v10727 = vpack.c.b16 %v10695, %v10695
      %v10728 = vpack.c.b16 %v10696, %v10696
      %v10729 = vpack.c.b16 %v10697, %v10697
      %v10730 = vpack.c.b16 %v10698, %v10698
      %v10731 = vpack.c.b16 %v10699, %v10699
      %v10732 = vpack.c.b16 %v10700, %v10700
      %v10733 = vpack.c.b16 %v10701, %v10701
      %v10734 = vpack.c.b16 %v10702, %v10702
      %v10735 = vpack.c.b16 %v10703, %v10703
      %v10736 = vpack.c.b16 %v10704, %v10704
      %v10737 = vpack.c.b16 %v10705, %v10705
      %v10738 = vpack.c.b16 %v10706, %v10706
      %v10739 = vpack.c.b16 %v10707, %v10707
      %v10740 = vpack.c.b16 %v10708, %v10708
      %v10741 = vpack.c.b16 %v10709, %v10709
      %v10742 = vpack.c.b16 %v10710, %v10710
      %v10743 = vpack.c.b16 %v10711, %v10711
      %v10744 = vpack.c.b16 %v10712, %v10712
      %v10745 = vpack.c.b16 %v10713, %v10713
      %v10746 = vpack.c.b16 %v10714, %v10714
      %v10747 = vpack.c.b16 %v10715, %v10715
      %v10748 = vpack.c.b16 %v10716, %v10716
      %v10749 = vpack.c.b16 %v10717, %v10717
      %v10750 = vpack.c.b16 %v10718, %v10718
      %v10751 = vpack.c.b16 %v10719, %v10719
      %v10752 = vpack.c.b16 %v10720, %v10720
      %v10753 = vpack.c.b16 %v10721, %v10721
      %v10754 = vpack.c.b16 %v10722, %v10722
      %10787 = vst.msk [vmem:[%s344] sm:$0xf] %vm334, %v10723
      %10788 = vst.msk [vmem:[%s344 + $0x4] sm:$0xf] %vm334, %v10724
      %10789 = vst.msk [vmem:[%s344 + $0x10] sm:$0xf] %vm334, %v10725
      %10790 = vst.msk [vmem:[%s344 + $0x14] sm:$0xf] %vm334, %v10726
      %10791 = vst.msk [vmem:[%s344 + $0x20] sm:$0xf] %vm334, %v10727
      %10792 = vst.msk [vmem:[%s344 + $0x24] sm:$0xf] %vm334, %v10728
      %10793 = vst.msk [vmem:[%s344 + $0x30] sm:$0xf] %vm334, %v10729
      %10794 = vst.msk [vmem:[%s344 + $0x34] sm:$0xf] %vm334, %v10730
      %10795 = vst.msk [vmem:[%s344 + $0x40] sm:$0xf] %vm334, %v10731
      %10796 = vst.msk [vmem:[%s344 + $0x44] sm:$0xf] %vm334, %v10732
      %10797 = vst.msk [vmem:[%s344 + $0x50] sm:$0xf] %vm334, %v10733
      %10798 = vst.msk [vmem:[%s344 + $0x54] sm:$0xf] %vm334, %v10734
      %10799 = vst.msk [vmem:[%s344 + $0x60] sm:$0xf] %vm334, %v10735
      %10800 = vst.msk [vmem:[%s344 + $0x64] sm:$0xf] %vm334, %v10736
      %10801 = vst.msk [vmem:[%s344 + $0x70] sm:$0xf] %vm334, %v10737
      %10802 = vst.msk [vmem:[%s344 + $0x74] sm:$0xf] %vm334, %v10738
      %10803 = vst.msk [vmem:[%s344 + $0x80] sm:$0xf] %vm334, %v10739
      %10804 = vst.msk [vmem:[%s344 + $0x84] sm:$0xf] %vm334, %v10740
      %10805 = vst.msk [vmem:[%s344 + $0x90] sm:$0xf] %vm334, %v10741
      %10806 = vst.msk [vmem:[%s344 + $0x94] sm:$0xf] %vm334, %v10742
      %10807 = vst.msk [vmem:[%s344 + $0xa0] sm:$0xf] %vm334, %v10743
      %10808 = vst.msk [vmem:[%s344 + $0xa4] sm:$0xf] %vm334, %v10744
      %10809 = vst.msk [vmem:[%s344 + $0xb0] sm:$0xf] %vm334, %v10745
      %10810 = vst.msk [vmem:[%s344 + $0xb4] sm:$0xf] %vm334, %v10746
      %10811 = vst.msk [vmem:[%s344 + $0xc0] sm:$0xf] %vm334, %v10747
      %10812 = vst.msk [vmem:[%s344 + $0xc4] sm:$0xf] %vm334, %v10748
      %10813 = vst.msk [vmem:[%s344 + $0xd0] sm:$0xf] %vm334, %v10749
      %10814 = vst.msk [vmem:[%s344 + $0xd4] sm:$0xf] %vm334, %v10750
      %10815 = vst.msk [vmem:[%s344 + $0xe0] sm:$0xf] %vm334, %v10751
      %10816 = vst.msk [vmem:[%s344 + $0xe4] sm:$0xf] %vm334, %v10752
      %10817 = vst.msk [vmem:[%s344 + $0xf0] sm:$0xf] %vm334, %v10753
      %10818 = vst.msk [vmem:[%s344 + $0xf4] sm:$0xf] %vm334, %v10754
      %v10819 = vld [vmem:[%s344] sm:$0xf]
      %v10820 = vld [vmem:[%s344 + $0x4] sm:$0xf]
      %v10821 = vld [vmem:[%s344 + $0x10] sm:$0xf]
      %v10822 = vld [vmem:[%s344 + $0x14] sm:$0xf]
      %v10823 = vld [vmem:[%s344 + $0x20] sm:$0xf]
      %v10824 = vld [vmem:[%s344 + $0x24] sm:$0xf]
      %v10825 = vld [vmem:[%s344 + $0x30] sm:$0xf]
      %v10826 = vld [vmem:[%s344 + $0x34] sm:$0xf]
      %v10827 = vld [vmem:[%s344 + $0x40] sm:$0xf]
      %v10828 = vld [vmem:[%s344 + $0x44] sm:$0xf]
      %v10829 = vld [vmem:[%s344 + $0x50] sm:$0xf]
      %v10830 = vld [vmem:[%s344 + $0x54] sm:$0xf]
      %v10831 = vld [vmem:[%s344 + $0x60] sm:$0xf]
      %v10832 = vld [vmem:[%s344 + $0x64] sm:$0xf]
      %v10833 = vld [vmem:[%s344 + $0x70] sm:$0xf]
      %v10834 = vld [vmem:[%s344 + $0x74] sm:$0xf]
      %v10835 = vld [vmem:[%s344 + $0x80] sm:$0xf]
      %v10836 = vld [vmem:[%s344 + $0x84] sm:$0xf]
      %v10837 = vld [vmem:[%s344 + $0x90] sm:$0xf]
      %v10838 = vld [vmem:[%s344 + $0x94] sm:$0xf]
      %v10839 = vld [vmem:[%s344 + $0xa0] sm:$0xf]
      %v10840 = vld [vmem:[%s344 + $0xa4] sm:$0xf]
      %v10841 = vld [vmem:[%s344 + $0xb0] sm:$0xf]
      %v10842 = vld [vmem:[%s344 + $0xb4] sm:$0xf]
      %v10843 = vld [vmem:[%s344 + $0xc0] sm:$0xf]
      %v10844 = vld [vmem:[%s344 + $0xc4] sm:$0xf]
      %v10845 = vld [vmem:[%s344 + $0xd0] sm:$0xf]
      %v10846 = vld [vmem:[%s344 + $0xd4] sm:$0xf]
      %v10847 = vld [vmem:[%s344 + $0xe0] sm:$0xf]
      %v10848 = vld [vmem:[%s344 + $0xe4] sm:$0xf]
      %v10849 = vld [vmem:[%s344 + $0xf0] sm:$0xf]
      %v10850 = vld [vmem:[%s344 + $0xf4] sm:$0xf]
      %v10851 = vld [vmem:[#allocation3] sm:$0xf]
      %v10852 = vld [vmem:[#allocation3 + $0x4] sm:$0xf]
      %v10853 = vld [vmem:[#allocation3 + $0x8] sm:$0xf]
      %v10854 = vld [vmem:[#allocation3 + $0xc] sm:$0xf]
      %v10855 = vld [vmem:[#allocation3 + $0x10] sm:$0xf]
      %v10856 = vld [vmem:[#allocation3 + $0x14] sm:$0xf]
      %v10857 = vld [vmem:[#allocation3 + $0x18] sm:$0xf]
      %v10858 = vld [vmem:[#allocation3 + $0x1c] sm:$0xf]
      %v10859 = vld [vmem:[#allocation3 + $0x20] sm:$0xf]
      %v10860 = vld [vmem:[#allocation3 + $0x24] sm:$0xf]
      %v10861 = vld [vmem:[#allocation3 + $0x28] sm:$0xf]
      %v10862 = vld [vmem:[#allocation3 + $0x2c] sm:$0xf]
      %v10863 = vld [vmem:[#allocation3 + $0x30] sm:$0xf]
      %v10864 = vld [vmem:[#allocation3 + $0x34] sm:$0xf]
      %v10865 = vld [vmem:[#allocation3 + $0x38] sm:$0xf]
      %v10866 = vld [vmem:[#allocation3 + $0x3c] sm:$0xf]
      %v10867 = vld [vmem:[#allocation3 + $0x40] sm:$0xf]
      %v10868 = vld [vmem:[#allocation3 + $0x44] sm:$0xf]
      %v10869 = vld [vmem:[#allocation3 + $0x48] sm:$0xf]
      %v10870 = vld [vmem:[#allocation3 + $0x4c] sm:$0xf]
      %v10871 = vld [vmem:[#allocation3 + $0x50] sm:$0xf]
      %v10872 = vld [vmem:[#allocation3 + $0x54] sm:$0xf]
      %v10873 = vld [vmem:[#allocation3 + $0x58] sm:$0xf]
      %v10874 = vld [vmem:[#allocation3 + $0x5c] sm:$0xf]
      %v10875 = vld [vmem:[#allocation3 + $0x60] sm:$0xf]
      %v10876 = vld [vmem:[#allocation3 + $0x64] sm:$0xf]
      %v10877 = vld [vmem:[#allocation3 + $0x68] sm:$0xf]
      %v10878 = vld [vmem:[#allocation3 + $0x6c] sm:$0xf]
      %v10879 = vld [vmem:[#allocation3 + $0x70] sm:$0xf]
      %v10880 = vld [vmem:[#allocation3 + $0x74] sm:$0xf]
      %v10881 = vld [vmem:[#allocation3 + $0x78] sm:$0xf]
      %v10882 = vld [vmem:[#allocation3 + $0x7c] sm:$0xf]
      %v10915 = vunpack.c.l.b16 %v10819
      %v10916 = vunpack.c.l.b16 %v10820
      %v10917 = vunpack.c.l.b16 %v10821
      %v10918 = vunpack.c.l.b16 %v10822
      %v10919 = vunpack.c.l.b16 %v10823
      %v10920 = vunpack.c.l.b16 %v10824
      %v10921 = vunpack.c.l.b16 %v10825
      %v10922 = vunpack.c.l.b16 %v10826
      %v10923 = vunpack.c.l.b16 %v10827
      %v10924 = vunpack.c.l.b16 %v10828
      %v10925 = vunpack.c.l.b16 %v10829
      %v10926 = vunpack.c.l.b16 %v10830
      %v10927 = vunpack.c.l.b16 %v10831
      %v10928 = vunpack.c.l.b16 %v10832
      %v10929 = vunpack.c.l.b16 %v10833
      %v10930 = vunpack.c.l.b16 %v10834
      %v10931 = vunpack.c.l.b16 %v10835
      %v10932 = vunpack.c.l.b16 %v10836
      %v10933 = vunpack.c.l.b16 %v10837
      %v10934 = vunpack.c.l.b16 %v10838
      %v10935 = vunpack.c.l.b16 %v10839
      %v10936 = vunpack.c.l.b16 %v10840
      %v10937 = vunpack.c.l.b16 %v10841
      %v10938 = vunpack.c.l.b16 %v10842
      %v10939 = vunpack.c.l.b16 %v10843
      %v10940 = vunpack.c.l.b16 %v10844
      %v10941 = vunpack.c.l.b16 %v10845
      %v10942 = vunpack.c.l.b16 %v10846
      %v10943 = vunpack.c.l.b16 %v10847
      %v10944 = vunpack.c.l.b16 %v10848
      %v10945 = vunpack.c.l.b16 %v10849
      %v10946 = vunpack.c.l.b16 %v10850
      %v10947 = vpack.c.b16 %v10916, %v10915
      %v10948 = vpack.c.b16 %v10918, %v10917
      %v10949 = vpack.c.b16 %v10920, %v10919
      %v10950 = vpack.c.b16 %v10922, %v10921
      %v10951 = vpack.c.b16 %v10924, %v10923
      %v10952 = vpack.c.b16 %v10926, %v10925
      %v10953 = vpack.c.b16 %v10928, %v10927
      %v10954 = vpack.c.b16 %v10930, %v10929
      %v10955 = vpack.c.b16 %v10932, %v10931
      %v10956 = vpack.c.b16 %v10934, %v10933
      %v10957 = vpack.c.b16 %v10936, %v10935
      %v10958 = vpack.c.b16 %v10938, %v10937
      %v10959 = vpack.c.b16 %v10940, %v10939
      %v10960 = vpack.c.b16 %v10942, %v10941
      %v10961 = vpack.c.b16 %v10944, %v10943
      %v10962 = vpack.c.b16 %v10946, %v10945
      %v10995 = vunpack.c.l.b16 %v10851
      %v10996 = vunpack.c.l.b16 %v10852
      %v10997 = vunpack.c.l.b16 %v10853
      %v10998 = vunpack.c.l.b16 %v10854
      %v10999 = vunpack.c.l.b16 %v10855
      %v11000 = vunpack.c.l.b16 %v10856
      %v11001 = vunpack.c.l.b16 %v10857
      %v11002 = vunpack.c.l.b16 %v10858
      %v11003 = vunpack.c.l.b16 %v10859
      %v11004 = vunpack.c.l.b16 %v10860
      %v11005 = vunpack.c.l.b16 %v10861
      %v11006 = vunpack.c.l.b16 %v10862
      %v11007 = vunpack.c.l.b16 %v10863
      %v11008 = vunpack.c.l.b16 %v10864
      %v11009 = vunpack.c.l.b16 %v10865
      %v11010 = vunpack.c.l.b16 %v10866
      %v11011 = vunpack.c.l.b16 %v10867
      %v11012 = vunpack.c.l.b16 %v10868
      %v11013 = vunpack.c.l.b16 %v10869
      %v11014 = vunpack.c.l.b16 %v10870
      %v11015 = vunpack.c.l.b16 %v10871
      %v11016 = vunpack.c.l.b16 %v10872
      %v11017 = vunpack.c.l.b16 %v10873
      %v11018 = vunpack.c.l.b16 %v10874
      %v11019 = vunpack.c.l.b16 %v10875
      %v11020 = vunpack.c.l.b16 %v10876
      %v11021 = vunpack.c.l.b16 %v10877
      %v11022 = vunpack.c.l.b16 %v10878
      %v11023 = vunpack.c.l.b16 %v10879
      %v11024 = vunpack.c.l.b16 %v10880
      %v11025 = vunpack.c.l.b16 %v10881
      %v11026 = vunpack.c.l.b16 %v10882
      %v11027 = vpack.c.b16 %v10996, %v10995
      %v11028 = vpack.c.b16 %v10998, %v10997
      %v11029 = vpack.c.b16 %v11000, %v10999
      %v11030 = vpack.c.b16 %v11002, %v11001
      %v11031 = vpack.c.b16 %v11004, %v11003
      %v11032 = vpack.c.b16 %v11006, %v11005
      %v11033 = vpack.c.b16 %v11008, %v11007
      %v11034 = vpack.c.b16 %v11010, %v11009
      %v11035 = vpack.c.b16 %v11012, %v11011
      %v11036 = vpack.c.b16 %v11014, %v11013
      %v11037 = vpack.c.b16 %v11016, %v11015
      %v11038 = vpack.c.b16 %v11018, %v11017
      %v11039 = vpack.c.b16 %v11020, %v11019
      %v11040 = vpack.c.b16 %v11022, %v11021
      %v11041 = vpack.c.b16 %v11024, %v11023
      %v11042 = vpack.c.b16 %v11026, %v11025
      %11043 = vrot.lane.b32.xlu0 %v11027, 4
      %v11044 = vpop.permute.xlu0 %11043
      %11045 = vrot.lane.b32.xlu0 %v11028, 4
      %v11046 = vpop.permute.xlu0 %11045
      %11047 = vrot.lane.b32.xlu0 %v11029, 4
      %v11048 = vpop.permute.xlu0 %11047
      %11049 = vrot.lane.b32.xlu0 %v11030, 4
      %v11050 = vpop.permute.xlu0 %11049
      %11051 = vrot.lane.b32.xlu0 %v11031, 4
      %v11052 = vpop.permute.xlu0 %11051
      %11053 = vrot.lane.b32.xlu0 %v11032, 4
      %v11054 = vpop.permute.xlu0 %11053
      %11055 = vrot.lane.b32.xlu0 %v11033, 4
      %v11056 = vpop.permute.xlu0 %11055
      %11057 = vrot.lane.b32.xlu0 %v11034, 4
      %v11058 = vpop.permute.xlu0 %11057
      %11059 = vrot.lane.b32.xlu0 %v11035, 4
      %v11060 = vpop.permute.xlu0 %11059
      %11061 = vrot.lane.b32.xlu0 %v11036, 4
      %v11062 = vpop.permute.xlu0 %11061
      %11063 = vrot.lane.b32.xlu0 %v11037, 4
      %v11064 = vpop.permute.xlu0 %11063
      %11065 = vrot.lane.b32.xlu0 %v11038, 4
      %v11066 = vpop.permute.xlu0 %11065
      %11067 = vrot.lane.b32.xlu0 %v11039, 4
      %v11068 = vpop.permute.xlu0 %11067
      %11069 = vrot.lane.b32.xlu0 %v11040, 4
      %v11070 = vpop.permute.xlu0 %11069
      %11071 = vrot.lane.b32.xlu0 %v11041, 4
      %v11072 = vpop.permute.xlu0 %11071
      %11073 = vrot.lane.b32.xlu0 %v11042, 4
      %v11074 = vpop.permute.xlu0 %11073
      %v11077 = vsel %vm2187, %v10947, %v11044
      %v11080 = vsel %vm2187, %v10948, %v11046
      %v11083 = vsel %vm2187, %v10949, %v11048
      %v11086 = vsel %vm2187, %v10950, %v11050
      %v11089 = vsel %vm2187, %v10951, %v11052
      %v11092 = vsel %vm2187, %v10952, %v11054
      %v11095 = vsel %vm2187, %v10953, %v11056
      %v11098 = vsel %vm2187, %v10954, %v11058
      %v11101 = vsel %vm2187, %v10955, %v11060
      %v11104 = vsel %vm2187, %v10956, %v11062
      %v11107 = vsel %vm2187, %v10957, %v11064
      %v11110 = vsel %vm2187, %v10958, %v11066
      %v11113 = vsel %vm2187, %v10959, %v11068
      %v11116 = vsel %vm2187, %v10960, %v11070
      %v11119 = vsel %vm2187, %v10961, %v11072
      %v11122 = vsel %vm2187, %v10962, %v11074
      %v11123 = vld [vmem:[%s7] sm:$0xf]
      %v11124 = vld [vmem:[%s8] sm:$0x1]
      %v11126 = vlaneseq
      %v11127 = vshrl.u32 %v11126, 7
      %v11128 = vsub.s32 0, %v11127
      %v11129 = vrot.slane %v11124, %v11128
      %v11131 = vsel %vm497, %v11077, 0
      %v11133 = vsel %vm497, %v11080, 0
      %v11135 = vsel %vm497, %v11083, 0
      %v11137 = vsel %vm497, %v11086, 0
      %v11139 = vsel %vm497, %v11089, 0
      %v11141 = vsel %vm497, %v11092, 0
      %v11143 = vsel %vm497, %v11095, 0
      %v11145 = vsel %vm497, %v11098, 0
      %v11147 = vsel %vm497, %v11101, 0
      %v11149 = vsel %vm497, %v11104, 0
      %v11151 = vsel %vm497, %v11107, 0
      %v11153 = vsel %vm497, %v11110, 0
      %v11155 = vsel %vm497, %v11113, 0
      %v11157 = vsel %vm497, %v11116, 0
      %v11159 = vsel %vm497, %v11119, 0
      %v11161 = vsel %vm497, %v11122, 0
      %v11164 = vsel %vm546, %v11123, 0
      %11166 = vmatprep.subr.bf16.mxu0 0
      %11167 = vmatpush1.bf16.msra.mxu0 0
      %11168 = vmatprep.subr.bf16.mxu0 0
      %11169 = vmatpush1.bf16.msra.mxu0 0
      %11170 = vmatprep.subr.bf16.mxu0 0
      %11171 = vmatpush1.bf16.msra.mxu0 0
      %11172 = vmatprep.subr.bf16.mxu0 0
      %11173 = vmatpush1.bf16.msra.mxu0 0
      %11174 = vmatprep.subr.bf16.mxu0 0
      %11175 = vmatpush1.bf16.msra.mxu0 0
      %11176 = vmatprep.subr.bf16.mxu0 0
      %11177 = vmatpush1.bf16.msra.mxu0 0
      %11178 = vmatprep.subr.bf16.mxu0 0
      %11179 = vmatpush1.bf16.msra.mxu0 0
      %11180 = vmatprep.subr.bf16.mxu0 0
      %11181 = vmatpush1.bf16.msra.mxu0 %v11164
      %11182 = vmatprep.subr.bf16.mxu0 0
      %11183 = vmatpush2.bf16.msra.mxu0 0
      %11184 = vmatprep.subr.bf16.mxu0 0
      %11185 = vmatpush2.bf16.msra.mxu0 0
      %11186 = vmatprep.subr.bf16.mxu0 0
      %11187 = vmatpush2.bf16.msra.mxu0 0
      %11188 = vmatprep.subr.bf16.mxu0 0
      %11189 = vmatpush2.bf16.msra.mxu0 0
      %11190 = vmatprep.subr.bf16.mxu0 0
      %11191 = vmatpush2.bf16.msra.mxu0 0
      %11192 = vmatprep.subr.bf16.mxu0 0
      %11193 = vmatpush2.bf16.msra.mxu0 0
      %11194 = vmatprep.subr.bf16.mxu0 0
      %11195 = vmatpush2.bf16.msra.mxu0 0
      %11196 = vmatprep.subr.bf16.mxu0 0
      %11197 = vmatpush2.bf16.msra.mxu0 0
      %11198 = vmatprep.mubr.bf16.mxu0 0
      %11199 = vmatmul.mubr.bf16.gmra.mxu0 %v11131
      %v11200 = vpop.f32.mrf.mxu0
      %v11201 = vadd.f32 %v11129, %v11200
      %v11202 = vpop.f32.mrf.mxu0
      %v11203 = vpop.f32.mrf.mxu0
      %v11204 = vadd.f32 %v11129, %v11203
      %v11205 = vpop.f32.mrf.mxu0
      %11206 = vmatprep.mubr.bf16.mxu0 0
      %11207 = vmatmul.mubr.bf16.gmra.mxu0 %v11133
      %v11208 = vpop.f32.mrf.mxu0
      %v11209 = vadd.f32 %v11129, %v11208
      %v11210 = vpop.f32.mrf.mxu0
      %v11211 = vpop.f32.mrf.mxu0
      %v11212 = vadd.f32 %v11129, %v11211
      %v11213 = vpop.f32.mrf.mxu0
      %11214 = vmatprep.mubr.bf16.mxu0 0
      %11215 = vmatmul.mubr.bf16.gmra.mxu0 %v11135
      %v11216 = vpop.f32.mrf.mxu0
      %v11217 = vadd.f32 %v11129, %v11216
      %v11218 = vpop.f32.mrf.mxu0
      %v11219 = vpop.f32.mrf.mxu0
      %v11220 = vadd.f32 %v11129, %v11219
      %v11221 = vpop.f32.mrf.mxu0
      %11222 = vmatprep.mubr.bf16.mxu0 0
      %11223 = vmatmul.mubr.bf16.gmra.mxu0 %v11137
      %v11224 = vpop.f32.mrf.mxu0
      %v11225 = vadd.f32 %v11129, %v11224
      %v11226 = vpop.f32.mrf.mxu0
      %v11227 = vpop.f32.mrf.mxu0
      %v11228 = vadd.f32 %v11129, %v11227
      %v11229 = vpop.f32.mrf.mxu0
      %11230 = vmatprep.mubr.bf16.mxu0 0
      %11231 = vmatmul.mubr.bf16.gmra.mxu0 %v11139
      %v11232 = vpop.f32.mrf.mxu0
      %v11233 = vadd.f32 %v11129, %v11232
      %v11234 = vpop.f32.mrf.mxu0
      %v11235 = vpop.f32.mrf.mxu0
      %v11236 = vadd.f32 %v11129, %v11235
      %v11237 = vpop.f32.mrf.mxu0
      %11238 = vmatprep.mubr.bf16.mxu0 0
      %11239 = vmatmul.mubr.bf16.gmra.mxu0 %v11141
      %v11240 = vpop.f32.mrf.mxu0
      %v11241 = vadd.f32 %v11129, %v11240
      %v11242 = vpop.f32.mrf.mxu0
      %v11243 = vpop.f32.mrf.mxu0
      %v11244 = vadd.f32 %v11129, %v11243
      %v11245 = vpop.f32.mrf.mxu0
      %11246 = vmatprep.mubr.bf16.mxu0 0
      %11247 = vmatmul.mubr.bf16.gmra.mxu0 %v11143
      %v11248 = vpop.f32.mrf.mxu0
      %v11249 = vadd.f32 %v11129, %v11248
      %v11250 = vpop.f32.mrf.mxu0
      %v11251 = vpop.f32.mrf.mxu0
      %v11252 = vadd.f32 %v11129, %v11251
      %v11253 = vpop.f32.mrf.mxu0
      %11254 = vmatprep.mubr.bf16.mxu0 0
      %11255 = vmatmul.mubr.bf16.gmra.mxu0 %v11145
      %v11256 = vpop.f32.mrf.mxu0
      %v11257 = vadd.f32 %v11129, %v11256
      %v11258 = vpop.f32.mrf.mxu0
      %v11259 = vpop.f32.mrf.mxu0
      %v11260 = vadd.f32 %v11129, %v11259
      %v11261 = vpop.f32.mrf.mxu0
      %11262 = vmatprep.mubr.bf16.mxu0 0
      %11263 = vmatmul.mubr.bf16.gmra.mxu0 %v11147
      %v11264 = vpop.f32.mrf.mxu0
      %v11265 = vadd.f32 %v11129, %v11264
      %v11266 = vpop.f32.mrf.mxu0
      %v11267 = vpop.f32.mrf.mxu0
      %v11268 = vadd.f32 %v11129, %v11267
      %v11269 = vpop.f32.mrf.mxu0
      %11270 = vmatprep.mubr.bf16.mxu0 0
      %11271 = vmatmul.mubr.bf16.gmra.mxu0 %v11149
      %v11272 = vpop.f32.mrf.mxu0
      %v11273 = vadd.f32 %v11129, %v11272
      %v11274 = vpop.f32.mrf.mxu0
      %v11275 = vpop.f32.mrf.mxu0
      %v11276 = vadd.f32 %v11129, %v11275
      %v11277 = vpop.f32.mrf.mxu0
      %11278 = vmatprep.mubr.bf16.mxu0 0
      %11279 = vmatmul.mubr.bf16.gmra.mxu0 %v11151
      %v11280 = vpop.f32.mrf.mxu0
      %v11281 = vadd.f32 %v11129, %v11280
      %v11282 = vpop.f32.mrf.mxu0
      %v11283 = vpop.f32.mrf.mxu0
      %v11284 = vadd.f32 %v11129, %v11283
      %v11285 = vpop.f32.mrf.mxu0
      %11286 = vmatprep.mubr.bf16.mxu0 0
      %11287 = vmatmul.mubr.bf16.gmra.mxu0 %v11153
      %v11288 = vpop.f32.mrf.mxu0
      %v11289 = vadd.f32 %v11129, %v11288
      %v11290 = vpop.f32.mrf.mxu0
      %v11291 = vpop.f32.mrf.mxu0
      %v11292 = vadd.f32 %v11129, %v11291
      %v11293 = vpop.f32.mrf.mxu0
      %11294 = vmatprep.mubr.bf16.mxu0 0
      %11295 = vmatmul.mubr.bf16.gmra.mxu0 %v11155
      %v11296 = vpop.f32.mrf.mxu0
      %v11297 = vadd.f32 %v11129, %v11296
      %v11298 = vpop.f32.mrf.mxu0
      %v11299 = vpop.f32.mrf.mxu0
      %v11300 = vadd.f32 %v11129, %v11299
      %v11301 = vpop.f32.mrf.mxu0
      %11302 = vmatprep.mubr.bf16.mxu0 0
      %11303 = vmatmul.mubr.bf16.gmra.mxu0 %v11157
      %v11304 = vpop.f32.mrf.mxu0
      %v11305 = vadd.f32 %v11129, %v11304
      %v11306 = vpop.f32.mrf.mxu0
      %v11307 = vpop.f32.mrf.mxu0
      %v11308 = vadd.f32 %v11129, %v11307
      %v11309 = vpop.f32.mrf.mxu0
      %11310 = vmatprep.mubr.bf16.mxu0 0
      %11311 = vmatmul.mubr.bf16.gmra.mxu0 %v11159
      %v11312 = vpop.f32.mrf.mxu0
      %v11313 = vadd.f32 %v11129, %v11312
      %v11314 = vpop.f32.mrf.mxu0
      %v11315 = vpop.f32.mrf.mxu0
      %v11316 = vadd.f32 %v11129, %v11315
      %v11317 = vpop.f32.mrf.mxu0
      %11318 = vmatprep.mubr.bf16.mxu0 0
      %11319 = vmatmul.mubr.bf16.gmra.mxu0 %v11161
      %v11320 = vpop.f32.mrf.mxu0
      %v11321 = vadd.f32 %v11129, %v11320
      %v11322 = vpop.f32.mrf.mxu0
      %v11323 = vpop.f32.mrf.mxu0
      %v11324 = vadd.f32 %v11129, %v11323
      %v11325 = vpop.f32.mrf.mxu0
      %11326 = vdwg.mxu0
      %v11327 = vxor.u32 %v11201, 2147483648
      %v11328 = vxor.u32 %v11204, 2147483648
      %v11329 = vxor.u32 %v11209, 2147483648
      %v11330 = vxor.u32 %v11212, 2147483648
      %v11331 = vxor.u32 %v11217, 2147483648
      %v11332 = vxor.u32 %v11220, 2147483648
      %v11333 = vxor.u32 %v11225, 2147483648
      %v11334 = vxor.u32 %v11228, 2147483648
      %v11335 = vxor.u32 %v11233, 2147483648
      %v11336 = vxor.u32 %v11236, 2147483648
      %v11337 = vxor.u32 %v11241, 2147483648
      %v11338 = vxor.u32 %v11244, 2147483648
      %v11339 = vxor.u32 %v11249, 2147483648
      %v11340 = vxor.u32 %v11252, 2147483648
      %v11341 = vxor.u32 %v11257, 2147483648
      %v11342 = vxor.u32 %v11260, 2147483648
      %v11343 = vxor.u32 %v11265, 2147483648
      %v11344 = vxor.u32 %v11268, 2147483648
      %v11345 = vxor.u32 %v11273, 2147483648
      %v11346 = vxor.u32 %v11276, 2147483648
      %v11347 = vxor.u32 %v11281, 2147483648
      %v11348 = vxor.u32 %v11284, 2147483648
      %v11349 = vxor.u32 %v11289, 2147483648
      %v11350 = vxor.u32 %v11292, 2147483648
      %v11351 = vxor.u32 %v11297, 2147483648
      %v11352 = vxor.u32 %v11300, 2147483648
      %v11353 = vxor.u32 %v11305, 2147483648
      %v11354 = vxor.u32 %v11308, 2147483648
      %v11355 = vxor.u32 %v11313, 2147483648
      %v11356 = vxor.u32 %v11316, 2147483648
      %v11357 = vxor.u32 %v11321, 2147483648
      %v11358 = vxor.u32 %v11324, 2147483648
      %v11359 = vmul.f32 %v11327, 1.442695
      %v11360 = vpow.pop %v11359
      %v11361 = vmul.f32 %v11328, 1.442695
      %v11362 = vpow.pop %v11361
      %v11363 = vmul.f32 %v11329, 1.442695
      %v11364 = vpow.pop %v11363
      %v11365 = vmul.f32 %v11330, 1.442695
      %v11366 = vpow.pop %v11365
      %v11367 = vmul.f32 %v11331, 1.442695
      %v11368 = vpow.pop %v11367
      %v11369 = vmul.f32 %v11332, 1.442695
      %v11370 = vpow.pop %v11369
      %v11371 = vmul.f32 %v11333, 1.442695
      %v11372 = vpow.pop %v11371
      %v11373 = vmul.f32 %v11334, 1.442695
      %v11374 = vpow.pop %v11373
      %v11375 = vmul.f32 %v11335, 1.442695
      %v11376 = vpow.pop %v11375
      %v11377 = vmul.f32 %v11336, 1.442695
      %v11378 = vpow.pop %v11377
      %v11379 = vmul.f32 %v11337, 1.442695
      %v11380 = vpow.pop %v11379
      %v11381 = vmul.f32 %v11338, 1.442695
      %v11382 = vpow.pop %v11381
      %v11383 = vmul.f32 %v11339, 1.442695
      %v11384 = vpow.pop %v11383
      %v11385 = vmul.f32 %v11340, 1.442695
      %v11386 = vpow.pop %v11385
      %v11387 = vmul.f32 %v11341, 1.442695
      %v11388 = vpow.pop %v11387
      %v11389 = vmul.f32 %v11342, 1.442695
      %v11390 = vpow.pop %v11389
      %v11391 = vmul.f32 %v11343, 1.442695
      %v11392 = vpow.pop %v11391
      %v11393 = vmul.f32 %v11344, 1.442695
      %v11394 = vpow.pop %v11393
      %v11395 = vmul.f32 %v11345, 1.442695
      %v11396 = vpow.pop %v11395
      %v11397 = vmul.f32 %v11346, 1.442695
      %v11398 = vpow.pop %v11397
      %v11399 = vmul.f32 %v11347, 1.442695
      %v11400 = vpow.pop %v11399
      %v11401 = vmul.f32 %v11348, 1.442695
      %v11402 = vpow.pop %v11401
      %v11403 = vmul.f32 %v11349, 1.442695
      %v11404 = vpow.pop %v11403
      %v11405 = vmul.f32 %v11350, 1.442695
      %v11406 = vpow.pop %v11405
      %v11407 = vmul.f32 %v11351, 1.442695
      %v11408 = vpow.pop %v11407
      %v11409 = vmul.f32 %v11352, 1.442695
      %v11410 = vpow.pop %v11409
      %v11411 = vmul.f32 %v11353, 1.442695
      %v11412 = vpow.pop %v11411
      %v11413 = vmul.f32 %v11354, 1.442695
      %v11414 = vpow.pop %v11413
      %v11415 = vmul.f32 %v11355, 1.442695
      %v11416 = vpow.pop %v11415
      %v11417 = vmul.f32 %v11356, 1.442695
      %v11418 = vpow.pop %v11417
      %v11419 = vmul.f32 %v11357, 1.442695
      %v11420 = vpow.pop %v11419
      %v11421 = vmul.f32 %v11358, 1.442695
      %v11422 = vpow.pop %v11421
      %v11423 = vadd.f32 %v11360, 1.0
      %v11424 = vadd.f32 %v11362, 1.0
      %v11425 = vadd.f32 %v11364, 1.0
      %v11426 = vadd.f32 %v11366, 1.0
      %v11427 = vadd.f32 %v11368, 1.0
      %v11428 = vadd.f32 %v11370, 1.0
      %v11429 = vadd.f32 %v11372, 1.0
      %v11430 = vadd.f32 %v11374, 1.0
      %v11431 = vadd.f32 %v11376, 1.0
      %v11432 = vadd.f32 %v11378, 1.0
      %v11433 = vadd.f32 %v11380, 1.0
      %v11434 = vadd.f32 %v11382, 1.0
      %v11435 = vadd.f32 %v11384, 1.0
      %v11436 = vadd.f32 %v11386, 1.0
      %v11437 = vadd.f32 %v11388, 1.0
      %v11438 = vadd.f32 %v11390, 1.0
      %v11439 = vadd.f32 %v11392, 1.0
      %v11440 = vadd.f32 %v11394, 1.0
      %v11441 = vadd.f32 %v11396, 1.0
      %v11442 = vadd.f32 %v11398, 1.0
      %v11443 = vadd.f32 %v11400, 1.0
      %v11444 = vadd.f32 %v11402, 1.0
      %v11445 = vadd.f32 %v11404, 1.0
      %v11446 = vadd.f32 %v11406, 1.0
      %v11447 = vadd.f32 %v11408, 1.0
      %v11448 = vadd.f32 %v11410, 1.0
      %v11449 = vadd.f32 %v11412, 1.0
      %v11450 = vadd.f32 %v11414, 1.0
      %v11451 = vadd.f32 %v11416, 1.0
      %v11452 = vadd.f32 %v11418, 1.0
      %v11453 = vadd.f32 %v11420, 1.0
      %v11454 = vadd.f32 %v11422, 1.0
      %v11455 = vrcp.pop %v11423
      %v11456 = vmul.f32 1.0, %v11455
      %v11457 = vrcp.pop %v11424
      %v11458 = vmul.f32 1.0, %v11457
      %v11459 = vrcp.pop %v11425
      %v11460 = vmul.f32 1.0, %v11459
      %v11461 = vrcp.pop %v11426
      %v11462 = vmul.f32 1.0, %v11461
      %v11463 = vrcp.pop %v11427
      %v11464 = vmul.f32 1.0, %v11463
      %v11465 = vrcp.pop %v11428
      %v11466 = vmul.f32 1.0, %v11465
      %v11467 = vrcp.pop %v11429
      %v11468 = vmul.f32 1.0, %v11467
      %v11469 = vrcp.pop %v11430
      %v11470 = vmul.f32 1.0, %v11469
      %v11471 = vrcp.pop %v11431
      %v11472 = vmul.f32 1.0, %v11471
      %v11473 = vrcp.pop %v11432
      %v11474 = vmul.f32 1.0, %v11473
      %v11475 = vrcp.pop %v11433
      %v11476 = vmul.f32 1.0, %v11475
      %v11477 = vrcp.pop %v11434
      %v11478 = vmul.f32 1.0, %v11477
      %v11479 = vrcp.pop %v11435
      %v11480 = vmul.f32 1.0, %v11479
      %v11481 = vrcp.pop %v11436
      %v11482 = vmul.f32 1.0, %v11481
      %v11483 = vrcp.pop %v11437
      %v11484 = vmul.f32 1.0, %v11483
      %v11485 = vrcp.pop %v11438
      %v11486 = vmul.f32 1.0, %v11485
      %v11487 = vrcp.pop %v11439
      %v11488 = vmul.f32 1.0, %v11487
      %v11489 = vrcp.pop %v11440
      %v11490 = vmul.f32 1.0, %v11489
      %v11491 = vrcp.pop %v11441
      %v11492 = vmul.f32 1.0, %v11491
      %v11493 = vrcp.pop %v11442
      %v11494 = vmul.f32 1.0, %v11493
      %v11495 = vrcp.pop %v11443
      %v11496 = vmul.f32 1.0, %v11495
      %v11497 = vrcp.pop %v11444
      %v11498 = vmul.f32 1.0, %v11497
      %v11499 = vrcp.pop %v11445
      %v11500 = vmul.f32 1.0, %v11499
      %v11501 = vrcp.pop %v11446
      %v11502 = vmul.f32 1.0, %v11501
      %v11503 = vrcp.pop %v11447
      %v11504 = vmul.f32 1.0, %v11503
      %v11505 = vrcp.pop %v11448
      %v11506 = vmul.f32 1.0, %v11505
      %v11507 = vrcp.pop %v11449
      %v11508 = vmul.f32 1.0, %v11507
      %v11509 = vrcp.pop %v11450
      %v11510 = vmul.f32 1.0, %v11509
      %v11511 = vrcp.pop %v11451
      %v11512 = vmul.f32 1.0, %v11511
      %v11513 = vrcp.pop %v11452
      %v11514 = vmul.f32 1.0, %v11513
      %v11515 = vrcp.pop %v11453
      %v11516 = vmul.f32 1.0, %v11515
      %v11517 = vrcp.pop %v11454
      %v11518 = vmul.f32 1.0, %v11517
      %v11519 = vmul.f32 %v11201, %v11456
      %v11520 = vmul.f32 %v11204, %v11458
      %v11521 = vmul.f32 %v11209, %v11460
      %v11522 = vmul.f32 %v11212, %v11462
      %v11523 = vmul.f32 %v11217, %v11464
      %v11524 = vmul.f32 %v11220, %v11466
      %v11525 = vmul.f32 %v11225, %v11468
      %v11526 = vmul.f32 %v11228, %v11470
      %v11527 = vmul.f32 %v11233, %v11472
      %v11528 = vmul.f32 %v11236, %v11474
      %v11529 = vmul.f32 %v11241, %v11476
      %v11530 = vmul.f32 %v11244, %v11478
      %v11531 = vmul.f32 %v11249, %v11480
      %v11532 = vmul.f32 %v11252, %v11482
      %v11533 = vmul.f32 %v11257, %v11484
      %v11534 = vmul.f32 %v11260, %v11486
      %v11535 = vmul.f32 %v11265, %v11488
      %v11536 = vmul.f32 %v11268, %v11490
      %v11537 = vmul.f32 %v11273, %v11492
      %v11538 = vmul.f32 %v11276, %v11494
      %v11539 = vmul.f32 %v11281, %v11496
      %v11540 = vmul.f32 %v11284, %v11498
      %v11541 = vmul.f32 %v11289, %v11500
      %v11542 = vmul.f32 %v11292, %v11502
      %v11543 = vmul.f32 %v11297, %v11504
      %v11544 = vmul.f32 %v11300, %v11506
      %v11545 = vmul.f32 %v11305, %v11508
      %v11546 = vmul.f32 %v11308, %v11510
      %v11547 = vmul.f32 %v11313, %v11512
      %v11548 = vmul.f32 %v11316, %v11514
      %v11549 = vmul.f32 %v11321, %v11516
      %v11550 = vmul.f32 %v11324, %v11518
      %11551 = vst.msk [vmem:[%s332] sm:$0xff] %vm497, %v11519
      %11552 = vst.msk [vmem:[%s332 + $0x8] sm:$0xff] %vm497, %v11520
      %11553 = vst.msk [vmem:[%s332 + $0x10] sm:$0xff] %vm497, %v11521
      %11554 = vst.msk [vmem:[%s332 + $0x18] sm:$0xff] %vm497, %v11522
      %11555 = vst.msk [vmem:[%s332 + $0x20] sm:$0xff] %vm497, %v11523
      %11556 = vst.msk [vmem:[%s332 + $0x28] sm:$0xff] %vm497, %v11524
      %11557 = vst.msk [vmem:[%s332 + $0x30] sm:$0xff] %vm497, %v11525
      %11558 = vst.msk [vmem:[%s332 + $0x38] sm:$0xff] %vm497, %v11526
      %11559 = vst.msk [vmem:[%s332 + $0x40] sm:$0xff] %vm497, %v11527
      %11560 = vst.msk [vmem:[%s332 + $0x48] sm:$0xff] %vm497, %v11528
      %11561 = vst.msk [vmem:[%s332 + $0x50] sm:$0xff] %vm497, %v11529
      %11562 = vst.msk [vmem:[%s332 + $0x58] sm:$0xff] %vm497, %v11530
      %11563 = vst.msk [vmem:[%s332 + $0x60] sm:$0xff] %vm497, %v11531
      %11564 = vst.msk [vmem:[%s332 + $0x68] sm:$0xff] %vm497, %v11532
      %11565 = vst.msk [vmem:[%s332 + $0x70] sm:$0xff] %vm497, %v11533
      %11566 = vst.msk [vmem:[%s332 + $0x78] sm:$0xff] %vm497, %v11534
      %11567 = vst.msk [vmem:[%s332 + $0x80] sm:$0xff] %vm497, %v11535
      %11568 = vst.msk [vmem:[%s332 + $0x88] sm:$0xff] %vm497, %v11536
      %11569 = vst.msk [vmem:[%s332 + $0x90] sm:$0xff] %vm497, %v11537
      %11570 = vst.msk [vmem:[%s332 + $0x98] sm:$0xff] %vm497, %v11538
      %11571 = vst.msk [vmem:[%s332 + $0xa0] sm:$0xff] %vm497, %v11539
      %11572 = vst.msk [vmem:[%s332 + $0xa8] sm:$0xff] %vm497, %v11540
      %11573 = vst.msk [vmem:[%s332 + $0xb0] sm:$0xff] %vm497, %v11541
      %11574 = vst.msk [vmem:[%s332 + $0xb8] sm:$0xff] %vm497, %v11542
      %11575 = vst.msk [vmem:[%s332 + $0xc0] sm:$0xff] %vm497, %v11543
      %11576 = vst.msk [vmem:[%s332 + $0xc8] sm:$0xff] %vm497, %v11544
      %11577 = vst.msk [vmem:[%s332 + $0xd0] sm:$0xff] %vm497, %v11545
      %11578 = vst.msk [vmem:[%s332 + $0xd8] sm:$0xff] %vm497, %v11546
      %11579 = vst.msk [vmem:[%s332 + $0xe0] sm:$0xff] %vm497, %v11547
      %11580 = vst.msk [vmem:[%s332 + $0xe8] sm:$0xff] %vm497, %v11548
      %11581 = vst.msk [vmem:[%s332 + $0xf0] sm:$0xff] %vm497, %v11549
      %11582 = vst.msk [vmem:[%s332 + $0xf8] sm:$0xff] %vm497, %v11550
      %p11583 = scmp.lt.s32.totalorder %s20, 1
      %s11584 = scalar_select %p11583, %s20, 1
      %s11585 = smul.addr %s11584, 32
      %s11586 = smul.addr %s11585, 8
      %s11587 = scalar_lea.vmem %s9, %s11586
      // Predicated region
      $region57: #{tpu_custom_call.1} parent=55 // pred_check
        %p11588 = pneg %p232
      $region58: #{tpu_custom_call.1} parent=55 // pred_check_branch
        %11590 = sbr.rel (%p11588) target = $region60
      $region59: #{tpu_custom_call.1} parent=55 // pred_region
        _
      $region60: #{tpu_custom_call.1} parent=55 // pred_fallthru
        _
    $region56: #{tpu_custom_call.1} parent=5 // pred_fallthru
      _
    %p11591 = scmp.le.s32.totalorder 2, %s15
    // Predicated region
    $region61: #{tpu_custom_call.1} parent=5 // pred_check
      %p11592 = pneg %p11591
    $region62: #{tpu_custom_call.1} parent=5 // pred_check_branch
      %11594 = sbr.rel (%p11592) target = $region64
    $region63: #{tpu_custom_call.1} parent=5 // pred_region
      %s11595 = ssub.s32 %s15, 2
      // Predicated region
      $region65: #{tpu_custom_call.1} parent=63 // pred_check
        %p11596 = pneg %p238
      $region66: #{tpu_custom_call.1} parent=63 // pred_check_branch
        %11598 = sbr.rel (%p11596) target = $region68
      $region67: #{tpu_custom_call.1} parent=63 // pred_region
        %p11599 = scmp.lt.s32.totalorder %s21, 1
        %s11600 = scalar_select %p11599, %s21, 1
        %s11601 = smul.addr %s11600, 32
        %s11602 = smul.addr %s11601, 8
        %s11603 = scalar_lea.vmem %s9, %s11602
      $region68: #{tpu_custom_call.1} parent=63 // pred_fallthru
        _
    $region64: #{tpu_custom_call.1} parent=5 // pred_fallthru
      _
  $region6: #{tpu_custom_call.1} parent=0 // loop_footer
    %s19 = sadd.s32 1, %s15
  $region7: #{tpu_custom_call.1} parent=0 // loop_footer_branch
    %14 = sbr.rel target = $region3
  $region8: #{tpu_custom_call.1} parent=0 // loop_exit
    _

</llo_original>
